<compile_context>
chip_gen: v7x
topology: tpu7x:2x2x1
jax: 0.10.0
libtpu: 0.0.40
codegen_flags: <defaults>
</compile_context>

<pallas_src>
import functools
import math

import jax
import jax.numpy as jnp
from jax.experimental import pallas as pl
from jax.experimental.pallas import tpu as pltpu

LANE_CAP = 1024      # max lane-axis (M) tile (multiple of 256 for v6e/v7x MXU)
SUBLANE = 8
MIN_PALLAS_M = 128   # below this, padding + launch overhead beats XLA


def _round_up(x, m):
    return -(-x // m) * m


def _pick_m_tile(mp, cap=LANE_CAP):
    """Largest multiple of 128 <= cap that divides mp (mp multiple of 128)."""
    best, t = 128, 128
    while t <= cap:
        if mp % t == 0:
            best = t
        t += 128
    return best


# ----------------------------------------------------------------------------
# Pallas conv GEMM:  out(O, M) = act( W(O, K) @ P(K, M) + bias(O, 1) )
# ----------------------------------------------------------------------------
def _conv_mm_kernel(activation, w_ref, p_ref, b_ref, o_ref):
    acc = jnp.dot(w_ref[...], p_ref[...], preferred_element_type=jnp.float32)
    acc = acc + b_ref[...]                          # (Op,1) lane-broadcast
    if activation == "leaky_relu":
        acc = jnp.where(acc > 0, acc, 0.01 * acc)
    elif activation == "relu":
        acc = jnp.maximum(acc, 0.0)
    o_ref[...] = acc.astype(o_ref.dtype)


def conv_gemm(w_mat, patches, bias, activation="none"):
    """w_mat: (O, K); patches: (K, M); bias: (O,) or None -> (O, M) f32."""
    O, K = w_mat.shape
    K2, M = patches.shape
    assert K == K2
    b = jnp.zeros((O,), jnp.float32) if bias is None else bias.astype(jnp.float32)

    if M < MIN_PALLAS_M:
        # Deep latent levels (spatial 1..2^3): let XLA handle the tiny dot.
        acc = jnp.dot(w_mat.astype(jnp.float32), patches.astype(jnp.float32),
                      preferred_element_type=jnp.float32) + b[:, None]
        if activation == "leaky_relu":
            acc = jnp.where(acc > 0, acc, 0.01 * acc)
        elif activation == "relu":
            acc = jnp.maximum(acc, 0.0)
        return acc

    Op = _round_up(O, SUBLANE)
    Kp = _round_up(K, 16)                           # bf16 sublane packing
    Mp = _round_up(M, 128)
    TM = _pick_m_tile(Mp)

    w_p = jnp.pad(w_mat.astype(jnp.bfloat16), ((0, Op - O), (0, Kp - K)))
    p_p = jnp.pad(patches.astype(jnp.bfloat16), ((0, Kp - K), (0, Mp - M)))
    b_p = jnp.pad(b, (0, Op - O)).reshape(Op, 1)

    out = pl.pallas_call(
        functools.partial(_conv_mm_kernel, activation),
        out_shape=jax.ShapeDtypeStruct((Op, Mp), jnp.float32),
        grid_spec=pltpu.PrefetchScalarGridSpec(
            num_scalar_prefetch=0,
            grid=(Mp // TM,),
            in_specs=[
                pl.BlockSpec((Op, Kp), lambda j: (0, 0)),   # weights (resident)
                pl.BlockSpec((Kp, TM), lambda j: (0, j)),   # patches (lane-dense)
                pl.BlockSpec((Op, 1), lambda j: (0, 0)),    # bias (resident)
            ],
            out_specs=pl.BlockSpec((Op, TM), lambda j: (0, j)),
        ),
        compiler_params=pltpu.CompilerParams(
            dimension_semantics=("parallel",)),
    )(w_p, p_p, b_p)
    return out[:O, :M]


# ----------------------------------------------------------------------------
# Conv3d (k=3, pad=1) via channel-first im2col + Pallas GEMM
# Internal activation layout everywhere: (C, N, D, H, W)
# ----------------------------------------------------------------------------
def _im2col_cf(x, stride):
    C, N, D, H, W = x.shape
    xp = jnp.pad(x, ((0, 0), (0, 0), (1, 1), (1, 1), (1, 1)))
    Do = (D + 2 - 3) // stride + 1
    Ho = (H + 2 - 3) // stride + 1
    Wo = (W + 2 - 3) // stride + 1
    cols = []
    for kd in range(3):
        for kh in range(3):
            for kw in range(3):
                cols.append(xp[:, :,
                               kd:kd + Do * stride:stride,
                               kh:kh + Ho * stride:stride,
                               kw:kw + Wo * stride:stride])
    patches = jnp.stack(cols, axis=1)                 # (C,27,N,Do,Ho,Wo)
    return patches.reshape(C * 27, N * Do * Ho * Wo), (N, Do, Ho, Wo)


def conv3d_cf(x, p, stride=1, activation="none"):
    """x: (C, N, D, H, W) -> (O, N, Do, Ho, Wo)."""
    w, b = p["w"], p["b"]
    O = w.shape[0]
    patches, (N, Do, Ho, Wo) = _im2col_cf(x, stride)
    y = conv_gemm(w.reshape(O, -1), patches, b, activation)   # (O, M)
    return y.reshape(O, N, Do, Ho, Wo)


def down_block(x, convs):
    x = conv3d_cf(x, convs[0], stride=2, activation="leaky_relu")
    for p in convs[1:]:
        x = conv3d_cf(x, p, stride=1, activation="leaky_relu")
    return x


def up_block(x, convs, upscale=2):
    x = jnp.repeat(jnp.repeat(jnp.repeat(x, upscale, 2), upscale, 3), upscale, 4)
    x = conv3d_cf(x, convs[0], stride=1, activation="leaky_relu")
    for p in convs[1:]:
        x = conv3d_cf(x, p, stride=1, activation="leaky_relu")
    return x


# ----------------------------------------------------------------------------
# Small glue ops (negligible FLOPs, plain JAX)
# ----------------------------------------------------------------------------
def nearest_interp_3d(x, out_size):
    D, H, W = x.shape[2:]
    oD, oH, oW = out_size
    di = jnp.arange(oD) * D // oD
    hi = jnp.arange(oH) * H // oH
    wi = jnp.arange(oW) * W // oW
    return x[:, :, di][:, :, :, hi][:, :, :, :, wi]


def linear_interp_last(x, out_len):
    """F.interpolate(mode='linear', align_corners=True) along last axis."""
    T_in = x.shape[-1]
    if T_in == 1:
        return jnp.broadcast_to(x, x.shape[:-1] + (out_len,))
    pos = jnp.arange(out_len, dtype=jnp.float32) * (T_in - 1) / (out_len - 1)
    lo = jnp.clip(jnp.floor(pos).astype(jnp.int32), 0, T_in - 1)
    hi = jnp.clip(lo + 1, 0, T_in - 1)
    w = (pos - lo.astype(jnp.float32)).astype(x.dtype)
    return x[..., lo] * (1.0 - w) + x[..., hi] * w


def layer_norm(x, w, b, eps=1e-5):
    mu = x.mean(-1, keepdims=True)
    var = ((x - mu) ** 2).mean(-1, keepdims=True)
    return (x - mu) / jnp.sqrt(var + eps) * w + b


# ----------------------------------------------------------------------------
# Transformer block (post-LN TransformerEncoderLayer, relu, eval mode)
# Tiny GEMMs (S=5, d=8) stay in plain XLA.
# ----------------------------------------------------------------------------
def mha(y, p, nhead):
    B, S, d = y.shape
    dh = d // nhead
    qkv = y @ p["in_w"].T + p["in_b"]                 # (B,S,3d)
    q, k, v = jnp.split(qkv, 3, axis=-1)

    def heads(t):
        return t.reshape(B, S, nhead, dh).transpose(0, 2, 1, 3)

    q, k, v = heads(q), heads(k), heads(v)
    scores = jnp.einsum("bhqd,bhkd->bhqk", q, k) / math.sqrt(dh)
    attn = jax.nn.softmax(scores, axis=-1)
    out = jnp.einsum("bhqk,bhkd->bhqd", attn, v)
    out = out.transpose(0, 2, 1, 3).reshape(B, S, d)
    return out @ p["out_w"].T + p["out_b"]


def transformer_block(xs, obs, p, nhead):
    y = jnp.concatenate([xs, obs], axis=-1)
    y = y @ p["lin_w"].T + p["lin_b"]
    y = y + p["pe"]
    a = mha(y, p, nhead)
    y = layer_norm(y + a, p["ln1_w"], p["ln1_b"])
    h = jnp.maximum(y @ p["ff1_w"].T + p["ff1_b"], 0.0)
    ff = h @ p["ff2_w"].T + p["ff2_b"]
    y = layer_norm(y + ff, p["ln2_w"], p["ln2_b"])
    return y


# ----------------------------------------------------------------------------
# Parameter init (deterministic, PyTorch-like uniform fan-in scaling)
# ----------------------------------------------------------------------------
def _init_conv3d(key, cin, cout, bias):
    k1, k2 = jax.random.split(key)
    s = 1.0 / math.sqrt(cin * 27)
    w = jax.random.uniform(k1, (cout, cin, 3, 3, 3), jnp.float32, -s, s)
    b = (jax.random.uniform(k2, (cout,), jnp.float32, -s, s)
         if bias else jnp.zeros((cout,), jnp.float32))
    return {"w": w, "b": b}


def _init_linear(key, fin, fout, bias):
    k1, k2 = jax.random.split(key)
    s = 1.0 / math.sqrt(fin)
    w = jax.random.uniform(k1, (fout, fin), jnp.float32, -s, s)
    b = (jax.random.uniform(k2, (fout,), jnp.float32, -s, s)
         if bias else jnp.zeros((fout,), jnp.float32))
    return w, b


def sinusoidal_pe(seq, dim):
    # Matches the reference: div_term uses math.log(100.0) (NOT 10000).
    pos = jnp.arange(seq, dtype=jnp.float32)[:, None]
    div = jnp.exp(jnp.arange(0, dim, 2, dtype=jnp.float32) * -(math.log(100.0) / dim))
    pe = jnp.zeros((seq, dim), jnp.float32)
    pe = pe.at[:, 0::2].set(jnp.sin(pos * div))
    pe = pe.at[:, 1::2].set(jnp.cos(pos * div)[:, : dim // 2])
    return pe[None]


def init_params(key, cfg):
    keys = iter(jax.random.split(key, 256))
    nk = lambda: next(keys)
    f0, f1, f2, f3 = (cfg["feat_channels_0"], cfg["feat_channels_1"],
                      cfg["feat_channels_2"], cfg["feat_channels_3"])
    lc = cfg["latent_channels"]
    bias = cfg["bias"]
    d = cfg["latent_dim"]

    def block(cin, cout, n):
        convs = [_init_conv3d(nk(), cin, cout, bias)]
        for _ in range(n - 1):
            convs.append(_init_conv3d(nk(), cout, cout, bias))
        return convs

    nlx, nlo = cfg["num_layers_x_in_block"], cfg["num_layers_o_in_block"]
    params = {
        "x_feat": _init_conv3d(nk(), cfg["input_channels"], f0, bias),
        "o_feat": _init_conv3d(nk(), cfg["input_channels"], f0, bias),
        "enc_x": [block(2 * f0, f1, nlx), block(f1, f2, nlx),
                  block(f2, f3, nlx), block(f3, lc, nlx)],
        "enc_o": [block(f0, f1, nlo), block(f1, f2, nlo),
                  block(f2, f3, nlo), block(f3, lc, nlo)],
        "dec": [block(lc, f3, nlx), block(f3, f2, nlx),
                block(f2, f1, nlx), block(f1, f0, nlx)],
    }
    trs = []
    for _ in range(cfg["num_transformer_blocks"]):
        t = {}
        t["lin_w"], t["lin_b"] = _init_linear(nk(), 2 * d, d, bias)
        t["pe"] = sinusoidal_pe(cfg["hr_sequence_length"], d)
        t["in_w"], t["in_b"] = _init_linear(nk(), d, 3 * d, True)
        t["out_w"], t["out_b"] = _init_linear(nk(), d, d, True)
        t["ff1_w"], t["ff1_b"] = _init_linear(nk(), d, d, True)   # dim_feedforward = latent_dim
        t["ff2_w"], t["ff2_b"] = _init_linear(nk(), d, d, True)
        t["ln1_w"], t["ln1_b"] = jnp.ones((d,), jnp.float32), jnp.zeros((d,), jnp.float32)
        t["ln2_w"], t["ln2_b"] = jnp.ones((d,), jnp.float32), jnp.zeros((d,), jnp.float32)
        trs.append(t)
    params["transformers"] = trs
    rec_in = 3 * f0 if cfg["use_global_skip_connection"] else f0
    params["rec1"] = _init_conv3d(nk(), rec_in, f0, bias)
    params["rec2"] = _init_conv3d(nk(), f0, cfg["output_channels"], bias)
    return params


# ----------------------------------------------------------------------------
# Full forward
# ----------------------------------------------------------------------------
def _interp_feat_time_cf(feat_cf, B, T_in, T_out):
    """feat_cf: (C, B*T_in, D, H, W) -> (C, B*T_out, D, H, W)."""
    C, _, D, H, W = feat_cf.shape
    f = feat_cf.reshape(C, B, T_in, D, H, W)
    f = f.transpose(0, 1, 3, 4, 5, 2)                 # (C,B,D,H,W,T_in)
    f = linear_interp_last(f, T_out)
    f = f.transpose(0, 1, 5, 2, 3, 4)                 # (C,B,T_out,D,H,W)
    return f.reshape(C, B * T_out, D, H, W)


def forward(params, cfg, lr_pv, hr_obs):
    B, T, C, D, H, W = lr_pv.shape
    hr = (cfg["hr_z_size"], cfg["hr_y_size"], cfg["hr_x_size"])
    hr_seq = cfg["hr_sequence_length"]
    T_in = cfg["input_sequence_length"]

    # nearest spatial upsample of LR input (replicates the torch view semantics)
    x = lr_pv.reshape(B, T * C, D, H, W)
    x = nearest_interp_3d(x, hr)
    x = x.reshape((B, C, T) + hr).reshape((-1, cfg["input_channels"]) + hr)
    obs = hr_obs.reshape((-1, cfg["input_channels"]) + hr)

    # switch to channel-first internal layout (C, N, D, H, W)
    x_cf = x.transpose(1, 0, 2, 3, 4)
    o_cf = obs.transpose(1, 0, 2, 3, 4)

    feat_x = conv3d_cf(x_cf, params["x_feat"])
    feat_o = conv3d_cf(o_cf, params["o_feat"])

    # encoder
    y = jnp.concatenate([feat_x, feat_o], axis=0)
    for blk in params["enc_x"]:
        y = down_block(y, blk)
    z = feat_o
    for blk in params["enc_o"]:
        z = down_block(z, blk)

    latent_dim = cfg["latent_dim"]
    lat_x = y.transpose(1, 0, 2, 3, 4).reshape(-1, T_in, latent_dim)
    lat_o = z.transpose(1, 0, 2, 3, 4).reshape(-1, T_in, latent_dim)
    lat_x = linear_interp_last(lat_x.transpose(0, 2, 1), hr_seq).transpose(0, 2, 1)
    lat_o = linear_interp_last(lat_o.transpose(0, 2, 1), hr_seq).transpose(0, 2, 1)

    yy = lat_x
    for tp in params["transformers"]:
        yy = transformer_block(yy, lat_o, tp, cfg["num_multi_attention_heads"])
    yy = yy + lat_x

    yy = yy.reshape(-1, cfg["latent_channels"],
                    cfg["latent_z_size"], cfg["latent_y_size"], cfg["latent_x_size"])
    yy = yy.transpose(1, 0, 2, 3, 4)                  # -> channel-first
    for blk in params["dec"]:
        yy = up_block(yy, blk)

    if cfg["use_global_skip_connection"]:
        fx = _interp_feat_time_cf(feat_x, B, T_in, hr_seq)
        fo = _interp_feat_time_cf(feat_o, B, T_in, hr_seq)
        yy = jnp.concatenate([yy, fx, fo], axis=0)

    yy = conv3d_cf(yy, params["rec1"], activation="leaky_relu")
    yy = conv3d_cf(yy, params["rec2"], activation="none")
    yy = yy.transpose(1, 0, 2, 3, 4)                  # back to (N, C, D, H, W)
    return yy.reshape(-1, hr_seq, cfg["output_channels"], hr[0], hr[1], hr[2])


# ----------------------------------------------------------------------------
if __name__ == "__main__":
    cfg = dict(
        bias=True,
        feat_channels_0=4, feat_channels_1=8, feat_channels_2=8, feat_channels_3=8,
        latent_channels=8,
        hr_sequence_length=5,
        hr_x_size=16, hr_y_size=16, hr_z_size=16,
        input_channels=1, output_channels=1,
        input_sequence_length=3,
        lr_x_size=8, lr_y_size=8, lr_z_size=8,
        num_layers_x_in_block=1, num_layers_o_in_block=1,
        num_multi_attention_heads=2,
        num_transformer_blocks=1,
        use_global_skip_connection=True,
    )
    cfg["latent_x_size"] = cfg["hr_x_size"] // 16
    cfg["latent_y_size"] = cfg["hr_y_size"] // 16
    cfg["latent_z_size"] = cfg["hr_z_size"] // 16
    cfg["latent_dim"] = (cfg["latent_x_size"] * cfg["latent_y_size"]
                         * cfg["latent_z_size"] * cfg["latent_channels"])

    key = jax.random.PRNGKey(0)
    k_lr, k_obs, k_par = jax.random.split(key, 3)
    B = 1
    lr_pv = jax.random.normal(
        k_lr, (B, cfg["input_sequence_length"], cfg["input_channels"],
               cfg["lr_z_size"], cfg["lr_y_size"], cfg["lr_x_size"]), jnp.float32)
    hr_obs = jax.random.normal(
        k_obs, (B, cfg["input_sequence_length"], cfg["input_channels"],
                cfg["hr_z_size"], cfg["hr_y_size"], cfg["hr_x_size"]), jnp.float32)

    params = init_params(k_par, cfg)

    fwd = jax.jit(lambda p, a, b: forward(p, cfg, a, b))
    out = fwd(params, lr_pv, hr_obs)
    out = jax.block_until_ready(out)

    expected = (B, cfg["hr_sequence_length"], cfg["output_channels"],
                cfg["hr_z_size"], cfg["hr_y_size"], cfg["hr_x_size"])
    assert out.shape == expected, (out.shape, expected)
    assert jnp.all(jnp.isfinite(out))
    print("KERNEL_OK")
</pallas_src>

<mosaic_0001>
module attributes {stable_mosaic.version = 11 : i64} {
  func.func @_conv_mm_kernel(%arg0: i32, %arg1: memref<8x32xbf16, #tpu.memory_space<vmem>>, %arg2: memref<32x1024xbf16, #tpu.memory_space<vmem>>, %arg3: memref<8x1xf32, #tpu.memory_space<vmem>>, %arg4: memref<8x1024xf32, #tpu.memory_space<vmem>>) attributes {dimension_semantics = [#tpu.dimension_semantics<parallel>], iteration_bounds = array<i64: 12>, scalar_prefetch = 0 : i64, scratch_operands = 0 : i64, tpu.core_type = #tpu.core_type<tc>, window_params = [{pipeline_mode = #tpu.pipeline_mode<synchronous>, transform_indices = @transform_0, window_bounds = array<i64: 8, 32>}, {transform_indices = @transform_1, window_bounds = array<i64: 32, 1024>}, {pipeline_mode = #tpu.pipeline_mode<synchronous>, transform_indices = @transform_2, window_bounds = array<i64: 8, 1>}, {transform_indices = @transform_3, window_bounds = array<i64: 8, 1024>}]} {
    %c0 = arith.constant 0 : index
    %c0_0 = arith.constant 0 : index
    %0 = vector.load %arg1[%c0, %c0_0] : memref<8x32xbf16, #tpu.memory_space<vmem>>, vector<8x32xbf16>
    %c0_1 = arith.constant 0 : index
    %c0_2 = arith.constant 0 : index
    %1 = vector.load %arg2[%c0_1, %c0_2] : memref<32x1024xbf16, #tpu.memory_space<vmem>>, vector<32x1024xbf16>
    %cst = arith.constant dense<0.000000e+00> : vector<8x1024xf32>
    %2 = tpu.matmul %0, %1, %cst {dimension_numbers = #tpu.dot_dimension_numbers<[1], [0], [0], [1], [0, 0, 1, 1], [], []>} : vector<8x32xbf16>, vector<32x1024xbf16>, vector<8x1024xf32> -> vector<8x1024xf32>
    %c0_3 = arith.constant 0 : index
    %c0_4 = arith.constant 0 : index
    %3 = vector.load %arg3[%c0_3, %c0_4] : memref<8x1xf32, #tpu.memory_space<vmem>>, vector<8x1xf32>
    %4 = vector.broadcast %3 : vector<8x1xf32> to vector<8x1024xf32>
    %5 = arith.addf %2, %4 : vector<8x1024xf32>
    %c0_5 = arith.constant 0 : index
    %c0_6 = arith.constant 0 : index
    %6 = vector.load %arg4[%c0_5, %c0_6] : memref<8x1024xf32, #tpu.memory_space<vmem>>, vector<8x1024xf32>
    tpu.vector_store %arg4[%c0_5, %c0_6], %5 {strides = array<i32>} : memref<8x1024xf32, #tpu.memory_space<vmem>>, vector<8x1024xf32>,
    return
  }
  func.func @transform_0(%arg0: i32) -> (i32, i32) {
    %c0_i32 = arith.constant 0 : i32
    %c0_i32_0 = arith.constant 0 : i32
    %c0_i32_1 = arith.constant 0 : i32
    return %c0_i32, %c0_i32_0 : i32, i32
  }
  func.func @transform_1(%arg0: i32) -> (i32, i32) {
    %c0_i32 = arith.constant 0 : i32
    %c0_i32_0 = arith.constant 0 : i32
    return %c0_i32, %arg0 : i32, i32
  }
  func.func @transform_2(%arg0: i32) -> (i32, i32) {
    %c0_i32 = arith.constant 0 : i32
    %c0_i32_0 = arith.constant 0 : i32
    %c0_i32_1 = arith.constant 0 : i32
    return %c0_i32, %c0_i32_0 : i32, i32
  }
  func.func @transform_3(%arg0: i32) -> (i32, i32) {
    %c0_i32 = arith.constant 0 : i32
    %c0_i32_0 = arith.constant 0 : i32
    return %c0_i32, %arg0 : i32, i32
  }
}

module attributes {stable_mosaic.version = 11 : i64} {
  func.func @_conv_mm_kernel(%arg0: i32, %arg1: memref<8x112xbf16, #tpu.memory_space<vmem>>, %arg2: memref<112x768xbf16, #tpu.memory_space<vmem>>, %arg3: memref<8x1xf32, #tpu.memory_space<vmem>>, %arg4: memref<8x768xf32, #tpu.memory_space<vmem>>) attributes {dimension_semantics = [#tpu.dimension_semantics<parallel>], iteration_bounds = array<i64: 2>, scalar_prefetch = 0 : i64, scratch_operands = 0 : i64, tpu.core_type = #tpu.core_type<tc>, window_params = [{pipeline_mode = #tpu.pipeline_mode<synchronous>, transform_indices = @transform_0, window_bounds = array<i64: 8, 112>}, {transform_indices = @transform_1, window_bounds = array<i64: 112, 768>}, {pipeline_mode = #tpu.pipeline_mode<synchronous>, transform_indices = @transform_2, window_bounds = array<i64: 8, 1>}, {transform_indices = @transform_3, window_bounds = array<i64: 8, 768>}]} {
    %c0 = arith.constant 0 : index
    %c0_0 = arith.constant 0 : index
    %0 = vector.load %arg1[%c0, %c0_0] : memref<8x112xbf16, #tpu.memory_space<vmem>>, vector<8x112xbf16>
    %c0_1 = arith.constant 0 : index
    %c0_2 = arith.constant 0 : index
    %1 = vector.load %arg2[%c0_1, %c0_2] : memref<112x768xbf16, #tpu.memory_space<vmem>>, vector<112x768xbf16>
    %cst = arith.constant dense<0.000000e+00> : vector<8x768xf32>
    %2 = tpu.matmul %0, %1, %cst {dimension_numbers = #tpu.dot_dimension_numbers<[1], [0], [0], [1], [0, 0, 1, 1], [], []>} : vector<8x112xbf16>, vector<112x768xbf16>, vector<8x768xf32> -> vector<8x768xf32>
    %c0_3 = arith.constant 0 : index
    %c0_4 = arith.constant 0 : index
    %3 = vector.load %arg3[%c0_3, %c0_4] : memref<8x1xf32, #tpu.memory_space<vmem>>, vector<8x1xf32>
    %4 = vector.broadcast %3 : vector<8x1xf32> to vector<8x768xf32>
    %5 = arith.addf %2, %4 : vector<8x768xf32>
    %cst_5 = arith.constant 0.000000e+00 : f32
    %6 = vector.broadcast %cst_5 : f32 to vector<8x768xf32>
    %7 = arith.cmpf ogt, %5, %6 : vector<8x768xf32>
    %cst_6 = arith.constant 0.00999999977 : f32
    %8 = vector.broadcast %cst_6 : f32 to vector<8x768xf32>
    %9 = arith.mulf %8, %5 : vector<8x768xf32>
    %10 = arith.select %7, %5, %9 : vector<8x768xi1>, vector<8x768xf32>
    %c0_7 = arith.constant 0 : index
    %c0_8 = arith.constant 0 : index
    %11 = vector.load %arg4[%c0_7, %c0_8] : memref<8x768xf32, #tpu.memory_space<vmem>>, vector<8x768xf32>
    tpu.vector_store %arg4[%c0_7, %c0_8], %10 {strides = array<i32>} : memref<8x768xf32, #tpu.memory_space<vmem>>, vector<8x768xf32>,
    return
  }
  func.func @transform_0(%arg0: i32) -> (i32, i32) {
    %c0_i32 = arith.constant 0 : i32
    %c0_i32_0 = arith.constant 0 : i32
    %c0_i32_1 = arith.constant 0 : i32
    return %c0_i32, %c0_i32_0 : i32, i32
  }
  func.func @transform_1(%arg0: i32) -> (i32, i32) {
    %c0_i32 = arith.constant 0 : i32
    %c0_i32_0 = arith.constant 0 : i32
    return %c0_i32, %arg0 : i32, i32
  }
  func.func @transform_2(%arg0: i32) -> (i32, i32) {
    %c0_i32 = arith.constant 0 : i32
    %c0_i32_0 = arith.constant 0 : i32
    %c0_i32_1 = arith.constant 0 : i32
    return %c0_i32, %c0_i32_0 : i32, i32
  }
  func.func @transform_3(%arg0: i32) -> (i32, i32) {
    %c0_i32 = arith.constant 0 : i32
    %c0_i32_0 = arith.constant 0 : i32
    return %c0_i32, %arg0 : i32, i32
  }
}

module attributes {stable_mosaic.version = 11 : i64} {
  func.func @_conv_mm_kernel(%arg0: i32, %arg1: memref<8x224xbf16, #tpu.memory_space<vmem>>, %arg2: memref<224x256xbf16, #tpu.memory_space<vmem>>, %arg3: memref<8x1xf32, #tpu.memory_space<vmem>>, %arg4: memref<8x256xf32, #tpu.memory_space<vmem>>) attributes {dimension_semantics = [#tpu.dimension_semantics<parallel>], iteration_bounds = array<i64: 1>, scalar_prefetch = 0 : i64, scratch_operands = 0 : i64, tpu.core_type = #tpu.core_type<tc>, window_params = [{pipeline_mode = #tpu.pipeline_mode<synchronous>, transform_indices = @transform_0, window_bounds = array<i64: 8, 224>}, {transform_indices = @transform_1, window_bounds = array<i64: 224, 256>}, {pipeline_mode = #tpu.pipeline_mode<synchronous>, transform_indices = @transform_2, window_bounds = array<i64: 8, 1>}, {transform_indices = @transform_3, window_bounds = array<i64: 8, 256>}]} {
    %c0 = arith.constant 0 : index
    %c0_0 = arith.constant 0 : index
    %0 = vector.load %arg1[%c0, %c0_0] : memref<8x224xbf16, #tpu.memory_space<vmem>>, vector<8x224xbf16>
    %c0_1 = arith.constant 0 : index
    %c0_2 = arith.constant 0 : index
    %1 = vector.load %arg2[%c0_1, %c0_2] : memref<224x256xbf16, #tpu.memory_space<vmem>>, vector<224x256xbf16>
    %cst = arith.constant dense<0.000000e+00> : vector<8x256xf32>
    %2 = tpu.matmul %0, %1, %cst {dimension_numbers = #tpu.dot_dimension_numbers<[1], [0], [0], [1], [0, 0, 1, 1], [], []>} : vector<8x224xbf16>, vector<224x256xbf16>, vector<8x256xf32> -> vector<8x256xf32>
    %c0_3 = arith.constant 0 : index
    %c0_4 = arith.constant 0 : index
    %3 = vector.load %arg3[%c0_3, %c0_4] : memref<8x1xf32, #tpu.memory_space<vmem>>, vector<8x1xf32>
    %4 = vector.broadcast %3 : vector<8x1xf32> to vector<8x256xf32>
    %5 = arith.addf %2, %4 : vector<8x256xf32>
    %cst_5 = arith.constant 0.000000e+00 : f32
    %6 = vector.broadcast %cst_5 : f32 to vector<8x256xf32>
    %7 = arith.cmpf ogt, %5, %6 : vector<8x256xf32>
    %cst_6 = arith.constant 0.00999999977 : f32
    %8 = vector.broadcast %cst_6 : f32 to vector<8x256xf32>
    %9 = arith.mulf %8, %5 : vector<8x256xf32>
    %10 = arith.select %7, %5, %9 : vector<8x256xi1>, vector<8x256xf32>
    %c0_7 = arith.constant 0 : index
    %c0_8 = arith.constant 0 : index
    %11 = vector.load %arg4[%c0_7, %c0_8] : memref<8x256xf32, #tpu.memory_space<vmem>>, vector<8x256xf32>
    tpu.vector_store %arg4[%c0_7, %c0_8], %10 {strides = array<i32>} : memref<8x256xf32, #tpu.memory_space<vmem>>, vector<8x256xf32>,
    return
  }
  func.func @transform_0(%arg0: i32) -> (i32, i32) {
    %c0_i32 = arith.constant 0 : i32
    %c0_i32_0 = arith.constant 0 : i32
    %c0_i32_1 = arith.constant 0 : i32
    return %c0_i32, %c0_i32_0 : i32, i32
  }
  func.func @transform_1(%arg0: i32) -> (i32, i32) {
    %c0_i32 = arith.constant 0 : i32
    %c0_i32_0 = arith.constant 0 : i32
    return %c0_i32, %arg0 : i32, i32
  }
  func.func @transform_2(%arg0: i32) -> (i32, i32) {
    %c0_i32 = arith.constant 0 : i32
    %c0_i32_0 = arith.constant 0 : i32
    %c0_i32_1 = arith.constant 0 : i32
    return %c0_i32, %c0_i32_0 : i32, i32
  }
  func.func @transform_3(%arg0: i32) -> (i32, i32) {
    %c0_i32 = arith.constant 0 : i32
    %c0_i32_0 = arith.constant 0 : i32
    return %c0_i32, %arg0 : i32, i32
  }
}

module attributes {stable_mosaic.version = 11 : i64} {
  func.func @_conv_mm_kernel(%arg0: i32, %arg1: memref<8x224xbf16, #tpu.memory_space<vmem>>, %arg2: memref<224x768xbf16, #tpu.memory_space<vmem>>, %arg3: memref<8x1xf32, #tpu.memory_space<vmem>>, %arg4: memref<8x768xf32, #tpu.memory_space<vmem>>) attributes {dimension_semantics = [#tpu.dimension_semantics<parallel>], iteration_bounds = array<i64: 2>, scalar_prefetch = 0 : i64, scratch_operands = 0 : i64, tpu.core_type = #tpu.core_type<tc>, window_params = [{pipeline_mode = #tpu.pipeline_mode<synchronous>, transform_indices = @transform_0, window_bounds = array<i64: 8, 224>}, {transform_indices = @transform_1, window_bounds = array<i64: 224, 768>}, {pipeline_mode = #tpu.pipeline_mode<synchronous>, transform_indices = @transform_2, window_bounds = array<i64: 8, 1>}, {transform_indices = @transform_3, window_bounds = array<i64: 8, 768>}]} {
    %c0 = arith.constant 0 : index
    %c0_0 = arith.constant 0 : index
    %0 = vector.load %arg1[%c0, %c0_0] : memref<8x224xbf16, #tpu.memory_space<vmem>>, vector<8x224xbf16>
    %c0_1 = arith.constant 0 : index
    %c0_2 = arith.constant 0 : index
    %1 = vector.load %arg2[%c0_1, %c0_2] : memref<224x768xbf16, #tpu.memory_space<vmem>>, vector<224x768xbf16>
    %cst = arith.constant dense<0.000000e+00> : vector<8x768xf32>
    %2 = tpu.matmul %0, %1, %cst {dimension_numbers = #tpu.dot_dimension_numbers<[1], [0], [0], [1], [0, 0, 1, 1], [], []>} : vector<8x224xbf16>, vector<224x768xbf16>, vector<8x768xf32> -> vector<8x768xf32>
    %c0_3 = arith.constant 0 : index
    %c0_4 = arith.constant 0 : index
    %3 = vector.load %arg3[%c0_3, %c0_4] : memref<8x1xf32, #tpu.memory_space<vmem>>, vector<8x1xf32>
    %4 = vector.broadcast %3 : vector<8x1xf32> to vector<8x768xf32>
    %5 = arith.addf %2, %4 : vector<8x768xf32>
    %cst_5 = arith.constant 0.000000e+00 : f32
    %6 = vector.broadcast %cst_5 : f32 to vector<8x768xf32>
    %7 = arith.cmpf ogt, %5, %6 : vector<8x768xf32>
    %cst_6 = arith.constant 0.00999999977 : f32
    %8 = vector.broadcast %cst_6 : f32 to vector<8x768xf32>
    %9 = arith.mulf %8, %5 : vector<8x768xf32>
    %10 = arith.select %7, %5, %9 : vector<8x768xi1>, vector<8x768xf32>
    %c0_7 = arith.constant 0 : index
    %c0_8 = arith.constant 0 : index
    %11 = vector.load %arg4[%c0_7, %c0_8] : memref<8x768xf32, #tpu.memory_space<vmem>>, vector<8x768xf32>
    tpu.vector_store %arg4[%c0_7, %c0_8], %10 {strides = array<i32>} : memref<8x768xf32, #tpu.memory_space<vmem>>, vector<8x768xf32>,
    return
  }
  func.func @transform_0(%arg0: i32) -> (i32, i32) {
    %c0_i32 = arith.constant 0 : i32
    %c0_i32_0 = arith.constant 0 : i32
    %c0_i32_1 = arith.constant 0 : i32
    return %c0_i32, %c0_i32_0 : i32, i32
  }
  func.func @transform_1(%arg0: i32) -> (i32, i32) {
    %c0_i32 = arith.constant 0 : i32
    %c0_i32_0 = arith.constant 0 : i32
    return %c0_i32, %arg0 : i32, i32
  }
  func.func @transform_2(%arg0: i32) -> (i32, i32) {
    %c0_i32 = arith.constant 0 : i32
    %c0_i32_0 = arith.constant 0 : i32
    %c0_i32_1 = arith.constant 0 : i32
    return %c0_i32, %c0_i32_0 : i32, i32
  }
  func.func @transform_3(%arg0: i32) -> (i32, i32) {
    %c0_i32 = arith.constant 0 : i32
    %c0_i32_0 = arith.constant 0 : i32
    return %c0_i32, %arg0 : i32, i32
  }
}

module attributes {stable_mosaic.version = 11 : i64} {
  func.func @_conv_mm_kernel(%arg0: i32, %arg1: memref<8x224xbf16, #tpu.memory_space<vmem>>, %arg2: memref<224x384xbf16, #tpu.memory_space<vmem>>, %arg3: memref<8x1xf32, #tpu.memory_space<vmem>>, %arg4: memref<8x384xf32, #tpu.memory_space<vmem>>) attributes {dimension_semantics = [#tpu.dimension_semantics<parallel>], iteration_bounds = array<i64: 1>, scalar_prefetch = 0 : i64, scratch_operands = 0 : i64, tpu.core_type = #tpu.core_type<tc>, window_params = [{pipeline_mode = #tpu.pipeline_mode<synchronous>, transform_indices = @transform_0, window_bounds = array<i64: 8, 224>}, {transform_indices = @transform_1, window_bounds = array<i64: 224, 384>}, {pipeline_mode = #tpu.pipeline_mode<synchronous>, transform_indices = @transform_2, window_bounds = array<i64: 8, 1>}, {transform_indices = @transform_3, window_bounds = array<i64: 8, 384>}]} {
    %c0 = arith.constant 0 : index
    %c0_0 = arith.constant 0 : index
    %0 = vector.load %arg1[%c0, %c0_0] : memref<8x224xbf16, #tpu.memory_space<vmem>>, vector<8x224xbf16>
    %c0_1 = arith.constant 0 : index
    %c0_2 = arith.constant 0 : index
    %1 = vector.load %arg2[%c0_1, %c0_2] : memref<224x384xbf16, #tpu.memory_space<vmem>>, vector<224x384xbf16>
    %cst = arith.constant dense<0.000000e+00> : vector<8x384xf32>
    %2 = tpu.matmul %0, %1, %cst {dimension_numbers = #tpu.dot_dimension_numbers<[1], [0], [0], [1], [0, 0, 1, 1], [], []>} : vector<8x224xbf16>, vector<224x384xbf16>, vector<8x384xf32> -> vector<8x384xf32>
    %c0_3 = arith.constant 0 : index
    %c0_4 = arith.constant 0 : index
    %3 = vector.load %arg3[%c0_3, %c0_4] : memref<8x1xf32, #tpu.memory_space<vmem>>, vector<8x1xf32>
    %4 = vector.broadcast %3 : vector<8x1xf32> to vector<8x384xf32>
    %5 = arith.addf %2, %4 : vector<8x384xf32>
    %cst_5 = arith.constant 0.000000e+00 : f32
    %6 = vector.broadcast %cst_5 : f32 to vector<8x384xf32>
    %7 = arith.cmpf ogt, %5, %6 : vector<8x384xf32>
    %cst_6 = arith.constant 0.00999999977 : f32
    %8 = vector.broadcast %cst_6 : f32 to vector<8x384xf32>
    %9 = arith.mulf %8, %5 : vector<8x384xf32>
    %10 = arith.select %7, %5, %9 : vector<8x384xi1>, vector<8x384xf32>
    %c0_7 = arith.constant 0 : index
    %c0_8 = arith.constant 0 : index
    %11 = vector.load %arg4[%c0_7, %c0_8] : memref<8x384xf32, #tpu.memory_space<vmem>>, vector<8x384xf32>
    tpu.vector_store %arg4[%c0_7, %c0_8], %10 {strides = array<i32>} : memref<8x384xf32, #tpu.memory_space<vmem>>, vector<8x384xf32>,
    return
  }
  func.func @transform_0(%arg0: i32) -> (i32, i32) {
    %c0_i32 = arith.constant 0 : i32
    %c0_i32_0 = arith.constant 0 : i32
    %c0_i32_1 = arith.constant 0 : i32
    return %c0_i32, %c0_i32_0 : i32, i32
  }
  func.func @transform_1(%arg0: i32) -> (i32, i32) {
    %c0_i32 = arith.constant 0 : i32
    %c0_i32_0 = arith.constant 0 : i32
    return %c0_i32, %arg0 : i32, i32
  }
  func.func @transform_2(%arg0: i32) -> (i32, i32) {
    %c0_i32 = arith.constant 0 : i32
    %c0_i32_0 = arith.constant 0 : i32
    %c0_i32_1 = arith.constant 0 : i32
    return %c0_i32, %c0_i32_0 : i32, i32
  }
  func.func @transform_3(%arg0: i32) -> (i32, i32) {
    %c0_i32 = arith.constant 0 : i32
    %c0_i32_0 = arith.constant 0 : i32
    return %c0_i32, %arg0 : i32, i32
  }
}

module attributes {stable_mosaic.version = 11 : i64} {
  func.func @_conv_mm_kernel(%arg0: i32, %arg1: memref<8x224xbf16, #tpu.memory_space<vmem>>, %arg2: memref<224x640xbf16, #tpu.memory_space<vmem>>, %arg3: memref<8x1xf32, #tpu.memory_space<vmem>>, %arg4: memref<8x640xf32, #tpu.memory_space<vmem>>) attributes {dimension_semantics = [#tpu.dimension_semantics<parallel>], iteration_bounds = array<i64: 4>, scalar_prefetch = 0 : i64, scratch_operands = 0 : i64, tpu.core_type = #tpu.core_type<tc>, window_params = [{pipeline_mode = #tpu.pipeline_mode<synchronous>, transform_indices = @transform_0, window_bounds = array<i64: 8, 224>}, {transform_indices = @transform_1, window_bounds = array<i64: 224, 640>}, {pipeline_mode = #tpu.pipeline_mode<synchronous>, transform_indices = @transform_2, window_bounds = array<i64: 8, 1>}, {transform_indices = @transform_3, window_bounds = array<i64: 8, 640>}]} {
    %c0 = arith.constant 0 : index
    %c0_0 = arith.constant 0 : index
    %0 = vector.load %arg1[%c0, %c0_0] : memref<8x224xbf16, #tpu.memory_space<vmem>>, vector<8x224xbf16>
    %c0_1 = arith.constant 0 : index
    %c0_2 = arith.constant 0 : index
    %1 = vector.load %arg2[%c0_1, %c0_2] : memref<224x640xbf16, #tpu.memory_space<vmem>>, vector<224x640xbf16>
    %cst = arith.constant dense<0.000000e+00> : vector<8x640xf32>
    %2 = tpu.matmul %0, %1, %cst {dimension_numbers = #tpu.dot_dimension_numbers<[1], [0], [0], [1], [0, 0, 1, 1], [], []>} : vector<8x224xbf16>, vector<224x640xbf16>, vector<8x640xf32> -> vector<8x640xf32>
    %c0_3 = arith.constant 0 : index
    %c0_4 = arith.constant 0 : index
    %3 = vector.load %arg3[%c0_3, %c0_4] : memref<8x1xf32, #tpu.memory_space<vmem>>, vector<8x1xf32>
    %4 = vector.broadcast %3 : vector<8x1xf32> to vector<8x640xf32>
    %5 = arith.addf %2, %4 : vector<8x640xf32>
    %cst_5 = arith.constant 0.000000e+00 : f32
    %6 = vector.broadcast %cst_5 : f32 to vector<8x640xf32>
    %7 = arith.cmpf ogt, %5, %6 : vector<8x640xf32>
    %cst_6 = arith.constant 0.00999999977 : f32
    %8 = vector.broadcast %cst_6 : f32 to vector<8x640xf32>
    %9 = arith.mulf %8, %5 : vector<8x640xf32>
    %10 = arith.select %7, %5, %9 : vector<8x640xi1>, vector<8x640xf32>
    %c0_7 = arith.constant 0 : index
    %c0_8 = arith.constant 0 : index
    %11 = vector.load %arg4[%c0_7, %c0_8] : memref<8x640xf32, #tpu.memory_space<vmem>>, vector<8x640xf32>
    tpu.vector_store %arg4[%c0_7, %c0_8], %10 {strides = array<i32>} : memref<8x640xf32, #tpu.memory_space<vmem>>, vector<8x640xf32>,
    return
  }
  func.func @transform_0(%arg0: i32) -> (i32, i32) {
    %c0_i32 = arith.constant 0 : i32
    %c0_i32_0 = arith.constant 0 : i32
    %c0_i32_1 = arith.constant 0 : i32
    return %c0_i32, %c0_i32_0 : i32, i32
  }
  func.func @transform_1(%arg0: i32) -> (i32, i32) {
    %c0_i32 = arith.constant 0 : i32
    %c0_i32_0 = arith.constant 0 : i32
    return %c0_i32, %arg0 : i32, i32
  }
  func.func @transform_2(%arg0: i32) -> (i32, i32) {
    %c0_i32 = arith.constant 0 : i32
    %c0_i32_0 = arith.constant 0 : i32
    %c0_i32_1 = arith.constant 0 : i32
    return %c0_i32, %c0_i32_0 : i32, i32
  }
  func.func @transform_3(%arg0: i32) -> (i32, i32) {
    %c0_i32 = arith.constant 0 : i32
    %c0_i32_0 = arith.constant 0 : i32
    return %c0_i32, %arg0 : i32, i32
  }
}

module attributes {stable_mosaic.version = 11 : i64} {
  func.func @_conv_mm_kernel(%arg0: i32, %arg1: memref<8x224xbf16, #tpu.memory_space<vmem>>, %arg2: memref<224x1024xbf16, #tpu.memory_space<vmem>>, %arg3: memref<8x1xf32, #tpu.memory_space<vmem>>, %arg4: memref<8x1024xf32, #tpu.memory_space<vmem>>) attributes {dimension_semantics = [#tpu.dimension_semantics<parallel>], iteration_bounds = array<i64: 20>, scalar_prefetch = 0 : i64, scratch_operands = 0 : i64, tpu.core_type = #tpu.core_type<tc>, window_params = [{pipeline_mode = #tpu.pipeline_mode<synchronous>, transform_indices = @transform_0, window_bounds = array<i64: 8, 224>}, {transform_indices = @transform_1, window_bounds = array<i64: 224, 1024>}, {pipeline_mode = #tpu.pipeline_mode<synchronous>, transform_indices = @transform_2, window_bounds = array<i64: 8, 1>}, {transform_indices = @transform_3, window_bounds = array<i64: 8, 1024>}]} {
    %c0 = arith.constant 0 : index
    %c0_0 = arith.constant 0 : index
    %0 = vector.load %arg1[%c0, %c0_0] : memref<8x224xbf16, #tpu.memory_space<vmem>>, vector<8x224xbf16>
    %c0_1 = arith.constant 0 : index
    %c0_2 = arith.constant 0 : index
    %1 = vector.load %arg2[%c0_1, %c0_2] : memref<224x1024xbf16, #tpu.memory_space<vmem>>, vector<224x1024xbf16>
    %cst = arith.constant dense<0.000000e+00> : vector<8x1024xf32>
    %2 = tpu.matmul %0, %1, %cst {dimension_numbers = #tpu.dot_dimension_numbers<[1], [0], [0], [1], [0, 0, 1, 1], [], []>} : vector<8x224xbf16>, vector<224x1024xbf16>, vector<8x1024xf32> -> vector<8x1024xf32>
    %c0_3 = arith.constant 0 : index
    %c0_4 = arith.constant 0 : index
    %3 = vector.load %arg3[%c0_3, %c0_4] : memref<8x1xf32, #tpu.memory_space<vmem>>, vector<8x1xf32>
    %4 = vector.broadcast %3 : vector<8x1xf32> to vector<8x1024xf32>
    %5 = arith.addf %2, %4 : vector<8x1024xf32>
    %cst_5 = arith.constant 0.000000e+00 : f32
    %6 = vector.broadcast %cst_5 : f32 to vector<8x1024xf32>
    %7 = arith.cmpf ogt, %5, %6 : vector<8x1024xf32>
    %cst_6 = arith.constant 0.00999999977 : f32
    %8 = vector.broadcast %cst_6 : f32 to vector<8x1024xf32>
    %9 = arith.mulf %8, %5 : vector<8x1024xf32>
    %10 = arith.select %7, %5, %9 : vector<8x1024xi1>, vector<8x1024xf32>
    %c0_7 = arith.constant 0 : index
    %c0_8 = arith.constant 0 : index
    %11 = vector.load %arg4[%c0_7, %c0_8] : memref<8x1024xf32, #tpu.memory_space<vmem>>, vector<8x1024xf32>
    tpu.vector_store %arg4[%c0_7, %c0_8], %10 {strides = array<i32>} : memref<8x1024xf32, #tpu.memory_space<vmem>>, vector<8x1024xf32>,
    return
  }
  func.func @transform_0(%arg0: i32) -> (i32, i32) {
    %c0_i32 = arith.constant 0 : i32
    %c0_i32_0 = arith.constant 0 : i32
    %c0_i32_1 = arith.constant 0 : i32
    return %c0_i32, %c0_i32_0 : i32, i32
  }
  func.func @transform_1(%arg0: i32) -> (i32, i32) {
    %c0_i32 = arith.constant 0 : i32
    %c0_i32_0 = arith.constant 0 : i32
    return %c0_i32, %arg0 : i32, i32
  }
  func.func @transform_2(%arg0: i32) -> (i32, i32) {
    %c0_i32 = arith.constant 0 : i32
    %c0_i32_0 = arith.constant 0 : i32
    %c0_i32_1 = arith.constant 0 : i32
    return %c0_i32, %c0_i32_0 : i32, i32
  }
  func.func @transform_3(%arg0: i32) -> (i32, i32) {
    %c0_i32 = arith.constant 0 : i32
    %c0_i32_0 = arith.constant 0 : i32
    return %c0_i32, %arg0 : i32, i32
  }
}

module attributes {stable_mosaic.version = 11 : i64} {
  func.func @_conv_mm_kernel(%arg0: i32, %arg1: memref<8x336xbf16, #tpu.memory_space<vmem>>, %arg2: memref<336x1024xbf16, #tpu.memory_space<vmem>>, %arg3: memref<8x1xf32, #tpu.memory_space<vmem>>, %arg4: memref<8x1024xf32, #tpu.memory_space<vmem>>) attributes {dimension_semantics = [#tpu.dimension_semantics<parallel>], iteration_bounds = array<i64: 20>, scalar_prefetch = 0 : i64, scratch_operands = 0 : i64, tpu.core_type = #tpu.core_type<tc>, window_params = [{pipeline_mode = #tpu.pipeline_mode<synchronous>, transform_indices = @transform_0, window_bounds = array<i64: 8, 336>}, {transform_indices = @transform_1, window_bounds = array<i64: 336, 1024>}, {pipeline_mode = #tpu.pipeline_mode<synchronous>, transform_indices = @transform_2, window_bounds = array<i64: 8, 1>}, {transform_indices = @transform_3, window_bounds = array<i64: 8, 1024>}]} {
    %c0 = arith.constant 0 : index
    %c0_0 = arith.constant 0 : index
    %0 = vector.load %arg1[%c0, %c0_0] : memref<8x336xbf16, #tpu.memory_space<vmem>>, vector<8x336xbf16>
    %c0_1 = arith.constant 0 : index
    %c0_2 = arith.constant 0 : index
    %1 = vector.load %arg2[%c0_1, %c0_2] : memref<336x1024xbf16, #tpu.memory_space<vmem>>, vector<336x1024xbf16>
    %cst = arith.constant dense<0.000000e+00> : vector<8x1024xf32>
    %2 = tpu.matmul %0, %1, %cst {dimension_numbers = #tpu.dot_dimension_numbers<[1], [0], [0], [1], [0, 0, 1, 1], [], []>} : vector<8x336xbf16>, vector<336x1024xbf16>, vector<8x1024xf32> -> vector<8x1024xf32>
    %c0_3 = arith.constant 0 : index
    %c0_4 = arith.constant 0 : index
    %3 = vector.load %arg3[%c0_3, %c0_4] : memref<8x1xf32, #tpu.memory_space<vmem>>, vector<8x1xf32>
    %4 = vector.broadcast %3 : vector<8x1xf32> to vector<8x1024xf32>
    %5 = arith.addf %2, %4 : vector<8x1024xf32>
    %cst_5 = arith.constant 0.000000e+00 : f32
    %6 = vector.broadcast %cst_5 : f32 to vector<8x1024xf32>
    %7 = arith.cmpf ogt, %5, %6 : vector<8x1024xf32>
    %cst_6 = arith.constant 0.00999999977 : f32
    %8 = vector.broadcast %cst_6 : f32 to vector<8x1024xf32>
    %9 = arith.mulf %8, %5 : vector<8x1024xf32>
    %10 = arith.select %7, %5, %9 : vector<8x1024xi1>, vector<8x1024xf32>
    %c0_7 = arith.constant 0 : index
    %c0_8 = arith.constant 0 : index
    %11 = vector.load %arg4[%c0_7, %c0_8] : memref<8x1024xf32, #tpu.memory_space<vmem>>, vector<8x1024xf32>
    tpu.vector_store %arg4[%c0_7, %c0_8], %10 {strides = array<i32>} : memref<8x1024xf32, #tpu.memory_space<vmem>>, vector<8x1024xf32>,
    return
  }
  func.func @transform_0(%arg0: i32) -> (i32, i32) {
    %c0_i32 = arith.constant 0 : i32
    %c0_i32_0 = arith.constant 0 : i32
    %c0_i32_1 = arith.constant 0 : i32
    return %c0_i32, %c0_i32_0 : i32, i32
  }
  func.func @transform_1(%arg0: i32) -> (i32, i32) {
    %c0_i32 = arith.constant 0 : i32
    %c0_i32_0 = arith.constant 0 : i32
    return %c0_i32, %arg0 : i32, i32
  }
  func.func @transform_2(%arg0: i32) -> (i32, i32) {
    %c0_i32 = arith.constant 0 : i32
    %c0_i32_0 = arith.constant 0 : i32
    %c0_i32_1 = arith.constant 0 : i32
    return %c0_i32, %c0_i32_0 : i32, i32
  }
  func.func @transform_3(%arg0: i32) -> (i32, i32) {
    %c0_i32 = arith.constant 0 : i32
    %c0_i32_0 = arith.constant 0 : i32
    return %c0_i32, %arg0 : i32, i32
  }
}

module attributes {stable_mosaic.version = 11 : i64} {
  func.func @_conv_mm_kernel(%arg0: i32, %arg1: memref<8x112xbf16, #tpu.memory_space<vmem>>, %arg2: memref<112x1024xbf16, #tpu.memory_space<vmem>>, %arg3: memref<8x1xf32, #tpu.memory_space<vmem>>, %arg4: memref<8x1024xf32, #tpu.memory_space<vmem>>) attributes {dimension_semantics = [#tpu.dimension_semantics<parallel>], iteration_bounds = array<i64: 20>, scalar_prefetch = 0 : i64, scratch_operands = 0 : i64, tpu.core_type = #tpu.core_type<tc>, window_params = [{pipeline_mode = #tpu.pipeline_mode<synchronous>, transform_indices = @transform_0, window_bounds = array<i64: 8, 112>}, {transform_indices = @transform_1, window_bounds = array<i64: 112, 1024>}, {pipeline_mode = #tpu.pipeline_mode<synchronous>, transform_indices = @transform_2, window_bounds = array<i64: 8, 1>}, {transform_indices = @transform_3, window_bounds = array<i64: 8, 1024>}]} {
    %c0 = arith.constant 0 : index
    %c0_0 = arith.constant 0 : index
    %0 = vector.load %arg1[%c0, %c0_0] : memref<8x112xbf16, #tpu.memory_space<vmem>>, vector<8x112xbf16>
    %c0_1 = arith.constant 0 : index
    %c0_2 = arith.constant 0 : index
    %1 = vector.load %arg2[%c0_1, %c0_2] : memref<112x1024xbf16, #tpu.memory_space<vmem>>, vector<112x1024xbf16>
    %cst = arith.constant dense<0.000000e+00> : vector<8x1024xf32>
    %2 = tpu.matmul %0, %1, %cst {dimension_numbers = #tpu.dot_dimension_numbers<[1], [0], [0], [1], [0, 0, 1, 1], [], []>} : vector<8x112xbf16>, vector<112x1024xbf16>, vector<8x1024xf32> -> vector<8x1024xf32>
    %c0_3 = arith.constant 0 : index
    %c0_4 = arith.constant 0 : index
    %3 = vector.load %arg3[%c0_3, %c0_4] : memref<8x1xf32, #tpu.memory_space<vmem>>, vector<8x1xf32>
    %4 = vector.broadcast %3 : vector<8x1xf32> to vector<8x1024xf32>
    %5 = arith.addf %2, %4 : vector<8x1024xf32>
    %c0_5 = arith.constant 0 : index
    %c0_6 = arith.constant 0 : index
    %6 = vector.load %arg4[%c0_5, %c0_6] : memref<8x1024xf32, #tpu.memory_space<vmem>>, vector<8x1024xf32>
    tpu.vector_store %arg4[%c0_5, %c0_6], %5 {strides = array<i32>} : memref<8x1024xf32, #tpu.memory_space<vmem>>, vector<8x1024xf32>,
    return
  }
  func.func @transform_0(%arg0: i32) -> (i32, i32) {
    %c0_i32 = arith.constant 0 : i32
    %c0_i32_0 = arith.constant 0 : i32
    %c0_i32_1 = arith.constant 0 : i32
    return %c0_i32, %c0_i32_0 : i32, i32
  }
  func.func @transform_1(%arg0: i32) -> (i32, i32) {
    %c0_i32 = arith.constant 0 : i32
    %c0_i32_0 = arith.constant 0 : i32
    return %c0_i32, %arg0 : i32, i32
  }
  func.func @transform_2(%arg0: i32) -> (i32, i32) {
    %c0_i32 = arith.constant 0 : i32
    %c0_i32_0 = arith.constant 0 : i32
    %c0_i32_1 = arith.constant 0 : i32
    return %c0_i32, %c0_i32_0 : i32, i32
  }
  func.func @transform_3(%arg0: i32) -> (i32, i32) {
    %c0_i32 = arith.constant 0 : i32
    %c0_i32_0 = arith.constant 0 : i32
    return %c0_i32, %arg0 : i32, i32
  }
}

</mosaic_0001>

<llo_original>
// kernel: _lambda_.12
$region0: #{_lambda_.12}
  #allocation0 [shape = 'u32[]', space=smem, size = 0x4, offset = 0x4, fixed_abs, tag = 'smem constant byte address 0x4 - core index']
  #allocation1 [shape = 'u32[144,128]{1,0:T(1,128)}', space=vmem, size = 0x12000, scoped, tag = 'internal scratch']
  %s0 = inlined_call_operand.vmem [shape: bf16[8,32], index: 0, kind: input, shape index: {}]
  %s1 = inlined_call_operand.vmem [shape: bf16[32,12288], index: 1, kind: input, shape index: {}]
  %s2 = inlined_call_operand.vmem [shape: f32[8,1], index: 2, kind: input, shape index: {}]
  %s3 = inlined_call_operand.vmem [shape: f32[8,12288], index: 3, kind: output, shape index: {}]
  %s4 = sld [smem:[#allocation0]]
  $region68: #{_lambda_.12} parent=0
    _
  %s6 = ssub.s32 1, %s4
  %s7 = scalar_select 0, %s6, %s4
  $region1: #{_lambda_.12} parent=0
    #allocation2 [shape = 'u8[131072]{0}', space=vmem, size = 0x20000, scoped, tag = 'input window, operand 1']
    loop: start=0, step=1, limit=14
    $region2: #{_lambda_.12} parent=1 // loop_pre_header
      _
    $region3: #{_lambda_.12} parent=1 // loop_header
      %s9 = sphi 0, %s13
      %p10 = scmp.ge.s32.totalorder %s9, 14
      %s17 = sphi 0, %s17
      %s19 = sphi 0, %s17
      %s20 = sphi 0, %s19
      %s34 = sphi 0, %s20
      %s40 = sphi 0, %s42
      %s43 = sphi 0, %s40
      %s44 = sphi 0, %s43
      %s60 = sphi 0, %s44
      %s64 = sphi 0, %s64
      %s66 = sphi 0, %s64
      %s67 = sphi 0, %s66
      %s81 = sphi 0, %s67
      %s87 = sphi 0, %s89
      %s90 = sphi 0, %s87
      %s91 = sphi 0, %s90
      %s107 = sphi 0, %s91
    $region4: #{_lambda_.12} parent=1 // loop_header_branch
      %12 = sbr.rel (%p10) target = $region8
    $region5: #{_lambda_.12} parent=1 // loop_body
      %s14 = ssub.s32 %s9, 1
      %s15 = ssub.s32 %s9, 2
      %s16 = sadd.s32 %s9, 1
      %s18 = sadd.s32 %s17, 1
      %p21 = scmp.eq.s32.totalorder %s9, 11
      %p22 = scmp.ne.s32.totalorder %s17, %s19
      %p23 = scmp.eq.s32.totalorder %s9, 0
      %p24 = por %p22, %p23
      %p25 = scmp.ne.s32.totalorder %s17, %s19
      %p26 = scmp.eq.s32.totalorder %s14, 11
      %p27 = por %p25, %p26
      %p28 = scmp.ne.s32.totalorder %s19, %s20
      %p29 = scmp.eq.s32.totalorder %s14, 0
      %p30 = por %p28, %p29
      %p31 = scmp.ne.s32.totalorder %s19, %s20
      %p32 = scmp.eq.s32.totalorder %s15, 11
      %p33 = por %p31, %p32
      %p35 = scmp.ne.s32.totalorder %s20, %s34
      %p36 = scmp.eq.s32.totalorder %s15, 0
      %p37 = por %p35, %p36
      %s38 = ssub.s32 %s9, %s16
      %p39 = scmp.eq.s32.totalorder %s38, 0
      %s41 = sadd.s32 %s40, 1
      %s42 = scalar_select %p39, %s40, %s41
      %p45 = pneg %p39
      %p46 = scmp.eq.s32.totalorder %s9, 11
      %p47 = por %p45, %p46
      %p48 = scmp.ne.s32.totalorder %s40, %s43
      %p49 = scmp.eq.s32.totalorder %s9, 0
      %p50 = por %p48, %p49
      %p51 = scmp.ne.s32.totalorder %s40, %s43
      %p52 = scmp.eq.s32.totalorder %s14, 11
      %p53 = por %p51, %p52
      %p54 = scmp.ne.s32.totalorder %s43, %s44
      %p55 = scmp.eq.s32.totalorder %s14, 0
      %p56 = por %p54, %p55
      %p57 = scmp.ne.s32.totalorder %s43, %s44
      %p58 = scmp.eq.s32.totalorder %s15, 11
      %p59 = por %p57, %p58
      %p61 = scmp.ne.s32.totalorder %s44, %s60
      %p62 = scmp.eq.s32.totalorder %s15, 0
      %p63 = por %p61, %p62
      %s65 = sadd.s32 %s64, 1
      %p68 = scmp.eq.s32.totalorder %s9, 11
      %p69 = scmp.ne.s32.totalorder %s64, %s66
      %p70 = scmp.eq.s32.totalorder %s9, 0
      %p71 = por %p69, %p70
      %p72 = scmp.ne.s32.totalorder %s64, %s66
      %p73 = scmp.eq.s32.totalorder %s14, 11
      %p74 = por %p72, %p73
      %p75 = scmp.ne.s32.totalorder %s66, %s67
      %p76 = scmp.eq.s32.totalorder %s14, 0
      %p77 = por %p75, %p76
      %p78 = scmp.ne.s32.totalorder %s66, %s67
      %p79 = scmp.eq.s32.totalorder %s15, 11
      %p80 = por %p78, %p79
      %p82 = scmp.ne.s32.totalorder %s67, %s81
      %p83 = scmp.eq.s32.totalorder %s15, 0
      %p84 = por %p82, %p83
      %s85 = ssub.s32 %s9, %s16
      %p86 = scmp.eq.s32.totalorder %s85, 0
      %s88 = sadd.s32 %s87, 1
      %s89 = scalar_select %p86, %s87, %s88
      %p92 = pneg %p86
      %p93 = scmp.eq.s32.totalorder %s9, 11
      %p94 = por %p92, %p93
      %p95 = scmp.ne.s32.totalorder %s87, %s90
      %p96 = scmp.eq.s32.totalorder %s9, 0
      %p97 = por %p95, %p96
      %p98 = scmp.ne.s32.totalorder %s87, %s90
      %p99 = scmp.eq.s32.totalorder %s14, 11
      %p100 = por %p98, %p99
      %p101 = scmp.ne.s32.totalorder %s90, %s91
      %p102 = scmp.eq.s32.totalorder %s14, 0
      %p103 = por %p101, %p102
      %p104 = scmp.ne.s32.totalorder %s90, %s91
      %p105 = scmp.eq.s32.totalorder %s15, 11
      %p106 = por %p104, %p105
      %p108 = scmp.ne.s32.totalorder %s91, %s107
      %p109 = scmp.eq.s32.totalorder %s15, 0
      %p110 = por %p108, %p109
      %p111 = scmp.le.s32.totalorder 1, %s9
      %p112 = scmp.lt.s32.totalorder %s9, 13
      %p113 = pnand %p111, %p112
      %p114 = pneg %p113
      // Predicated region
      $region9: #{_lambda_.12} parent=5 // pred_check
        _
      $region10: #{_lambda_.12} parent=5 // pred_check_branch
        %116 = sbr.rel (%p113) target = $region12
      $region11: #{_lambda_.12} parent=5 // pred_region
        %s117 = ssub.s32 %s9, 1
        // Predicated region
        $region13: #{_lambda_.12} parent=11 // pred_check
          %p118 = pneg %p30
        $region14: #{_lambda_.12} parent=11 // pred_check_branch
          %120 = sbr.rel (%p118) target = $region16
        $region15: #{_lambda_.12} parent=11 // pred_region
          _
        $region16: #{_lambda_.12} parent=11 // pred_fallthru
          _
        // Predicated region
        $region17: #{_lambda_.12} parent=11 // pred_check
          %p121 = pneg %p77
        $region18: #{_lambda_.12} parent=11 // pred_check_branch
          %123 = sbr.rel (%p121) target = $region20
        $region19: #{_lambda_.12} parent=11 // pred_region
          _
        $region20: #{_lambda_.12} parent=11 // pred_fallthru
          _
      $region12: #{_lambda_.12} parent=5 // pred_fallthru
        _
      %p124 = scmp.lt.s32.totalorder %s9, 12
      // Predicated region
      $region21: #{_lambda_.12} parent=5 // pred_check
        %p125 = pneg %p124
      $region22: #{_lambda_.12} parent=5 // pred_check_branch
        %127 = sbr.rel (%p125) target = $region24
      $region23: #{_lambda_.12} parent=5 // pred_region
        // Predicated region
        $region25: #{_lambda_.12} parent=23 // pred_check
          %p128 = pneg %p50
        $region26: #{_lambda_.12} parent=23 // pred_check_branch
          %130 = sbr.rel (%p128) target = $region28
        $region27: #{_lambda_.12} parent=23 // pred_region
          %s131 = sand.u32 %s40, 1
          %s132 = sand.u32 %s40, 1
          %s133 = smul.addr %s132, 128
          %s134 = scalar_lea.vmem [#allocation2], %s133
          %s135 = smul.u32 8, %s9
          %s136 = smul.addr %s135, 4
          %s137 = scalar_lea.vmem %s1, %s136
          // Predicated region
          $region29: #{_lambda_.12} parent=27 // pred_check
            _
          $region30: #{_lambda_.12} parent=27 // pred_check_branch
            %139 = sbr.rel (0) target = $region32
          $region31: #{_lambda_.12} parent=27 // pred_region
            // Predicated region
            $region33: #{_lambda_.12} parent=31 // pred_check
              _
            $region34: #{_lambda_.12} parent=31 // pred_check_branch
              %141 = sbr.rel (0) target = $region36
            $region35: #{_lambda_.12} parent=31 // pred_region
              loop: start=0, step=1, limit=1
              $region37: #{_lambda_.12} parent=35 // loop_pre_header
                _
              $region38: #{_lambda_.12} parent=35 // loop_header
                %s143 = sphi 0, %s147
                %p144 = scmp.ge.s32.totalorder %s143, 1
                %s148 = sphi %s137, %s137
                %s149 = sphi %s134, %s134
              $region39: #{_lambda_.12} parent=35 // loop_header_branch
                %146 = sbr.rel (%p144) target = $region43
              $region40: #{_lambda_.12} parent=35 // loop_body
                %v150 = vld [vmem:[%s148] sm:$0xff]
                %151 = vst [vmem:[%s149] sm:$0xff] %v150
                %v152 = vld [vmem:[%s148 + $0x8] sm:$0xff]
                %153 = vst [vmem:[%s149 + $0x8] sm:$0xff] %v152
                %v154 = vld [vmem:[%s148 + $0x10] sm:$0xff]
                %155 = vst [vmem:[%s149 + $0x10] sm:$0xff] %v154
                %v156 = vld [vmem:[%s148 + $0x18] sm:$0xff]
                %157 = vst [vmem:[%s149 + $0x18] sm:$0xff] %v156
                %v158 = vld [vmem:[%s148 + $0x180] sm:$0xff]
                %159 = vst [vmem:[%s149 + $0x20] sm:$0xff] %v158
                %v160 = vld [vmem:[%s148 + $0x188] sm:$0xff]
                %161 = vst [vmem:[%s149 + $0x28] sm:$0xff] %v160
                %v162 = vld [vmem:[%s148 + $0x190] sm:$0xff]
                %163 = vst [vmem:[%s149 + $0x30] sm:$0xff] %v162
                %v164 = vld [vmem:[%s148 + $0x198] sm:$0xff]
                %165 = vst [vmem:[%s149 + $0x38] sm:$0xff] %v164
                %v166 = vld [vmem:[%s148 + $0x300] sm:$0xff]
                %167 = vst [vmem:[%s149 + $0x40] sm:$0xff] %v166
                %v168 = vld [vmem:[%s148 + $0x308] sm:$0xff]
                %169 = vst [vmem:[%s149 + $0x48] sm:$0xff] %v168
                %v170 = vld [vmem:[%s148 + $0x310] sm:$0xff]
                %171 = vst [vmem:[%s149 + $0x50] sm:$0xff] %v170
                %v172 = vld [vmem:[%s148 + $0x318] sm:$0xff]
                %173 = vst [vmem:[%s149 + $0x58] sm:$0xff] %v172
                %v174 = vld [vmem:[%s148 + $0x480] sm:$0xff]
                %175 = vst [vmem:[%s149 + $0x60] sm:$0xff] %v174
                %v176 = vld [vmem:[%s148 + $0x488] sm:$0xff]
                %177 = vst [vmem:[%s149 + $0x68] sm:$0xff] %v176
                %v178 = vld [vmem:[%s148 + $0x490] sm:$0xff]
                %179 = vst [vmem:[%s149 + $0x70] sm:$0xff] %v178
                %v180 = vld [vmem:[%s148 + $0x498] sm:$0xff]
                %181 = vst [vmem:[%s149 + $0x78] sm:$0xff] %v180
              $region41: #{_lambda_.12} parent=35 // loop_footer
                %s147 = sadd.s32 1, %s143
              $region42: #{_lambda_.12} parent=35 // loop_footer_branch
                %142 = sbr.rel target = $region38
              $region43: #{_lambda_.12} parent=35 // loop_exit
                _
            $region36: #{_lambda_.12} parent=31 // pred_fallthru
              _
            // Predicated region
            $region44: #{_lambda_.12} parent=31 // pred_check
              _
            $region45: #{_lambda_.12} parent=31 // pred_check_branch
              %183 = sbr.rel target = $region47
            $region46: #{_lambda_.12} parent=31 // pred_region
              _
            $region47: #{_lambda_.12} parent=31 // pred_fallthru
              _
          $region32: #{_lambda_.12} parent=27 // pred_fallthru
            _
          %184 = vnop
        $region28: #{_lambda_.12} parent=23 // pred_fallthru
          _
      $region24: #{_lambda_.12} parent=5 // pred_fallthru
        _
      %p185 = scmp.le.s32.totalorder 1, %s9
      %p186 = scmp.lt.s32.totalorder %s9, 13
      %p187 = pnand %p185, %p186
      %p188 = pneg %p187
      // Predicated region
      $region48: #{_lambda_.12} parent=5 // pred_check
        _
      $region49: #{_lambda_.12} parent=5 // pred_check_branch
        %190 = sbr.rel (%p187) target = $region51
      $region50: #{_lambda_.12} parent=5 // pred_region
        %s191 = ssub.s32 %s9, 1
        %s192 = sand.u32 %s43, 1
        %s193 = sand.u32 %s43, 1
        %s194 = smul.addr %s193, 128
        %s195 = scalar_lea.vmem [#allocation2], %s194
        // Predicated region
        $region52: #{_lambda_.12} parent=50 // pred_check
          %p196 = pneg %p56
        $region53: #{_lambda_.12} parent=50 // pred_check_branch
          %198 = sbr.rel (%p196) target = $region55
        $region54: #{_lambda_.12} parent=50 // pred_region
          _
        $region55: #{_lambda_.12} parent=50 // pred_fallthru
          _
        %p199 = pneg %p30
        %p200 = pneg %p27
        %s201 = sand.u32 %s43, 1
        %s202 = sand.u32 %s43, 1
        %s203 = smul.addr %s202, 128
        %s204 = scalar_lea.vmem [#allocation2], %s203
        %p205 = pneg %p56
        %p206 = pneg %p53
        %p207 = pneg %p77
        %p208 = pneg %p74
        %p209 = pneg %p103
        %p210 = pneg %p100
        %s211 = smul.u32 8, %s14
        %p212 = scmp.lt.s32.totalorder %s211, 95
        %s213 = scalar_select %p212, %s211, 95
        %s214 = smul.addr %s213, 8
        %s215 = scalar_lea.vmem %s3, %s214
        %s216 = smul.u32 8, %s14
        %s217 = smul.u32 8, %s14
        %p218 = scmp.lt.s32.totalorder %s217, 95
        %s219 = scalar_select %p218, %s217, 95
        %s220 = smul.addr %s219, 8
        %s221 = scalar_lea.vmem %s3, %s220
        %s222 = smul.u32 8, %s14
        %v224 = vld [vmem:[%s0] sm:$0xf]
        %v225 = vld [vmem:[%s195] sm:$0xff]
        %v226 = vld [vmem:[%s195 + $0x8] sm:$0xff]
        %v227 = vld [vmem:[%s195 + $0x10] sm:$0xff]
        %v228 = vld [vmem:[%s195 + $0x18] sm:$0xff]
        %v229 = vld [vmem:[%s195 + $0x20] sm:$0xff]
        %v230 = vld [vmem:[%s195 + $0x28] sm:$0xff]
        %v231 = vld [vmem:[%s195 + $0x30] sm:$0xff]
        %v232 = vld [vmem:[%s195 + $0x38] sm:$0xff]
        %v233 = vld [vmem:[%s195 + $0x40] sm:$0xff]
        %v234 = vld [vmem:[%s195 + $0x48] sm:$0xff]
        %v235 = vld [vmem:[%s195 + $0x50] sm:$0xff]
        %v236 = vld [vmem:[%s195 + $0x58] sm:$0xff]
        %v237 = vld [vmem:[%s195 + $0x60] sm:$0xff]
        %v238 = vld [vmem:[%s195 + $0x68] sm:$0xff]
        %v239 = vld [vmem:[%s195 + $0x70] sm:$0xff]
        %v240 = vld [vmem:[%s195 + $0x78] sm:$0xff]
        %v241 = vld [vmem:[%s2] sm:$0xff]
        %243 = vset.pattern.permute.xlu0 0
        %244 = vperm.xlu0 %243, %v241
        %v245 = vpop.permute.xlu0 %244
        %v263 = vunpack.c.l.b16 %v225
        %v264 = vunpack.c.h.b16 %v225
        %v265 = vunpack.c.l.b16 %v226
        %v266 = vunpack.c.h.b16 %v226
        %v267 = vunpack.c.l.b16 %v227
        %v268 = vunpack.c.h.b16 %v227
        %v269 = vunpack.c.l.b16 %v228
        %v270 = vunpack.c.h.b16 %v228
        %v271 = vunpack.c.l.b16 %v229
        %v272 = vunpack.c.h.b16 %v229
        %v273 = vunpack.c.l.b16 %v230
        %v274 = vunpack.c.h.b16 %v230
        %v275 = vunpack.c.l.b16 %v231
        %v276 = vunpack.c.h.b16 %v231
        %v277 = vunpack.c.l.b16 %v232
        %v278 = vunpack.c.h.b16 %v232
        %v279 = vunpack.c.l.b16 %v233
        %v280 = vunpack.c.h.b16 %v233
        %v281 = vunpack.c.l.b16 %v234
        %v282 = vunpack.c.h.b16 %v234
        %v283 = vunpack.c.l.b16 %v235
        %v284 = vunpack.c.h.b16 %v235
        %v285 = vunpack.c.l.b16 %v236
        %v286 = vunpack.c.h.b16 %v236
        %v287 = vunpack.c.l.b16 %v237
        %v288 = vunpack.c.h.b16 %v237
        %v289 = vunpack.c.l.b16 %v238
        %v290 = vunpack.c.h.b16 %v238
        %v291 = vunpack.c.l.b16 %v239
        %v292 = vunpack.c.h.b16 %v239
        %v293 = vunpack.c.l.b16 %v240
        %v294 = vunpack.c.h.b16 %v240
        %v295 = vpack.c.b16 %v271, %v263
        %v296 = vpack.c.b16 %v272, %v264
        %v297 = vpack.c.b16 %v273, %v265
        %v298 = vpack.c.b16 %v274, %v266
        %v299 = vpack.c.b16 %v275, %v267
        %v300 = vpack.c.b16 %v276, %v268
        %v301 = vpack.c.b16 %v277, %v269
        %v302 = vpack.c.b16 %v278, %v270
        %v303 = vpack.c.b16 %v287, %v279
        %v304 = vpack.c.b16 %v288, %v280
        %v305 = vpack.c.b16 %v289, %v281
        %v306 = vpack.c.b16 %v290, %v282
        %v307 = vpack.c.b16 %v291, %v283
        %v308 = vpack.c.b16 %v292, %v284
        %v309 = vpack.c.b16 %v293, %v285
        %v310 = vpack.c.b16 %v294, %v286
        %vm327 = vcmask 261120
        %v329 = vsel %vm327, %v224, 0
        %331 = vmatprep.subr.bf16.mxu0 %v296
        %332 = vmatpush1.bf16.msra.mxu0 %v295
        %333 = vmatprep.subr.bf16.mxu0 %v304
        %334 = vmatpush1.bf16.msra.mxu0 %v303
        %335 = vmatprep.subr.bf16.mxu0 0
        %336 = vmatpush1.bf16.msra.mxu0 0
        %337 = vmatprep.subr.bf16.mxu0 0
        %338 = vmatpush1.bf16.msra.mxu0 0
        %339 = vmatprep.subr.bf16.mxu0 0
        %340 = vmatpush1.bf16.msra.mxu0 0
        %341 = vmatprep.subr.bf16.mxu0 0
        %342 = vmatpush1.bf16.msra.mxu0 0
        %343 = vmatprep.subr.bf16.mxu0 0
        %344 = vmatpush1.bf16.msra.mxu0 0
        %345 = vmatprep.subr.bf16.mxu0 0
        %346 = vmatpush1.bf16.msra.mxu0 0
        %347 = vmatprep.subr.bf16.mxu0 0
        %348 = vmatpush1.bf16.msra.mxu0 0
        %349 = vmatprep.subr.bf16.mxu0 0
        %350 = vmatpush1.bf16.msra.mxu0 0
        %351 = vmatprep.subr.bf16.mxu0 0
        %352 = vmatpush1.bf16.msra.mxu0 0
        %353 = vmatprep.subr.bf16.mxu0 0
        %354 = vmatpush1.bf16.msra.mxu0 0
        %355 = vmatprep.subr.bf16.mxu0 0
        %356 = vmatpush1.bf16.msra.mxu0 0
        %357 = vmatprep.subr.bf16.mxu0 0
        %358 = vmatpush1.bf16.msra.mxu0 0
        %359 = vmatprep.subr.bf16.mxu0 0
        %360 = vmatpush1.bf16.msra.mxu0 0
        %361 = vmatprep.subr.bf16.mxu0 0
        %362 = vmatpush1.bf16.msra.mxu0 0
        %363 = vmatprep.mubr.bf16.mxu0 0
        %364 = vmatmul.mubr.bf16.gmra.mrb[0].mxu0 %v329
        %v365 = vpop.f32.mrb[0].mxu0
        %v366 = vadd.f32 %v245, %v365
        %v367 = vpop.f32.mrb[0].mxu0
        %v368 = vadd.f32 %v245, %v367
        %v369 = vpop.f32.mrb[0].mxu0
        %v370 = vpop.f32.mrb[0].mxu0
        %371 = vdwg.mxu0
        %372 = vmatprep.subr.bf16.mxu0 %v298
        %373 = vmatpush1.bf16.msra.mxu0 %v297
        %374 = vmatprep.subr.bf16.mxu0 %v306
        %375 = vmatpush1.bf16.msra.mxu0 %v305
        %376 = vmatprep.subr.bf16.mxu0 0
        %377 = vmatpush1.bf16.msra.mxu0 0
        %378 = vmatprep.subr.bf16.mxu0 0
        %379 = vmatpush1.bf16.msra.mxu0 0
        %380 = vmatprep.subr.bf16.mxu0 0
        %381 = vmatpush1.bf16.msra.mxu0 0
        %382 = vmatprep.subr.bf16.mxu0 0
        %383 = vmatpush1.bf16.msra.mxu0 0
        %384 = vmatprep.subr.bf16.mxu0 0
        %385 = vmatpush1.bf16.msra.mxu0 0
        %386 = vmatprep.subr.bf16.mxu0 0
        %387 = vmatpush1.bf16.msra.mxu0 0
        %388 = vmatprep.subr.bf16.mxu0 0
        %389 = vmatpush1.bf16.msra.mxu0 0
        %390 = vmatprep.subr.bf16.mxu0 0
        %391 = vmatpush1.bf16.msra.mxu0 0
        %392 = vmatprep.subr.bf16.mxu0 0
        %393 = vmatpush1.bf16.msra.mxu0 0
        %394 = vmatprep.subr.bf16.mxu0 0
        %395 = vmatpush1.bf16.msra.mxu0 0
        %396 = vmatprep.subr.bf16.mxu0 0
        %397 = vmatpush1.bf16.msra.mxu0 0
        %398 = vmatprep.subr.bf16.mxu0 0
        %399 = vmatpush1.bf16.msra.mxu0 0
        %400 = vmatprep.subr.bf16.mxu0 0
        %401 = vmatpush1.bf16.msra.mxu0 0
        %402 = vmatprep.subr.bf16.mxu0 0
        %403 = vmatpush1.bf16.msra.mxu0 0
        %404 = vmatprep.mubr.bf16.mxu0 0
        %405 = vmatmul.mubr.bf16.gmra.mrb[0].mxu0 %v329
        %v406 = vpop.f32.mrb[0].mxu0
        %v407 = vadd.f32 %v245, %v406
        %v408 = vpop.f32.mrb[0].mxu0
        %v409 = vadd.f32 %v245, %v408
        %v410 = vpop.f32.mrb[0].mxu0
        %v411 = vpop.f32.mrb[0].mxu0
        %412 = vdwg.mxu0
        %413 = vmatprep.subr.bf16.mxu0 %v300
        %414 = vmatpush1.bf16.msra.mxu0 %v299
        %415 = vmatprep.subr.bf16.mxu0 %v308
        %416 = vmatpush1.bf16.msra.mxu0 %v307
        %417 = vmatprep.subr.bf16.mxu0 0
        %418 = vmatpush1.bf16.msra.mxu0 0
        %419 = vmatprep.subr.bf16.mxu0 0
        %420 = vmatpush1.bf16.msra.mxu0 0
        %421 = vmatprep.subr.bf16.mxu0 0
        %422 = vmatpush1.bf16.msra.mxu0 0
        %423 = vmatprep.subr.bf16.mxu0 0
        %424 = vmatpush1.bf16.msra.mxu0 0
        %425 = vmatprep.subr.bf16.mxu0 0
        %426 = vmatpush1.bf16.msra.mxu0 0
        %427 = vmatprep.subr.bf16.mxu0 0
        %428 = vmatpush1.bf16.msra.mxu0 0
        %429 = vmatprep.subr.bf16.mxu0 0
        %430 = vmatpush1.bf16.msra.mxu0 0
        %431 = vmatprep.subr.bf16.mxu0 0
        %432 = vmatpush1.bf16.msra.mxu0 0
        %433 = vmatprep.subr.bf16.mxu0 0
        %434 = vmatpush1.bf16.msra.mxu0 0
        %435 = vmatprep.subr.bf16.mxu0 0
        %436 = vmatpush1.bf16.msra.mxu0 0
        %437 = vmatprep.subr.bf16.mxu0 0
        %438 = vmatpush1.bf16.msra.mxu0 0
        %439 = vmatprep.subr.bf16.mxu0 0
        %440 = vmatpush1.bf16.msra.mxu0 0
        %441 = vmatprep.subr.bf16.mxu0 0
        %442 = vmatpush1.bf16.msra.mxu0 0
        %443 = vmatprep.subr.bf16.mxu0 0
        %444 = vmatpush1.bf16.msra.mxu0 0
        %445 = vmatprep.mubr.bf16.mxu0 0
        %446 = vmatmul.mubr.bf16.gmra.mrb[0].mxu0 %v329
        %v447 = vpop.f32.mrb[0].mxu0
        %v448 = vadd.f32 %v245, %v447
        %v449 = vpop.f32.mrb[0].mxu0
        %v450 = vadd.f32 %v245, %v449
        %v451 = vpop.f32.mrb[0].mxu0
        %v452 = vpop.f32.mrb[0].mxu0
        %453 = vdwg.mxu0
        %454 = vmatprep.subr.bf16.mxu0 %v302
        %455 = vmatpush1.bf16.msra.mxu0 %v301
        %456 = vmatprep.subr.bf16.mxu0 %v310
        %457 = vmatpush1.bf16.msra.mxu0 %v309
        %458 = vmatprep.subr.bf16.mxu0 0
        %459 = vmatpush1.bf16.msra.mxu0 0
        %460 = vmatprep.subr.bf16.mxu0 0
        %461 = vmatpush1.bf16.msra.mxu0 0
        %462 = vmatprep.subr.bf16.mxu0 0
        %463 = vmatpush1.bf16.msra.mxu0 0
        %464 = vmatprep.subr.bf16.mxu0 0
        %465 = vmatpush1.bf16.msra.mxu0 0
        %466 = vmatprep.subr.bf16.mxu0 0
        %467 = vmatpush1.bf16.msra.mxu0 0
        %468 = vmatprep.subr.bf16.mxu0 0
        %469 = vmatpush1.bf16.msra.mxu0 0
        %470 = vmatprep.subr.bf16.mxu0 0
        %471 = vmatpush1.bf16.msra.mxu0 0
        %472 = vmatprep.subr.bf16.mxu0 0
        %473 = vmatpush1.bf16.msra.mxu0 0
        %474 = vmatprep.subr.bf16.mxu0 0
        %475 = vmatpush1.bf16.msra.mxu0 0
        %476 = vmatprep.subr.bf16.mxu0 0
        %477 = vmatpush1.bf16.msra.mxu0 0
        %478 = vmatprep.subr.bf16.mxu0 0
        %479 = vmatpush1.bf16.msra.mxu0 0
        %480 = vmatprep.subr.bf16.mxu0 0
        %481 = vmatpush1.bf16.msra.mxu0 0
        %482 = vmatprep.subr.bf16.mxu0 0
        %483 = vmatpush1.bf16.msra.mxu0 0
        %484 = vmatprep.subr.bf16.mxu0 0
        %485 = vmatpush1.bf16.msra.mxu0 0
        %486 = vmatprep.mubr.bf16.mxu0 0
        %487 = vmatmul.mubr.bf16.gmra.mrb[0].mxu0 %v329
        %v488 = vpop.f32.mrb[0].mxu0
        %v489 = vadd.f32 %v245, %v488
        %v490 = vpop.f32.mrb[0].mxu0
        %v491 = vadd.f32 %v245, %v490
        %v492 = vpop.f32.mrb[0].mxu0
        %v493 = vpop.f32.mrb[0].mxu0
        %494 = vdwg.mxu0
        %495 = vst [vmem:[%s221] sm:$0xff] %v366
        %496 = vst [vmem:[%s221 + $0x8] sm:$0xff] %v368
        %497 = vst [vmem:[%s221 + $0x10] sm:$0xff] %v407
        %498 = vst [vmem:[%s221 + $0x18] sm:$0xff] %v409
        %499 = vst [vmem:[%s221 + $0x20] sm:$0xff] %v448
        %500 = vst [vmem:[%s221 + $0x28] sm:$0xff] %v450
        %501 = vst [vmem:[%s221 + $0x30] sm:$0xff] %v489
        %502 = vst [vmem:[%s221 + $0x38] sm:$0xff] %v491
        %s503 = smul.u32 8, %s14
        %p504 = scmp.lt.s32.totalorder %s503, 95
        %s505 = scalar_select %p504, %s503, 95
        %s506 = smul.addr %s505, 8
        %s507 = scalar_lea.vmem %s3, %s506
        // Predicated region
        $region56: #{_lambda_.12} parent=50 // pred_check
          %p508 = pneg %p100
        $region57: #{_lambda_.12} parent=50 // pred_check_branch
          %510 = sbr.rel (%p508) target = $region59
        $region58: #{_lambda_.12} parent=50 // pred_region
          %s511 = smul.u32 8, %s14
        $region59: #{_lambda_.12} parent=50 // pred_fallthru
          _
      $region51: #{_lambda_.12} parent=5 // pred_fallthru
        _
      %p512 = scmp.le.s32.totalorder 2, %s9
      // Predicated region
      $region60: #{_lambda_.12} parent=5 // pred_check
        %p513 = pneg %p512
      $region61: #{_lambda_.12} parent=5 // pred_check_branch
        %515 = sbr.rel (%p513) target = $region63
      $region62: #{_lambda_.12} parent=5 // pred_region
        %s516 = ssub.s32 %s9, 2
        // Predicated region
        $region64: #{_lambda_.12} parent=62 // pred_check
          %p517 = pneg %p106
        $region65: #{_lambda_.12} parent=62 // pred_check_branch
          %519 = sbr.rel (%p517) target = $region67
        $region66: #{_lambda_.12} parent=62 // pred_region
          %s520 = smul.u32 8, %s15
          %p521 = scmp.lt.s32.totalorder %s520, 95
          %s522 = scalar_select %p521, %s520, 95
          %s523 = smul.addr %s522, 8
          %s524 = scalar_lea.vmem %s3, %s523
        $region67: #{_lambda_.12} parent=62 // pred_fallthru
          _
      $region63: #{_lambda_.12} parent=5 // pred_fallthru
        _
    $region6: #{_lambda_.12} parent=1 // loop_footer
      %s13 = sadd.s32 1, %s9
    $region7: #{_lambda_.12} parent=1 // loop_footer_branch
      %8 = sbr.rel target = $region3
    $region8: #{_lambda_.12} parent=1 // loop_exit
      _

// kernel: _lambda_.15
$region0: #{_lambda_.15}
  #allocation0 [shape = 'u32[]', space=smem, size = 0x4, offset = 0x4, fixed_abs, tag = 'smem constant byte address 0x4 - core index']
  #allocation1 [shape = 'u32[144,128]{1,0:T(1,128)}', space=vmem, size = 0x12000, scoped, tag = 'internal scratch']
  %s0 = inlined_call_operand.vmem [shape: bf16[8,112], index: 0, kind: input, shape index: {}]
  %s1 = inlined_call_operand.vmem [shape: bf16[112,1536], index: 1, kind: input, shape index: {}]
  %s2 = inlined_call_operand.vmem [shape: f32[8,1], index: 2, kind: input, shape index: {}]
  %s3 = inlined_call_operand.vmem [shape: f32[8,1536], index: 3, kind: output, shape index: {}]
  %s4 = sld [smem:[#allocation0]]
  $region68: #{_lambda_.15} parent=0
    _
  %s6 = ssub.s32 1, %s4
  %s7 = scalar_select 0, %s6, %s4
  $region1: #{_lambda_.15} parent=0
    #allocation2 [shape = 'u8[344064]{0}', space=vmem, size = 0x54000, scoped, tag = 'input window, operand 1']
    loop: start=0, step=1, limit=4
    $region2: #{_lambda_.15} parent=1 // loop_pre_header
      _
    $region3: #{_lambda_.15} parent=1 // loop_header
      %s9 = sphi 0, %s13
      %p10 = scmp.ge.s32.totalorder %s9, 4
      %s17 = sphi 0, %s17
      %s19 = sphi 0, %s17
      %s20 = sphi 0, %s19
      %s34 = sphi 0, %s20
      %s40 = sphi 0, %s42
      %s43 = sphi 0, %s40
      %s44 = sphi 0, %s43
      %s60 = sphi 0, %s44
      %s64 = sphi 0, %s64
      %s66 = sphi 0, %s64
      %s67 = sphi 0, %s66
      %s81 = sphi 0, %s67
      %s87 = sphi 0, %s89
      %s90 = sphi 0, %s87
      %s91 = sphi 0, %s90
      %s107 = sphi 0, %s91
    $region4: #{_lambda_.15} parent=1 // loop_header_branch
      %12 = sbr.rel (%p10) target = $region8
    $region5: #{_lambda_.15} parent=1 // loop_body
      %s14 = ssub.s32 %s9, 1
      %s15 = ssub.s32 %s9, 2
      %s16 = sadd.s32 %s9, 1
      %s18 = sadd.s32 %s17, 1
      %p21 = scmp.eq.s32.totalorder %s9, 1
      %p22 = scmp.ne.s32.totalorder %s17, %s19
      %p23 = scmp.eq.s32.totalorder %s9, 0
      %p24 = por %p22, %p23
      %p25 = scmp.ne.s32.totalorder %s17, %s19
      %p26 = scmp.eq.s32.totalorder %s14, 1
      %p27 = por %p25, %p26
      %p28 = scmp.ne.s32.totalorder %s19, %s20
      %p29 = scmp.eq.s32.totalorder %s14, 0
      %p30 = por %p28, %p29
      %p31 = scmp.ne.s32.totalorder %s19, %s20
      %p32 = scmp.eq.s32.totalorder %s15, 1
      %p33 = por %p31, %p32
      %p35 = scmp.ne.s32.totalorder %s20, %s34
      %p36 = scmp.eq.s32.totalorder %s15, 0
      %p37 = por %p35, %p36
      %s38 = ssub.s32 %s9, %s16
      %p39 = scmp.eq.s32.totalorder %s38, 0
      %s41 = sadd.s32 %s40, 1
      %s42 = scalar_select %p39, %s40, %s41
      %p45 = pneg %p39
      %p46 = scmp.eq.s32.totalorder %s9, 1
      %p47 = por %p45, %p46
      %p48 = scmp.ne.s32.totalorder %s40, %s43
      %p49 = scmp.eq.s32.totalorder %s9, 0
      %p50 = por %p48, %p49
      %p51 = scmp.ne.s32.totalorder %s40, %s43
      %p52 = scmp.eq.s32.totalorder %s14, 1
      %p53 = por %p51, %p52
      %p54 = scmp.ne.s32.totalorder %s43, %s44
      %p55 = scmp.eq.s32.totalorder %s14, 0
      %p56 = por %p54, %p55
      %p57 = scmp.ne.s32.totalorder %s43, %s44
      %p58 = scmp.eq.s32.totalorder %s15, 1
      %p59 = por %p57, %p58
      %p61 = scmp.ne.s32.totalorder %s44, %s60
      %p62 = scmp.eq.s32.totalorder %s15, 0
      %p63 = por %p61, %p62
      %s65 = sadd.s32 %s64, 1
      %p68 = scmp.eq.s32.totalorder %s9, 1
      %p69 = scmp.ne.s32.totalorder %s64, %s66
      %p70 = scmp.eq.s32.totalorder %s9, 0
      %p71 = por %p69, %p70
      %p72 = scmp.ne.s32.totalorder %s64, %s66
      %p73 = scmp.eq.s32.totalorder %s14, 1
      %p74 = por %p72, %p73
      %p75 = scmp.ne.s32.totalorder %s66, %s67
      %p76 = scmp.eq.s32.totalorder %s14, 0
      %p77 = por %p75, %p76
      %p78 = scmp.ne.s32.totalorder %s66, %s67
      %p79 = scmp.eq.s32.totalorder %s15, 1
      %p80 = por %p78, %p79
      %p82 = scmp.ne.s32.totalorder %s67, %s81
      %p83 = scmp.eq.s32.totalorder %s15, 0
      %p84 = por %p82, %p83
      %s85 = ssub.s32 %s9, %s16
      %p86 = scmp.eq.s32.totalorder %s85, 0
      %s88 = sadd.s32 %s87, 1
      %s89 = scalar_select %p86, %s87, %s88
      %p92 = pneg %p86
      %p93 = scmp.eq.s32.totalorder %s9, 1
      %p94 = por %p92, %p93
      %p95 = scmp.ne.s32.totalorder %s87, %s90
      %p96 = scmp.eq.s32.totalorder %s9, 0
      %p97 = por %p95, %p96
      %p98 = scmp.ne.s32.totalorder %s87, %s90
      %p99 = scmp.eq.s32.totalorder %s14, 1
      %p100 = por %p98, %p99
      %p101 = scmp.ne.s32.totalorder %s90, %s91
      %p102 = scmp.eq.s32.totalorder %s14, 0
      %p103 = por %p101, %p102
      %p104 = scmp.ne.s32.totalorder %s90, %s91
      %p105 = scmp.eq.s32.totalorder %s15, 1
      %p106 = por %p104, %p105
      %p108 = scmp.ne.s32.totalorder %s91, %s107
      %p109 = scmp.eq.s32.totalorder %s15, 0
      %p110 = por %p108, %p109
      %p111 = scmp.le.s32.totalorder 1, %s9
      %p112 = scmp.lt.s32.totalorder %s9, 3
      %p113 = pnand %p111, %p112
      %p114 = pneg %p113
      // Predicated region
      $region9: #{_lambda_.15} parent=5 // pred_check
        _
      $region10: #{_lambda_.15} parent=5 // pred_check_branch
        %116 = sbr.rel (%p113) target = $region12
      $region11: #{_lambda_.15} parent=5 // pred_region
        %s117 = ssub.s32 %s9, 1
        // Predicated region
        $region13: #{_lambda_.15} parent=11 // pred_check
          %p118 = pneg %p30
        $region14: #{_lambda_.15} parent=11 // pred_check_branch
          %120 = sbr.rel (%p118) target = $region16
        $region15: #{_lambda_.15} parent=11 // pred_region
          _
        $region16: #{_lambda_.15} parent=11 // pred_fallthru
          _
        // Predicated region
        $region17: #{_lambda_.15} parent=11 // pred_check
          %p121 = pneg %p77
        $region18: #{_lambda_.15} parent=11 // pred_check_branch
          %123 = sbr.rel (%p121) target = $region20
        $region19: #{_lambda_.15} parent=11 // pred_region
          _
        $region20: #{_lambda_.15} parent=11 // pred_fallthru
          _
      $region12: #{_lambda_.15} parent=5 // pred_fallthru
        _
      %p124 = scmp.lt.s32.totalorder %s9, 2
      // Predicated region
      $region21: #{_lambda_.15} parent=5 // pred_check
        %p125 = pneg %p124
      $region22: #{_lambda_.15} parent=5 // pred_check_branch
        %127 = sbr.rel (%p125) target = $region24
      $region23: #{_lambda_.15} parent=5 // pred_region
        // Predicated region
        $region25: #{_lambda_.15} parent=23 // pred_check
          %p128 = pneg %p50
        $region26: #{_lambda_.15} parent=23 // pred_check_branch
          %130 = sbr.rel (%p128) target = $region28
        $region27: #{_lambda_.15} parent=23 // pred_region
          %s131 = sand.u32 %s40, 1
          %s132 = sand.u32 %s40, 1
          %s133 = smul.addr %s132, 336
          %s134 = scalar_lea.vmem [#allocation2], %s133
          %s135 = smul.u32 6, %s9
          %s136 = smul.addr %s135, 4
          %s137 = scalar_lea.vmem %s1, %s136
          // Predicated region
          $region29: #{_lambda_.15} parent=27 // pred_check
            _
          $region30: #{_lambda_.15} parent=27 // pred_check_branch
            %139 = sbr.rel (0) target = $region32
          $region31: #{_lambda_.15} parent=27 // pred_region
            // Predicated region
            $region33: #{_lambda_.15} parent=31 // pred_check
              _
            $region34: #{_lambda_.15} parent=31 // pred_check_branch
              %141 = sbr.rel (0) target = $region36
            $region35: #{_lambda_.15} parent=31 // pred_region
              loop: start=0, step=1, limit=1
              $region37: #{_lambda_.15} parent=35 // loop_pre_header
                _
              $region38: #{_lambda_.15} parent=35 // loop_header
                %s143 = sphi 0, %s147
                %p144 = scmp.ge.s32.totalorder %s143, 1
                %s148 = sphi %s137, %s137
                %s149 = sphi %s134, %s134
              $region39: #{_lambda_.15} parent=35 // loop_header_branch
                %146 = sbr.rel (%p144) target = $region43
              $region40: #{_lambda_.15} parent=35 // loop_body
                %v150 = vld [vmem:[%s148] sm:$0xff]
                %151 = vst [vmem:[%s149] sm:$0xff] %v150
                %v152 = vld [vmem:[%s148 + $0x8] sm:$0xff]
                %153 = vst [vmem:[%s149 + $0x8] sm:$0xff] %v152
                %v154 = vld [vmem:[%s148 + $0x10] sm:$0xff]
                %155 = vst [vmem:[%s149 + $0x10] sm:$0xff] %v154
                %v156 = vld [vmem:[%s148 + $0x30] sm:$0xff]
                %157 = vst [vmem:[%s149 + $0x18] sm:$0xff] %v156
                %v158 = vld [vmem:[%s148 + $0x38] sm:$0xff]
                %159 = vst [vmem:[%s149 + $0x20] sm:$0xff] %v158
                %v160 = vld [vmem:[%s148 + $0x40] sm:$0xff]
                %161 = vst [vmem:[%s149 + $0x28] sm:$0xff] %v160
                %v162 = vld [vmem:[%s148 + $0x60] sm:$0xff]
                %163 = vst [vmem:[%s149 + $0x30] sm:$0xff] %v162
                %v164 = vld [vmem:[%s148 + $0x68] sm:$0xff]
                %165 = vst [vmem:[%s149 + $0x38] sm:$0xff] %v164
                %v166 = vld [vmem:[%s148 + $0x70] sm:$0xff]
                %167 = vst [vmem:[%s149 + $0x40] sm:$0xff] %v166
                %v168 = vld [vmem:[%s148 + $0x90] sm:$0xff]
                %169 = vst [vmem:[%s149 + $0x48] sm:$0xff] %v168
                %v170 = vld [vmem:[%s148 + $0x98] sm:$0xff]
                %171 = vst [vmem:[%s149 + $0x50] sm:$0xff] %v170
                %v172 = vld [vmem:[%s148 + $0xa0] sm:$0xff]
                %173 = vst [vmem:[%s149 + $0x58] sm:$0xff] %v172
                %v174 = vld [vmem:[%s148 + $0xc0] sm:$0xff]
                %175 = vst [vmem:[%s149 + $0x60] sm:$0xff] %v174
                %v176 = vld [vmem:[%s148 + $0xc8] sm:$0xff]
                %177 = vst [vmem:[%s149 + $0x68] sm:$0xff] %v176
                %v178 = vld [vmem:[%s148 + $0xd0] sm:$0xff]
                %179 = vst [vmem:[%s149 + $0x70] sm:$0xff] %v178
                %v180 = vld [vmem:[%s148 + $0xf0] sm:$0xff]
                %181 = vst [vmem:[%s149 + $0x78] sm:$0xff] %v180
                %v182 = vld [vmem:[%s148 + $0xf8] sm:$0xff]
                %183 = vst [vmem:[%s149 + $0x80] sm:$0xff] %v182
                %v184 = vld [vmem:[%s148 + $0x100] sm:$0xff]
                %185 = vst [vmem:[%s149 + $0x88] sm:$0xff] %v184
                %v186 = vld [vmem:[%s148 + $0x120] sm:$0xff]
                %187 = vst [vmem:[%s149 + $0x90] sm:$0xff] %v186
                %v188 = vld [vmem:[%s148 + $0x128] sm:$0xff]
                %189 = vst [vmem:[%s149 + $0x98] sm:$0xff] %v188
                %v190 = vld [vmem:[%s148 + $0x130] sm:$0xff]
                %191 = vst [vmem:[%s149 + $0xa0] sm:$0xff] %v190
                %v192 = vld [vmem:[%s148 + $0x150] sm:$0xff]
                %193 = vst [vmem:[%s149 + $0xa8] sm:$0xff] %v192
                %v194 = vld [vmem:[%s148 + $0x158] sm:$0xff]
                %195 = vst [vmem:[%s149 + $0xb0] sm:$0xff] %v194
                %v196 = vld [vmem:[%s148 + $0x160] sm:$0xff]
                %197 = vst [vmem:[%s149 + $0xb8] sm:$0xff] %v196
                %v198 = vld [vmem:[%s148 + $0x180] sm:$0xff]
                %199 = vst [vmem:[%s149 + $0xc0] sm:$0xff] %v198
                %v200 = vld [vmem:[%s148 + $0x188] sm:$0xff]
                %201 = vst [vmem:[%s149 + $0xc8] sm:$0xff] %v200
                %v202 = vld [vmem:[%s148 + $0x190] sm:$0xff]
                %203 = vst [vmem:[%s149 + $0xd0] sm:$0xff] %v202
                %v204 = vld [vmem:[%s148 + $0x1b0] sm:$0xff]
                %205 = vst [vmem:[%s149 + $0xd8] sm:$0xff] %v204
                %v206 = vld [vmem:[%s148 + $0x1b8] sm:$0xff]
                %207 = vst [vmem:[%s149 + $0xe0] sm:$0xff] %v206
                %v208 = vld [vmem:[%s148 + $0x1c0] sm:$0xff]
                %209 = vst [vmem:[%s149 + $0xe8] sm:$0xff] %v208
                %v210 = vld [vmem:[%s148 + $0x1e0] sm:$0xff]
                %211 = vst [vmem:[%s149 + $0xf0] sm:$0xff] %v210
                %v212 = vld [vmem:[%s148 + $0x1e8] sm:$0xff]
                %213 = vst [vmem:[%s149 + $0xf8] sm:$0xff] %v212
                %v214 = vld [vmem:[%s148 + $0x1f0] sm:$0xff]
                %215 = vst [vmem:[%s149 + $0x100] sm:$0xff] %v214
                %v216 = vld [vmem:[%s148 + $0x210] sm:$0xff]
                %217 = vst [vmem:[%s149 + $0x108] sm:$0xff] %v216
                %v218 = vld [vmem:[%s148 + $0x218] sm:$0xff]
                %219 = vst [vmem:[%s149 + $0x110] sm:$0xff] %v218
                %v220 = vld [vmem:[%s148 + $0x220] sm:$0xff]
                %221 = vst [vmem:[%s149 + $0x118] sm:$0xff] %v220
                %v222 = vld [vmem:[%s148 + $0x240] sm:$0xff]
                %223 = vst [vmem:[%s149 + $0x120] sm:$0xff] %v222
                %v224 = vld [vmem:[%s148 + $0x248] sm:$0xff]
                %225 = vst [vmem:[%s149 + $0x128] sm:$0xff] %v224
                %v226 = vld [vmem:[%s148 + $0x250] sm:$0xff]
                %227 = vst [vmem:[%s149 + $0x130] sm:$0xff] %v226
                %v228 = vld [vmem:[%s148 + $0x270] sm:$0xff]
                %229 = vst [vmem:[%s149 + $0x138] sm:$0xff] %v228
                %v230 = vld [vmem:[%s148 + $0x278] sm:$0xff]
                %231 = vst [vmem:[%s149 + $0x140] sm:$0xff] %v230
                %v232 = vld [vmem:[%s148 + $0x280] sm:$0xff]
                %233 = vst [vmem:[%s149 + $0x148] sm:$0xff] %v232
              $region41: #{_lambda_.15} parent=35 // loop_footer
                %s147 = sadd.s32 1, %s143
              $region42: #{_lambda_.15} parent=35 // loop_footer_branch
                %142 = sbr.rel target = $region38
              $region43: #{_lambda_.15} parent=35 // loop_exit
                _
            $region36: #{_lambda_.15} parent=31 // pred_fallthru
              _
            // Predicated region
            $region44: #{_lambda_.15} parent=31 // pred_check
              _
            $region45: #{_lambda_.15} parent=31 // pred_check_branch
              %235 = sbr.rel target = $region47
            $region46: #{_lambda_.15} parent=31 // pred_region
              _
            $region47: #{_lambda_.15} parent=31 // pred_fallthru
              _
          $region32: #{_lambda_.15} parent=27 // pred_fallthru
            _
          %236 = vnop
        $region28: #{_lambda_.15} parent=23 // pred_fallthru
          _
      $region24: #{_lambda_.15} parent=5 // pred_fallthru
        _
      %p237 = scmp.le.s32.totalorder 1, %s9
      %p238 = scmp.lt.s32.totalorder %s9, 3
      %p239 = pnand %p237, %p238
      %p240 = pneg %p239
      // Predicated region
      $region48: #{_lambda_.15} parent=5 // pred_check
        _
      $region49: #{_lambda_.15} parent=5 // pred_check_branch
        %242 = sbr.rel (%p239) target = $region51
      $region50: #{_lambda_.15} parent=5 // pred_region
        %s243 = ssub.s32 %s9, 1
        %s244 = sand.u32 %s43, 1
        %s245 = sand.u32 %s43, 1
        %s246 = smul.addr %s245, 336
        %s247 = scalar_lea.vmem [#allocation2], %s246
        // Predicated region
        $region52: #{_lambda_.15} parent=50 // pred_check
          %p248 = pneg %p56
        $region53: #{_lambda_.15} parent=50 // pred_check_branch
          %250 = sbr.rel (%p248) target = $region55
        $region54: #{_lambda_.15} parent=50 // pred_region
          _
        $region55: #{_lambda_.15} parent=50 // pred_fallthru
          _
        %p251 = pneg %p30
        %p252 = pneg %p27
        %s253 = sand.u32 %s43, 1
        %s254 = sand.u32 %s43, 1
        %s255 = smul.addr %s254, 336
        %s256 = scalar_lea.vmem [#allocation2], %s255
        %p257 = pneg %p56
        %p258 = pneg %p53
        %p259 = pneg %p77
        %p260 = pneg %p74
        %p261 = pneg %p103
        %p262 = pneg %p100
        %s263 = smul.u32 6, %s14
        %p264 = scmp.lt.s32.totalorder %s263, 11
        %s265 = scalar_select %p264, %s263, 11
        %s266 = smul.addr %s265, 8
        %s267 = scalar_lea.vmem %s3, %s266
        %s268 = smul.u32 6, %s14
        %s269 = smul.u32 6, %s14
        %p270 = scmp.lt.s32.totalorder %s269, 11
        %s271 = scalar_select %p270, %s269, 11
        %s272 = smul.addr %s271, 8
        %s273 = scalar_lea.vmem %s3, %s272
        %s274 = smul.u32 6, %s14
        %v276 = vld [vmem:[%s0] sm:$0xf]
        %v277 = vld [vmem:[%s247] sm:$0xff]
        %v278 = vld [vmem:[%s247 + $0x8] sm:$0xff]
        %v279 = vld [vmem:[%s247 + $0x10] sm:$0xff]
        %v280 = vld [vmem:[%s247 + $0x18] sm:$0xff]
        %v281 = vld [vmem:[%s247 + $0x20] sm:$0xff]
        %v282 = vld [vmem:[%s247 + $0x28] sm:$0xff]
        %v283 = vld [vmem:[%s247 + $0x30] sm:$0xff]
        %v284 = vld [vmem:[%s247 + $0x38] sm:$0xff]
        %v285 = vld [vmem:[%s247 + $0x40] sm:$0xff]
        %v286 = vld [vmem:[%s247 + $0x48] sm:$0xff]
        %v287 = vld [vmem:[%s247 + $0x50] sm:$0xff]
        %v288 = vld [vmem:[%s247 + $0x58] sm:$0xff]
        %v289 = vld [vmem:[%s247 + $0x60] sm:$0xff]
        %v290 = vld [vmem:[%s247 + $0x68] sm:$0xff]
        %v291 = vld [vmem:[%s247 + $0x70] sm:$0xff]
        %v292 = vld [vmem:[%s247 + $0x78] sm:$0xff]
        %v293 = vld [vmem:[%s247 + $0x80] sm:$0xff]
        %v294 = vld [vmem:[%s247 + $0x88] sm:$0xff]
        %v295 = vld [vmem:[%s247 + $0x90] sm:$0xff]
        %v296 = vld [vmem:[%s247 + $0x98] sm:$0xff]
        %v297 = vld [vmem:[%s247 + $0xa0] sm:$0xff]
        %v298 = vld [vmem:[%s247 + $0xa8] sm:$0xff]
        %v299 = vld [vmem:[%s247 + $0xb0] sm:$0xff]
        %v300 = vld [vmem:[%s247 + $0xb8] sm:$0xff]
        %v301 = vld [vmem:[%s247 + $0xc0] sm:$0xff]
        %v302 = vld [vmem:[%s247 + $0xc8] sm:$0xff]
        %v303 = vld [vmem:[%s247 + $0xd0] sm:$0xff]
        %v304 = vld [vmem:[%s247 + $0xd8] sm:$0xff]
        %v305 = vld [vmem:[%s247 + $0xe0] sm:$0xff]
        %v306 = vld [vmem:[%s247 + $0xe8] sm:$0xff]
        %v307 = vld [vmem:[%s247 + $0xf0] sm:$0xff]
        %v308 = vld [vmem:[%s247 + $0xf8] sm:$0xff]
        %v309 = vld [vmem:[%s247 + $0x100] sm:$0xff]
        %v310 = vld [vmem:[%s247 + $0x108] sm:$0xff]
        %v311 = vld [vmem:[%s247 + $0x110] sm:$0xff]
        %v312 = vld [vmem:[%s247 + $0x118] sm:$0xff]
        %v313 = vld [vmem:[%s247 + $0x120] sm:$0xff]
        %v314 = vld [vmem:[%s247 + $0x128] sm:$0xff]
        %v315 = vld [vmem:[%s247 + $0x130] sm:$0xff]
        %v316 = vld [vmem:[%s247 + $0x138] sm:$0xff]
        %v317 = vld [vmem:[%s247 + $0x140] sm:$0xff]
        %v318 = vld [vmem:[%s247 + $0x148] sm:$0xff]
        %v319 = vld [vmem:[%s2] sm:$0xff]
        %321 = vset.pattern.permute.xlu0 0
        %322 = vperm.xlu0 %321, %v319
        %v323 = vpop.permute.xlu0 %322
        %v367 = vunpack.c.l.b16 %v277
        %v368 = vunpack.c.h.b16 %v277
        %v369 = vunpack.c.l.b16 %v278
        %v370 = vunpack.c.h.b16 %v278
        %v371 = vunpack.c.l.b16 %v279
        %v372 = vunpack.c.h.b16 %v279
        %v373 = vunpack.c.l.b16 %v280
        %v374 = vunpack.c.h.b16 %v280
        %v375 = vunpack.c.l.b16 %v281
        %v376 = vunpack.c.h.b16 %v281
        %v377 = vunpack.c.l.b16 %v282
        %v378 = vunpack.c.h.b16 %v282
        %v379 = vunpack.c.l.b16 %v283
        %v380 = vunpack.c.h.b16 %v283
        %v381 = vunpack.c.l.b16 %v284
        %v382 = vunpack.c.h.b16 %v284
        %v383 = vunpack.c.l.b16 %v285
        %v384 = vunpack.c.h.b16 %v285
        %v385 = vunpack.c.l.b16 %v286
        %v386 = vunpack.c.h.b16 %v286
        %v387 = vunpack.c.l.b16 %v287
        %v388 = vunpack.c.h.b16 %v287
        %v389 = vunpack.c.l.b16 %v288
        %v390 = vunpack.c.h.b16 %v288
        %v391 = vunpack.c.l.b16 %v289
        %v392 = vunpack.c.h.b16 %v289
        %v393 = vunpack.c.l.b16 %v290
        %v394 = vunpack.c.h.b16 %v290
        %v395 = vunpack.c.l.b16 %v291
        %v396 = vunpack.c.h.b16 %v291
        %v397 = vunpack.c.l.b16 %v292
        %v398 = vunpack.c.h.b16 %v292
        %v399 = vunpack.c.l.b16 %v293
        %v400 = vunpack.c.h.b16 %v293
        %v401 = vunpack.c.l.b16 %v294
        %v402 = vunpack.c.h.b16 %v294
        %v403 = vunpack.c.l.b16 %v295
        %v404 = vunpack.c.h.b16 %v295
        %v405 = vunpack.c.l.b16 %v296
        %v406 = vunpack.c.h.b16 %v296
        %v407 = vunpack.c.l.b16 %v297
        %v408 = vunpack.c.h.b16 %v297
        %v409 = vunpack.c.l.b16 %v298
        %v410 = vunpack.c.h.b16 %v298
        %v411 = vunpack.c.l.b16 %v299
        %v412 = vunpack.c.h.b16 %v299
        %v413 = vunpack.c.l.b16 %v300
        %v414 = vunpack.c.h.b16 %v300
        %v415 = vunpack.c.l.b16 %v301
        %v416 = vunpack.c.h.b16 %v301
        %v417 = vunpack.c.l.b16 %v302
        %v418 = vunpack.c.h.b16 %v302
        %v419 = vunpack.c.l.b16 %v303
        %v420 = vunpack.c.h.b16 %v303
        %v421 = vunpack.c.l.b16 %v304
        %v422 = vunpack.c.h.b16 %v304
        %v423 = vunpack.c.l.b16 %v305
        %v424 = vunpack.c.h.b16 %v305
        %v425 = vunpack.c.l.b16 %v306
        %v426 = vunpack.c.h.b16 %v306
        %v427 = vunpack.c.l.b16 %v307
        %v428 = vunpack.c.h.b16 %v307
        %v429 = vunpack.c.l.b16 %v308
        %v430 = vunpack.c.h.b16 %v308
        %v431 = vunpack.c.l.b16 %v309
        %v432 = vunpack.c.h.b16 %v309
        %v433 = vunpack.c.l.b16 %v310
        %v434 = vunpack.c.h.b16 %v310
        %v435 = vunpack.c.l.b16 %v311
        %v436 = vunpack.c.h.b16 %v311
        %v437 = vunpack.c.l.b16 %v312
        %v438 = vunpack.c.h.b16 %v312
        %v439 = vunpack.c.l.b16 %v313
        %v440 = vunpack.c.h.b16 %v313
        %v441 = vunpack.c.l.b16 %v314
        %v442 = vunpack.c.h.b16 %v314
        %v443 = vunpack.c.l.b16 %v315
        %v444 = vunpack.c.h.b16 %v315
        %v445 = vunpack.c.l.b16 %v316
        %v446 = vunpack.c.h.b16 %v316
        %v447 = vunpack.c.l.b16 %v317
        %v448 = vunpack.c.h.b16 %v317
        %v449 = vunpack.c.l.b16 %v318
        %v450 = vunpack.c.h.b16 %v318
        %v451 = vpack.c.b16 %v373, %v367
        %v452 = vpack.c.b16 %v374, %v368
        %v453 = vpack.c.b16 %v375, %v369
        %v454 = vpack.c.b16 %v376, %v370
        %v455 = vpack.c.b16 %v377, %v371
        %v456 = vpack.c.b16 %v378, %v372
        %v457 = vpack.c.b16 %v385, %v379
        %v458 = vpack.c.b16 %v386, %v380
        %v459 = vpack.c.b16 %v387, %v381
        %v460 = vpack.c.b16 %v388, %v382
        %v461 = vpack.c.b16 %v389, %v383
        %v462 = vpack.c.b16 %v390, %v384
        %v463 = vpack.c.b16 %v397, %v391
        %v464 = vpack.c.b16 %v398, %v392
        %v465 = vpack.c.b16 %v399, %v393
        %v466 = vpack.c.b16 %v400, %v394
        %v467 = vpack.c.b16 %v401, %v395
        %v468 = vpack.c.b16 %v402, %v396
        %v469 = vpack.c.b16 %v409, %v403
        %v470 = vpack.c.b16 %v410, %v404
        %v471 = vpack.c.b16 %v411, %v405
        %v472 = vpack.c.b16 %v412, %v406
        %v473 = vpack.c.b16 %v413, %v407
        %v474 = vpack.c.b16 %v414, %v408
        %v475 = vpack.c.b16 %v421, %v415
        %v476 = vpack.c.b16 %v422, %v416
        %v477 = vpack.c.b16 %v423, %v417
        %v478 = vpack.c.b16 %v424, %v418
        %v479 = vpack.c.b16 %v425, %v419
        %v480 = vpack.c.b16 %v426, %v420
        %v481 = vpack.c.b16 %v433, %v427
        %v482 = vpack.c.b16 %v434, %v428
        %v483 = vpack.c.b16 %v435, %v429
        %v484 = vpack.c.b16 %v436, %v430
        %v485 = vpack.c.b16 %v437, %v431
        %v486 = vpack.c.b16 %v438, %v432
        %v487 = vpack.c.b16 %v445, %v439
        %v488 = vpack.c.b16 %v446, %v440
        %v489 = vpack.c.b16 %v447, %v441
        %v490 = vpack.c.b16 %v448, %v442
        %v491 = vpack.c.b16 %v449, %v443
        %v492 = vpack.c.b16 %v450, %v444
        %vm535 = vcmask 916480
        %v537 = vsel %vm535, %v276, 0
        %539 = vmatprep.subr.bf16.mxu0 %v452
        %540 = vmatpush1.bf16.msra.mxu0 %v451
        %541 = vmatprep.subr.bf16.mxu0 %v458
        %542 = vmatpush1.bf16.msra.mxu0 %v457
        %543 = vmatprep.subr.bf16.mxu0 %v464
        %544 = vmatpush1.bf16.msra.mxu0 %v463
        %545 = vmatprep.subr.bf16.mxu0 %v470
        %546 = vmatpush1.bf16.msra.mxu0 %v469
        %547 = vmatprep.subr.bf16.mxu0 %v476
        %548 = vmatpush1.bf16.msra.mxu0 %v475
        %549 = vmatprep.subr.bf16.mxu0 %v482
        %550 = vmatpush1.bf16.msra.mxu0 %v481
        %551 = vmatprep.subr.bf16.mxu0 %v488
        %552 = vmatpush1.bf16.msra.mxu0 %v487
        %553 = vmatprep.subr.bf16.mxu0 0
        %554 = vmatpush1.bf16.msra.mxu0 0
        %555 = vmatprep.subr.bf16.mxu0 0
        %556 = vmatpush1.bf16.msra.mxu0 0
        %557 = vmatprep.subr.bf16.mxu0 0
        %558 = vmatpush1.bf16.msra.mxu0 0
        %559 = vmatprep.subr.bf16.mxu0 0
        %560 = vmatpush1.bf16.msra.mxu0 0
        %561 = vmatprep.subr.bf16.mxu0 0
        %562 = vmatpush1.bf16.msra.mxu0 0
        %563 = vmatprep.subr.bf16.mxu0 0
        %564 = vmatpush1.bf16.msra.mxu0 0
        %565 = vmatprep.subr.bf16.mxu0 0
        %566 = vmatpush1.bf16.msra.mxu0 0
        %567 = vmatprep.subr.bf16.mxu0 0
        %568 = vmatpush1.bf16.msra.mxu0 0
        %569 = vmatprep.subr.bf16.mxu0 0
        %570 = vmatpush1.bf16.msra.mxu0 0
        %571 = vmatprep.mubr.bf16.mxu0 0
        %572 = vmatmul.mubr.bf16.gmra.mrb[0].mxu0 %v537
        %v573 = vpop.f32.mrb[0].mxu0
        %v574 = vadd.f32 %v323, %v573
        %v575 = vpop.f32.mrb[0].mxu0
        %v576 = vadd.f32 %v323, %v575
        %v577 = vpop.f32.mrb[0].mxu0
        %v578 = vpop.f32.mrb[0].mxu0
        %579 = vdwg.mxu0
        %580 = vmatprep.subr.bf16.mxu0 %v454
        %581 = vmatpush1.bf16.msra.mxu0 %v453
        %582 = vmatprep.subr.bf16.mxu0 %v460
        %583 = vmatpush1.bf16.msra.mxu0 %v459
        %584 = vmatprep.subr.bf16.mxu0 %v466
        %585 = vmatpush1.bf16.msra.mxu0 %v465
        %586 = vmatprep.subr.bf16.mxu0 %v472
        %587 = vmatpush1.bf16.msra.mxu0 %v471
        %588 = vmatprep.subr.bf16.mxu0 %v478
        %589 = vmatpush1.bf16.msra.mxu0 %v477
        %590 = vmatprep.subr.bf16.mxu0 %v484
        %591 = vmatpush1.bf16.msra.mxu0 %v483
        %592 = vmatprep.subr.bf16.mxu0 %v490
        %593 = vmatpush1.bf16.msra.mxu0 %v489
        %594 = vmatprep.subr.bf16.mxu0 0
        %595 = vmatpush1.bf16.msra.mxu0 0
        %596 = vmatprep.subr.bf16.mxu0 0
        %597 = vmatpush1.bf16.msra.mxu0 0
        %598 = vmatprep.subr.bf16.mxu0 0
        %599 = vmatpush1.bf16.msra.mxu0 0
        %600 = vmatprep.subr.bf16.mxu0 0
        %601 = vmatpush1.bf16.msra.mxu0 0
        %602 = vmatprep.subr.bf16.mxu0 0
        %603 = vmatpush1.bf16.msra.mxu0 0
        %604 = vmatprep.subr.bf16.mxu0 0
        %605 = vmatpush1.bf16.msra.mxu0 0
        %606 = vmatprep.subr.bf16.mxu0 0
        %607 = vmatpush1.bf16.msra.mxu0 0
        %608 = vmatprep.subr.bf16.mxu0 0
        %609 = vmatpush1.bf16.msra.mxu0 0
        %610 = vmatprep.subr.bf16.mxu0 0
        %611 = vmatpush1.bf16.msra.mxu0 0
        %612 = vmatprep.mubr.bf16.mxu0 0
        %613 = vmatmul.mubr.bf16.gmra.mrb[0].mxu0 %v537
        %v614 = vpop.f32.mrb[0].mxu0
        %v615 = vadd.f32 %v323, %v614
        %v616 = vpop.f32.mrb[0].mxu0
        %v617 = vadd.f32 %v323, %v616
        %v618 = vpop.f32.mrb[0].mxu0
        %v619 = vpop.f32.mrb[0].mxu0
        %620 = vdwg.mxu0
        %621 = vmatprep.subr.bf16.mxu0 %v456
        %622 = vmatpush1.bf16.msra.mxu0 %v455
        %623 = vmatprep.subr.bf16.mxu0 %v462
        %624 = vmatpush1.bf16.msra.mxu0 %v461
        %625 = vmatprep.subr.bf16.mxu0 %v468
        %626 = vmatpush1.bf16.msra.mxu0 %v467
        %627 = vmatprep.subr.bf16.mxu0 %v474
        %628 = vmatpush1.bf16.msra.mxu0 %v473
        %629 = vmatprep.subr.bf16.mxu0 %v480
        %630 = vmatpush1.bf16.msra.mxu0 %v479
        %631 = vmatprep.subr.bf16.mxu0 %v486
        %632 = vmatpush1.bf16.msra.mxu0 %v485
        %633 = vmatprep.subr.bf16.mxu0 %v492
        %634 = vmatpush1.bf16.msra.mxu0 %v491
        %635 = vmatprep.subr.bf16.mxu0 0
        %636 = vmatpush1.bf16.msra.mxu0 0
        %637 = vmatprep.subr.bf16.mxu0 0
        %638 = vmatpush1.bf16.msra.mxu0 0
        %639 = vmatprep.subr.bf16.mxu0 0
        %640 = vmatpush1.bf16.msra.mxu0 0
        %641 = vmatprep.subr.bf16.mxu0 0
        %642 = vmatpush1.bf16.msra.mxu0 0
        %643 = vmatprep.subr.bf16.mxu0 0
        %644 = vmatpush1.bf16.msra.mxu0 0
        %645 = vmatprep.subr.bf16.mxu0 0
        %646 = vmatpush1.bf16.msra.mxu0 0
        %647 = vmatprep.subr.bf16.mxu0 0
        %648 = vmatpush1.bf16.msra.mxu0 0
        %649 = vmatprep.subr.bf16.mxu0 0
        %650 = vmatpush1.bf16.msra.mxu0 0
        %651 = vmatprep.subr.bf16.mxu0 0
        %652 = vmatpush1.bf16.msra.mxu0 0
        %653 = vmatprep.mubr.bf16.mxu0 0
        %654 = vmatmul.mubr.bf16.gmra.mrb[0].mxu0 %v537
        %v655 = vpop.f32.mrb[0].mxu0
        %v656 = vadd.f32 %v323, %v655
        %v657 = vpop.f32.mrb[0].mxu0
        %v658 = vadd.f32 %v323, %v657
        %v659 = vpop.f32.mrb[0].mxu0
        %v660 = vpop.f32.mrb[0].mxu0
        %661 = vdwg.mxu0
        %vm662 = vcmp.gt.f32.partialorder %v574, 0.0
        %vm663 = vcmp.gt.f32.partialorder %v576, 0.0
        %vm664 = vcmp.gt.f32.partialorder %v615, 0.0
        %vm665 = vcmp.gt.f32.partialorder %v617, 0.0
        %vm666 = vcmp.gt.f32.partialorder %v656, 0.0
        %vm667 = vcmp.gt.f32.partialorder %v658, 0.0
        %v668 = vmul.f32 %v574, 0.01
        %v669 = vmul.f32 %v576, 0.01
        %v670 = vmul.f32 %v615, 0.01
        %v671 = vmul.f32 %v617, 0.01
        %v672 = vmul.f32 %v656, 0.01
        %v673 = vmul.f32 %v658, 0.01
        %v674 = vsel %vm662, %v574, %v668
        %v675 = vsel %vm663, %v576, %v669
        %v676 = vsel %vm664, %v615, %v670
        %v677 = vsel %vm665, %v617, %v671
        %v678 = vsel %vm666, %v656, %v672
        %v679 = vsel %vm667, %v658, %v673
        %680 = vst [vmem:[%s273] sm:$0xff] %v674
        %681 = vst [vmem:[%s273 + $0x8] sm:$0xff] %v675
        %682 = vst [vmem:[%s273 + $0x10] sm:$0xff] %v676
        %683 = vst [vmem:[%s273 + $0x18] sm:$0xff] %v677
        %684 = vst [vmem:[%s273 + $0x20] sm:$0xff] %v678
        %685 = vst [vmem:[%s273 + $0x28] sm:$0xff] %v679
        %s686 = smul.u32 6, %s14
        %p687 = scmp.lt.s32.totalorder %s686, 11
        %s688 = scalar_select %p687, %s686, 11
        %s689 = smul.addr %s688, 8
        %s690 = scalar_lea.vmem %s3, %s689
        // Predicated region
        $region56: #{_lambda_.15} parent=50 // pred_check
          %p691 = pneg %p100
        $region57: #{_lambda_.15} parent=50 // pred_check_branch
          %693 = sbr.rel (%p691) target = $region59
        $region58: #{_lambda_.15} parent=50 // pred_region
          %s694 = smul.u32 6, %s14
        $region59: #{_lambda_.15} parent=50 // pred_fallthru
          _
      $region51: #{_lambda_.15} parent=5 // pred_fallthru
        _
      %p695 = scmp.le.s32.totalorder 2, %s9
      // Predicated region
      $region60: #{_lambda_.15} parent=5 // pred_check
        %p696 = pneg %p695
      $region61: #{_lambda_.15} parent=5 // pred_check_branch
        %698 = sbr.rel (%p696) target = $region63
      $region62: #{_lambda_.15} parent=5 // pred_region
        %s699 = ssub.s32 %s9, 2
        // Predicated region
        $region64: #{_lambda_.15} parent=62 // pred_check
          %p700 = pneg %p106
        $region65: #{_lambda_.15} parent=62 // pred_check_branch
          %702 = sbr.rel (%p700) target = $region67
        $region66: #{_lambda_.15} parent=62 // pred_region
          %s703 = smul.u32 6, %s15
          %p704 = scmp.lt.s32.totalorder %s703, 11
          %s705 = scalar_select %p704, %s703, 11
          %s706 = smul.addr %s705, 8
          %s707 = scalar_lea.vmem %s3, %s706
        $region67: #{_lambda_.15} parent=62 // pred_fallthru
          _
      $region63: #{_lambda_.15} parent=5 // pred_fallthru
        _
    $region6: #{_lambda_.15} parent=1 // loop_footer
      %s13 = sadd.s32 1, %s9
    $region7: #{_lambda_.15} parent=1 // loop_footer_branch
      %8 = sbr.rel target = $region3
    $region8: #{_lambda_.15} parent=1 // loop_exit
      _

// kernel: _lambda_.16
$region0: #{_lambda_.16}
  #allocation0 [shape = 'u32[]', space=smem, size = 0x4, offset = 0x4, fixed_abs, tag = 'smem constant byte address 0x4 - core index']
  #allocation1 [shape = 'u32[144,128]{1,0:T(1,128)}', space=vmem, size = 0x12000, scoped, tag = 'internal scratch']
  %s0 = inlined_call_operand.vmem [shape: bf16[8,224], index: 0, kind: input, shape index: {}]
  %s1 = inlined_call_operand.vmem [shape: bf16[224,256], index: 1, kind: input, shape index: {}]
  %s2 = inlined_call_operand.vmem [shape: f32[8,1], index: 2, kind: input, shape index: {}]
  %s3 = inlined_call_operand.vmem [shape: f32[8,256], index: 3, kind: output, shape index: {}]
  %s4 = sld [smem:[#allocation0]]
  $region22: #{_lambda_.16} parent=0
    _
  %s6 = ssub.s32 1, %s4
  %s7 = scalar_select 0, %s6, %s4
  // Predicated region
  $region2: #{_lambda_.16} parent=0 // pred_check
    _
  $region3: #{_lambda_.16} parent=0 // pred_check_branch
    %9 = sbr.rel (0) target = $region5
  $region4: #{_lambda_.16} parent=0 // pred_region
    _
  $region5: #{_lambda_.16} parent=0 // pred_fallthru
    _
  // Predicated region
  $region6: #{_lambda_.16} parent=0 // pred_check
    _
  $region7: #{_lambda_.16} parent=0 // pred_check_branch
    %11 = sbr.rel (0) target = $region9
  $region8: #{_lambda_.16} parent=0 // pred_region
    _
  $region9: #{_lambda_.16} parent=0 // pred_fallthru
    _
  // Predicated region
  $region10: #{_lambda_.16} parent=0 // pred_check
    _
  $region11: #{_lambda_.16} parent=0 // pred_check_branch
    %13 = sbr.rel (0) target = $region13
  $region12: #{_lambda_.16} parent=0 // pred_region
    _
  $region13: #{_lambda_.16} parent=0 // pred_fallthru
    _
  %v15 = vld [vmem:[%s0] sm:$0xff]
  %v16 = vld [vmem:[%s1] sm:$0xff]
  %v17 = vld [vmem:[%s1 + $0x8] sm:$0xff]
  %v18 = vld [vmem:[%s1 + $0x10] sm:$0xff]
  %v19 = vld [vmem:[%s1 + $0x18] sm:$0xff]
  %v20 = vld [vmem:[%s1 + $0x20] sm:$0xff]
  %v21 = vld [vmem:[%s1 + $0x28] sm:$0xff]
  %v22 = vld [vmem:[%s1 + $0x30] sm:$0xff]
  %v23 = vld [vmem:[%s1 + $0x38] sm:$0xff]
  %v24 = vld [vmem:[%s1 + $0x40] sm:$0xff]
  %v25 = vld [vmem:[%s1 + $0x48] sm:$0xff]
  %v26 = vld [vmem:[%s1 + $0x50] sm:$0xff]
  %v27 = vld [vmem:[%s1 + $0x58] sm:$0xff]
  %v28 = vld [vmem:[%s1 + $0x60] sm:$0xff]
  %v29 = vld [vmem:[%s1 + $0x68] sm:$0xff]
  %v30 = vld [vmem:[%s1 + $0x70] sm:$0xff]
  %v31 = vld [vmem:[%s1 + $0x78] sm:$0xff]
  %v32 = vld [vmem:[%s1 + $0x80] sm:$0xff]
  %v33 = vld [vmem:[%s1 + $0x88] sm:$0xff]
  %v34 = vld [vmem:[%s1 + $0x90] sm:$0xff]
  %v35 = vld [vmem:[%s1 + $0x98] sm:$0xff]
  %v36 = vld [vmem:[%s1 + $0xa0] sm:$0xff]
  %v37 = vld [vmem:[%s1 + $0xa8] sm:$0xff]
  %v38 = vld [vmem:[%s1 + $0xb0] sm:$0xff]
  %v39 = vld [vmem:[%s1 + $0xb8] sm:$0xff]
  %v40 = vld [vmem:[%s1 + $0xc0] sm:$0xff]
  %v41 = vld [vmem:[%s1 + $0xc8] sm:$0xff]
  %v42 = vld [vmem:[%s1 + $0xd0] sm:$0xff]
  %v43 = vld [vmem:[%s1 + $0xd8] sm:$0xff]
  %v44 = vld [vmem:[%s2] sm:$0xff]
  %46 = vset.pattern.permute.xlu0 0
  %47 = vperm.xlu0 %46, %v44
  %v48 = vpop.permute.xlu0 %47
  %v51 = vunpack.c.l.b16 %v15
  %v52 = vunpack.c.h.b16 %v15
  %v53 = vpack.c.b16 %v51, %v51
  %v54 = vpack.c.b16 %v52, %v52
  %v84 = vunpack.c.l.b16 %v16
  %v85 = vunpack.c.h.b16 %v16
  %v86 = vunpack.c.l.b16 %v17
  %v87 = vunpack.c.h.b16 %v17
  %v88 = vunpack.c.l.b16 %v18
  %v89 = vunpack.c.h.b16 %v18
  %v90 = vunpack.c.l.b16 %v19
  %v91 = vunpack.c.h.b16 %v19
  %v92 = vunpack.c.l.b16 %v20
  %v93 = vunpack.c.h.b16 %v20
  %v94 = vunpack.c.l.b16 %v21
  %v95 = vunpack.c.h.b16 %v21
  %v96 = vunpack.c.l.b16 %v22
  %v97 = vunpack.c.h.b16 %v22
  %v98 = vunpack.c.l.b16 %v23
  %v99 = vunpack.c.h.b16 %v23
  %v100 = vunpack.c.l.b16 %v24
  %v101 = vunpack.c.h.b16 %v24
  %v102 = vunpack.c.l.b16 %v25
  %v103 = vunpack.c.h.b16 %v25
  %v104 = vunpack.c.l.b16 %v26
  %v105 = vunpack.c.h.b16 %v26
  %v106 = vunpack.c.l.b16 %v27
  %v107 = vunpack.c.h.b16 %v27
  %v108 = vunpack.c.l.b16 %v28
  %v109 = vunpack.c.h.b16 %v28
  %v110 = vunpack.c.l.b16 %v29
  %v111 = vunpack.c.h.b16 %v29
  %v112 = vunpack.c.l.b16 %v30
  %v113 = vunpack.c.h.b16 %v30
  %v114 = vunpack.c.l.b16 %v31
  %v115 = vunpack.c.h.b16 %v31
  %v116 = vunpack.c.l.b16 %v32
  %v117 = vunpack.c.h.b16 %v32
  %v118 = vunpack.c.l.b16 %v33
  %v119 = vunpack.c.h.b16 %v33
  %v120 = vunpack.c.l.b16 %v34
  %v121 = vunpack.c.h.b16 %v34
  %v122 = vunpack.c.l.b16 %v35
  %v123 = vunpack.c.h.b16 %v35
  %v124 = vunpack.c.l.b16 %v36
  %v125 = vunpack.c.h.b16 %v36
  %v126 = vunpack.c.l.b16 %v37
  %v127 = vunpack.c.h.b16 %v37
  %v128 = vunpack.c.l.b16 %v38
  %v129 = vunpack.c.h.b16 %v38
  %v130 = vunpack.c.l.b16 %v39
  %v131 = vunpack.c.h.b16 %v39
  %v132 = vunpack.c.l.b16 %v40
  %v133 = vunpack.c.h.b16 %v40
  %v134 = vunpack.c.l.b16 %v41
  %v135 = vunpack.c.h.b16 %v41
  %v136 = vunpack.c.l.b16 %v42
  %v137 = vunpack.c.h.b16 %v42
  %v138 = vunpack.c.l.b16 %v43
  %v139 = vunpack.c.h.b16 %v43
  %v140 = vpack.c.b16 %v86, %v84
  %v141 = vpack.c.b16 %v87, %v85
  %v142 = vpack.c.b16 %v90, %v88
  %v143 = vpack.c.b16 %v91, %v89
  %v144 = vpack.c.b16 %v94, %v92
  %v145 = vpack.c.b16 %v95, %v93
  %v146 = vpack.c.b16 %v98, %v96
  %v147 = vpack.c.b16 %v99, %v97
  %v148 = vpack.c.b16 %v102, %v100
  %v149 = vpack.c.b16 %v103, %v101
  %v150 = vpack.c.b16 %v106, %v104
  %v151 = vpack.c.b16 %v107, %v105
  %v152 = vpack.c.b16 %v110, %v108
  %v153 = vpack.c.b16 %v111, %v109
  %v154 = vpack.c.b16 %v114, %v112
  %v155 = vpack.c.b16 %v115, %v113
  %v156 = vpack.c.b16 %v118, %v116
  %v157 = vpack.c.b16 %v119, %v117
  %v158 = vpack.c.b16 %v122, %v120
  %v159 = vpack.c.b16 %v123, %v121
  %v160 = vpack.c.b16 %v126, %v124
  %v161 = vpack.c.b16 %v127, %v125
  %v162 = vpack.c.b16 %v130, %v128
  %v163 = vpack.c.b16 %v131, %v129
  %v164 = vpack.c.b16 %v134, %v132
  %v165 = vpack.c.b16 %v135, %v133
  %v166 = vpack.c.b16 %v138, %v136
  %v167 = vpack.c.b16 %v139, %v137
  %vm196 = vcmask 785408
  %v198 = vsel %vm196, %v54, 0
  %200 = vmatprep.subr.bf16.mxu0 %v141
  %201 = vmatpush1.bf16.msra.mxu0 %v140
  %202 = vmatprep.subr.bf16.mxu0 %v143
  %203 = vmatpush1.bf16.msra.mxu0 %v142
  %204 = vmatprep.subr.bf16.mxu0 %v145
  %205 = vmatpush1.bf16.msra.mxu0 %v144
  %206 = vmatprep.subr.bf16.mxu0 %v147
  %207 = vmatpush1.bf16.msra.mxu0 %v146
  %208 = vmatprep.subr.bf16.mxu0 %v149
  %209 = vmatpush1.bf16.msra.mxu0 %v148
  %210 = vmatprep.subr.bf16.mxu0 %v151
  %211 = vmatpush1.bf16.msra.mxu0 %v150
  %212 = vmatprep.subr.bf16.mxu0 %v153
  %213 = vmatpush1.bf16.msra.mxu0 %v152
  %214 = vmatprep.subr.bf16.mxu0 %v155
  %215 = vmatpush1.bf16.msra.mxu0 %v154
  %216 = vmatprep.subr.bf16.mxu0 %v157
  %217 = vmatpush1.bf16.msra.mxu0 %v156
  %218 = vmatprep.subr.bf16.mxu0 %v159
  %219 = vmatpush1.bf16.msra.mxu0 %v158
  %220 = vmatprep.subr.bf16.mxu0 %v161
  %221 = vmatpush1.bf16.msra.mxu0 %v160
  %222 = vmatprep.subr.bf16.mxu0 %v163
  %223 = vmatpush1.bf16.msra.mxu0 %v162
  %224 = vmatprep.subr.bf16.mxu0 %v165
  %225 = vmatpush1.bf16.msra.mxu0 %v164
  %226 = vmatprep.subr.bf16.mxu0 %v167
  %227 = vmatpush1.bf16.msra.mxu0 %v166
  %228 = vmatprep.subr.bf16.mxu0 0
  %229 = vmatpush1.bf16.msra.mxu0 0
  %230 = vmatprep.subr.bf16.mxu0 0
  %231 = vmatpush1.bf16.msra.mxu0 0
  %232 = vmatprep.mubr.bf16.mxu0 %v198
  %233 = vmatmul.mubr.bf16.gmra.mrb[0].mxu0 %v53
  %v234 = vpop.f32.mrb[0].mxu0
  %v235 = vadd.f32 %v48, %v234
  %v236 = vpop.f32.mrb[0].mxu0
  %v237 = vadd.f32 %v48, %v236
  %v238 = vpop.f32.mrb[0].mxu0
  %v239 = vpop.f32.mrb[0].mxu0
  %240 = vdwg.mxu0
  %vm241 = vcmp.gt.f32.partialorder %v235, 0.0
  %vm242 = vcmp.gt.f32.partialorder %v237, 0.0
  %v243 = vmul.f32 %v235, 0.01
  %v244 = vmul.f32 %v237, 0.01
  %v245 = vsel %vm241, %v235, %v243
  %v246 = vsel %vm242, %v237, %v244
  %247 = vst [vmem:[%s3] sm:$0xff] %v245
  %248 = vst [vmem:[%s3 + $0x8] sm:$0xff] %v246
  // Predicated region
  $region14: #{_lambda_.16} parent=0 // pred_check
    _
  $region15: #{_lambda_.16} parent=0 // pred_check_branch
    %250 = sbr.rel (0) target = $region17
  $region16: #{_lambda_.16} parent=0 // pred_region
    _
  $region17: #{_lambda_.16} parent=0 // pred_fallthru
    _
  // Predicated region
  $region18: #{_lambda_.16} parent=0 // pred_check
    _
  $region19: #{_lambda_.16} parent=0 // pred_check_branch
    %252 = sbr.rel (0) target = $region21
  $region20: #{_lambda_.16} parent=0 // pred_region
    _
  $region21: #{_lambda_.16} parent=0 // pred_fallthru
    _

// kernel: _lambda_.13
$region0: #{_lambda_.13}
  #allocation0 [shape = 'u32[]', space=smem, size = 0x4, offset = 0x4, fixed_abs, tag = 'smem constant byte address 0x4 - core index']
  #allocation1 [shape = 'u32[144,128]{1,0:T(1,128)}', space=vmem, size = 0x12000, scoped, tag = 'internal scratch']
  %s0 = inlined_call_operand.vmem [shape: bf16[8,224], index: 0, kind: input, shape index: {}]
  %s1 = inlined_call_operand.vmem [shape: bf16[224,1536], index: 1, kind: input, shape index: {}]
  %s2 = inlined_call_operand.vmem [shape: f32[8,1], index: 2, kind: input, shape index: {}]
  %s3 = inlined_call_operand.vmem [shape: f32[8,1536], index: 3, kind: output, shape index: {}]
  %s4 = sld [smem:[#allocation0]]
  $region68: #{_lambda_.13} parent=0
    _
  %s6 = ssub.s32 1, %s4
  %s7 = scalar_select 0, %s6, %s4
  $region1: #{_lambda_.13} parent=0
    #allocation2 [shape = 'u8[688128]{0}', space=vmem, size = 0xa8000, scoped, tag = 'input window, operand 1']
    loop: start=0, step=1, limit=4
    $region2: #{_lambda_.13} parent=1 // loop_pre_header
      _
    $region3: #{_lambda_.13} parent=1 // loop_header
      %s9 = sphi 0, %s13
      %p10 = scmp.ge.s32.totalorder %s9, 4
      %s17 = sphi 0, %s17
      %s19 = sphi 0, %s17
      %s20 = sphi 0, %s19
      %s34 = sphi 0, %s20
      %s40 = sphi 0, %s42
      %s43 = sphi 0, %s40
      %s44 = sphi 0, %s43
      %s60 = sphi 0, %s44
      %s64 = sphi 0, %s64
      %s66 = sphi 0, %s64
      %s67 = sphi 0, %s66
      %s81 = sphi 0, %s67
      %s87 = sphi 0, %s89
      %s90 = sphi 0, %s87
      %s91 = sphi 0, %s90
      %s107 = sphi 0, %s91
    $region4: #{_lambda_.13} parent=1 // loop_header_branch
      %12 = sbr.rel (%p10) target = $region8
    $region5: #{_lambda_.13} parent=1 // loop_body
      %s14 = ssub.s32 %s9, 1
      %s15 = ssub.s32 %s9, 2
      %s16 = sadd.s32 %s9, 1
      %s18 = sadd.s32 %s17, 1
      %p21 = scmp.eq.s32.totalorder %s9, 1
      %p22 = scmp.ne.s32.totalorder %s17, %s19
      %p23 = scmp.eq.s32.totalorder %s9, 0
      %p24 = por %p22, %p23
      %p25 = scmp.ne.s32.totalorder %s17, %s19
      %p26 = scmp.eq.s32.totalorder %s14, 1
      %p27 = por %p25, %p26
      %p28 = scmp.ne.s32.totalorder %s19, %s20
      %p29 = scmp.eq.s32.totalorder %s14, 0
      %p30 = por %p28, %p29
      %p31 = scmp.ne.s32.totalorder %s19, %s20
      %p32 = scmp.eq.s32.totalorder %s15, 1
      %p33 = por %p31, %p32
      %p35 = scmp.ne.s32.totalorder %s20, %s34
      %p36 = scmp.eq.s32.totalorder %s15, 0
      %p37 = por %p35, %p36
      %s38 = ssub.s32 %s9, %s16
      %p39 = scmp.eq.s32.totalorder %s38, 0
      %s41 = sadd.s32 %s40, 1
      %s42 = scalar_select %p39, %s40, %s41
      %p45 = pneg %p39
      %p46 = scmp.eq.s32.totalorder %s9, 1
      %p47 = por %p45, %p46
      %p48 = scmp.ne.s32.totalorder %s40, %s43
      %p49 = scmp.eq.s32.totalorder %s9, 0
      %p50 = por %p48, %p49
      %p51 = scmp.ne.s32.totalorder %s40, %s43
      %p52 = scmp.eq.s32.totalorder %s14, 1
      %p53 = por %p51, %p52
      %p54 = scmp.ne.s32.totalorder %s43, %s44
      %p55 = scmp.eq.s32.totalorder %s14, 0
      %p56 = por %p54, %p55
      %p57 = scmp.ne.s32.totalorder %s43, %s44
      %p58 = scmp.eq.s32.totalorder %s15, 1
      %p59 = por %p57, %p58
      %p61 = scmp.ne.s32.totalorder %s44, %s60
      %p62 = scmp.eq.s32.totalorder %s15, 0
      %p63 = por %p61, %p62
      %s65 = sadd.s32 %s64, 1
      %p68 = scmp.eq.s32.totalorder %s9, 1
      %p69 = scmp.ne.s32.totalorder %s64, %s66
      %p70 = scmp.eq.s32.totalorder %s9, 0
      %p71 = por %p69, %p70
      %p72 = scmp.ne.s32.totalorder %s64, %s66
      %p73 = scmp.eq.s32.totalorder %s14, 1
      %p74 = por %p72, %p73
      %p75 = scmp.ne.s32.totalorder %s66, %s67
      %p76 = scmp.eq.s32.totalorder %s14, 0
      %p77 = por %p75, %p76
      %p78 = scmp.ne.s32.totalorder %s66, %s67
      %p79 = scmp.eq.s32.totalorder %s15, 1
      %p80 = por %p78, %p79
      %p82 = scmp.ne.s32.totalorder %s67, %s81
      %p83 = scmp.eq.s32.totalorder %s15, 0
      %p84 = por %p82, %p83
      %s85 = ssub.s32 %s9, %s16
      %p86 = scmp.eq.s32.totalorder %s85, 0
      %s88 = sadd.s32 %s87, 1
      %s89 = scalar_select %p86, %s87, %s88
      %p92 = pneg %p86
      %p93 = scmp.eq.s32.totalorder %s9, 1
      %p94 = por %p92, %p93
      %p95 = scmp.ne.s32.totalorder %s87, %s90
      %p96 = scmp.eq.s32.totalorder %s9, 0
      %p97 = por %p95, %p96
      %p98 = scmp.ne.s32.totalorder %s87, %s90
      %p99 = scmp.eq.s32.totalorder %s14, 1
      %p100 = por %p98, %p99
      %p101 = scmp.ne.s32.totalorder %s90, %s91
      %p102 = scmp.eq.s32.totalorder %s14, 0
      %p103 = por %p101, %p102
      %p104 = scmp.ne.s32.totalorder %s90, %s91
      %p105 = scmp.eq.s32.totalorder %s15, 1
      %p106 = por %p104, %p105
      %p108 = scmp.ne.s32.totalorder %s91, %s107
      %p109 = scmp.eq.s32.totalorder %s15, 0
      %p110 = por %p108, %p109
      %p111 = scmp.le.s32.totalorder 1, %s9
      %p112 = scmp.lt.s32.totalorder %s9, 3
      %p113 = pnand %p111, %p112
      %p114 = pneg %p113
      // Predicated region
      $region9: #{_lambda_.13} parent=5 // pred_check
        _
      $region10: #{_lambda_.13} parent=5 // pred_check_branch
        %116 = sbr.rel (%p113) target = $region12
      $region11: #{_lambda_.13} parent=5 // pred_region
        %s117 = ssub.s32 %s9, 1
        // Predicated region
        $region13: #{_lambda_.13} parent=11 // pred_check
          %p118 = pneg %p30
        $region14: #{_lambda_.13} parent=11 // pred_check_branch
          %120 = sbr.rel (%p118) target = $region16
        $region15: #{_lambda_.13} parent=11 // pred_region
          _
        $region16: #{_lambda_.13} parent=11 // pred_fallthru
          _
        // Predicated region
        $region17: #{_lambda_.13} parent=11 // pred_check
          %p121 = pneg %p77
        $region18: #{_lambda_.13} parent=11 // pred_check_branch
          %123 = sbr.rel (%p121) target = $region20
        $region19: #{_lambda_.13} parent=11 // pred_region
          _
        $region20: #{_lambda_.13} parent=11 // pred_fallthru
          _
      $region12: #{_lambda_.13} parent=5 // pred_fallthru
        _
      %p124 = scmp.lt.s32.totalorder %s9, 2
      // Predicated region
      $region21: #{_lambda_.13} parent=5 // pred_check
        %p125 = pneg %p124
      $region22: #{_lambda_.13} parent=5 // pred_check_branch
        %127 = sbr.rel (%p125) target = $region24
      $region23: #{_lambda_.13} parent=5 // pred_region
        // Predicated region
        $region25: #{_lambda_.13} parent=23 // pred_check
          %p128 = pneg %p50
        $region26: #{_lambda_.13} parent=23 // pred_check_branch
          %130 = sbr.rel (%p128) target = $region28
        $region27: #{_lambda_.13} parent=23 // pred_region
          %s131 = sand.u32 %s40, 1
          %s132 = sand.u32 %s40, 1
          %s133 = smul.addr %s132, 672
          %s134 = scalar_lea.vmem [#allocation2], %s133
          %s135 = smul.u32 6, %s9
          %s136 = smul.addr %s135, 4
          %s137 = scalar_lea.vmem %s1, %s136
          // Predicated region
          $region29: #{_lambda_.13} parent=27 // pred_check
            _
          $region30: #{_lambda_.13} parent=27 // pred_check_branch
            %139 = sbr.rel (0) target = $region32
          $region31: #{_lambda_.13} parent=27 // pred_region
            // Predicated region
            $region33: #{_lambda_.13} parent=31 // pred_check
              _
            $region34: #{_lambda_.13} parent=31 // pred_check_branch
              %141 = sbr.rel (0) target = $region36
            $region35: #{_lambda_.13} parent=31 // pred_region
              loop: start=0, step=1, limit=1
              $region37: #{_lambda_.13} parent=35 // loop_pre_header
                _
              $region38: #{_lambda_.13} parent=35 // loop_header
                %s143 = sphi 0, %s147
                %p144 = scmp.ge.s32.totalorder %s143, 1
                %s148 = sphi %s137, %s137
                %s149 = sphi %s134, %s134
              $region39: #{_lambda_.13} parent=35 // loop_header_branch
                %146 = sbr.rel (%p144) target = $region43
              $region40: #{_lambda_.13} parent=35 // loop_body
                %v150 = vld [vmem:[%s148] sm:$0xff]
                %151 = vst [vmem:[%s149] sm:$0xff] %v150
                %v152 = vld [vmem:[%s148 + $0x8] sm:$0xff]
                %153 = vst [vmem:[%s149 + $0x8] sm:$0xff] %v152
                %v154 = vld [vmem:[%s148 + $0x10] sm:$0xff]
                %155 = vst [vmem:[%s149 + $0x10] sm:$0xff] %v154
                %v156 = vld [vmem:[%s148 + $0x30] sm:$0xff]
                %157 = vst [vmem:[%s149 + $0x18] sm:$0xff] %v156
                %v158 = vld [vmem:[%s148 + $0x38] sm:$0xff]
                %159 = vst [vmem:[%s149 + $0x20] sm:$0xff] %v158
                %v160 = vld [vmem:[%s148 + $0x40] sm:$0xff]
                %161 = vst [vmem:[%s149 + $0x28] sm:$0xff] %v160
                %v162 = vld [vmem:[%s148 + $0x60] sm:$0xff]
                %163 = vst [vmem:[%s149 + $0x30] sm:$0xff] %v162
                %v164 = vld [vmem:[%s148 + $0x68] sm:$0xff]
                %165 = vst [vmem:[%s149 + $0x38] sm:$0xff] %v164
                %v166 = vld [vmem:[%s148 + $0x70] sm:$0xff]
                %167 = vst [vmem:[%s149 + $0x40] sm:$0xff] %v166
                %v168 = vld [vmem:[%s148 + $0x90] sm:$0xff]
                %169 = vst [vmem:[%s149 + $0x48] sm:$0xff] %v168
                %v170 = vld [vmem:[%s148 + $0x98] sm:$0xff]
                %171 = vst [vmem:[%s149 + $0x50] sm:$0xff] %v170
                %v172 = vld [vmem:[%s148 + $0xa0] sm:$0xff]
                %173 = vst [vmem:[%s149 + $0x58] sm:$0xff] %v172
                %v174 = vld [vmem:[%s148 + $0xc0] sm:$0xff]
                %175 = vst [vmem:[%s149 + $0x60] sm:$0xff] %v174
                %v176 = vld [vmem:[%s148 + $0xc8] sm:$0xff]
                %177 = vst [vmem:[%s149 + $0x68] sm:$0xff] %v176
                %v178 = vld [vmem:[%s148 + $0xd0] sm:$0xff]
                %179 = vst [vmem:[%s149 + $0x70] sm:$0xff] %v178
                %v180 = vld [vmem:[%s148 + $0xf0] sm:$0xff]
                %181 = vst [vmem:[%s149 + $0x78] sm:$0xff] %v180
                %v182 = vld [vmem:[%s148 + $0xf8] sm:$0xff]
                %183 = vst [vmem:[%s149 + $0x80] sm:$0xff] %v182
                %v184 = vld [vmem:[%s148 + $0x100] sm:$0xff]
                %185 = vst [vmem:[%s149 + $0x88] sm:$0xff] %v184
                %v186 = vld [vmem:[%s148 + $0x120] sm:$0xff]
                %187 = vst [vmem:[%s149 + $0x90] sm:$0xff] %v186
                %v188 = vld [vmem:[%s148 + $0x128] sm:$0xff]
                %189 = vst [vmem:[%s149 + $0x98] sm:$0xff] %v188
                %v190 = vld [vmem:[%s148 + $0x130] sm:$0xff]
                %191 = vst [vmem:[%s149 + $0xa0] sm:$0xff] %v190
                %v192 = vld [vmem:[%s148 + $0x150] sm:$0xff]
                %193 = vst [vmem:[%s149 + $0xa8] sm:$0xff] %v192
                %v194 = vld [vmem:[%s148 + $0x158] sm:$0xff]
                %195 = vst [vmem:[%s149 + $0xb0] sm:$0xff] %v194
                %v196 = vld [vmem:[%s148 + $0x160] sm:$0xff]
                %197 = vst [vmem:[%s149 + $0xb8] sm:$0xff] %v196
                %v198 = vld [vmem:[%s148 + $0x180] sm:$0xff]
                %199 = vst [vmem:[%s149 + $0xc0] sm:$0xff] %v198
                %v200 = vld [vmem:[%s148 + $0x188] sm:$0xff]
                %201 = vst [vmem:[%s149 + $0xc8] sm:$0xff] %v200
                %v202 = vld [vmem:[%s148 + $0x190] sm:$0xff]
                %203 = vst [vmem:[%s149 + $0xd0] sm:$0xff] %v202
                %v204 = vld [vmem:[%s148 + $0x1b0] sm:$0xff]
                %205 = vst [vmem:[%s149 + $0xd8] sm:$0xff] %v204
                %v206 = vld [vmem:[%s148 + $0x1b8] sm:$0xff]
                %207 = vst [vmem:[%s149 + $0xe0] sm:$0xff] %v206
                %v208 = vld [vmem:[%s148 + $0x1c0] sm:$0xff]
                %209 = vst [vmem:[%s149 + $0xe8] sm:$0xff] %v208
                %v210 = vld [vmem:[%s148 + $0x1e0] sm:$0xff]
                %211 = vst [vmem:[%s149 + $0xf0] sm:$0xff] %v210
                %v212 = vld [vmem:[%s148 + $0x1e8] sm:$0xff]
                %213 = vst [vmem:[%s149 + $0xf8] sm:$0xff] %v212
                %v214 = vld [vmem:[%s148 + $0x1f0] sm:$0xff]
                %215 = vst [vmem:[%s149 + $0x100] sm:$0xff] %v214
                %v216 = vld [vmem:[%s148 + $0x210] sm:$0xff]
                %217 = vst [vmem:[%s149 + $0x108] sm:$0xff] %v216
                %v218 = vld [vmem:[%s148 + $0x218] sm:$0xff]
                %219 = vst [vmem:[%s149 + $0x110] sm:$0xff] %v218
                %v220 = vld [vmem:[%s148 + $0x220] sm:$0xff]
                %221 = vst [vmem:[%s149 + $0x118] sm:$0xff] %v220
                %v222 = vld [vmem:[%s148 + $0x240] sm:$0xff]
                %223 = vst [vmem:[%s149 + $0x120] sm:$0xff] %v222
                %v224 = vld [vmem:[%s148 + $0x248] sm:$0xff]
                %225 = vst [vmem:[%s149 + $0x128] sm:$0xff] %v224
                %v226 = vld [vmem:[%s148 + $0x250] sm:$0xff]
                %227 = vst [vmem:[%s149 + $0x130] sm:$0xff] %v226
                %v228 = vld [vmem:[%s148 + $0x270] sm:$0xff]
                %229 = vst [vmem:[%s149 + $0x138] sm:$0xff] %v228
                %v230 = vld [vmem:[%s148 + $0x278] sm:$0xff]
                %231 = vst [vmem:[%s149 + $0x140] sm:$0xff] %v230
                %v232 = vld [vmem:[%s148 + $0x280] sm:$0xff]
                %233 = vst [vmem:[%s149 + $0x148] sm:$0xff] %v232
                %v234 = vld [vmem:[%s148 + $0x2a0] sm:$0xff]
                %235 = vst [vmem:[%s149 + $0x150] sm:$0xff] %v234
                %v236 = vld [vmem:[%s148 + $0x2a8] sm:$0xff]
                %237 = vst [vmem:[%s149 + $0x158] sm:$0xff] %v236
                %v238 = vld [vmem:[%s148 + $0x2b0] sm:$0xff]
                %239 = vst [vmem:[%s149 + $0x160] sm:$0xff] %v238
                %v240 = vld [vmem:[%s148 + $0x2d0] sm:$0xff]
                %241 = vst [vmem:[%s149 + $0x168] sm:$0xff] %v240
                %v242 = vld [vmem:[%s148 + $0x2d8] sm:$0xff]
                %243 = vst [vmem:[%s149 + $0x170] sm:$0xff] %v242
                %v244 = vld [vmem:[%s148 + $0x2e0] sm:$0xff]
                %245 = vst [vmem:[%s149 + $0x178] sm:$0xff] %v244
                %v246 = vld [vmem:[%s148 + $0x300] sm:$0xff]
                %247 = vst [vmem:[%s149 + $0x180] sm:$0xff] %v246
                %v248 = vld [vmem:[%s148 + $0x308] sm:$0xff]
                %249 = vst [vmem:[%s149 + $0x188] sm:$0xff] %v248
                %v250 = vld [vmem:[%s148 + $0x310] sm:$0xff]
                %251 = vst [vmem:[%s149 + $0x190] sm:$0xff] %v250
                %v252 = vld [vmem:[%s148 + $0x330] sm:$0xff]
                %253 = vst [vmem:[%s149 + $0x198] sm:$0xff] %v252
                %v254 = vld [vmem:[%s148 + $0x338] sm:$0xff]
                %255 = vst [vmem:[%s149 + $0x1a0] sm:$0xff] %v254
                %v256 = vld [vmem:[%s148 + $0x340] sm:$0xff]
                %257 = vst [vmem:[%s149 + $0x1a8] sm:$0xff] %v256
                %v258 = vld [vmem:[%s148 + $0x360] sm:$0xff]
                %259 = vst [vmem:[%s149 + $0x1b0] sm:$0xff] %v258
                %v260 = vld [vmem:[%s148 + $0x368] sm:$0xff]
                %261 = vst [vmem:[%s149 + $0x1b8] sm:$0xff] %v260
                %v262 = vld [vmem:[%s148 + $0x370] sm:$0xff]
                %263 = vst [vmem:[%s149 + $0x1c0] sm:$0xff] %v262
                %v264 = vld [vmem:[%s148 + $0x390] sm:$0xff]
                %265 = vst [vmem:[%s149 + $0x1c8] sm:$0xff] %v264
                %v266 = vld [vmem:[%s148 + $0x398] sm:$0xff]
                %267 = vst [vmem:[%s149 + $0x1d0] sm:$0xff] %v266
                %v268 = vld [vmem:[%s148 + $0x3a0] sm:$0xff]
                %269 = vst [vmem:[%s149 + $0x1d8] sm:$0xff] %v268
                %v270 = vld [vmem:[%s148 + $0x3c0] sm:$0xff]
                %271 = vst [vmem:[%s149 + $0x1e0] sm:$0xff] %v270
                %v272 = vld [vmem:[%s148 + $0x3c8] sm:$0xff]
                %273 = vst [vmem:[%s149 + $0x1e8] sm:$0xff] %v272
                %v274 = vld [vmem:[%s148 + $0x3d0] sm:$0xff]
                %275 = vst [vmem:[%s149 + $0x1f0] sm:$0xff] %v274
                %v276 = vld [vmem:[%s148 + $0x3f0] sm:$0xff]
                %277 = vst [vmem:[%s149 + $0x1f8] sm:$0xff] %v276
                %v278 = vld [vmem:[%s148 + $0x3f8] sm:$0xff]
                %279 = vst [vmem:[%s149 + $0x200] sm:$0xff] %v278
                %v280 = vld [vmem:[%s148 + $0x400] sm:$0xff]
                %281 = vst [vmem:[%s149 + $0x208] sm:$0xff] %v280
                %v282 = vld [vmem:[%s148 + $0x420] sm:$0xff]
                %283 = vst [vmem:[%s149 + $0x210] sm:$0xff] %v282
                %v284 = vld [vmem:[%s148 + $0x428] sm:$0xff]
                %285 = vst [vmem:[%s149 + $0x218] sm:$0xff] %v284
                %v286 = vld [vmem:[%s148 + $0x430] sm:$0xff]
                %287 = vst [vmem:[%s149 + $0x220] sm:$0xff] %v286
                %v288 = vld [vmem:[%s148 + $0x450] sm:$0xff]
                %289 = vst [vmem:[%s149 + $0x228] sm:$0xff] %v288
                %v290 = vld [vmem:[%s148 + $0x458] sm:$0xff]
                %291 = vst [vmem:[%s149 + $0x230] sm:$0xff] %v290
                %v292 = vld [vmem:[%s148 + $0x460] sm:$0xff]
                %293 = vst [vmem:[%s149 + $0x238] sm:$0xff] %v292
                %v294 = vld [vmem:[%s148 + $0x480] sm:$0xff]
                %295 = vst [vmem:[%s149 + $0x240] sm:$0xff] %v294
                %v296 = vld [vmem:[%s148 + $0x488] sm:$0xff]
                %297 = vst [vmem:[%s149 + $0x248] sm:$0xff] %v296
                %v298 = vld [vmem:[%s148 + $0x490] sm:$0xff]
                %299 = vst [vmem:[%s149 + $0x250] sm:$0xff] %v298
                %v300 = vld [vmem:[%s148 + $0x4b0] sm:$0xff]
                %301 = vst [vmem:[%s149 + $0x258] sm:$0xff] %v300
                %v302 = vld [vmem:[%s148 + $0x4b8] sm:$0xff]
                %303 = vst [vmem:[%s149 + $0x260] sm:$0xff] %v302
                %v304 = vld [vmem:[%s148 + $0x4c0] sm:$0xff]
                %305 = vst [vmem:[%s149 + $0x268] sm:$0xff] %v304
                %v306 = vld [vmem:[%s148 + $0x4e0] sm:$0xff]
                %307 = vst [vmem:[%s149 + $0x270] sm:$0xff] %v306
                %v308 = vld [vmem:[%s148 + $0x4e8] sm:$0xff]
                %309 = vst [vmem:[%s149 + $0x278] sm:$0xff] %v308
                %v310 = vld [vmem:[%s148 + $0x4f0] sm:$0xff]
                %311 = vst [vmem:[%s149 + $0x280] sm:$0xff] %v310
                %v312 = vld [vmem:[%s148 + $0x510] sm:$0xff]
                %313 = vst [vmem:[%s149 + $0x288] sm:$0xff] %v312
                %v314 = vld [vmem:[%s148 + $0x518] sm:$0xff]
                %315 = vst [vmem:[%s149 + $0x290] sm:$0xff] %v314
                %v316 = vld [vmem:[%s148 + $0x520] sm:$0xff]
                %317 = vst [vmem:[%s149 + $0x298] sm:$0xff] %v316
              $region41: #{_lambda_.13} parent=35 // loop_footer
                %s147 = sadd.s32 1, %s143
              $region42: #{_lambda_.13} parent=35 // loop_footer_branch
                %142 = sbr.rel target = $region38
              $region43: #{_lambda_.13} parent=35 // loop_exit
                _
            $region36: #{_lambda_.13} parent=31 // pred_fallthru
              _
            // Predicated region
            $region44: #{_lambda_.13} parent=31 // pred_check
              _
            $region45: #{_lambda_.13} parent=31 // pred_check_branch
              %319 = sbr.rel target = $region47
            $region46: #{_lambda_.13} parent=31 // pred_region
              _
            $region47: #{_lambda_.13} parent=31 // pred_fallthru
              _
          $region32: #{_lambda_.13} parent=27 // pred_fallthru
            _
          %320 = vnop
        $region28: #{_lambda_.13} parent=23 // pred_fallthru
          _
      $region24: #{_lambda_.13} parent=5 // pred_fallthru
        _
      %p321 = scmp.le.s32.totalorder 1, %s9
      %p322 = scmp.lt.s32.totalorder %s9, 3
      %p323 = pnand %p321, %p322
      %p324 = pneg %p323
      // Predicated region
      $region48: #{_lambda_.13} parent=5 // pred_check
        _
      $region49: #{_lambda_.13} parent=5 // pred_check_branch
        %326 = sbr.rel (%p323) target = $region51
      $region50: #{_lambda_.13} parent=5 // pred_region
        %s327 = ssub.s32 %s9, 1
        %s328 = sand.u32 %s43, 1
        %s329 = sand.u32 %s43, 1
        %s330 = smul.addr %s329, 672
        %s331 = scalar_lea.vmem [#allocation2], %s330
        // Predicated region
        $region52: #{_lambda_.13} parent=50 // pred_check
          %p332 = pneg %p56
        $region53: #{_lambda_.13} parent=50 // pred_check_branch
          %334 = sbr.rel (%p332) target = $region55
        $region54: #{_lambda_.13} parent=50 // pred_region
          _
        $region55: #{_lambda_.13} parent=50 // pred_fallthru
          _
        %p335 = pneg %p30
        %p336 = pneg %p27
        %s337 = sand.u32 %s43, 1
        %s338 = sand.u32 %s43, 1
        %s339 = smul.addr %s338, 672
        %s340 = scalar_lea.vmem [#allocation2], %s339
        %p341 = pneg %p56
        %p342 = pneg %p53
        %p343 = pneg %p77
        %p344 = pneg %p74
        %p345 = pneg %p103
        %p346 = pneg %p100
        %s347 = smul.u32 6, %s14
        %p348 = scmp.lt.s32.totalorder %s347, 11
        %s349 = scalar_select %p348, %s347, 11
        %s350 = smul.addr %s349, 8
        %s351 = scalar_lea.vmem %s3, %s350
        %s352 = smul.u32 6, %s14
        %s353 = smul.u32 6, %s14
        %p354 = scmp.lt.s32.totalorder %s353, 11
        %s355 = scalar_select %p354, %s353, 11
        %s356 = smul.addr %s355, 8
        %s357 = scalar_lea.vmem %s3, %s356
        %s358 = smul.u32 6, %s14
        %v360 = vld [vmem:[%s0] sm:$0xff]
        %v361 = vld [vmem:[%s331] sm:$0xff]
        %v362 = vld [vmem:[%s331 + $0x8] sm:$0xff]
        %v363 = vld [vmem:[%s331 + $0x10] sm:$0xff]
        %v364 = vld [vmem:[%s331 + $0x18] sm:$0xff]
        %v365 = vld [vmem:[%s331 + $0x20] sm:$0xff]
        %v366 = vld [vmem:[%s331 + $0x28] sm:$0xff]
        %v367 = vld [vmem:[%s331 + $0x30] sm:$0xff]
        %v368 = vld [vmem:[%s331 + $0x38] sm:$0xff]
        %v369 = vld [vmem:[%s331 + $0x40] sm:$0xff]
        %v370 = vld [vmem:[%s331 + $0x48] sm:$0xff]
        %v371 = vld [vmem:[%s331 + $0x50] sm:$0xff]
        %v372 = vld [vmem:[%s331 + $0x58] sm:$0xff]
        %v373 = vld [vmem:[%s331 + $0x60] sm:$0xff]
        %v374 = vld [vmem:[%s331 + $0x68] sm:$0xff]
        %v375 = vld [vmem:[%s331 + $0x70] sm:$0xff]
        %v376 = vld [vmem:[%s331 + $0x78] sm:$0xff]
        %v377 = vld [vmem:[%s331 + $0x80] sm:$0xff]
        %v378 = vld [vmem:[%s331 + $0x88] sm:$0xff]
        %v379 = vld [vmem:[%s331 + $0x90] sm:$0xff]
        %v380 = vld [vmem:[%s331 + $0x98] sm:$0xff]
        %v381 = vld [vmem:[%s331 + $0xa0] sm:$0xff]
        %v382 = vld [vmem:[%s331 + $0xa8] sm:$0xff]
        %v383 = vld [vmem:[%s331 + $0xb0] sm:$0xff]
        %v384 = vld [vmem:[%s331 + $0xb8] sm:$0xff]
        %v385 = vld [vmem:[%s331 + $0xc0] sm:$0xff]
        %v386 = vld [vmem:[%s331 + $0xc8] sm:$0xff]
        %v387 = vld [vmem:[%s331 + $0xd0] sm:$0xff]
        %v388 = vld [vmem:[%s331 + $0xd8] sm:$0xff]
        %v389 = vld [vmem:[%s331 + $0xe0] sm:$0xff]
        %v390 = vld [vmem:[%s331 + $0xe8] sm:$0xff]
        %v391 = vld [vmem:[%s331 + $0xf0] sm:$0xff]
        %v392 = vld [vmem:[%s331 + $0xf8] sm:$0xff]
        %v393 = vld [vmem:[%s331 + $0x100] sm:$0xff]
        %v394 = vld [vmem:[%s331 + $0x108] sm:$0xff]
        %v395 = vld [vmem:[%s331 + $0x110] sm:$0xff]
        %v396 = vld [vmem:[%s331 + $0x118] sm:$0xff]
        %v397 = vld [vmem:[%s331 + $0x120] sm:$0xff]
        %v398 = vld [vmem:[%s331 + $0x128] sm:$0xff]
        %v399 = vld [vmem:[%s331 + $0x130] sm:$0xff]
        %v400 = vld [vmem:[%s331 + $0x138] sm:$0xff]
        %v401 = vld [vmem:[%s331 + $0x140] sm:$0xff]
        %v402 = vld [vmem:[%s331 + $0x148] sm:$0xff]
        %v403 = vld [vmem:[%s331 + $0x150] sm:$0xff]
        %v404 = vld [vmem:[%s331 + $0x158] sm:$0xff]
        %v405 = vld [vmem:[%s331 + $0x160] sm:$0xff]
        %v406 = vld [vmem:[%s331 + $0x168] sm:$0xff]
        %v407 = vld [vmem:[%s331 + $0x170] sm:$0xff]
        %v408 = vld [vmem:[%s331 + $0x178] sm:$0xff]
        %v409 = vld [vmem:[%s331 + $0x180] sm:$0xff]
        %v410 = vld [vmem:[%s331 + $0x188] sm:$0xff]
        %v411 = vld [vmem:[%s331 + $0x190] sm:$0xff]
        %v412 = vld [vmem:[%s331 + $0x198] sm:$0xff]
        %v413 = vld [vmem:[%s331 + $0x1a0] sm:$0xff]
        %v414 = vld [vmem:[%s331 + $0x1a8] sm:$0xff]
        %v415 = vld [vmem:[%s331 + $0x1b0] sm:$0xff]
        %v416 = vld [vmem:[%s331 + $0x1b8] sm:$0xff]
        %v417 = vld [vmem:[%s331 + $0x1c0] sm:$0xff]
        %v418 = vld [vmem:[%s331 + $0x1c8] sm:$0xff]
        %v419 = vld [vmem:[%s331 + $0x1d0] sm:$0xff]
        %v420 = vld [vmem:[%s331 + $0x1d8] sm:$0xff]
        %v421 = vld [vmem:[%s331 + $0x1e0] sm:$0xff]
        %v422 = vld [vmem:[%s331 + $0x1e8] sm:$0xff]
        %v423 = vld [vmem:[%s331 + $0x1f0] sm:$0xff]
        %v424 = vld [vmem:[%s331 + $0x1f8] sm:$0xff]
        %v425 = vld [vmem:[%s331 + $0x200] sm:$0xff]
        %v426 = vld [vmem:[%s331 + $0x208] sm:$0xff]
        %v427 = vld [vmem:[%s331 + $0x210] sm:$0xff]
        %v428 = vld [vmem:[%s331 + $0x218] sm:$0xff]
        %v429 = vld [vmem:[%s331 + $0x220] sm:$0xff]
        %v430 = vld [vmem:[%s331 + $0x228] sm:$0xff]
        %v431 = vld [vmem:[%s331 + $0x230] sm:$0xff]
        %v432 = vld [vmem:[%s331 + $0x238] sm:$0xff]
        %v433 = vld [vmem:[%s331 + $0x240] sm:$0xff]
        %v434 = vld [vmem:[%s331 + $0x248] sm:$0xff]
        %v435 = vld [vmem:[%s331 + $0x250] sm:$0xff]
        %v436 = vld [vmem:[%s331 + $0x258] sm:$0xff]
        %v437 = vld [vmem:[%s331 + $0x260] sm:$0xff]
        %v438 = vld [vmem:[%s331 + $0x268] sm:$0xff]
        %v439 = vld [vmem:[%s331 + $0x270] sm:$0xff]
        %v440 = vld [vmem:[%s331 + $0x278] sm:$0xff]
        %v441 = vld [vmem:[%s331 + $0x280] sm:$0xff]
        %v442 = vld [vmem:[%s331 + $0x288] sm:$0xff]
        %v443 = vld [vmem:[%s331 + $0x290] sm:$0xff]
        %v444 = vld [vmem:[%s331 + $0x298] sm:$0xff]
        %v445 = vld [vmem:[%s2] sm:$0xff]
        %447 = vset.pattern.permute.xlu0 0
        %448 = vperm.xlu0 %447, %v445
        %v449 = vpop.permute.xlu0 %448
        %v452 = vunpack.c.l.b16 %v360
        %v453 = vunpack.c.h.b16 %v360
        %v454 = vpack.c.b16 %v452, %v452
        %v455 = vpack.c.b16 %v453, %v453
        %v541 = vunpack.c.l.b16 %v361
        %v542 = vunpack.c.h.b16 %v361
        %v543 = vunpack.c.l.b16 %v362
        %v544 = vunpack.c.h.b16 %v362
        %v545 = vunpack.c.l.b16 %v363
        %v546 = vunpack.c.h.b16 %v363
        %v547 = vunpack.c.l.b16 %v364
        %v548 = vunpack.c.h.b16 %v364
        %v549 = vunpack.c.l.b16 %v365
        %v550 = vunpack.c.h.b16 %v365
        %v551 = vunpack.c.l.b16 %v366
        %v552 = vunpack.c.h.b16 %v366
        %v553 = vunpack.c.l.b16 %v367
        %v554 = vunpack.c.h.b16 %v367
        %v555 = vunpack.c.l.b16 %v368
        %v556 = vunpack.c.h.b16 %v368
        %v557 = vunpack.c.l.b16 %v369
        %v558 = vunpack.c.h.b16 %v369
        %v559 = vunpack.c.l.b16 %v370
        %v560 = vunpack.c.h.b16 %v370
        %v561 = vunpack.c.l.b16 %v371
        %v562 = vunpack.c.h.b16 %v371
        %v563 = vunpack.c.l.b16 %v372
        %v564 = vunpack.c.h.b16 %v372
        %v565 = vunpack.c.l.b16 %v373
        %v566 = vunpack.c.h.b16 %v373
        %v567 = vunpack.c.l.b16 %v374
        %v568 = vunpack.c.h.b16 %v374
        %v569 = vunpack.c.l.b16 %v375
        %v570 = vunpack.c.h.b16 %v375
        %v571 = vunpack.c.l.b16 %v376
        %v572 = vunpack.c.h.b16 %v376
        %v573 = vunpack.c.l.b16 %v377
        %v574 = vunpack.c.h.b16 %v377
        %v575 = vunpack.c.l.b16 %v378
        %v576 = vunpack.c.h.b16 %v378
        %v577 = vunpack.c.l.b16 %v379
        %v578 = vunpack.c.h.b16 %v379
        %v579 = vunpack.c.l.b16 %v380
        %v580 = vunpack.c.h.b16 %v380
        %v581 = vunpack.c.l.b16 %v381
        %v582 = vunpack.c.h.b16 %v381
        %v583 = vunpack.c.l.b16 %v382
        %v584 = vunpack.c.h.b16 %v382
        %v585 = vunpack.c.l.b16 %v383
        %v586 = vunpack.c.h.b16 %v383
        %v587 = vunpack.c.l.b16 %v384
        %v588 = vunpack.c.h.b16 %v384
        %v589 = vunpack.c.l.b16 %v385
        %v590 = vunpack.c.h.b16 %v385
        %v591 = vunpack.c.l.b16 %v386
        %v592 = vunpack.c.h.b16 %v386
        %v593 = vunpack.c.l.b16 %v387
        %v594 = vunpack.c.h.b16 %v387
        %v595 = vunpack.c.l.b16 %v388
        %v596 = vunpack.c.h.b16 %v388
        %v597 = vunpack.c.l.b16 %v389
        %v598 = vunpack.c.h.b16 %v389
        %v599 = vunpack.c.l.b16 %v390
        %v600 = vunpack.c.h.b16 %v390
        %v601 = vunpack.c.l.b16 %v391
        %v602 = vunpack.c.h.b16 %v391
        %v603 = vunpack.c.l.b16 %v392
        %v604 = vunpack.c.h.b16 %v392
        %v605 = vunpack.c.l.b16 %v393
        %v606 = vunpack.c.h.b16 %v393
        %v607 = vunpack.c.l.b16 %v394
        %v608 = vunpack.c.h.b16 %v394
        %v609 = vunpack.c.l.b16 %v395
        %v610 = vunpack.c.h.b16 %v395
        %v611 = vunpack.c.l.b16 %v396
        %v612 = vunpack.c.h.b16 %v396
        %v613 = vunpack.c.l.b16 %v397
        %v614 = vunpack.c.h.b16 %v397
        %v615 = vunpack.c.l.b16 %v398
        %v616 = vunpack.c.h.b16 %v398
        %v617 = vunpack.c.l.b16 %v399
        %v618 = vunpack.c.h.b16 %v399
        %v619 = vunpack.c.l.b16 %v400
        %v620 = vunpack.c.h.b16 %v400
        %v621 = vunpack.c.l.b16 %v401
        %v622 = vunpack.c.h.b16 %v401
        %v623 = vunpack.c.l.b16 %v402
        %v624 = vunpack.c.h.b16 %v402
        %v625 = vunpack.c.l.b16 %v403
        %v626 = vunpack.c.h.b16 %v403
        %v627 = vunpack.c.l.b16 %v404
        %v628 = vunpack.c.h.b16 %v404
        %v629 = vunpack.c.l.b16 %v405
        %v630 = vunpack.c.h.b16 %v405
        %v631 = vunpack.c.l.b16 %v406
        %v632 = vunpack.c.h.b16 %v406
        %v633 = vunpack.c.l.b16 %v407
        %v634 = vunpack.c.h.b16 %v407
        %v635 = vunpack.c.l.b16 %v408
        %v636 = vunpack.c.h.b16 %v408
        %v637 = vunpack.c.l.b16 %v409
        %v638 = vunpack.c.h.b16 %v409
        %v639 = vunpack.c.l.b16 %v410
        %v640 = vunpack.c.h.b16 %v410
        %v641 = vunpack.c.l.b16 %v411
        %v642 = vunpack.c.h.b16 %v411
        %v643 = vunpack.c.l.b16 %v412
        %v644 = vunpack.c.h.b16 %v412
        %v645 = vunpack.c.l.b16 %v413
        %v646 = vunpack.c.h.b16 %v413
        %v647 = vunpack.c.l.b16 %v414
        %v648 = vunpack.c.h.b16 %v414
        %v649 = vunpack.c.l.b16 %v415
        %v650 = vunpack.c.h.b16 %v415
        %v651 = vunpack.c.l.b16 %v416
        %v652 = vunpack.c.h.b16 %v416
        %v653 = vunpack.c.l.b16 %v417
        %v654 = vunpack.c.h.b16 %v417
        %v655 = vunpack.c.l.b16 %v418
        %v656 = vunpack.c.h.b16 %v418
        %v657 = vunpack.c.l.b16 %v419
        %v658 = vunpack.c.h.b16 %v419
        %v659 = vunpack.c.l.b16 %v420
        %v660 = vunpack.c.h.b16 %v420
        %v661 = vunpack.c.l.b16 %v421
        %v662 = vunpack.c.h.b16 %v421
        %v663 = vunpack.c.l.b16 %v422
        %v664 = vunpack.c.h.b16 %v422
        %v665 = vunpack.c.l.b16 %v423
        %v666 = vunpack.c.h.b16 %v423
        %v667 = vunpack.c.l.b16 %v424
        %v668 = vunpack.c.h.b16 %v424
        %v669 = vunpack.c.l.b16 %v425
        %v670 = vunpack.c.h.b16 %v425
        %v671 = vunpack.c.l.b16 %v426
        %v672 = vunpack.c.h.b16 %v426
        %v673 = vunpack.c.l.b16 %v427
        %v674 = vunpack.c.h.b16 %v427
        %v675 = vunpack.c.l.b16 %v428
        %v676 = vunpack.c.h.b16 %v428
        %v677 = vunpack.c.l.b16 %v429
        %v678 = vunpack.c.h.b16 %v429
        %v679 = vunpack.c.l.b16 %v430
        %v680 = vunpack.c.h.b16 %v430
        %v681 = vunpack.c.l.b16 %v431
        %v682 = vunpack.c.h.b16 %v431
        %v683 = vunpack.c.l.b16 %v432
        %v684 = vunpack.c.h.b16 %v432
        %v685 = vunpack.c.l.b16 %v433
        %v686 = vunpack.c.h.b16 %v433
        %v687 = vunpack.c.l.b16 %v434
        %v688 = vunpack.c.h.b16 %v434
        %v689 = vunpack.c.l.b16 %v435
        %v690 = vunpack.c.h.b16 %v435
        %v691 = vunpack.c.l.b16 %v436
        %v692 = vunpack.c.h.b16 %v436
        %v693 = vunpack.c.l.b16 %v437
        %v694 = vunpack.c.h.b16 %v437
        %v695 = vunpack.c.l.b16 %v438
        %v696 = vunpack.c.h.b16 %v438
        %v697 = vunpack.c.l.b16 %v439
        %v698 = vunpack.c.h.b16 %v439
        %v699 = vunpack.c.l.b16 %v440
        %v700 = vunpack.c.h.b16 %v440
        %v701 = vunpack.c.l.b16 %v441
        %v702 = vunpack.c.h.b16 %v441
        %v703 = vunpack.c.l.b16 %v442
        %v704 = vunpack.c.h.b16 %v442
        %v705 = vunpack.c.l.b16 %v443
        %v706 = vunpack.c.h.b16 %v443
        %v707 = vunpack.c.l.b16 %v444
        %v708 = vunpack.c.h.b16 %v444
        %v709 = vpack.c.b16 %v547, %v541
        %v710 = vpack.c.b16 %v548, %v542
        %v711 = vpack.c.b16 %v549, %v543
        %v712 = vpack.c.b16 %v550, %v544
        %v713 = vpack.c.b16 %v551, %v545
        %v714 = vpack.c.b16 %v552, %v546
        %v715 = vpack.c.b16 %v559, %v553
        %v716 = vpack.c.b16 %v560, %v554
        %v717 = vpack.c.b16 %v561, %v555
        %v718 = vpack.c.b16 %v562, %v556
        %v719 = vpack.c.b16 %v563, %v557
        %v720 = vpack.c.b16 %v564, %v558
        %v721 = vpack.c.b16 %v571, %v565
        %v722 = vpack.c.b16 %v572, %v566
        %v723 = vpack.c.b16 %v573, %v567
        %v724 = vpack.c.b16 %v574, %v568
        %v725 = vpack.c.b16 %v575, %v569
        %v726 = vpack.c.b16 %v576, %v570
        %v727 = vpack.c.b16 %v583, %v577
        %v728 = vpack.c.b16 %v584, %v578
        %v729 = vpack.c.b16 %v585, %v579
        %v730 = vpack.c.b16 %v586, %v580
        %v731 = vpack.c.b16 %v587, %v581
        %v732 = vpack.c.b16 %v588, %v582
        %v733 = vpack.c.b16 %v595, %v589
        %v734 = vpack.c.b16 %v596, %v590
        %v735 = vpack.c.b16 %v597, %v591
        %v736 = vpack.c.b16 %v598, %v592
        %v737 = vpack.c.b16 %v599, %v593
        %v738 = vpack.c.b16 %v600, %v594
        %v739 = vpack.c.b16 %v607, %v601
        %v740 = vpack.c.b16 %v608, %v602
        %v741 = vpack.c.b16 %v609, %v603
        %v742 = vpack.c.b16 %v610, %v604
        %v743 = vpack.c.b16 %v611, %v605
        %v744 = vpack.c.b16 %v612, %v606
        %v745 = vpack.c.b16 %v619, %v613
        %v746 = vpack.c.b16 %v620, %v614
        %v747 = vpack.c.b16 %v621, %v615
        %v748 = vpack.c.b16 %v622, %v616
        %v749 = vpack.c.b16 %v623, %v617
        %v750 = vpack.c.b16 %v624, %v618
        %v751 = vpack.c.b16 %v631, %v625
        %v752 = vpack.c.b16 %v632, %v626
        %v753 = vpack.c.b16 %v633, %v627
        %v754 = vpack.c.b16 %v634, %v628
        %v755 = vpack.c.b16 %v635, %v629
        %v756 = vpack.c.b16 %v636, %v630
        %v757 = vpack.c.b16 %v643, %v637
        %v758 = vpack.c.b16 %v644, %v638
        %v759 = vpack.c.b16 %v645, %v639
        %v760 = vpack.c.b16 %v646, %v640
        %v761 = vpack.c.b16 %v647, %v641
        %v762 = vpack.c.b16 %v648, %v642
        %v763 = vpack.c.b16 %v655, %v649
        %v764 = vpack.c.b16 %v656, %v650
        %v765 = vpack.c.b16 %v657, %v651
        %v766 = vpack.c.b16 %v658, %v652
        %v767 = vpack.c.b16 %v659, %v653
        %v768 = vpack.c.b16 %v660, %v654
        %v769 = vpack.c.b16 %v667, %v661
        %v770 = vpack.c.b16 %v668, %v662
        %v771 = vpack.c.b16 %v669, %v663
        %v772 = vpack.c.b16 %v670, %v664
        %v773 = vpack.c.b16 %v671, %v665
        %v774 = vpack.c.b16 %v672, %v666
        %v775 = vpack.c.b16 %v679, %v673
        %v776 = vpack.c.b16 %v680, %v674
        %v777 = vpack.c.b16 %v681, %v675
        %v778 = vpack.c.b16 %v682, %v676
        %v779 = vpack.c.b16 %v683, %v677
        %v780 = vpack.c.b16 %v684, %v678
        %v781 = vpack.c.b16 %v691, %v685
        %v782 = vpack.c.b16 %v692, %v686
        %v783 = vpack.c.b16 %v693, %v687
        %v784 = vpack.c.b16 %v694, %v688
        %v785 = vpack.c.b16 %v695, %v689
        %v786 = vpack.c.b16 %v696, %v690
        %v787 = vpack.c.b16 %v703, %v697
        %v788 = vpack.c.b16 %v704, %v698
        %v789 = vpack.c.b16 %v705, %v699
        %v790 = vpack.c.b16 %v706, %v700
        %v791 = vpack.c.b16 %v707, %v701
        %v792 = vpack.c.b16 %v708, %v702
        %vm877 = vcmask 785408
        %v879 = vsel %vm877, %v455, 0
        %881 = vmatprep.subr.bf16.mxu0 %v710
        %882 = vmatpush1.bf16.msra.mxu0 %v709
        %883 = vmatprep.subr.bf16.mxu0 %v716
        %884 = vmatpush1.bf16.msra.mxu0 %v715
        %885 = vmatprep.subr.bf16.mxu0 %v722
        %886 = vmatpush1.bf16.msra.mxu0 %v721
        %887 = vmatprep.subr.bf16.mxu0 %v728
        %888 = vmatpush1.bf16.msra.mxu0 %v727
        %889 = vmatprep.subr.bf16.mxu0 %v734
        %890 = vmatpush1.bf16.msra.mxu0 %v733
        %891 = vmatprep.subr.bf16.mxu0 %v740
        %892 = vmatpush1.bf16.msra.mxu0 %v739
        %893 = vmatprep.subr.bf16.mxu0 %v746
        %894 = vmatpush1.bf16.msra.mxu0 %v745
        %895 = vmatprep.subr.bf16.mxu0 %v752
        %896 = vmatpush1.bf16.msra.mxu0 %v751
        %897 = vmatprep.subr.bf16.mxu0 %v758
        %898 = vmatpush1.bf16.msra.mxu0 %v757
        %899 = vmatprep.subr.bf16.mxu0 %v764
        %900 = vmatpush1.bf16.msra.mxu0 %v763
        %901 = vmatprep.subr.bf16.mxu0 %v770
        %902 = vmatpush1.bf16.msra.mxu0 %v769
        %903 = vmatprep.subr.bf16.mxu0 %v776
        %904 = vmatpush1.bf16.msra.mxu0 %v775
        %905 = vmatprep.subr.bf16.mxu0 %v782
        %906 = vmatpush1.bf16.msra.mxu0 %v781
        %907 = vmatprep.subr.bf16.mxu0 %v788
        %908 = vmatpush1.bf16.msra.mxu0 %v787
        %909 = vmatprep.subr.bf16.mxu0 0
        %910 = vmatpush1.bf16.msra.mxu0 0
        %911 = vmatprep.subr.bf16.mxu0 0
        %912 = vmatpush1.bf16.msra.mxu0 0
        %913 = vmatprep.mubr.bf16.mxu0 %v879
        %914 = vmatmul.mubr.bf16.gmra.mrb[0].mxu0 %v454
        %v915 = vpop.f32.mrb[0].mxu0
        %v916 = vadd.f32 %v449, %v915
        %v917 = vpop.f32.mrb[0].mxu0
        %v918 = vadd.f32 %v449, %v917
        %v919 = vpop.f32.mrb[0].mxu0
        %v920 = vpop.f32.mrb[0].mxu0
        %921 = vdwg.mxu0
        %922 = vmatprep.subr.bf16.mxu0 %v712
        %923 = vmatpush1.bf16.msra.mxu0 %v711
        %924 = vmatprep.subr.bf16.mxu0 %v718
        %925 = vmatpush1.bf16.msra.mxu0 %v717
        %926 = vmatprep.subr.bf16.mxu0 %v724
        %927 = vmatpush1.bf16.msra.mxu0 %v723
        %928 = vmatprep.subr.bf16.mxu0 %v730
        %929 = vmatpush1.bf16.msra.mxu0 %v729
        %930 = vmatprep.subr.bf16.mxu0 %v736
        %931 = vmatpush1.bf16.msra.mxu0 %v735
        %932 = vmatprep.subr.bf16.mxu0 %v742
        %933 = vmatpush1.bf16.msra.mxu0 %v741
        %934 = vmatprep.subr.bf16.mxu0 %v748
        %935 = vmatpush1.bf16.msra.mxu0 %v747
        %936 = vmatprep.subr.bf16.mxu0 %v754
        %937 = vmatpush1.bf16.msra.mxu0 %v753
        %938 = vmatprep.subr.bf16.mxu0 %v760
        %939 = vmatpush1.bf16.msra.mxu0 %v759
        %940 = vmatprep.subr.bf16.mxu0 %v766
        %941 = vmatpush1.bf16.msra.mxu0 %v765
        %942 = vmatprep.subr.bf16.mxu0 %v772
        %943 = vmatpush1.bf16.msra.mxu0 %v771
        %944 = vmatprep.subr.bf16.mxu0 %v778
        %945 = vmatpush1.bf16.msra.mxu0 %v777
        %946 = vmatprep.subr.bf16.mxu0 %v784
        %947 = vmatpush1.bf16.msra.mxu0 %v783
        %948 = vmatprep.subr.bf16.mxu0 %v790
        %949 = vmatpush1.bf16.msra.mxu0 %v789
        %950 = vmatprep.subr.bf16.mxu0 0
        %951 = vmatpush1.bf16.msra.mxu0 0
        %952 = vmatprep.subr.bf16.mxu0 0
        %953 = vmatpush1.bf16.msra.mxu0 0
        %954 = vmatprep.mubr.bf16.mxu0 %v879
        %955 = vmatmul.mubr.bf16.gmra.mrb[0].mxu0 %v454
        %v956 = vpop.f32.mrb[0].mxu0
        %v957 = vadd.f32 %v449, %v956
        %v958 = vpop.f32.mrb[0].mxu0
        %v959 = vadd.f32 %v449, %v958
        %v960 = vpop.f32.mrb[0].mxu0
        %v961 = vpop.f32.mrb[0].mxu0
        %962 = vdwg.mxu0
        %963 = vmatprep.subr.bf16.mxu0 %v714
        %964 = vmatpush1.bf16.msra.mxu0 %v713
        %965 = vmatprep.subr.bf16.mxu0 %v720
        %966 = vmatpush1.bf16.msra.mxu0 %v719
        %967 = vmatprep.subr.bf16.mxu0 %v726
        %968 = vmatpush1.bf16.msra.mxu0 %v725
        %969 = vmatprep.subr.bf16.mxu0 %v732
        %970 = vmatpush1.bf16.msra.mxu0 %v731
        %971 = vmatprep.subr.bf16.mxu0 %v738
        %972 = vmatpush1.bf16.msra.mxu0 %v737
        %973 = vmatprep.subr.bf16.mxu0 %v744
        %974 = vmatpush1.bf16.msra.mxu0 %v743
        %975 = vmatprep.subr.bf16.mxu0 %v750
        %976 = vmatpush1.bf16.msra.mxu0 %v749
        %977 = vmatprep.subr.bf16.mxu0 %v756
        %978 = vmatpush1.bf16.msra.mxu0 %v755
        %979 = vmatprep.subr.bf16.mxu0 %v762
        %980 = vmatpush1.bf16.msra.mxu0 %v761
        %981 = vmatprep.subr.bf16.mxu0 %v768
        %982 = vmatpush1.bf16.msra.mxu0 %v767
        %983 = vmatprep.subr.bf16.mxu0 %v774
        %984 = vmatpush1.bf16.msra.mxu0 %v773
        %985 = vmatprep.subr.bf16.mxu0 %v780
        %986 = vmatpush1.bf16.msra.mxu0 %v779
        %987 = vmatprep.subr.bf16.mxu0 %v786
        %988 = vmatpush1.bf16.msra.mxu0 %v785
        %989 = vmatprep.subr.bf16.mxu0 %v792
        %990 = vmatpush1.bf16.msra.mxu0 %v791
        %991 = vmatprep.subr.bf16.mxu0 0
        %992 = vmatpush1.bf16.msra.mxu0 0
        %993 = vmatprep.subr.bf16.mxu0 0
        %994 = vmatpush1.bf16.msra.mxu0 0
        %995 = vmatprep.mubr.bf16.mxu0 %v879
        %996 = vmatmul.mubr.bf16.gmra.mrb[0].mxu0 %v454
        %v997 = vpop.f32.mrb[0].mxu0
        %v998 = vadd.f32 %v449, %v997
        %v999 = vpop.f32.mrb[0].mxu0
        %v1000 = vadd.f32 %v449, %v999
        %v1001 = vpop.f32.mrb[0].mxu0
        %v1002 = vpop.f32.mrb[0].mxu0
        %1003 = vdwg.mxu0
        %vm1004 = vcmp.gt.f32.partialorder %v916, 0.0
        %vm1005 = vcmp.gt.f32.partialorder %v918, 0.0
        %vm1006 = vcmp.gt.f32.partialorder %v957, 0.0
        %vm1007 = vcmp.gt.f32.partialorder %v959, 0.0
        %vm1008 = vcmp.gt.f32.partialorder %v998, 0.0
        %vm1009 = vcmp.gt.f32.partialorder %v1000, 0.0
        %v1010 = vmul.f32 %v916, 0.01
        %v1011 = vmul.f32 %v918, 0.01
        %v1012 = vmul.f32 %v957, 0.01
        %v1013 = vmul.f32 %v959, 0.01
        %v1014 = vmul.f32 %v998, 0.01
        %v1015 = vmul.f32 %v1000, 0.01
        %v1016 = vsel %vm1004, %v916, %v1010
        %v1017 = vsel %vm1005, %v918, %v1011
        %v1018 = vsel %vm1006, %v957, %v1012
        %v1019 = vsel %vm1007, %v959, %v1013
        %v1020 = vsel %vm1008, %v998, %v1014
        %v1021 = vsel %vm1009, %v1000, %v1015
        %1022 = vst [vmem:[%s357] sm:$0xff] %v1016
        %1023 = vst [vmem:[%s357 + $0x8] sm:$0xff] %v1017
        %1024 = vst [vmem:[%s357 + $0x10] sm:$0xff] %v1018
        %1025 = vst [vmem:[%s357 + $0x18] sm:$0xff] %v1019
        %1026 = vst [vmem:[%s357 + $0x20] sm:$0xff] %v1020
        %1027 = vst [vmem:[%s357 + $0x28] sm:$0xff] %v1021
        %s1028 = smul.u32 6, %s14
        %p1029 = scmp.lt.s32.totalorder %s1028, 11
        %s1030 = scalar_select %p1029, %s1028, 11
        %s1031 = smul.addr %s1030, 8
        %s1032 = scalar_lea.vmem %s3, %s1031
        // Predicated region
        $region56: #{_lambda_.13} parent=50 // pred_check
          %p1033 = pneg %p100
        $region57: #{_lambda_.13} parent=50 // pred_check_branch
          %1035 = sbr.rel (%p1033) target = $region59
        $region58: #{_lambda_.13} parent=50 // pred_region
          %s1036 = smul.u32 6, %s14
        $region59: #{_lambda_.13} parent=50 // pred_fallthru
          _
      $region51: #{_lambda_.13} parent=5 // pred_fallthru
        _
      %p1037 = scmp.le.s32.totalorder 2, %s9
      // Predicated region
      $region60: #{_lambda_.13} parent=5 // pred_check
        %p1038 = pneg %p1037
      $region61: #{_lambda_.13} parent=5 // pred_check_branch
        %1040 = sbr.rel (%p1038) target = $region63
      $region62: #{_lambda_.13} parent=5 // pred_region
        %s1041 = ssub.s32 %s9, 2
        // Predicated region
        $region64: #{_lambda_.13} parent=62 // pred_check
          %p1042 = pneg %p106
        $region65: #{_lambda_.13} parent=62 // pred_check_branch
          %1044 = sbr.rel (%p1042) target = $region67
        $region66: #{_lambda_.13} parent=62 // pred_region
          %s1045 = smul.u32 6, %s15
          %p1046 = scmp.lt.s32.totalorder %s1045, 11
          %s1047 = scalar_select %p1046, %s1045, 11
          %s1048 = smul.addr %s1047, 8
          %s1049 = scalar_lea.vmem %s3, %s1048
        $region67: #{_lambda_.13} parent=62 // pred_fallthru
          _
      $region63: #{_lambda_.13} parent=5 // pred_fallthru
        _
    $region6: #{_lambda_.13} parent=1 // loop_footer
      %s13 = sadd.s32 1, %s9
    $region7: #{_lambda_.13} parent=1 // loop_footer_branch
      %8 = sbr.rel target = $region3
    $region8: #{_lambda_.13} parent=1 // loop_exit
      _

// kernel: _lambda_.17
$region0: #{_lambda_.17}
  #allocation0 [shape = 'u32[]', space=smem, size = 0x4, offset = 0x4, fixed_abs, tag = 'smem constant byte address 0x4 - core index']
  #allocation1 [shape = 'u32[144,128]{1,0:T(1,128)}', space=vmem, size = 0x12000, scoped, tag = 'internal scratch']
  %s0 = inlined_call_operand.vmem [shape: bf16[8,224], index: 0, kind: input, shape index: {}]
  %s1 = inlined_call_operand.vmem [shape: bf16[224,384], index: 1, kind: input, shape index: {}]
  %s2 = inlined_call_operand.vmem [shape: f32[8,1], index: 2, kind: input, shape index: {}]
  %s3 = inlined_call_operand.vmem [shape: f32[8,384], index: 3, kind: output, shape index: {}]
  %s4 = sld [smem:[#allocation0]]
  $region22: #{_lambda_.17} parent=0
    _
  %s6 = ssub.s32 1, %s4
  %s7 = scalar_select 0, %s6, %s4
  // Predicated region
  $region2: #{_lambda_.17} parent=0 // pred_check
    _
  $region3: #{_lambda_.17} parent=0 // pred_check_branch
    %9 = sbr.rel (0) target = $region5
  $region4: #{_lambda_.17} parent=0 // pred_region
    _
  $region5: #{_lambda_.17} parent=0 // pred_fallthru
    _
  // Predicated region
  $region6: #{_lambda_.17} parent=0 // pred_check
    _
  $region7: #{_lambda_.17} parent=0 // pred_check_branch
    %11 = sbr.rel (0) target = $region9
  $region8: #{_lambda_.17} parent=0 // pred_region
    _
  $region9: #{_lambda_.17} parent=0 // pred_fallthru
    _
  // Predicated region
  $region10: #{_lambda_.17} parent=0 // pred_check
    _
  $region11: #{_lambda_.17} parent=0 // pred_check_branch
    %13 = sbr.rel (0) target = $region13
  $region12: #{_lambda_.17} parent=0 // pred_region
    _
  $region13: #{_lambda_.17} parent=0 // pred_fallthru
    _
  %v15 = vld [vmem:[%s0] sm:$0xff]
  %v16 = vld [vmem:[%s1] sm:$0xff]
  %v17 = vld [vmem:[%s1 + $0x8] sm:$0xf]
  %v18 = vld [vmem:[%s1 + $0xc] sm:$0xff]
  %v19 = vld [vmem:[%s1 + $0x14] sm:$0xf]
  %v20 = vld [vmem:[%s1 + $0x18] sm:$0xff]
  %v21 = vld [vmem:[%s1 + $0x20] sm:$0xf]
  %v22 = vld [vmem:[%s1 + $0x24] sm:$0xff]
  %v23 = vld [vmem:[%s1 + $0x2c] sm:$0xf]
  %v24 = vld [vmem:[%s1 + $0x30] sm:$0xff]
  %v25 = vld [vmem:[%s1 + $0x38] sm:$0xf]
  %v26 = vld [vmem:[%s1 + $0x3c] sm:$0xff]
  %v27 = vld [vmem:[%s1 + $0x44] sm:$0xf]
  %v28 = vld [vmem:[%s1 + $0x48] sm:$0xff]
  %v29 = vld [vmem:[%s1 + $0x50] sm:$0xf]
  %v30 = vld [vmem:[%s1 + $0x54] sm:$0xff]
  %v31 = vld [vmem:[%s1 + $0x5c] sm:$0xf]
  %v32 = vld [vmem:[%s1 + $0x60] sm:$0xff]
  %v33 = vld [vmem:[%s1 + $0x68] sm:$0xf]
  %v34 = vld [vmem:[%s1 + $0x6c] sm:$0xff]
  %v35 = vld [vmem:[%s1 + $0x74] sm:$0xf]
  %v36 = vld [vmem:[%s1 + $0x78] sm:$0xff]
  %v37 = vld [vmem:[%s1 + $0x80] sm:$0xf]
  %v38 = vld [vmem:[%s1 + $0x84] sm:$0xff]
  %v39 = vld [vmem:[%s1 + $0x8c] sm:$0xf]
  %v40 = vld [vmem:[%s1 + $0x90] sm:$0xff]
  %v41 = vld [vmem:[%s1 + $0x98] sm:$0xf]
  %v42 = vld [vmem:[%s1 + $0x9c] sm:$0xff]
  %v43 = vld [vmem:[%s1 + $0xa4] sm:$0xf]
  %v44 = vld [vmem:[%s1 + $0xa8] sm:$0xff]
  %v45 = vld [vmem:[%s1 + $0xb0] sm:$0xf]
  %v46 = vld [vmem:[%s1 + $0xb4] sm:$0xff]
  %v47 = vld [vmem:[%s1 + $0xbc] sm:$0xf]
  %v48 = vld [vmem:[%s1 + $0xc0] sm:$0xff]
  %v49 = vld [vmem:[%s1 + $0xc8] sm:$0xf]
  %v50 = vld [vmem:[%s1 + $0xcc] sm:$0xff]
  %v51 = vld [vmem:[%s1 + $0xd4] sm:$0xf]
  %v52 = vld [vmem:[%s1 + $0xd8] sm:$0xff]
  %v53 = vld [vmem:[%s1 + $0xe0] sm:$0xf]
  %v54 = vld [vmem:[%s1 + $0xe4] sm:$0xff]
  %v55 = vld [vmem:[%s1 + $0xec] sm:$0xf]
  %v56 = vld [vmem:[%s1 + $0xf0] sm:$0xff]
  %v57 = vld [vmem:[%s1 + $0xf8] sm:$0xf]
  %v58 = vld [vmem:[%s1 + $0xfc] sm:$0xff]
  %v59 = vld [vmem:[%s1 + $0x104] sm:$0xf]
  %v60 = vld [vmem:[%s1 + $0x108] sm:$0xff]
  %v61 = vld [vmem:[%s1 + $0x110] sm:$0xf]
  %v62 = vld [vmem:[%s1 + $0x114] sm:$0xff]
  %v63 = vld [vmem:[%s1 + $0x11c] sm:$0xf]
  %v64 = vld [vmem:[%s1 + $0x120] sm:$0xff]
  %v65 = vld [vmem:[%s1 + $0x128] sm:$0xf]
  %v66 = vld [vmem:[%s1 + $0x12c] sm:$0xff]
  %v67 = vld [vmem:[%s1 + $0x134] sm:$0xf]
  %v68 = vld [vmem:[%s1 + $0x138] sm:$0xff]
  %v69 = vld [vmem:[%s1 + $0x140] sm:$0xf]
  %v70 = vld [vmem:[%s1 + $0x144] sm:$0xff]
  %v71 = vld [vmem:[%s1 + $0x14c] sm:$0xf]
  %v72 = vld [vmem:[%s2] sm:$0xff]
  %74 = vset.pattern.permute.xlu0 0
  %75 = vperm.xlu0 %74, %v72
  %v76 = vpop.permute.xlu0 %75
  %v79 = vunpack.c.l.b16 %v15
  %v80 = vunpack.c.h.b16 %v15
  %v81 = vpack.c.b16 %v79, %v79
  %v82 = vpack.c.b16 %v80, %v80
  %v140 = vunpack.c.l.b16 %v16
  %v141 = vunpack.c.h.b16 %v16
  %v142 = vunpack.c.l.b16 %v17
  %v143 = vunpack.c.l.b16 %v18
  %v144 = vunpack.c.h.b16 %v18
  %v145 = vunpack.c.l.b16 %v19
  %v146 = vunpack.c.l.b16 %v20
  %v147 = vunpack.c.h.b16 %v20
  %v148 = vunpack.c.l.b16 %v21
  %v149 = vunpack.c.l.b16 %v22
  %v150 = vunpack.c.h.b16 %v22
  %v151 = vunpack.c.l.b16 %v23
  %v152 = vunpack.c.l.b16 %v24
  %v153 = vunpack.c.h.b16 %v24
  %v154 = vunpack.c.l.b16 %v25
  %v155 = vunpack.c.l.b16 %v26
  %v156 = vunpack.c.h.b16 %v26
  %v157 = vunpack.c.l.b16 %v27
  %v158 = vunpack.c.l.b16 %v28
  %v159 = vunpack.c.h.b16 %v28
  %v160 = vunpack.c.l.b16 %v29
  %v161 = vunpack.c.l.b16 %v30
  %v162 = vunpack.c.h.b16 %v30
  %v163 = vunpack.c.l.b16 %v31
  %v164 = vunpack.c.l.b16 %v32
  %v165 = vunpack.c.h.b16 %v32
  %v166 = vunpack.c.l.b16 %v33
  %v167 = vunpack.c.l.b16 %v34
  %v168 = vunpack.c.h.b16 %v34
  %v169 = vunpack.c.l.b16 %v35
  %v170 = vunpack.c.l.b16 %v36
  %v171 = vunpack.c.h.b16 %v36
  %v172 = vunpack.c.l.b16 %v37
  %v173 = vunpack.c.l.b16 %v38
  %v174 = vunpack.c.h.b16 %v38
  %v175 = vunpack.c.l.b16 %v39
  %v176 = vunpack.c.l.b16 %v40
  %v177 = vunpack.c.h.b16 %v40
  %v178 = vunpack.c.l.b16 %v41
  %v179 = vunpack.c.l.b16 %v42
  %v180 = vunpack.c.h.b16 %v42
  %v181 = vunpack.c.l.b16 %v43
  %v182 = vunpack.c.l.b16 %v44
  %v183 = vunpack.c.h.b16 %v44
  %v184 = vunpack.c.l.b16 %v45
  %v185 = vunpack.c.l.b16 %v46
  %v186 = vunpack.c.h.b16 %v46
  %v187 = vunpack.c.l.b16 %v47
  %v188 = vunpack.c.l.b16 %v48
  %v189 = vunpack.c.h.b16 %v48
  %v190 = vunpack.c.l.b16 %v49
  %v191 = vunpack.c.l.b16 %v50
  %v192 = vunpack.c.h.b16 %v50
  %v193 = vunpack.c.l.b16 %v51
  %v194 = vunpack.c.l.b16 %v52
  %v195 = vunpack.c.h.b16 %v52
  %v196 = vunpack.c.l.b16 %v53
  %v197 = vunpack.c.l.b16 %v54
  %v198 = vunpack.c.h.b16 %v54
  %v199 = vunpack.c.l.b16 %v55
  %v200 = vunpack.c.l.b16 %v56
  %v201 = vunpack.c.h.b16 %v56
  %v202 = vunpack.c.l.b16 %v57
  %v203 = vunpack.c.l.b16 %v58
  %v204 = vunpack.c.h.b16 %v58
  %v205 = vunpack.c.l.b16 %v59
  %v206 = vunpack.c.l.b16 %v60
  %v207 = vunpack.c.h.b16 %v60
  %v208 = vunpack.c.l.b16 %v61
  %v209 = vunpack.c.l.b16 %v62
  %v210 = vunpack.c.h.b16 %v62
  %v211 = vunpack.c.l.b16 %v63
  %v212 = vunpack.c.l.b16 %v64
  %v213 = vunpack.c.h.b16 %v64
  %v214 = vunpack.c.l.b16 %v65
  %v215 = vunpack.c.l.b16 %v66
  %v216 = vunpack.c.h.b16 %v66
  %v217 = vunpack.c.l.b16 %v67
  %v218 = vunpack.c.l.b16 %v68
  %v219 = vunpack.c.h.b16 %v68
  %v220 = vunpack.c.l.b16 %v69
  %v221 = vunpack.c.l.b16 %v70
  %v222 = vunpack.c.h.b16 %v70
  %v223 = vunpack.c.l.b16 %v71
  %v224 = vpack.c.b16 %v143, %v140
  %v225 = vpack.c.b16 %v144, %v141
  %v226 = vpack.c.b16 %v145, %v142
  %v227 = vpack.c.b16 %v149, %v146
  %v228 = vpack.c.b16 %v150, %v147
  %v229 = vpack.c.b16 %v151, %v148
  %v230 = vpack.c.b16 %v155, %v152
  %v231 = vpack.c.b16 %v156, %v153
  %v232 = vpack.c.b16 %v157, %v154
  %v233 = vpack.c.b16 %v161, %v158
  %v234 = vpack.c.b16 %v162, %v159
  %v235 = vpack.c.b16 %v163, %v160
  %v236 = vpack.c.b16 %v167, %v164
  %v237 = vpack.c.b16 %v168, %v165
  %v238 = vpack.c.b16 %v169, %v166
  %v239 = vpack.c.b16 %v173, %v170
  %v240 = vpack.c.b16 %v174, %v171
  %v241 = vpack.c.b16 %v175, %v172
  %v242 = vpack.c.b16 %v179, %v176
  %v243 = vpack.c.b16 %v180, %v177
  %v244 = vpack.c.b16 %v181, %v178
  %v245 = vpack.c.b16 %v185, %v182
  %v246 = vpack.c.b16 %v186, %v183
  %v247 = vpack.c.b16 %v187, %v184
  %v248 = vpack.c.b16 %v191, %v188
  %v249 = vpack.c.b16 %v192, %v189
  %v250 = vpack.c.b16 %v193, %v190
  %v251 = vpack.c.b16 %v197, %v194
  %v252 = vpack.c.b16 %v198, %v195
  %v253 = vpack.c.b16 %v199, %v196
  %v254 = vpack.c.b16 %v203, %v200
  %v255 = vpack.c.b16 %v204, %v201
  %v256 = vpack.c.b16 %v205, %v202
  %v257 = vpack.c.b16 %v209, %v206
  %v258 = vpack.c.b16 %v210, %v207
  %v259 = vpack.c.b16 %v211, %v208
  %v260 = vpack.c.b16 %v215, %v212
  %v261 = vpack.c.b16 %v216, %v213
  %v262 = vpack.c.b16 %v217, %v214
  %v263 = vpack.c.b16 %v221, %v218
  %v264 = vpack.c.b16 %v222, %v219
  %v265 = vpack.c.b16 %v223, %v220
  %vm308 = vcmask 785408
  %v310 = vsel %vm308, %v82, 0
  %312 = vmatprep.subr.bf16.mxu0 %v225
  %313 = vmatpush1.bf16.msra.mxu0 %v224
  %314 = vmatprep.subr.bf16.mxu0 %v228
  %315 = vmatpush1.bf16.msra.mxu0 %v227
  %316 = vmatprep.subr.bf16.mxu0 %v231
  %317 = vmatpush1.bf16.msra.mxu0 %v230
  %318 = vmatprep.subr.bf16.mxu0 %v234
  %319 = vmatpush1.bf16.msra.mxu0 %v233
  %320 = vmatprep.subr.bf16.mxu0 %v237
  %321 = vmatpush1.bf16.msra.mxu0 %v236
  %322 = vmatprep.subr.bf16.mxu0 %v240
  %323 = vmatpush1.bf16.msra.mxu0 %v239
  %324 = vmatprep.subr.bf16.mxu0 %v243
  %325 = vmatpush1.bf16.msra.mxu0 %v242
  %326 = vmatprep.subr.bf16.mxu0 %v246
  %327 = vmatpush1.bf16.msra.mxu0 %v245
  %328 = vmatprep.subr.bf16.mxu0 %v249
  %329 = vmatpush1.bf16.msra.mxu0 %v248
  %330 = vmatprep.subr.bf16.mxu0 %v252
  %331 = vmatpush1.bf16.msra.mxu0 %v251
  %332 = vmatprep.subr.bf16.mxu0 %v255
  %333 = vmatpush1.bf16.msra.mxu0 %v254
  %334 = vmatprep.subr.bf16.mxu0 %v258
  %335 = vmatpush1.bf16.msra.mxu0 %v257
  %336 = vmatprep.subr.bf16.mxu0 %v261
  %337 = vmatpush1.bf16.msra.mxu0 %v260
  %338 = vmatprep.subr.bf16.mxu0 %v264
  %339 = vmatpush1.bf16.msra.mxu0 %v263
  %340 = vmatprep.subr.bf16.mxu0 0
  %341 = vmatpush1.bf16.msra.mxu0 0
  %342 = vmatprep.subr.bf16.mxu0 0
  %343 = vmatpush1.bf16.msra.mxu0 0
  %344 = vmatprep.mubr.bf16.mxu0 %v310
  %345 = vmatmul.mubr.bf16.gmra.mrb[0].mxu0 %v81
  %v346 = vpop.f32.mrb[0].mxu0
  %v347 = vadd.f32 %v76, %v346
  %v348 = vpop.f32.mrb[0].mxu0
  %v349 = vadd.f32 %v76, %v348
  %v350 = vpop.f32.mrb[0].mxu0
  %v351 = vpop.f32.mrb[0].mxu0
  %352 = vdwg.mxu0
  %353 = vmatprep.subr.bf16.mxu0 0
  %354 = vmatpush1.bf16.msra.mxu0 %v226
  %355 = vmatprep.subr.bf16.mxu0 0
  %356 = vmatpush1.bf16.msra.mxu0 %v229
  %357 = vmatprep.subr.bf16.mxu0 0
  %358 = vmatpush1.bf16.msra.mxu0 %v232
  %359 = vmatprep.subr.bf16.mxu0 0
  %360 = vmatpush1.bf16.msra.mxu0 %v235
  %361 = vmatprep.subr.bf16.mxu0 0
  %362 = vmatpush1.bf16.msra.mxu0 %v238
  %363 = vmatprep.subr.bf16.mxu0 0
  %364 = vmatpush1.bf16.msra.mxu0 %v241
  %365 = vmatprep.subr.bf16.mxu0 0
  %366 = vmatpush1.bf16.msra.mxu0 %v244
  %367 = vmatprep.subr.bf16.mxu0 0
  %368 = vmatpush1.bf16.msra.mxu0 %v247
  %369 = vmatprep.subr.bf16.mxu0 0
  %370 = vmatpush1.bf16.msra.mxu0 %v250
  %371 = vmatprep.subr.bf16.mxu0 0
  %372 = vmatpush1.bf16.msra.mxu0 %v253
  %373 = vmatprep.subr.bf16.mxu0 0
  %374 = vmatpush1.bf16.msra.mxu0 %v256
  %375 = vmatprep.subr.bf16.mxu0 0
  %376 = vmatpush1.bf16.msra.mxu0 %v259
  %377 = vmatprep.subr.bf16.mxu0 0
  %378 = vmatpush1.bf16.msra.mxu0 %v262
  %379 = vmatprep.subr.bf16.mxu0 0
  %380 = vmatpush1.bf16.msra.mxu0 %v265
  %381 = vmatprep.subr.bf16.mxu0 0
  %382 = vmatpush1.bf16.msra.mxu0 0
  %383 = vmatprep.subr.bf16.mxu0 0
  %384 = vmatpush1.bf16.msra.mxu0 0
  %385 = vmatprep.mubr.bf16.mxu0 %v310
  %386 = vmatmul.mubr.bf16.gmra.mrb[0].mxu0 %v81
  %v387 = vpop.f32.mrb[0].mxu0
  %v388 = vadd.f32 %v76, %v387
  %v389 = vpop.f32.mrb[0].mxu0
  %v390 = vpop.f32.mrb[0].mxu0
  %v391 = vpop.f32.mrb[0].mxu0
  %392 = vdwg.mxu0
  %vm393 = vcmp.gt.f32.partialorder %v347, 0.0
  %vm394 = vcmp.gt.f32.partialorder %v349, 0.0
  %vm395 = vcmp.gt.f32.partialorder %v388, 0.0
  %v396 = vmul.f32 %v347, 0.01
  %v397 = vmul.f32 %v349, 0.01
  %v398 = vmul.f32 %v388, 0.01
  %v399 = vsel %vm393, %v347, %v396
  %v400 = vsel %vm394, %v349, %v397
  %v401 = vsel %vm395, %v388, %v398
  %402 = vst [vmem:[%s3] sm:$0xff] %v399
  %403 = vst [vmem:[%s3 + $0x8] sm:$0xff] %v400
  %404 = vst [vmem:[%s3 + $0x10] sm:$0xff] %v401
  // Predicated region
  $region14: #{_lambda_.17} parent=0 // pred_check
    _
  $region15: #{_lambda_.17} parent=0 // pred_check_branch
    %406 = sbr.rel (0) target = $region17
  $region16: #{_lambda_.17} parent=0 // pred_region
    _
  $region17: #{_lambda_.17} parent=0 // pred_fallthru
    _
  // Predicated region
  $region18: #{_lambda_.17} parent=0 // pred_check
    _
  $region19: #{_lambda_.17} parent=0 // pred_check_branch
    %408 = sbr.rel (0) target = $region21
  $region20: #{_lambda_.17} parent=0 // pred_region
    _
  $region21: #{_lambda_.17} parent=0 // pred_fallthru
    _

// kernel: _lambda_.18
$region0: #{_lambda_.18}
  #allocation0 [shape = 'u32[]', space=smem, size = 0x4, offset = 0x4, fixed_abs, tag = 'smem constant byte address 0x4 - core index']
  #allocation1 [shape = 'u32[144,128]{1,0:T(1,128)}', space=vmem, size = 0x12000, scoped, tag = 'internal scratch']
  %s0 = inlined_call_operand.vmem [shape: bf16[8,224], index: 0, kind: input, shape index: {}]
  %s1 = inlined_call_operand.vmem [shape: bf16[224,2560], index: 1, kind: input, shape index: {}]
  %s2 = inlined_call_operand.vmem [shape: f32[8,1], index: 2, kind: input, shape index: {}]
  %s3 = inlined_call_operand.vmem [shape: f32[8,2560], index: 3, kind: output, shape index: {}]
  %s4 = sld [smem:[#allocation0]]
  $region71: #{_lambda_.18} parent=0
    _
  %s6 = ssub.s32 1, %s4
  %s7 = scalar_select 0, %s6, %s4
  $region1: #{_lambda_.18} parent=0
    #allocation2 [shape = 'u8[573440]{0}', space=vmem, size = 0x8c000, scoped, tag = 'input window, operand 1']
    loop: start=0, step=1, limit=6
    $region2: #{_lambda_.18} parent=1 // loop_pre_header
      _
    $region3: #{_lambda_.18} parent=1 // loop_header
      %s9 = sphi 0, %s13
      %p10 = scmp.ge.s32.totalorder %s9, 6
      %s17 = sphi 0, %s17
      %s19 = sphi 0, %s17
      %s20 = sphi 0, %s19
      %s34 = sphi 0, %s20
      %s40 = sphi 0, %s42
      %s43 = sphi 0, %s40
      %s44 = sphi 0, %s43
      %s60 = sphi 0, %s44
      %s64 = sphi 0, %s64
      %s66 = sphi 0, %s64
      %s67 = sphi 0, %s66
      %s81 = sphi 0, %s67
      %s87 = sphi 0, %s89
      %s90 = sphi 0, %s87
      %s91 = sphi 0, %s90
      %s107 = sphi 0, %s91
    $region4: #{_lambda_.18} parent=1 // loop_header_branch
      %12 = sbr.rel (%p10) target = $region8
    $region5: #{_lambda_.18} parent=1 // loop_body
      %s14 = ssub.s32 %s9, 1
      %s15 = ssub.s32 %s9, 2
      %s16 = sadd.s32 %s9, 1
      %s18 = sadd.s32 %s17, 1
      %p21 = scmp.eq.s32.totalorder %s9, 3
      %p22 = scmp.ne.s32.totalorder %s17, %s19
      %p23 = scmp.eq.s32.totalorder %s9, 0
      %p24 = por %p22, %p23
      %p25 = scmp.ne.s32.totalorder %s17, %s19
      %p26 = scmp.eq.s32.totalorder %s14, 3
      %p27 = por %p25, %p26
      %p28 = scmp.ne.s32.totalorder %s19, %s20
      %p29 = scmp.eq.s32.totalorder %s14, 0
      %p30 = por %p28, %p29
      %p31 = scmp.ne.s32.totalorder %s19, %s20
      %p32 = scmp.eq.s32.totalorder %s15, 3
      %p33 = por %p31, %p32
      %p35 = scmp.ne.s32.totalorder %s20, %s34
      %p36 = scmp.eq.s32.totalorder %s15, 0
      %p37 = por %p35, %p36
      %s38 = ssub.s32 %s9, %s16
      %p39 = scmp.eq.s32.totalorder %s38, 0
      %s41 = sadd.s32 %s40, 1
      %s42 = scalar_select %p39, %s40, %s41
      %p45 = pneg %p39
      %p46 = scmp.eq.s32.totalorder %s9, 3
      %p47 = por %p45, %p46
      %p48 = scmp.ne.s32.totalorder %s40, %s43
      %p49 = scmp.eq.s32.totalorder %s9, 0
      %p50 = por %p48, %p49
      %p51 = scmp.ne.s32.totalorder %s40, %s43
      %p52 = scmp.eq.s32.totalorder %s14, 3
      %p53 = por %p51, %p52
      %p54 = scmp.ne.s32.totalorder %s43, %s44
      %p55 = scmp.eq.s32.totalorder %s14, 0
      %p56 = por %p54, %p55
      %p57 = scmp.ne.s32.totalorder %s43, %s44
      %p58 = scmp.eq.s32.totalorder %s15, 3
      %p59 = por %p57, %p58
      %p61 = scmp.ne.s32.totalorder %s44, %s60
      %p62 = scmp.eq.s32.totalorder %s15, 0
      %p63 = por %p61, %p62
      %s65 = sadd.s32 %s64, 1
      %p68 = scmp.eq.s32.totalorder %s9, 3
      %p69 = scmp.ne.s32.totalorder %s64, %s66
      %p70 = scmp.eq.s32.totalorder %s9, 0
      %p71 = por %p69, %p70
      %p72 = scmp.ne.s32.totalorder %s64, %s66
      %p73 = scmp.eq.s32.totalorder %s14, 3
      %p74 = por %p72, %p73
      %p75 = scmp.ne.s32.totalorder %s66, %s67
      %p76 = scmp.eq.s32.totalorder %s14, 0
      %p77 = por %p75, %p76
      %p78 = scmp.ne.s32.totalorder %s66, %s67
      %p79 = scmp.eq.s32.totalorder %s15, 3
      %p80 = por %p78, %p79
      %p82 = scmp.ne.s32.totalorder %s67, %s81
      %p83 = scmp.eq.s32.totalorder %s15, 0
      %p84 = por %p82, %p83
      %s85 = ssub.s32 %s9, %s16
      %p86 = scmp.eq.s32.totalorder %s85, 0
      %s88 = sadd.s32 %s87, 1
      %s89 = scalar_select %p86, %s87, %s88
      %p92 = pneg %p86
      %p93 = scmp.eq.s32.totalorder %s9, 3
      %p94 = por %p92, %p93
      %p95 = scmp.ne.s32.totalorder %s87, %s90
      %p96 = scmp.eq.s32.totalorder %s9, 0
      %p97 = por %p95, %p96
      %p98 = scmp.ne.s32.totalorder %s87, %s90
      %p99 = scmp.eq.s32.totalorder %s14, 3
      %p100 = por %p98, %p99
      %p101 = scmp.ne.s32.totalorder %s90, %s91
      %p102 = scmp.eq.s32.totalorder %s14, 0
      %p103 = por %p101, %p102
      %p104 = scmp.ne.s32.totalorder %s90, %s91
      %p105 = scmp.eq.s32.totalorder %s15, 3
      %p106 = por %p104, %p105
      %p108 = scmp.ne.s32.totalorder %s91, %s107
      %p109 = scmp.eq.s32.totalorder %s15, 0
      %p110 = por %p108, %p109
      %p111 = scmp.le.s32.totalorder 1, %s9
      %p112 = scmp.lt.s32.totalorder %s9, 5
      %p113 = pnand %p111, %p112
      %p114 = pneg %p113
      // Predicated region
      $region9: #{_lambda_.18} parent=5 // pred_check
        _
      $region10: #{_lambda_.18} parent=5 // pred_check_branch
        %116 = sbr.rel (%p113) target = $region12
      $region11: #{_lambda_.18} parent=5 // pred_region
        %s117 = ssub.s32 %s9, 1
        // Predicated region
        $region13: #{_lambda_.18} parent=11 // pred_check
          %p118 = pneg %p30
        $region14: #{_lambda_.18} parent=11 // pred_check_branch
          %120 = sbr.rel (%p118) target = $region16
        $region15: #{_lambda_.18} parent=11 // pred_region
          _
        $region16: #{_lambda_.18} parent=11 // pred_fallthru
          _
        // Predicated region
        $region17: #{_lambda_.18} parent=11 // pred_check
          %p121 = pneg %p77
        $region18: #{_lambda_.18} parent=11 // pred_check_branch
          %123 = sbr.rel (%p121) target = $region20
        $region19: #{_lambda_.18} parent=11 // pred_region
          _
        $region20: #{_lambda_.18} parent=11 // pred_fallthru
          _
      $region12: #{_lambda_.18} parent=5 // pred_fallthru
        _
      %p124 = scmp.lt.s32.totalorder %s9, 4
      // Predicated region
      $region21: #{_lambda_.18} parent=5 // pred_check
        %p125 = pneg %p124
      $region22: #{_lambda_.18} parent=5 // pred_check_branch
        %127 = sbr.rel (%p125) target = $region24
      $region23: #{_lambda_.18} parent=5 // pred_region
        // Predicated region
        $region25: #{_lambda_.18} parent=23 // pred_check
          %p128 = pneg %p50
        $region26: #{_lambda_.18} parent=23 // pred_check_branch
          %130 = sbr.rel (%p128) target = $region28
        $region27: #{_lambda_.18} parent=23 // pred_region
          %s131 = sand.u32 %s40, 1
          %s132 = sand.u32 %s40, 1
          %s133 = smul.addr %s132, 560
          %s134 = scalar_lea.vmem [#allocation2], %s133
          %s135 = smul.u32 5, %s9
          %s136 = smul.addr %s135, 4
          %s137 = scalar_lea.vmem %s1, %s136
          // Predicated region
          $region29: #{_lambda_.18} parent=27 // pred_check
            _
          $region30: #{_lambda_.18} parent=27 // pred_check_branch
            %139 = sbr.rel (0) target = $region32
          $region31: #{_lambda_.18} parent=27 // pred_region
            // Predicated region
            $region33: #{_lambda_.18} parent=31 // pred_check
              _
            $region34: #{_lambda_.18} parent=31 // pred_check_branch
              %141 = sbr.rel (0) target = $region36
            $region35: #{_lambda_.18} parent=31 // pred_region
              %s142 = scalar_lea.vmem %s137, 16
              %s143 = scalar_lea.vmem %s134, 16 [#allocation2]
              loop: start=0, step=1, limit=1
              $region37: #{_lambda_.18} parent=35 // loop_pre_header
                _
              $region38: #{_lambda_.18} parent=35 // loop_header
                %s145 = sphi 0, %s149
                %p146 = scmp.ge.s32.totalorder %s145, 1
                %s150 = sphi %s137, %s137
                %s151 = sphi %s134, %s134
              $region39: #{_lambda_.18} parent=35 // loop_header_branch
                %148 = sbr.rel (%p146) target = $region43
              $region40: #{_lambda_.18} parent=35 // loop_body
                %v152 = vld [vmem:[%s150] sm:$0xff]
                %153 = vst [vmem:[%s151] sm:$0xff] %v152
                %v154 = vld [vmem:[%s150 + $0x8] sm:$0xff]
                %155 = vst [vmem:[%s151 + $0x8] sm:$0xff] %v154
                %v156 = vld [vmem:[%s150 + $0x50] sm:$0xff]
                %157 = vst [vmem:[%s151 + $0x14] sm:$0xff] %v156
                %v158 = vld [vmem:[%s150 + $0x58] sm:$0xff]
                %159 = vst [vmem:[%s151 + $0x1c] sm:$0xff] %v158
                %v160 = vld [vmem:[%s150 + $0xa0] sm:$0xff]
                %161 = vst [vmem:[%s151 + $0x28] sm:$0xff] %v160
                %v162 = vld [vmem:[%s150 + $0xa8] sm:$0xff]
                %163 = vst [vmem:[%s151 + $0x30] sm:$0xff] %v162
                %v164 = vld [vmem:[%s150 + $0xf0] sm:$0xff]
                %165 = vst [vmem:[%s151 + $0x3c] sm:$0xff] %v164
                %v166 = vld [vmem:[%s150 + $0xf8] sm:$0xff]
                %167 = vst [vmem:[%s151 + $0x44] sm:$0xff] %v166
                %v168 = vld [vmem:[%s150 + $0x140] sm:$0xff]
                %169 = vst [vmem:[%s151 + $0x50] sm:$0xff] %v168
                %v170 = vld [vmem:[%s150 + $0x148] sm:$0xff]
                %171 = vst [vmem:[%s151 + $0x58] sm:$0xff] %v170
                %v172 = vld [vmem:[%s150 + $0x190] sm:$0xff]
                %173 = vst [vmem:[%s151 + $0x64] sm:$0xff] %v172
                %v174 = vld [vmem:[%s150 + $0x198] sm:$0xff]
                %175 = vst [vmem:[%s151 + $0x6c] sm:$0xff] %v174
                %v176 = vld [vmem:[%s150 + $0x1e0] sm:$0xff]
                %177 = vst [vmem:[%s151 + $0x78] sm:$0xff] %v176
                %v178 = vld [vmem:[%s150 + $0x1e8] sm:$0xff]
                %179 = vst [vmem:[%s151 + $0x80] sm:$0xff] %v178
                %v180 = vld [vmem:[%s150 + $0x230] sm:$0xff]
                %181 = vst [vmem:[%s151 + $0x8c] sm:$0xff] %v180
                %v182 = vld [vmem:[%s150 + $0x238] sm:$0xff]
                %183 = vst [vmem:[%s151 + $0x94] sm:$0xff] %v182
                %v184 = vld [vmem:[%s150 + $0x280] sm:$0xff]
                %185 = vst [vmem:[%s151 + $0xa0] sm:$0xff] %v184
                %v186 = vld [vmem:[%s150 + $0x288] sm:$0xff]
                %187 = vst [vmem:[%s151 + $0xa8] sm:$0xff] %v186
                %v188 = vld [vmem:[%s150 + $0x2d0] sm:$0xff]
                %189 = vst [vmem:[%s151 + $0xb4] sm:$0xff] %v188
                %v190 = vld [vmem:[%s150 + $0x2d8] sm:$0xff]
                %191 = vst [vmem:[%s151 + $0xbc] sm:$0xff] %v190
                %v192 = vld [vmem:[%s150 + $0x320] sm:$0xff]
                %193 = vst [vmem:[%s151 + $0xc8] sm:$0xff] %v192
                %v194 = vld [vmem:[%s150 + $0x328] sm:$0xff]
                %195 = vst [vmem:[%s151 + $0xd0] sm:$0xff] %v194
                %v196 = vld [vmem:[%s150 + $0x370] sm:$0xff]
                %197 = vst [vmem:[%s151 + $0xdc] sm:$0xff] %v196
                %v198 = vld [vmem:[%s150 + $0x378] sm:$0xff]
                %199 = vst [vmem:[%s151 + $0xe4] sm:$0xff] %v198
                %v200 = vld [vmem:[%s150 + $0x3c0] sm:$0xff]
                %201 = vst [vmem:[%s151 + $0xf0] sm:$0xff] %v200
                %v202 = vld [vmem:[%s150 + $0x3c8] sm:$0xff]
                %203 = vst [vmem:[%s151 + $0xf8] sm:$0xff] %v202
                %v204 = vld [vmem:[%s150 + $0x410] sm:$0xff]
                %205 = vst [vmem:[%s151 + $0x104] sm:$0xff] %v204
                %v206 = vld [vmem:[%s150 + $0x418] sm:$0xff]
                %207 = vst [vmem:[%s151 + $0x10c] sm:$0xff] %v206
                %v208 = vld [vmem:[%s150 + $0x460] sm:$0xff]
                %209 = vst [vmem:[%s151 + $0x118] sm:$0xff] %v208
                %v210 = vld [vmem:[%s150 + $0x468] sm:$0xff]
                %211 = vst [vmem:[%s151 + $0x120] sm:$0xff] %v210
                %v212 = vld [vmem:[%s150 + $0x4b0] sm:$0xff]
                %213 = vst [vmem:[%s151 + $0x12c] sm:$0xff] %v212
                %v214 = vld [vmem:[%s150 + $0x4b8] sm:$0xff]
                %215 = vst [vmem:[%s151 + $0x134] sm:$0xff] %v214
                %v216 = vld [vmem:[%s150 + $0x500] sm:$0xff]
                %217 = vst [vmem:[%s151 + $0x140] sm:$0xff] %v216
                %v218 = vld [vmem:[%s150 + $0x508] sm:$0xff]
                %219 = vst [vmem:[%s151 + $0x148] sm:$0xff] %v218
                %v220 = vld [vmem:[%s150 + $0x550] sm:$0xff]
                %221 = vst [vmem:[%s151 + $0x154] sm:$0xff] %v220
                %v222 = vld [vmem:[%s150 + $0x558] sm:$0xff]
                %223 = vst [vmem:[%s151 + $0x15c] sm:$0xff] %v222
                %v224 = vld [vmem:[%s150 + $0x5a0] sm:$0xff]
                %225 = vst [vmem:[%s151 + $0x168] sm:$0xff] %v224
                %v226 = vld [vmem:[%s150 + $0x5a8] sm:$0xff]
                %227 = vst [vmem:[%s151 + $0x170] sm:$0xff] %v226
                %v228 = vld [vmem:[%s150 + $0x5f0] sm:$0xff]
                %229 = vst [vmem:[%s151 + $0x17c] sm:$0xff] %v228
                %v230 = vld [vmem:[%s150 + $0x5f8] sm:$0xff]
                %231 = vst [vmem:[%s151 + $0x184] sm:$0xff] %v230
                %v232 = vld [vmem:[%s150 + $0x640] sm:$0xff]
                %233 = vst [vmem:[%s151 + $0x190] sm:$0xff] %v232
                %v234 = vld [vmem:[%s150 + $0x648] sm:$0xff]
                %235 = vst [vmem:[%s151 + $0x198] sm:$0xff] %v234
                %v236 = vld [vmem:[%s150 + $0x690] sm:$0xff]
                %237 = vst [vmem:[%s151 + $0x1a4] sm:$0xff] %v236
                %v238 = vld [vmem:[%s150 + $0x698] sm:$0xff]
                %239 = vst [vmem:[%s151 + $0x1ac] sm:$0xff] %v238
                %v240 = vld [vmem:[%s150 + $0x6e0] sm:$0xff]
                %241 = vst [vmem:[%s151 + $0x1b8] sm:$0xff] %v240
                %v242 = vld [vmem:[%s150 + $0x6e8] sm:$0xff]
                %243 = vst [vmem:[%s151 + $0x1c0] sm:$0xff] %v242
                %v244 = vld [vmem:[%s150 + $0x730] sm:$0xff]
                %245 = vst [vmem:[%s151 + $0x1cc] sm:$0xff] %v244
                %v246 = vld [vmem:[%s150 + $0x738] sm:$0xff]
                %247 = vst [vmem:[%s151 + $0x1d4] sm:$0xff] %v246
                %v248 = vld [vmem:[%s150 + $0x780] sm:$0xff]
                %249 = vst [vmem:[%s151 + $0x1e0] sm:$0xff] %v248
                %v250 = vld [vmem:[%s150 + $0x788] sm:$0xff]
                %251 = vst [vmem:[%s151 + $0x1e8] sm:$0xff] %v250
                %v252 = vld [vmem:[%s150 + $0x7d0] sm:$0xff]
                %253 = vst [vmem:[%s151 + $0x1f4] sm:$0xff] %v252
                %v254 = vld [vmem:[%s150 + $0x7d8] sm:$0xff]
                %255 = vst [vmem:[%s151 + $0x1fc] sm:$0xff] %v254
                %v256 = vld [vmem:[%s150 + $0x820] sm:$0xff]
                %257 = vst [vmem:[%s151 + $0x208] sm:$0xff] %v256
                %v258 = vld [vmem:[%s150 + $0x828] sm:$0xff]
                %259 = vst [vmem:[%s151 + $0x210] sm:$0xff] %v258
                %v260 = vld [vmem:[%s150 + $0x870] sm:$0xff]
                %261 = vst [vmem:[%s151 + $0x21c] sm:$0xff] %v260
                %v262 = vld [vmem:[%s150 + $0x878] sm:$0xff]
                %263 = vst [vmem:[%s151 + $0x224] sm:$0xff] %v262
              $region41: #{_lambda_.18} parent=35 // loop_footer
                %s149 = sadd.s32 1, %s145
              $region42: #{_lambda_.18} parent=35 // loop_footer_branch
                %144 = sbr.rel target = $region38
              $region43: #{_lambda_.18} parent=35 // loop_exit
                _
              loop: start=0, step=1, limit=1
              $region44: #{_lambda_.18} parent=35 // loop_pre_header
                _
              $region45: #{_lambda_.18} parent=35 // loop_header
                %s266 = sphi 0, %s270
                %p267 = scmp.ge.s32.totalorder %s266, 1
                %s271 = sphi %s142, %s142
                %s272 = sphi %s143, %s143
              $region46: #{_lambda_.18} parent=35 // loop_header_branch
                %269 = sbr.rel (%p267) target = $region50
              $region47: #{_lambda_.18} parent=35 // loop_body
                %v273 = vld [vmem:[%s271] sm:$0xf]
                %274 = vst [vmem:[%s272] sm:$0xf] %v273
                %v275 = vld [vmem:[%s271 + $0x50] sm:$0xf]
                %276 = vst [vmem:[%s272 + $0x14] sm:$0xf] %v275
                %v277 = vld [vmem:[%s271 + $0xa0] sm:$0xf]
                %278 = vst [vmem:[%s272 + $0x28] sm:$0xf] %v277
                %v279 = vld [vmem:[%s271 + $0xf0] sm:$0xf]
                %280 = vst [vmem:[%s272 + $0x3c] sm:$0xf] %v279
                %v281 = vld [vmem:[%s271 + $0x140] sm:$0xf]
                %282 = vst [vmem:[%s272 + $0x50] sm:$0xf] %v281
                %v283 = vld [vmem:[%s271 + $0x190] sm:$0xf]
                %284 = vst [vmem:[%s272 + $0x64] sm:$0xf] %v283
                %v285 = vld [vmem:[%s271 + $0x1e0] sm:$0xf]
                %286 = vst [vmem:[%s272 + $0x78] sm:$0xf] %v285
                %v287 = vld [vmem:[%s271 + $0x230] sm:$0xf]
                %288 = vst [vmem:[%s272 + $0x8c] sm:$0xf] %v287
                %v289 = vld [vmem:[%s271 + $0x280] sm:$0xf]
                %290 = vst [vmem:[%s272 + $0xa0] sm:$0xf] %v289
                %v291 = vld [vmem:[%s271 + $0x2d0] sm:$0xf]
                %292 = vst [vmem:[%s272 + $0xb4] sm:$0xf] %v291
                %v293 = vld [vmem:[%s271 + $0x320] sm:$0xf]
                %294 = vst [vmem:[%s272 + $0xc8] sm:$0xf] %v293
                %v295 = vld [vmem:[%s271 + $0x370] sm:$0xf]
                %296 = vst [vmem:[%s272 + $0xdc] sm:$0xf] %v295
                %v297 = vld [vmem:[%s271 + $0x3c0] sm:$0xf]
                %298 = vst [vmem:[%s272 + $0xf0] sm:$0xf] %v297
                %v299 = vld [vmem:[%s271 + $0x410] sm:$0xf]
                %300 = vst [vmem:[%s272 + $0x104] sm:$0xf] %v299
                %v301 = vld [vmem:[%s271 + $0x460] sm:$0xf]
                %302 = vst [vmem:[%s272 + $0x118] sm:$0xf] %v301
                %v303 = vld [vmem:[%s271 + $0x4b0] sm:$0xf]
                %304 = vst [vmem:[%s272 + $0x12c] sm:$0xf] %v303
                %v305 = vld [vmem:[%s271 + $0x500] sm:$0xf]
                %306 = vst [vmem:[%s272 + $0x140] sm:$0xf] %v305
                %v307 = vld [vmem:[%s271 + $0x550] sm:$0xf]
                %308 = vst [vmem:[%s272 + $0x154] sm:$0xf] %v307
                %v309 = vld [vmem:[%s271 + $0x5a0] sm:$0xf]
                %310 = vst [vmem:[%s272 + $0x168] sm:$0xf] %v309
                %v311 = vld [vmem:[%s271 + $0x5f0] sm:$0xf]
                %312 = vst [vmem:[%s272 + $0x17c] sm:$0xf] %v311
                %v313 = vld [vmem:[%s271 + $0x640] sm:$0xf]
                %314 = vst [vmem:[%s272 + $0x190] sm:$0xf] %v313
                %v315 = vld [vmem:[%s271 + $0x690] sm:$0xf]
                %316 = vst [vmem:[%s272 + $0x1a4] sm:$0xf] %v315
                %v317 = vld [vmem:[%s271 + $0x6e0] sm:$0xf]
                %318 = vst [vmem:[%s272 + $0x1b8] sm:$0xf] %v317
                %v319 = vld [vmem:[%s271 + $0x730] sm:$0xf]
                %320 = vst [vmem:[%s272 + $0x1cc] sm:$0xf] %v319
                %v321 = vld [vmem:[%s271 + $0x780] sm:$0xf]
                %322 = vst [vmem:[%s272 + $0x1e0] sm:$0xf] %v321
                %v323 = vld [vmem:[%s271 + $0x7d0] sm:$0xf]
                %324 = vst [vmem:[%s272 + $0x1f4] sm:$0xf] %v323
                %v325 = vld [vmem:[%s271 + $0x820] sm:$0xf]
                %326 = vst [vmem:[%s272 + $0x208] sm:$0xf] %v325
                %v327 = vld [vmem:[%s271 + $0x870] sm:$0xf]
                %328 = vst [vmem:[%s272 + $0x21c] sm:$0xf] %v327
              $region48: #{_lambda_.18} parent=35 // loop_footer
                %s270 = sadd.s32 1, %s266
              $region49: #{_lambda_.18} parent=35 // loop_footer_branch
                %265 = sbr.rel target = $region45
              $region50: #{_lambda_.18} parent=35 // loop_exit
                _
            $region36: #{_lambda_.18} parent=31 // pred_fallthru
              _
          $region32: #{_lambda_.18} parent=27 // pred_fallthru
            _
          %329 = vnop
        $region28: #{_lambda_.18} parent=23 // pred_fallthru
          _
      $region24: #{_lambda_.18} parent=5 // pred_fallthru
        _
      %p330 = scmp.le.s32.totalorder 1, %s9
      %p331 = scmp.lt.s32.totalorder %s9, 5
      %p332 = pnand %p330, %p331
      %p333 = pneg %p332
      // Predicated region
      $region51: #{_lambda_.18} parent=5 // pred_check
        _
      $region52: #{_lambda_.18} parent=5 // pred_check_branch
        %335 = sbr.rel (%p332) target = $region54
      $region53: #{_lambda_.18} parent=5 // pred_region
        %s336 = ssub.s32 %s9, 1
        %s337 = sand.u32 %s43, 1
        %s338 = sand.u32 %s43, 1
        %s339 = smul.addr %s338, 560
        %s340 = scalar_lea.vmem [#allocation2], %s339
        // Predicated region
        $region55: #{_lambda_.18} parent=53 // pred_check
          %p341 = pneg %p56
        $region56: #{_lambda_.18} parent=53 // pred_check_branch
          %343 = sbr.rel (%p341) target = $region58
        $region57: #{_lambda_.18} parent=53 // pred_region
          _
        $region58: #{_lambda_.18} parent=53 // pred_fallthru
          _
        %p344 = pneg %p30
        %p345 = pneg %p27
        %s346 = sand.u32 %s43, 1
        %s347 = sand.u32 %s43, 1
        %s348 = smul.addr %s347, 560
        %s349 = scalar_lea.vmem [#allocation2], %s348
        %p350 = pneg %p56
        %p351 = pneg %p53
        %p352 = pneg %p77
        %p353 = pneg %p74
        %p354 = pneg %p103
        %p355 = pneg %p100
        %s356 = smul.u32 5, %s14
        %p357 = scmp.lt.s32.totalorder %s356, 19
        %s358 = scalar_select %p357, %s356, 19
        %s359 = smul.addr %s358, 8
        %s360 = scalar_lea.vmem %s3, %s359
        %s361 = smul.u32 5, %s14
        %s362 = smul.u32 5, %s14
        %p363 = scmp.lt.s32.totalorder %s362, 19
        %s364 = scalar_select %p363, %s362, 19
        %s365 = smul.addr %s364, 8
        %s366 = scalar_lea.vmem %s3, %s365
        %s367 = smul.u32 5, %s14
        %v369 = vld [vmem:[%s0] sm:$0xff]
        %v370 = vld [vmem:[%s340] sm:$0xff]
        %v371 = vld [vmem:[%s340 + $0x8] sm:$0xff]
        %v372 = vld [vmem:[%s340 + $0x10] sm:$0xf]
        %v373 = vld [vmem:[%s340 + $0x14] sm:$0xff]
        %v374 = vld [vmem:[%s340 + $0x1c] sm:$0xff]
        %v375 = vld [vmem:[%s340 + $0x24] sm:$0xf]
        %v376 = vld [vmem:[%s340 + $0x28] sm:$0xff]
        %v377 = vld [vmem:[%s340 + $0x30] sm:$0xff]
        %v378 = vld [vmem:[%s340 + $0x38] sm:$0xf]
        %v379 = vld [vmem:[%s340 + $0x3c] sm:$0xff]
        %v380 = vld [vmem:[%s340 + $0x44] sm:$0xff]
        %v381 = vld [vmem:[%s340 + $0x4c] sm:$0xf]
        %v382 = vld [vmem:[%s340 + $0x50] sm:$0xff]
        %v383 = vld [vmem:[%s340 + $0x58] sm:$0xff]
        %v384 = vld [vmem:[%s340 + $0x60] sm:$0xf]
        %v385 = vld [vmem:[%s340 + $0x64] sm:$0xff]
        %v386 = vld [vmem:[%s340 + $0x6c] sm:$0xff]
        %v387 = vld [vmem:[%s340 + $0x74] sm:$0xf]
        %v388 = vld [vmem:[%s340 + $0x78] sm:$0xff]
        %v389 = vld [vmem:[%s340 + $0x80] sm:$0xff]
        %v390 = vld [vmem:[%s340 + $0x88] sm:$0xf]
        %v391 = vld [vmem:[%s340 + $0x8c] sm:$0xff]
        %v392 = vld [vmem:[%s340 + $0x94] sm:$0xff]
        %v393 = vld [vmem:[%s340 + $0x9c] sm:$0xf]
        %v394 = vld [vmem:[%s340 + $0xa0] sm:$0xff]
        %v395 = vld [vmem:[%s340 + $0xa8] sm:$0xff]
        %v396 = vld [vmem:[%s340 + $0xb0] sm:$0xf]
        %v397 = vld [vmem:[%s340 + $0xb4] sm:$0xff]
        %v398 = vld [vmem:[%s340 + $0xbc] sm:$0xff]
        %v399 = vld [vmem:[%s340 + $0xc4] sm:$0xf]
        %v400 = vld [vmem:[%s340 + $0xc8] sm:$0xff]
        %v401 = vld [vmem:[%s340 + $0xd0] sm:$0xff]
        %v402 = vld [vmem:[%s340 + $0xd8] sm:$0xf]
        %v403 = vld [vmem:[%s340 + $0xdc] sm:$0xff]
        %v404 = vld [vmem:[%s340 + $0xe4] sm:$0xff]
        %v405 = vld [vmem:[%s340 + $0xec] sm:$0xf]
        %v406 = vld [vmem:[%s340 + $0xf0] sm:$0xff]
        %v407 = vld [vmem:[%s340 + $0xf8] sm:$0xff]
        %v408 = vld [vmem:[%s340 + $0x100] sm:$0xf]
        %v409 = vld [vmem:[%s340 + $0x104] sm:$0xff]
        %v410 = vld [vmem:[%s340 + $0x10c] sm:$0xff]
        %v411 = vld [vmem:[%s340 + $0x114] sm:$0xf]
        %v412 = vld [vmem:[%s340 + $0x118] sm:$0xff]
        %v413 = vld [vmem:[%s340 + $0x120] sm:$0xff]
        %v414 = vld [vmem:[%s340 + $0x128] sm:$0xf]
        %v415 = vld [vmem:[%s340 + $0x12c] sm:$0xff]
        %v416 = vld [vmem:[%s340 + $0x134] sm:$0xff]
        %v417 = vld [vmem:[%s340 + $0x13c] sm:$0xf]
        %v418 = vld [vmem:[%s340 + $0x140] sm:$0xff]
        %v419 = vld [vmem:[%s340 + $0x148] sm:$0xff]
        %v420 = vld [vmem:[%s340 + $0x150] sm:$0xf]
        %v421 = vld [vmem:[%s340 + $0x154] sm:$0xff]
        %v422 = vld [vmem:[%s340 + $0x15c] sm:$0xff]
        %v423 = vld [vmem:[%s340 + $0x164] sm:$0xf]
        %v424 = vld [vmem:[%s340 + $0x168] sm:$0xff]
        %v425 = vld [vmem:[%s340 + $0x170] sm:$0xff]
        %v426 = vld [vmem:[%s340 + $0x178] sm:$0xf]
        %v427 = vld [vmem:[%s340 + $0x17c] sm:$0xff]
        %v428 = vld [vmem:[%s340 + $0x184] sm:$0xff]
        %v429 = vld [vmem:[%s340 + $0x18c] sm:$0xf]
        %v430 = vld [vmem:[%s340 + $0x190] sm:$0xff]
        %v431 = vld [vmem:[%s340 + $0x198] sm:$0xff]
        %v432 = vld [vmem:[%s340 + $0x1a0] sm:$0xf]
        %v433 = vld [vmem:[%s340 + $0x1a4] sm:$0xff]
        %v434 = vld [vmem:[%s340 + $0x1ac] sm:$0xff]
        %v435 = vld [vmem:[%s340 + $0x1b4] sm:$0xf]
        %v436 = vld [vmem:[%s340 + $0x1b8] sm:$0xff]
        %v437 = vld [vmem:[%s340 + $0x1c0] sm:$0xff]
        %v438 = vld [vmem:[%s340 + $0x1c8] sm:$0xf]
        %v439 = vld [vmem:[%s340 + $0x1cc] sm:$0xff]
        %v440 = vld [vmem:[%s340 + $0x1d4] sm:$0xff]
        %v441 = vld [vmem:[%s340 + $0x1dc] sm:$0xf]
        %v442 = vld [vmem:[%s340 + $0x1e0] sm:$0xff]
        %v443 = vld [vmem:[%s340 + $0x1e8] sm:$0xff]
        %v444 = vld [vmem:[%s340 + $0x1f0] sm:$0xf]
        %v445 = vld [vmem:[%s340 + $0x1f4] sm:$0xff]
        %v446 = vld [vmem:[%s340 + $0x1fc] sm:$0xff]
        %v447 = vld [vmem:[%s340 + $0x204] sm:$0xf]
        %v448 = vld [vmem:[%s340 + $0x208] sm:$0xff]
        %v449 = vld [vmem:[%s340 + $0x210] sm:$0xff]
        %v450 = vld [vmem:[%s340 + $0x218] sm:$0xf]
        %v451 = vld [vmem:[%s340 + $0x21c] sm:$0xff]
        %v452 = vld [vmem:[%s340 + $0x224] sm:$0xff]
        %v453 = vld [vmem:[%s340 + $0x22c] sm:$0xf]
        %v454 = vld [vmem:[%s2] sm:$0xff]
        %456 = vset.pattern.permute.xlu0 0
        %457 = vperm.xlu0 %456, %v454
        %v458 = vpop.permute.xlu0 %457
        %v461 = vunpack.c.l.b16 %v369
        %v462 = vunpack.c.h.b16 %v369
        %v463 = vpack.c.b16 %v461, %v461
        %v464 = vpack.c.b16 %v462, %v462
        %v550 = vunpack.c.l.b16 %v370
        %v551 = vunpack.c.h.b16 %v370
        %v552 = vunpack.c.l.b16 %v371
        %v553 = vunpack.c.h.b16 %v371
        %v554 = vunpack.c.l.b16 %v372
        %v555 = vunpack.c.l.b16 %v373
        %v556 = vunpack.c.h.b16 %v373
        %v557 = vunpack.c.l.b16 %v374
        %v558 = vunpack.c.h.b16 %v374
        %v559 = vunpack.c.l.b16 %v375
        %v560 = vunpack.c.l.b16 %v376
        %v561 = vunpack.c.h.b16 %v376
        %v562 = vunpack.c.l.b16 %v377
        %v563 = vunpack.c.h.b16 %v377
        %v564 = vunpack.c.l.b16 %v378
        %v565 = vunpack.c.l.b16 %v379
        %v566 = vunpack.c.h.b16 %v379
        %v567 = vunpack.c.l.b16 %v380
        %v568 = vunpack.c.h.b16 %v380
        %v569 = vunpack.c.l.b16 %v381
        %v570 = vunpack.c.l.b16 %v382
        %v571 = vunpack.c.h.b16 %v382
        %v572 = vunpack.c.l.b16 %v383
        %v573 = vunpack.c.h.b16 %v383
        %v574 = vunpack.c.l.b16 %v384
        %v575 = vunpack.c.l.b16 %v385
        %v576 = vunpack.c.h.b16 %v385
        %v577 = vunpack.c.l.b16 %v386
        %v578 = vunpack.c.h.b16 %v386
        %v579 = vunpack.c.l.b16 %v387
        %v580 = vunpack.c.l.b16 %v388
        %v581 = vunpack.c.h.b16 %v388
        %v582 = vunpack.c.l.b16 %v389
        %v583 = vunpack.c.h.b16 %v389
        %v584 = vunpack.c.l.b16 %v390
        %v585 = vunpack.c.l.b16 %v391
        %v586 = vunpack.c.h.b16 %v391
        %v587 = vunpack.c.l.b16 %v392
        %v588 = vunpack.c.h.b16 %v392
        %v589 = vunpack.c.l.b16 %v393
        %v590 = vunpack.c.l.b16 %v394
        %v591 = vunpack.c.h.b16 %v394
        %v592 = vunpack.c.l.b16 %v395
        %v593 = vunpack.c.h.b16 %v395
        %v594 = vunpack.c.l.b16 %v396
        %v595 = vunpack.c.l.b16 %v397
        %v596 = vunpack.c.h.b16 %v397
        %v597 = vunpack.c.l.b16 %v398
        %v598 = vunpack.c.h.b16 %v398
        %v599 = vunpack.c.l.b16 %v399
        %v600 = vunpack.c.l.b16 %v400
        %v601 = vunpack.c.h.b16 %v400
        %v602 = vunpack.c.l.b16 %v401
        %v603 = vunpack.c.h.b16 %v401
        %v604 = vunpack.c.l.b16 %v402
        %v605 = vunpack.c.l.b16 %v403
        %v606 = vunpack.c.h.b16 %v403
        %v607 = vunpack.c.l.b16 %v404
        %v608 = vunpack.c.h.b16 %v404
        %v609 = vunpack.c.l.b16 %v405
        %v610 = vunpack.c.l.b16 %v406
        %v611 = vunpack.c.h.b16 %v406
        %v612 = vunpack.c.l.b16 %v407
        %v613 = vunpack.c.h.b16 %v407
        %v614 = vunpack.c.l.b16 %v408
        %v615 = vunpack.c.l.b16 %v409
        %v616 = vunpack.c.h.b16 %v409
        %v617 = vunpack.c.l.b16 %v410
        %v618 = vunpack.c.h.b16 %v410
        %v619 = vunpack.c.l.b16 %v411
        %v620 = vunpack.c.l.b16 %v412
        %v621 = vunpack.c.h.b16 %v412
        %v622 = vunpack.c.l.b16 %v413
        %v623 = vunpack.c.h.b16 %v413
        %v624 = vunpack.c.l.b16 %v414
        %v625 = vunpack.c.l.b16 %v415
        %v626 = vunpack.c.h.b16 %v415
        %v627 = vunpack.c.l.b16 %v416
        %v628 = vunpack.c.h.b16 %v416
        %v629 = vunpack.c.l.b16 %v417
        %v630 = vunpack.c.l.b16 %v418
        %v631 = vunpack.c.h.b16 %v418
        %v632 = vunpack.c.l.b16 %v419
        %v633 = vunpack.c.h.b16 %v419
        %v634 = vunpack.c.l.b16 %v420
        %v635 = vunpack.c.l.b16 %v421
        %v636 = vunpack.c.h.b16 %v421
        %v637 = vunpack.c.l.b16 %v422
        %v638 = vunpack.c.h.b16 %v422
        %v639 = vunpack.c.l.b16 %v423
        %v640 = vunpack.c.l.b16 %v424
        %v641 = vunpack.c.h.b16 %v424
        %v642 = vunpack.c.l.b16 %v425
        %v643 = vunpack.c.h.b16 %v425
        %v644 = vunpack.c.l.b16 %v426
        %v645 = vunpack.c.l.b16 %v427
        %v646 = vunpack.c.h.b16 %v427
        %v647 = vunpack.c.l.b16 %v428
        %v648 = vunpack.c.h.b16 %v428
        %v649 = vunpack.c.l.b16 %v429
        %v650 = vunpack.c.l.b16 %v430
        %v651 = vunpack.c.h.b16 %v430
        %v652 = vunpack.c.l.b16 %v431
        %v653 = vunpack.c.h.b16 %v431
        %v654 = vunpack.c.l.b16 %v432
        %v655 = vunpack.c.l.b16 %v433
        %v656 = vunpack.c.h.b16 %v433
        %v657 = vunpack.c.l.b16 %v434
        %v658 = vunpack.c.h.b16 %v434
        %v659 = vunpack.c.l.b16 %v435
        %v660 = vunpack.c.l.b16 %v436
        %v661 = vunpack.c.h.b16 %v436
        %v662 = vunpack.c.l.b16 %v437
        %v663 = vunpack.c.h.b16 %v437
        %v664 = vunpack.c.l.b16 %v438
        %v665 = vunpack.c.l.b16 %v439
        %v666 = vunpack.c.h.b16 %v439
        %v667 = vunpack.c.l.b16 %v440
        %v668 = vunpack.c.h.b16 %v440
        %v669 = vunpack.c.l.b16 %v441
        %v670 = vunpack.c.l.b16 %v442
        %v671 = vunpack.c.h.b16 %v442
        %v672 = vunpack.c.l.b16 %v443
        %v673 = vunpack.c.h.b16 %v443
        %v674 = vunpack.c.l.b16 %v444
        %v675 = vunpack.c.l.b16 %v445
        %v676 = vunpack.c.h.b16 %v445
        %v677 = vunpack.c.l.b16 %v446
        %v678 = vunpack.c.h.b16 %v446
        %v679 = vunpack.c.l.b16 %v447
        %v680 = vunpack.c.l.b16 %v448
        %v681 = vunpack.c.h.b16 %v448
        %v682 = vunpack.c.l.b16 %v449
        %v683 = vunpack.c.h.b16 %v449
        %v684 = vunpack.c.l.b16 %v450
        %v685 = vunpack.c.l.b16 %v451
        %v686 = vunpack.c.h.b16 %v451
        %v687 = vunpack.c.l.b16 %v452
        %v688 = vunpack.c.h.b16 %v452
        %v689 = vunpack.c.l.b16 %v453
        %v690 = vpack.c.b16 %v555, %v550
        %v691 = vpack.c.b16 %v556, %v551
        %v692 = vpack.c.b16 %v557, %v552
        %v693 = vpack.c.b16 %v558, %v553
        %v694 = vpack.c.b16 %v559, %v554
        %v695 = vpack.c.b16 %v565, %v560
        %v696 = vpack.c.b16 %v566, %v561
        %v697 = vpack.c.b16 %v567, %v562
        %v698 = vpack.c.b16 %v568, %v563
        %v699 = vpack.c.b16 %v569, %v564
        %v700 = vpack.c.b16 %v575, %v570
        %v701 = vpack.c.b16 %v576, %v571
        %v702 = vpack.c.b16 %v577, %v572
        %v703 = vpack.c.b16 %v578, %v573
        %v704 = vpack.c.b16 %v579, %v574
        %v705 = vpack.c.b16 %v585, %v580
        %v706 = vpack.c.b16 %v586, %v581
        %v707 = vpack.c.b16 %v587, %v582
        %v708 = vpack.c.b16 %v588, %v583
        %v709 = vpack.c.b16 %v589, %v584
        %v710 = vpack.c.b16 %v595, %v590
        %v711 = vpack.c.b16 %v596, %v591
        %v712 = vpack.c.b16 %v597, %v592
        %v713 = vpack.c.b16 %v598, %v593
        %v714 = vpack.c.b16 %v599, %v594
        %v715 = vpack.c.b16 %v605, %v600
        %v716 = vpack.c.b16 %v606, %v601
        %v717 = vpack.c.b16 %v607, %v602
        %v718 = vpack.c.b16 %v608, %v603
        %v719 = vpack.c.b16 %v609, %v604
        %v720 = vpack.c.b16 %v615, %v610
        %v721 = vpack.c.b16 %v616, %v611
        %v722 = vpack.c.b16 %v617, %v612
        %v723 = vpack.c.b16 %v618, %v613
        %v724 = vpack.c.b16 %v619, %v614
        %v725 = vpack.c.b16 %v625, %v620
        %v726 = vpack.c.b16 %v626, %v621
        %v727 = vpack.c.b16 %v627, %v622
        %v728 = vpack.c.b16 %v628, %v623
        %v729 = vpack.c.b16 %v629, %v624
        %v730 = vpack.c.b16 %v635, %v630
        %v731 = vpack.c.b16 %v636, %v631
        %v732 = vpack.c.b16 %v637, %v632
        %v733 = vpack.c.b16 %v638, %v633
        %v734 = vpack.c.b16 %v639, %v634
        %v735 = vpack.c.b16 %v645, %v640
        %v736 = vpack.c.b16 %v646, %v641
        %v737 = vpack.c.b16 %v647, %v642
        %v738 = vpack.c.b16 %v648, %v643
        %v739 = vpack.c.b16 %v649, %v644
        %v740 = vpack.c.b16 %v655, %v650
        %v741 = vpack.c.b16 %v656, %v651
        %v742 = vpack.c.b16 %v657, %v652
        %v743 = vpack.c.b16 %v658, %v653
        %v744 = vpack.c.b16 %v659, %v654
        %v745 = vpack.c.b16 %v665, %v660
        %v746 = vpack.c.b16 %v666, %v661
        %v747 = vpack.c.b16 %v667, %v662
        %v748 = vpack.c.b16 %v668, %v663
        %v749 = vpack.c.b16 %v669, %v664
        %v750 = vpack.c.b16 %v675, %v670
        %v751 = vpack.c.b16 %v676, %v671
        %v752 = vpack.c.b16 %v677, %v672
        %v753 = vpack.c.b16 %v678, %v673
        %v754 = vpack.c.b16 %v679, %v674
        %v755 = vpack.c.b16 %v685, %v680
        %v756 = vpack.c.b16 %v686, %v681
        %v757 = vpack.c.b16 %v687, %v682
        %v758 = vpack.c.b16 %v688, %v683
        %v759 = vpack.c.b16 %v689, %v684
        %vm830 = vcmask 785408
        %v832 = vsel %vm830, %v464, 0
        %834 = vmatprep.subr.bf16.mxu0 %v691
        %835 = vmatpush1.bf16.msra.mxu0 %v690
        %836 = vmatprep.subr.bf16.mxu0 %v696
        %837 = vmatpush1.bf16.msra.mxu0 %v695
        %838 = vmatprep.subr.bf16.mxu0 %v701
        %839 = vmatpush1.bf16.msra.mxu0 %v700
        %840 = vmatprep.subr.bf16.mxu0 %v706
        %841 = vmatpush1.bf16.msra.mxu0 %v705
        %842 = vmatprep.subr.bf16.mxu0 %v711
        %843 = vmatpush1.bf16.msra.mxu0 %v710
        %844 = vmatprep.subr.bf16.mxu0 %v716
        %845 = vmatpush1.bf16.msra.mxu0 %v715
        %846 = vmatprep.subr.bf16.mxu0 %v721
        %847 = vmatpush1.bf16.msra.mxu0 %v720
        %848 = vmatprep.subr.bf16.mxu0 %v726
        %849 = vmatpush1.bf16.msra.mxu0 %v725
        %850 = vmatprep.subr.bf16.mxu0 %v731
        %851 = vmatpush1.bf16.msra.mxu0 %v730
        %852 = vmatprep.subr.bf16.mxu0 %v736
        %853 = vmatpush1.bf16.msra.mxu0 %v735
        %854 = vmatprep.subr.bf16.mxu0 %v741
        %855 = vmatpush1.bf16.msra.mxu0 %v740
        %856 = vmatprep.subr.bf16.mxu0 %v746
        %857 = vmatpush1.bf16.msra.mxu0 %v745
        %858 = vmatprep.subr.bf16.mxu0 %v751
        %859 = vmatpush1.bf16.msra.mxu0 %v750
        %860 = vmatprep.subr.bf16.mxu0 %v756
        %861 = vmatpush1.bf16.msra.mxu0 %v755
        %862 = vmatprep.subr.bf16.mxu0 0
        %863 = vmatpush1.bf16.msra.mxu0 0
        %864 = vmatprep.subr.bf16.mxu0 0
        %865 = vmatpush1.bf16.msra.mxu0 0
        %866 = vmatprep.mubr.bf16.mxu0 %v832
        %867 = vmatmul.mubr.bf16.gmra.mrb[0].mxu0 %v463
        %v868 = vpop.f32.mrb[0].mxu0
        %v869 = vadd.f32 %v458, %v868
        %v870 = vpop.f32.mrb[0].mxu0
        %v871 = vadd.f32 %v458, %v870
        %v872 = vpop.f32.mrb[0].mxu0
        %v873 = vpop.f32.mrb[0].mxu0
        %874 = vdwg.mxu0
        %875 = vmatprep.subr.bf16.mxu0 %v693
        %876 = vmatpush1.bf16.msra.mxu0 %v692
        %877 = vmatprep.subr.bf16.mxu0 %v698
        %878 = vmatpush1.bf16.msra.mxu0 %v697
        %879 = vmatprep.subr.bf16.mxu0 %v703
        %880 = vmatpush1.bf16.msra.mxu0 %v702
        %881 = vmatprep.subr.bf16.mxu0 %v708
        %882 = vmatpush1.bf16.msra.mxu0 %v707
        %883 = vmatprep.subr.bf16.mxu0 %v713
        %884 = vmatpush1.bf16.msra.mxu0 %v712
        %885 = vmatprep.subr.bf16.mxu0 %v718
        %886 = vmatpush1.bf16.msra.mxu0 %v717
        %887 = vmatprep.subr.bf16.mxu0 %v723
        %888 = vmatpush1.bf16.msra.mxu0 %v722
        %889 = vmatprep.subr.bf16.mxu0 %v728
        %890 = vmatpush1.bf16.msra.mxu0 %v727
        %891 = vmatprep.subr.bf16.mxu0 %v733
        %892 = vmatpush1.bf16.msra.mxu0 %v732
        %893 = vmatprep.subr.bf16.mxu0 %v738
        %894 = vmatpush1.bf16.msra.mxu0 %v737
        %895 = vmatprep.subr.bf16.mxu0 %v743
        %896 = vmatpush1.bf16.msra.mxu0 %v742
        %897 = vmatprep.subr.bf16.mxu0 %v748
        %898 = vmatpush1.bf16.msra.mxu0 %v747
        %899 = vmatprep.subr.bf16.mxu0 %v753
        %900 = vmatpush1.bf16.msra.mxu0 %v752
        %901 = vmatprep.subr.bf16.mxu0 %v758
        %902 = vmatpush1.bf16.msra.mxu0 %v757
        %903 = vmatprep.subr.bf16.mxu0 0
        %904 = vmatpush1.bf16.msra.mxu0 0
        %905 = vmatprep.subr.bf16.mxu0 0
        %906 = vmatpush1.bf16.msra.mxu0 0
        %907 = vmatprep.mubr.bf16.mxu0 %v832
        %908 = vmatmul.mubr.bf16.gmra.mrb[0].mxu0 %v463
        %v909 = vpop.f32.mrb[0].mxu0
        %v910 = vadd.f32 %v458, %v909
        %v911 = vpop.f32.mrb[0].mxu0
        %v912 = vadd.f32 %v458, %v911
        %v913 = vpop.f32.mrb[0].mxu0
        %v914 = vpop.f32.mrb[0].mxu0
        %915 = vdwg.mxu0
        %916 = vmatprep.subr.bf16.mxu0 0
        %917 = vmatpush1.bf16.msra.mxu0 %v694
        %918 = vmatprep.subr.bf16.mxu0 0
        %919 = vmatpush1.bf16.msra.mxu0 %v699
        %920 = vmatprep.subr.bf16.mxu0 0
        %921 = vmatpush1.bf16.msra.mxu0 %v704
        %922 = vmatprep.subr.bf16.mxu0 0
        %923 = vmatpush1.bf16.msra.mxu0 %v709
        %924 = vmatprep.subr.bf16.mxu0 0
        %925 = vmatpush1.bf16.msra.mxu0 %v714
        %926 = vmatprep.subr.bf16.mxu0 0
        %927 = vmatpush1.bf16.msra.mxu0 %v719
        %928 = vmatprep.subr.bf16.mxu0 0
        %929 = vmatpush1.bf16.msra.mxu0 %v724
        %930 = vmatprep.subr.bf16.mxu0 0
        %931 = vmatpush1.bf16.msra.mxu0 %v729
        %932 = vmatprep.subr.bf16.mxu0 0
        %933 = vmatpush1.bf16.msra.mxu0 %v734
        %934 = vmatprep.subr.bf16.mxu0 0
        %935 = vmatpush1.bf16.msra.mxu0 %v739
        %936 = vmatprep.subr.bf16.mxu0 0
        %937 = vmatpush1.bf16.msra.mxu0 %v744
        %938 = vmatprep.subr.bf16.mxu0 0
        %939 = vmatpush1.bf16.msra.mxu0 %v749
        %940 = vmatprep.subr.bf16.mxu0 0
        %941 = vmatpush1.bf16.msra.mxu0 %v754
        %942 = vmatprep.subr.bf16.mxu0 0
        %943 = vmatpush1.bf16.msra.mxu0 %v759
        %944 = vmatprep.subr.bf16.mxu0 0
        %945 = vmatpush1.bf16.msra.mxu0 0
        %946 = vmatprep.subr.bf16.mxu0 0
        %947 = vmatpush1.bf16.msra.mxu0 0
        %948 = vmatprep.mubr.bf16.mxu0 %v832
        %949 = vmatmul.mubr.bf16.gmra.mrb[0].mxu0 %v463
        %v950 = vpop.f32.mrb[0].mxu0
        %v951 = vadd.f32 %v458, %v950
        %v952 = vpop.f32.mrb[0].mxu0
        %v953 = vpop.f32.mrb[0].mxu0
        %v954 = vpop.f32.mrb[0].mxu0
        %955 = vdwg.mxu0
        %vm956 = vcmp.gt.f32.partialorder %v869, 0.0
        %vm957 = vcmp.gt.f32.partialorder %v871, 0.0
        %vm958 = vcmp.gt.f32.partialorder %v910, 0.0
        %vm959 = vcmp.gt.f32.partialorder %v912, 0.0
        %vm960 = vcmp.gt.f32.partialorder %v951, 0.0
        %v961 = vmul.f32 %v869, 0.01
        %v962 = vmul.f32 %v871, 0.01
        %v963 = vmul.f32 %v910, 0.01
        %v964 = vmul.f32 %v912, 0.01
        %v965 = vmul.f32 %v951, 0.01
        %v966 = vsel %vm956, %v869, %v961
        %v967 = vsel %vm957, %v871, %v962
        %v968 = vsel %vm958, %v910, %v963
        %v969 = vsel %vm959, %v912, %v964
        %v970 = vsel %vm960, %v951, %v965
        %971 = vst [vmem:[%s366] sm:$0xff] %v966
        %972 = vst [vmem:[%s366 + $0x8] sm:$0xff] %v967
        %973 = vst [vmem:[%s366 + $0x10] sm:$0xff] %v968
        %974 = vst [vmem:[%s366 + $0x18] sm:$0xff] %v969
        %975 = vst [vmem:[%s366 + $0x20] sm:$0xff] %v970
        %s976 = smul.u32 5, %s14
        %p977 = scmp.lt.s32.totalorder %s976, 19
        %s978 = scalar_select %p977, %s976, 19
        %s979 = smul.addr %s978, 8
        %s980 = scalar_lea.vmem %s3, %s979
        // Predicated region
        $region59: #{_lambda_.18} parent=53 // pred_check
          %p981 = pneg %p100
        $region60: #{_lambda_.18} parent=53 // pred_check_branch
          %983 = sbr.rel (%p981) target = $region62
        $region61: #{_lambda_.18} parent=53 // pred_region
          %s984 = smul.u32 5, %s14
        $region62: #{_lambda_.18} parent=53 // pred_fallthru
          _
      $region54: #{_lambda_.18} parent=5 // pred_fallthru
        _
      %p985 = scmp.le.s32.totalorder 2, %s9
      // Predicated region
      $region63: #{_lambda_.18} parent=5 // pred_check
        %p986 = pneg %p985
      $region64: #{_lambda_.18} parent=5 // pred_check_branch
        %988 = sbr.rel (%p986) target = $region66
      $region65: #{_lambda_.18} parent=5 // pred_region
        %s989 = ssub.s32 %s9, 2
        // Predicated region
        $region67: #{_lambda_.18} parent=65 // pred_check
          %p990 = pneg %p106
        $region68: #{_lambda_.18} parent=65 // pred_check_branch
          %992 = sbr.rel (%p990) target = $region70
        $region69: #{_lambda_.18} parent=65 // pred_region
          %s993 = smul.u32 5, %s15
          %p994 = scmp.lt.s32.totalorder %s993, 19
          %s995 = scalar_select %p994, %s993, 19
          %s996 = smul.addr %s995, 8
          %s997 = scalar_lea.vmem %s3, %s996
        $region70: #{_lambda_.18} parent=65 // pred_fallthru
          _
      $region66: #{_lambda_.18} parent=5 // pred_fallthru
        _
    $region6: #{_lambda_.18} parent=1 // loop_footer
      %s13 = sadd.s32 1, %s9
    $region7: #{_lambda_.18} parent=1 // loop_footer_branch
      %8 = sbr.rel target = $region3
    $region8: #{_lambda_.18} parent=1 // loop_exit
      _

// kernel: _lambda_.19
$region0: #{_lambda_.19}
  #allocation0 [shape = 'u32[]', space=smem, size = 0x4, offset = 0x4, fixed_abs, tag = 'smem constant byte address 0x4 - core index']
  #allocation1 [shape = 'u32[144,128]{1,0:T(1,128)}', space=vmem, size = 0x12000, scoped, tag = 'internal scratch']
  %s0 = inlined_call_operand.vmem [shape: bf16[8,224], index: 0, kind: input, shape index: {}]
  %s1 = inlined_call_operand.vmem [shape: bf16[224,20480], index: 1, kind: input, shape index: {}]
  %s2 = inlined_call_operand.vmem [shape: f32[8,1], index: 2, kind: input, shape index: {}]
  %s3 = inlined_call_operand.vmem [shape: f32[8,20480], index: 3, kind: output, shape index: {}]
  %s4 = sld [smem:[#allocation0]]
  $region68: #{_lambda_.19} parent=0
    _
  %s6 = ssub.s32 1, %s4
  %s7 = scalar_select 0, %s6, %s4
  $region1: #{_lambda_.19} parent=0
    #allocation2 [shape = 'u8[917504]{0}', space=vmem, size = 0xe0000, scoped, tag = 'input window, operand 1']
    loop: start=0, step=1, limit=22
    $region2: #{_lambda_.19} parent=1 // loop_pre_header
      _
    $region3: #{_lambda_.19} parent=1 // loop_header
      %s9 = sphi 0, %s13
      %p10 = scmp.ge.s32.totalorder %s9, 22
      %s17 = sphi 0, %s17
      %s19 = sphi 0, %s17
      %s20 = sphi 0, %s19
      %s34 = sphi 0, %s20
      %s40 = sphi 0, %s42
      %s43 = sphi 0, %s40
      %s44 = sphi 0, %s43
      %s60 = sphi 0, %s44
      %s64 = sphi 0, %s64
      %s66 = sphi 0, %s64
      %s67 = sphi 0, %s66
      %s81 = sphi 0, %s67
      %s87 = sphi 0, %s89
      %s90 = sphi 0, %s87
      %s91 = sphi 0, %s90
      %s107 = sphi 0, %s91
    $region4: #{_lambda_.19} parent=1 // loop_header_branch
      %12 = sbr.rel (%p10) target = $region8
    $region5: #{_lambda_.19} parent=1 // loop_body
      %s14 = ssub.s32 %s9, 1
      %s15 = ssub.s32 %s9, 2
      %s16 = sadd.s32 %s9, 1
      %s18 = sadd.s32 %s17, 1
      %p21 = scmp.eq.s32.totalorder %s9, 19
      %p22 = scmp.ne.s32.totalorder %s17, %s19
      %p23 = scmp.eq.s32.totalorder %s9, 0
      %p24 = por %p22, %p23
      %p25 = scmp.ne.s32.totalorder %s17, %s19
      %p26 = scmp.eq.s32.totalorder %s14, 19
      %p27 = por %p25, %p26
      %p28 = scmp.ne.s32.totalorder %s19, %s20
      %p29 = scmp.eq.s32.totalorder %s14, 0
      %p30 = por %p28, %p29
      %p31 = scmp.ne.s32.totalorder %s19, %s20
      %p32 = scmp.eq.s32.totalorder %s15, 19
      %p33 = por %p31, %p32
      %p35 = scmp.ne.s32.totalorder %s20, %s34
      %p36 = scmp.eq.s32.totalorder %s15, 0
      %p37 = por %p35, %p36
      %s38 = ssub.s32 %s9, %s16
      %p39 = scmp.eq.s32.totalorder %s38, 0
      %s41 = sadd.s32 %s40, 1
      %s42 = scalar_select %p39, %s40, %s41
      %p45 = pneg %p39
      %p46 = scmp.eq.s32.totalorder %s9, 19
      %p47 = por %p45, %p46
      %p48 = scmp.ne.s32.totalorder %s40, %s43
      %p49 = scmp.eq.s32.totalorder %s9, 0
      %p50 = por %p48, %p49
      %p51 = scmp.ne.s32.totalorder %s40, %s43
      %p52 = scmp.eq.s32.totalorder %s14, 19
      %p53 = por %p51, %p52
      %p54 = scmp.ne.s32.totalorder %s43, %s44
      %p55 = scmp.eq.s32.totalorder %s14, 0
      %p56 = por %p54, %p55
      %p57 = scmp.ne.s32.totalorder %s43, %s44
      %p58 = scmp.eq.s32.totalorder %s15, 19
      %p59 = por %p57, %p58
      %p61 = scmp.ne.s32.totalorder %s44, %s60
      %p62 = scmp.eq.s32.totalorder %s15, 0
      %p63 = por %p61, %p62
      %s65 = sadd.s32 %s64, 1
      %p68 = scmp.eq.s32.totalorder %s9, 19
      %p69 = scmp.ne.s32.totalorder %s64, %s66
      %p70 = scmp.eq.s32.totalorder %s9, 0
      %p71 = por %p69, %p70
      %p72 = scmp.ne.s32.totalorder %s64, %s66
      %p73 = scmp.eq.s32.totalorder %s14, 19
      %p74 = por %p72, %p73
      %p75 = scmp.ne.s32.totalorder %s66, %s67
      %p76 = scmp.eq.s32.totalorder %s14, 0
      %p77 = por %p75, %p76
      %p78 = scmp.ne.s32.totalorder %s66, %s67
      %p79 = scmp.eq.s32.totalorder %s15, 19
      %p80 = por %p78, %p79
      %p82 = scmp.ne.s32.totalorder %s67, %s81
      %p83 = scmp.eq.s32.totalorder %s15, 0
      %p84 = por %p82, %p83
      %s85 = ssub.s32 %s9, %s16
      %p86 = scmp.eq.s32.totalorder %s85, 0
      %s88 = sadd.s32 %s87, 1
      %s89 = scalar_select %p86, %s87, %s88
      %p92 = pneg %p86
      %p93 = scmp.eq.s32.totalorder %s9, 19
      %p94 = por %p92, %p93
      %p95 = scmp.ne.s32.totalorder %s87, %s90
      %p96 = scmp.eq.s32.totalorder %s9, 0
      %p97 = por %p95, %p96
      %p98 = scmp.ne.s32.totalorder %s87, %s90
      %p99 = scmp.eq.s32.totalorder %s14, 19
      %p100 = por %p98, %p99
      %p101 = scmp.ne.s32.totalorder %s90, %s91
      %p102 = scmp.eq.s32.totalorder %s14, 0
      %p103 = por %p101, %p102
      %p104 = scmp.ne.s32.totalorder %s90, %s91
      %p105 = scmp.eq.s32.totalorder %s15, 19
      %p106 = por %p104, %p105
      %p108 = scmp.ne.s32.totalorder %s91, %s107
      %p109 = scmp.eq.s32.totalorder %s15, 0
      %p110 = por %p108, %p109
      %p111 = scmp.le.s32.totalorder 1, %s9
      %p112 = scmp.lt.s32.totalorder %s9, 21
      %p113 = pnand %p111, %p112
      %p114 = pneg %p113
      // Predicated region
      $region9: #{_lambda_.19} parent=5 // pred_check
        _
      $region10: #{_lambda_.19} parent=5 // pred_check_branch
        %116 = sbr.rel (%p113) target = $region12
      $region11: #{_lambda_.19} parent=5 // pred_region
        %s117 = ssub.s32 %s9, 1
        // Predicated region
        $region13: #{_lambda_.19} parent=11 // pred_check
          %p118 = pneg %p30
        $region14: #{_lambda_.19} parent=11 // pred_check_branch
          %120 = sbr.rel (%p118) target = $region16
        $region15: #{_lambda_.19} parent=11 // pred_region
          _
        $region16: #{_lambda_.19} parent=11 // pred_fallthru
          _
        // Predicated region
        $region17: #{_lambda_.19} parent=11 // pred_check
          %p121 = pneg %p77
        $region18: #{_lambda_.19} parent=11 // pred_check_branch
          %123 = sbr.rel (%p121) target = $region20
        $region19: #{_lambda_.19} parent=11 // pred_region
          _
        $region20: #{_lambda_.19} parent=11 // pred_fallthru
          _
      $region12: #{_lambda_.19} parent=5 // pred_fallthru
        _
      %p124 = scmp.lt.s32.totalorder %s9, 20
      // Predicated region
      $region21: #{_lambda_.19} parent=5 // pred_check
        %p125 = pneg %p124
      $region22: #{_lambda_.19} parent=5 // pred_check_branch
        %127 = sbr.rel (%p125) target = $region24
      $region23: #{_lambda_.19} parent=5 // pred_region
        // Predicated region
        $region25: #{_lambda_.19} parent=23 // pred_check
          %p128 = pneg %p50
        $region26: #{_lambda_.19} parent=23 // pred_check_branch
          %130 = sbr.rel (%p128) target = $region28
        $region27: #{_lambda_.19} parent=23 // pred_region
          %s131 = sand.u32 %s40, 1
          %s132 = sand.u32 %s40, 1
          %s133 = smul.addr %s132, 896
          %s134 = scalar_lea.vmem [#allocation2], %s133
          %s135 = smul.u32 8, %s9
          %s136 = smul.addr %s135, 4
          %s137 = scalar_lea.vmem %s1, %s136
          // Predicated region
          $region29: #{_lambda_.19} parent=27 // pred_check
            _
          $region30: #{_lambda_.19} parent=27 // pred_check_branch
            %139 = sbr.rel (0) target = $region32
          $region31: #{_lambda_.19} parent=27 // pred_region
            // Predicated region
            $region33: #{_lambda_.19} parent=31 // pred_check
              _
            $region34: #{_lambda_.19} parent=31 // pred_check_branch
              %141 = sbr.rel (0) target = $region36
            $region35: #{_lambda_.19} parent=31 // pred_region
              loop: start=0, step=1, limit=1
              $region37: #{_lambda_.19} parent=35 // loop_pre_header
                _
              $region38: #{_lambda_.19} parent=35 // loop_header
                %s143 = sphi 0, %s147
                %p144 = scmp.ge.s32.totalorder %s143, 1
                %s148 = sphi %s137, %s137
                %s149 = sphi %s134, %s134
              $region39: #{_lambda_.19} parent=35 // loop_header_branch
                %146 = sbr.rel (%p144) target = $region43
              $region40: #{_lambda_.19} parent=35 // loop_body
                %v150 = vld [vmem:[%s148] sm:$0xff]
                %151 = vst [vmem:[%s149] sm:$0xff] %v150
                %v152 = vld [vmem:[%s148 + $0x8] sm:$0xff]
                %153 = vst [vmem:[%s149 + $0x8] sm:$0xff] %v152
                %v154 = vld [vmem:[%s148 + $0x10] sm:$0xff]
                %155 = vst [vmem:[%s149 + $0x10] sm:$0xff] %v154
                %v156 = vld [vmem:[%s148 + $0x18] sm:$0xff]
                %157 = vst [vmem:[%s149 + $0x18] sm:$0xff] %v156
                %v158 = vld [vmem:[%s148 + $0x280] sm:$0xff]
                %159 = vst [vmem:[%s149 + $0x20] sm:$0xff] %v158
                %v160 = vld [vmem:[%s148 + $0x288] sm:$0xff]
                %161 = vst [vmem:[%s149 + $0x28] sm:$0xff] %v160
                %v162 = vld [vmem:[%s148 + $0x290] sm:$0xff]
                %163 = vst [vmem:[%s149 + $0x30] sm:$0xff] %v162
                %v164 = vld [vmem:[%s148 + $0x298] sm:$0xff]
                %165 = vst [vmem:[%s149 + $0x38] sm:$0xff] %v164
                %v166 = vld [vmem:[%s148 + $0x500] sm:$0xff]
                %167 = vst [vmem:[%s149 + $0x40] sm:$0xff] %v166
                %v168 = vld [vmem:[%s148 + $0x508] sm:$0xff]
                %169 = vst [vmem:[%s149 + $0x48] sm:$0xff] %v168
                %v170 = vld [vmem:[%s148 + $0x510] sm:$0xff]
                %171 = vst [vmem:[%s149 + $0x50] sm:$0xff] %v170
                %v172 = vld [vmem:[%s148 + $0x518] sm:$0xff]
                %173 = vst [vmem:[%s149 + $0x58] sm:$0xff] %v172
                %v174 = vld [vmem:[%s148 + $0x780] sm:$0xff]
                %175 = vst [vmem:[%s149 + $0x60] sm:$0xff] %v174
                %v176 = vld [vmem:[%s148 + $0x788] sm:$0xff]
                %177 = vst [vmem:[%s149 + $0x68] sm:$0xff] %v176
                %v178 = vld [vmem:[%s148 + $0x790] sm:$0xff]
                %179 = vst [vmem:[%s149 + $0x70] sm:$0xff] %v178
                %v180 = vld [vmem:[%s148 + $0x798] sm:$0xff]
                %181 = vst [vmem:[%s149 + $0x78] sm:$0xff] %v180
                %v182 = vld [vmem:[%s148 + $0xa00] sm:$0xff]
                %183 = vst [vmem:[%s149 + $0x80] sm:$0xff] %v182
                %v184 = vld [vmem:[%s148 + $0xa08] sm:$0xff]
                %185 = vst [vmem:[%s149 + $0x88] sm:$0xff] %v184
                %v186 = vld [vmem:[%s148 + $0xa10] sm:$0xff]
                %187 = vst [vmem:[%s149 + $0x90] sm:$0xff] %v186
                %v188 = vld [vmem:[%s148 + $0xa18] sm:$0xff]
                %189 = vst [vmem:[%s149 + $0x98] sm:$0xff] %v188
                %v190 = vld [vmem:[%s148 + $0xc80] sm:$0xff]
                %191 = vst [vmem:[%s149 + $0xa0] sm:$0xff] %v190
                %v192 = vld [vmem:[%s148 + $0xc88] sm:$0xff]
                %193 = vst [vmem:[%s149 + $0xa8] sm:$0xff] %v192
                %v194 = vld [vmem:[%s148 + $0xc90] sm:$0xff]
                %195 = vst [vmem:[%s149 + $0xb0] sm:$0xff] %v194
                %v196 = vld [vmem:[%s148 + $0xc98] sm:$0xff]
                %197 = vst [vmem:[%s149 + $0xb8] sm:$0xff] %v196
                %v198 = vld [vmem:[%s148 + $0xf00] sm:$0xff]
                %199 = vst [vmem:[%s149 + $0xc0] sm:$0xff] %v198
                %v200 = vld [vmem:[%s148 + $0xf08] sm:$0xff]
                %201 = vst [vmem:[%s149 + $0xc8] sm:$0xff] %v200
                %v202 = vld [vmem:[%s148 + $0xf10] sm:$0xff]
                %203 = vst [vmem:[%s149 + $0xd0] sm:$0xff] %v202
                %v204 = vld [vmem:[%s148 + $0xf18] sm:$0xff]
                %205 = vst [vmem:[%s149 + $0xd8] sm:$0xff] %v204
                %v206 = vld [vmem:[%s148 + $0x1180] sm:$0xff]
                %207 = vst [vmem:[%s149 + $0xe0] sm:$0xff] %v206
                %v208 = vld [vmem:[%s148 + $0x1188] sm:$0xff]
                %209 = vst [vmem:[%s149 + $0xe8] sm:$0xff] %v208
                %v210 = vld [vmem:[%s148 + $0x1190] sm:$0xff]
                %211 = vst [vmem:[%s149 + $0xf0] sm:$0xff] %v210
                %v212 = vld [vmem:[%s148 + $0x1198] sm:$0xff]
                %213 = vst [vmem:[%s149 + $0xf8] sm:$0xff] %v212
                %v214 = vld [vmem:[%s148 + $0x1400] sm:$0xff]
                %215 = vst [vmem:[%s149 + $0x100] sm:$0xff] %v214
                %v216 = vld [vmem:[%s148 + $0x1408] sm:$0xff]
                %217 = vst [vmem:[%s149 + $0x108] sm:$0xff] %v216
                %v218 = vld [vmem:[%s148 + $0x1410] sm:$0xff]
                %219 = vst [vmem:[%s149 + $0x110] sm:$0xff] %v218
                %v220 = vld [vmem:[%s148 + $0x1418] sm:$0xff]
                %221 = vst [vmem:[%s149 + $0x118] sm:$0xff] %v220
                %v222 = vld [vmem:[%s148 + $0x1680] sm:$0xff]
                %223 = vst [vmem:[%s149 + $0x120] sm:$0xff] %v222
                %v224 = vld [vmem:[%s148 + $0x1688] sm:$0xff]
                %225 = vst [vmem:[%s149 + $0x128] sm:$0xff] %v224
                %v226 = vld [vmem:[%s148 + $0x1690] sm:$0xff]
                %227 = vst [vmem:[%s149 + $0x130] sm:$0xff] %v226
                %v228 = vld [vmem:[%s148 + $0x1698] sm:$0xff]
                %229 = vst [vmem:[%s149 + $0x138] sm:$0xff] %v228
                %v230 = vld [vmem:[%s148 + $0x1900] sm:$0xff]
                %231 = vst [vmem:[%s149 + $0x140] sm:$0xff] %v230
                %v232 = vld [vmem:[%s148 + $0x1908] sm:$0xff]
                %233 = vst [vmem:[%s149 + $0x148] sm:$0xff] %v232
                %v234 = vld [vmem:[%s148 + $0x1910] sm:$0xff]
                %235 = vst [vmem:[%s149 + $0x150] sm:$0xff] %v234
                %v236 = vld [vmem:[%s148 + $0x1918] sm:$0xff]
                %237 = vst [vmem:[%s149 + $0x158] sm:$0xff] %v236
                %v238 = vld [vmem:[%s148 + $0x1b80] sm:$0xff]
                %239 = vst [vmem:[%s149 + $0x160] sm:$0xff] %v238
                %v240 = vld [vmem:[%s148 + $0x1b88] sm:$0xff]
                %241 = vst [vmem:[%s149 + $0x168] sm:$0xff] %v240
                %v242 = vld [vmem:[%s148 + $0x1b90] sm:$0xff]
                %243 = vst [vmem:[%s149 + $0x170] sm:$0xff] %v242
                %v244 = vld [vmem:[%s148 + $0x1b98] sm:$0xff]
                %245 = vst [vmem:[%s149 + $0x178] sm:$0xff] %v244
                %v246 = vld [vmem:[%s148 + $0x1e00] sm:$0xff]
                %247 = vst [vmem:[%s149 + $0x180] sm:$0xff] %v246
                %v248 = vld [vmem:[%s148 + $0x1e08] sm:$0xff]
                %249 = vst [vmem:[%s149 + $0x188] sm:$0xff] %v248
                %v250 = vld [vmem:[%s148 + $0x1e10] sm:$0xff]
                %251 = vst [vmem:[%s149 + $0x190] sm:$0xff] %v250
                %v252 = vld [vmem:[%s148 + $0x1e18] sm:$0xff]
                %253 = vst [vmem:[%s149 + $0x198] sm:$0xff] %v252
                %v254 = vld [vmem:[%s148 + $0x2080] sm:$0xff]
                %255 = vst [vmem:[%s149 + $0x1a0] sm:$0xff] %v254
                %v256 = vld [vmem:[%s148 + $0x2088] sm:$0xff]
                %257 = vst [vmem:[%s149 + $0x1a8] sm:$0xff] %v256
                %v258 = vld [vmem:[%s148 + $0x2090] sm:$0xff]
                %259 = vst [vmem:[%s149 + $0x1b0] sm:$0xff] %v258
                %v260 = vld [vmem:[%s148 + $0x2098] sm:$0xff]
                %261 = vst [vmem:[%s149 + $0x1b8] sm:$0xff] %v260
                %v262 = vld [vmem:[%s148 + $0x2300] sm:$0xff]
                %263 = vst [vmem:[%s149 + $0x1c0] sm:$0xff] %v262
                %v264 = vld [vmem:[%s148 + $0x2308] sm:$0xff]
                %265 = vst [vmem:[%s149 + $0x1c8] sm:$0xff] %v264
                %v266 = vld [vmem:[%s148 + $0x2310] sm:$0xff]
                %267 = vst [vmem:[%s149 + $0x1d0] sm:$0xff] %v266
                %v268 = vld [vmem:[%s148 + $0x2318] sm:$0xff]
                %269 = vst [vmem:[%s149 + $0x1d8] sm:$0xff] %v268
                %v270 = vld [vmem:[%s148 + $0x2580] sm:$0xff]
                %271 = vst [vmem:[%s149 + $0x1e0] sm:$0xff] %v270
                %v272 = vld [vmem:[%s148 + $0x2588] sm:$0xff]
                %273 = vst [vmem:[%s149 + $0x1e8] sm:$0xff] %v272
                %v274 = vld [vmem:[%s148 + $0x2590] sm:$0xff]
                %275 = vst [vmem:[%s149 + $0x1f0] sm:$0xff] %v274
                %v276 = vld [vmem:[%s148 + $0x2598] sm:$0xff]
                %277 = vst [vmem:[%s149 + $0x1f8] sm:$0xff] %v276
                %v278 = vld [vmem:[%s148 + $0x2800] sm:$0xff]
                %279 = vst [vmem:[%s149 + $0x200] sm:$0xff] %v278
                %v280 = vld [vmem:[%s148 + $0x2808] sm:$0xff]
                %281 = vst [vmem:[%s149 + $0x208] sm:$0xff] %v280
                %v282 = vld [vmem:[%s148 + $0x2810] sm:$0xff]
                %283 = vst [vmem:[%s149 + $0x210] sm:$0xff] %v282
                %v284 = vld [vmem:[%s148 + $0x2818] sm:$0xff]
                %285 = vst [vmem:[%s149 + $0x218] sm:$0xff] %v284
                %v286 = vld [vmem:[%s148 + $0x2a80] sm:$0xff]
                %287 = vst [vmem:[%s149 + $0x220] sm:$0xff] %v286
                %v288 = vld [vmem:[%s148 + $0x2a88] sm:$0xff]
                %289 = vst [vmem:[%s149 + $0x228] sm:$0xff] %v288
                %v290 = vld [vmem:[%s148 + $0x2a90] sm:$0xff]
                %291 = vst [vmem:[%s149 + $0x230] sm:$0xff] %v290
                %v292 = vld [vmem:[%s148 + $0x2a98] sm:$0xff]
                %293 = vst [vmem:[%s149 + $0x238] sm:$0xff] %v292
                %v294 = vld [vmem:[%s148 + $0x2d00] sm:$0xff]
                %295 = vst [vmem:[%s149 + $0x240] sm:$0xff] %v294
                %v296 = vld [vmem:[%s148 + $0x2d08] sm:$0xff]
                %297 = vst [vmem:[%s149 + $0x248] sm:$0xff] %v296
                %v298 = vld [vmem:[%s148 + $0x2d10] sm:$0xff]
                %299 = vst [vmem:[%s149 + $0x250] sm:$0xff] %v298
                %v300 = vld [vmem:[%s148 + $0x2d18] sm:$0xff]
                %301 = vst [vmem:[%s149 + $0x258] sm:$0xff] %v300
                %v302 = vld [vmem:[%s148 + $0x2f80] sm:$0xff]
                %303 = vst [vmem:[%s149 + $0x260] sm:$0xff] %v302
                %v304 = vld [vmem:[%s148 + $0x2f88] sm:$0xff]
                %305 = vst [vmem:[%s149 + $0x268] sm:$0xff] %v304
                %v306 = vld [vmem:[%s148 + $0x2f90] sm:$0xff]
                %307 = vst [vmem:[%s149 + $0x270] sm:$0xff] %v306
                %v308 = vld [vmem:[%s148 + $0x2f98] sm:$0xff]
                %309 = vst [vmem:[%s149 + $0x278] sm:$0xff] %v308
                %v310 = vld [vmem:[%s148 + $0x3200] sm:$0xff]
                %311 = vst [vmem:[%s149 + $0x280] sm:$0xff] %v310
                %v312 = vld [vmem:[%s148 + $0x3208] sm:$0xff]
                %313 = vst [vmem:[%s149 + $0x288] sm:$0xff] %v312
                %v314 = vld [vmem:[%s148 + $0x3210] sm:$0xff]
                %315 = vst [vmem:[%s149 + $0x290] sm:$0xff] %v314
                %v316 = vld [vmem:[%s148 + $0x3218] sm:$0xff]
                %317 = vst [vmem:[%s149 + $0x298] sm:$0xff] %v316
                %v318 = vld [vmem:[%s148 + $0x3480] sm:$0xff]
                %319 = vst [vmem:[%s149 + $0x2a0] sm:$0xff] %v318
                %v320 = vld [vmem:[%s148 + $0x3488] sm:$0xff]
                %321 = vst [vmem:[%s149 + $0x2a8] sm:$0xff] %v320
                %v322 = vld [vmem:[%s148 + $0x3490] sm:$0xff]
                %323 = vst [vmem:[%s149 + $0x2b0] sm:$0xff] %v322
                %v324 = vld [vmem:[%s148 + $0x3498] sm:$0xff]
                %325 = vst [vmem:[%s149 + $0x2b8] sm:$0xff] %v324
                %v326 = vld [vmem:[%s148 + $0x3700] sm:$0xff]
                %327 = vst [vmem:[%s149 + $0x2c0] sm:$0xff] %v326
                %v328 = vld [vmem:[%s148 + $0x3708] sm:$0xff]
                %329 = vst [vmem:[%s149 + $0x2c8] sm:$0xff] %v328
                %v330 = vld [vmem:[%s148 + $0x3710] sm:$0xff]
                %331 = vst [vmem:[%s149 + $0x2d0] sm:$0xff] %v330
                %v332 = vld [vmem:[%s148 + $0x3718] sm:$0xff]
                %333 = vst [vmem:[%s149 + $0x2d8] sm:$0xff] %v332
                %v334 = vld [vmem:[%s148 + $0x3980] sm:$0xff]
                %335 = vst [vmem:[%s149 + $0x2e0] sm:$0xff] %v334
                %v336 = vld [vmem:[%s148 + $0x3988] sm:$0xff]
                %337 = vst [vmem:[%s149 + $0x2e8] sm:$0xff] %v336
                %v338 = vld [vmem:[%s148 + $0x3990] sm:$0xff]
                %339 = vst [vmem:[%s149 + $0x2f0] sm:$0xff] %v338
                %v340 = vld [vmem:[%s148 + $0x3998] sm:$0xff]
                %341 = vst [vmem:[%s149 + $0x2f8] sm:$0xff] %v340
                %v342 = vld [vmem:[%s148 + $0x3c00] sm:$0xff]
                %343 = vst [vmem:[%s149 + $0x300] sm:$0xff] %v342
                %v344 = vld [vmem:[%s148 + $0x3c08] sm:$0xff]
                %345 = vst [vmem:[%s149 + $0x308] sm:$0xff] %v344
                %v346 = vld [vmem:[%s148 + $0x3c10] sm:$0xff]
                %347 = vst [vmem:[%s149 + $0x310] sm:$0xff] %v346
                %v348 = vld [vmem:[%s148 + $0x3c18] sm:$0xff]
                %349 = vst [vmem:[%s149 + $0x318] sm:$0xff] %v348
                %v350 = vld [vmem:[%s148 + $0x3e80] sm:$0xff]
                %351 = vst [vmem:[%s149 + $0x320] sm:$0xff] %v350
                %v352 = vld [vmem:[%s148 + $0x3e88] sm:$0xff]
                %353 = vst [vmem:[%s149 + $0x328] sm:$0xff] %v352
                %v354 = vld [vmem:[%s148 + $0x3e90] sm:$0xff]
                %355 = vst [vmem:[%s149 + $0x330] sm:$0xff] %v354
                %v356 = vld [vmem:[%s148 + $0x3e98] sm:$0xff]
                %357 = vst [vmem:[%s149 + $0x338] sm:$0xff] %v356
                %v358 = vld [vmem:[%s148 + $0x4100] sm:$0xff]
                %359 = vst [vmem:[%s149 + $0x340] sm:$0xff] %v358
                %v360 = vld [vmem:[%s148 + $0x4108] sm:$0xff]
                %361 = vst [vmem:[%s149 + $0x348] sm:$0xff] %v360
                %v362 = vld [vmem:[%s148 + $0x4110] sm:$0xff]
                %363 = vst [vmem:[%s149 + $0x350] sm:$0xff] %v362
                %v364 = vld [vmem:[%s148 + $0x4118] sm:$0xff]
                %365 = vst [vmem:[%s149 + $0x358] sm:$0xff] %v364
                %v366 = vld [vmem:[%s148 + $0x4380] sm:$0xff]
                %367 = vst [vmem:[%s149 + $0x360] sm:$0xff] %v366
                %v368 = vld [vmem:[%s148 + $0x4388] sm:$0xff]
                %369 = vst [vmem:[%s149 + $0x368] sm:$0xff] %v368
                %v370 = vld [vmem:[%s148 + $0x4390] sm:$0xff]
                %371 = vst [vmem:[%s149 + $0x370] sm:$0xff] %v370
                %v372 = vld [vmem:[%s148 + $0x4398] sm:$0xff]
                %373 = vst [vmem:[%s149 + $0x378] sm:$0xff] %v372
              $region41: #{_lambda_.19} parent=35 // loop_footer
                %s147 = sadd.s32 1, %s143
              $region42: #{_lambda_.19} parent=35 // loop_footer_branch
                %142 = sbr.rel target = $region38
              $region43: #{_lambda_.19} parent=35 // loop_exit
                _
            $region36: #{_lambda_.19} parent=31 // pred_fallthru
              _
            // Predicated region
            $region44: #{_lambda_.19} parent=31 // pred_check
              _
            $region45: #{_lambda_.19} parent=31 // pred_check_branch
              %375 = sbr.rel target = $region47
            $region46: #{_lambda_.19} parent=31 // pred_region
              _
            $region47: #{_lambda_.19} parent=31 // pred_fallthru
              _
          $region32: #{_lambda_.19} parent=27 // pred_fallthru
            _
          %376 = vnop
        $region28: #{_lambda_.19} parent=23 // pred_fallthru
          _
      $region24: #{_lambda_.19} parent=5 // pred_fallthru
        _
      %p377 = scmp.le.s32.totalorder 1, %s9
      %p378 = scmp.lt.s32.totalorder %s9, 21
      %p379 = pnand %p377, %p378
      %p380 = pneg %p379
      // Predicated region
      $region48: #{_lambda_.19} parent=5 // pred_check
        _
      $region49: #{_lambda_.19} parent=5 // pred_check_branch
        %382 = sbr.rel (%p379) target = $region51
      $region50: #{_lambda_.19} parent=5 // pred_region
        %s383 = ssub.s32 %s9, 1
        %s384 = sand.u32 %s43, 1
        %s385 = sand.u32 %s43, 1
        %s386 = smul.addr %s385, 896
        %s387 = scalar_lea.vmem [#allocation2], %s386
        // Predicated region
        $region52: #{_lambda_.19} parent=50 // pred_check
          %p388 = pneg %p56
        $region53: #{_lambda_.19} parent=50 // pred_check_branch
          %390 = sbr.rel (%p388) target = $region55
        $region54: #{_lambda_.19} parent=50 // pred_region
          _
        $region55: #{_lambda_.19} parent=50 // pred_fallthru
          _
        %p391 = pneg %p30
        %p392 = pneg %p27
        %s393 = sand.u32 %s43, 1
        %s394 = sand.u32 %s43, 1
        %s395 = smul.addr %s394, 896
        %s396 = scalar_lea.vmem [#allocation2], %s395
        %p397 = pneg %p56
        %p398 = pneg %p53
        %p399 = pneg %p77
        %p400 = pneg %p74
        %p401 = pneg %p103
        %p402 = pneg %p100
        %s403 = smul.u32 8, %s14
        %p404 = scmp.lt.s32.totalorder %s403, 159
        %s405 = scalar_select %p404, %s403, 159
        %s406 = smul.addr %s405, 8
        %s407 = scalar_lea.vmem %s3, %s406
        %s408 = smul.u32 8, %s14
        %s409 = smul.u32 8, %s14
        %p410 = scmp.lt.s32.totalorder %s409, 159
        %s411 = scalar_select %p410, %s409, 159
        %s412 = smul.addr %s411, 8
        %s413 = scalar_lea.vmem %s3, %s412
        %s414 = smul.u32 8, %s14
        %v416 = vld [vmem:[%s0] sm:$0xff]
        %v417 = vld [vmem:[%s387] sm:$0xff]
        %v418 = vld [vmem:[%s387 + $0x8] sm:$0xff]
        %v419 = vld [vmem:[%s387 + $0x10] sm:$0xff]
        %v420 = vld [vmem:[%s387 + $0x18] sm:$0xff]
        %v421 = vld [vmem:[%s387 + $0x20] sm:$0xff]
        %v422 = vld [vmem:[%s387 + $0x28] sm:$0xff]
        %v423 = vld [vmem:[%s387 + $0x30] sm:$0xff]
        %v424 = vld [vmem:[%s387 + $0x38] sm:$0xff]
        %v425 = vld [vmem:[%s387 + $0x40] sm:$0xff]
        %v426 = vld [vmem:[%s387 + $0x48] sm:$0xff]
        %v427 = vld [vmem:[%s387 + $0x50] sm:$0xff]
        %v428 = vld [vmem:[%s387 + $0x58] sm:$0xff]
        %v429 = vld [vmem:[%s387 + $0x60] sm:$0xff]
        %v430 = vld [vmem:[%s387 + $0x68] sm:$0xff]
        %v431 = vld [vmem:[%s387 + $0x70] sm:$0xff]
        %v432 = vld [vmem:[%s387 + $0x78] sm:$0xff]
        %v433 = vld [vmem:[%s387 + $0x80] sm:$0xff]
        %v434 = vld [vmem:[%s387 + $0x88] sm:$0xff]
        %v435 = vld [vmem:[%s387 + $0x90] sm:$0xff]
        %v436 = vld [vmem:[%s387 + $0x98] sm:$0xff]
        %v437 = vld [vmem:[%s387 + $0xa0] sm:$0xff]
        %v438 = vld [vmem:[%s387 + $0xa8] sm:$0xff]
        %v439 = vld [vmem:[%s387 + $0xb0] sm:$0xff]
        %v440 = vld [vmem:[%s387 + $0xb8] sm:$0xff]
        %v441 = vld [vmem:[%s387 + $0xc0] sm:$0xff]
        %v442 = vld [vmem:[%s387 + $0xc8] sm:$0xff]
        %v443 = vld [vmem:[%s387 + $0xd0] sm:$0xff]
        %v444 = vld [vmem:[%s387 + $0xd8] sm:$0xff]
        %v445 = vld [vmem:[%s387 + $0xe0] sm:$0xff]
        %v446 = vld [vmem:[%s387 + $0xe8] sm:$0xff]
        %v447 = vld [vmem:[%s387 + $0xf0] sm:$0xff]
        %v448 = vld [vmem:[%s387 + $0xf8] sm:$0xff]
        %v449 = vld [vmem:[%s387 + $0x100] sm:$0xff]
        %v450 = vld [vmem:[%s387 + $0x108] sm:$0xff]
        %v451 = vld [vmem:[%s387 + $0x110] sm:$0xff]
        %v452 = vld [vmem:[%s387 + $0x118] sm:$0xff]
        %v453 = vld [vmem:[%s387 + $0x120] sm:$0xff]
        %v454 = vld [vmem:[%s387 + $0x128] sm:$0xff]
        %v455 = vld [vmem:[%s387 + $0x130] sm:$0xff]
        %v456 = vld [vmem:[%s387 + $0x138] sm:$0xff]
        %v457 = vld [vmem:[%s387 + $0x140] sm:$0xff]
        %v458 = vld [vmem:[%s387 + $0x148] sm:$0xff]
        %v459 = vld [vmem:[%s387 + $0x150] sm:$0xff]
        %v460 = vld [vmem:[%s387 + $0x158] sm:$0xff]
        %v461 = vld [vmem:[%s387 + $0x160] sm:$0xff]
        %v462 = vld [vmem:[%s387 + $0x168] sm:$0xff]
        %v463 = vld [vmem:[%s387 + $0x170] sm:$0xff]
        %v464 = vld [vmem:[%s387 + $0x178] sm:$0xff]
        %v465 = vld [vmem:[%s387 + $0x180] sm:$0xff]
        %v466 = vld [vmem:[%s387 + $0x188] sm:$0xff]
        %v467 = vld [vmem:[%s387 + $0x190] sm:$0xff]
        %v468 = vld [vmem:[%s387 + $0x198] sm:$0xff]
        %v469 = vld [vmem:[%s387 + $0x1a0] sm:$0xff]
        %v470 = vld [vmem:[%s387 + $0x1a8] sm:$0xff]
        %v471 = vld [vmem:[%s387 + $0x1b0] sm:$0xff]
        %v472 = vld [vmem:[%s387 + $0x1b8] sm:$0xff]
        %v473 = vld [vmem:[%s387 + $0x1c0] sm:$0xff]
        %v474 = vld [vmem:[%s387 + $0x1c8] sm:$0xff]
        %v475 = vld [vmem:[%s387 + $0x1d0] sm:$0xff]
        %v476 = vld [vmem:[%s387 + $0x1d8] sm:$0xff]
        %v477 = vld [vmem:[%s387 + $0x1e0] sm:$0xff]
        %v478 = vld [vmem:[%s387 + $0x1e8] sm:$0xff]
        %v479 = vld [vmem:[%s387 + $0x1f0] sm:$0xff]
        %v480 = vld [vmem:[%s387 + $0x1f8] sm:$0xff]
        %v481 = vld [vmem:[%s387 + $0x200] sm:$0xff]
        %v482 = vld [vmem:[%s387 + $0x208] sm:$0xff]
        %v483 = vld [vmem:[%s387 + $0x210] sm:$0xff]
        %v484 = vld [vmem:[%s387 + $0x218] sm:$0xff]
        %v485 = vld [vmem:[%s387 + $0x220] sm:$0xff]
        %v486 = vld [vmem:[%s387 + $0x228] sm:$0xff]
        %v487 = vld [vmem:[%s387 + $0x230] sm:$0xff]
        %v488 = vld [vmem:[%s387 + $0x238] sm:$0xff]
        %v489 = vld [vmem:[%s387 + $0x240] sm:$0xff]
        %v490 = vld [vmem:[%s387 + $0x248] sm:$0xff]
        %v491 = vld [vmem:[%s387 + $0x250] sm:$0xff]
        %v492 = vld [vmem:[%s387 + $0x258] sm:$0xff]
        %v493 = vld [vmem:[%s387 + $0x260] sm:$0xff]
        %v494 = vld [vmem:[%s387 + $0x268] sm:$0xff]
        %v495 = vld [vmem:[%s387 + $0x270] sm:$0xff]
        %v496 = vld [vmem:[%s387 + $0x278] sm:$0xff]
        %v497 = vld [vmem:[%s387 + $0x280] sm:$0xff]
        %v498 = vld [vmem:[%s387 + $0x288] sm:$0xff]
        %v499 = vld [vmem:[%s387 + $0x290] sm:$0xff]
        %v500 = vld [vmem:[%s387 + $0x298] sm:$0xff]
        %v501 = vld [vmem:[%s387 + $0x2a0] sm:$0xff]
        %v502 = vld [vmem:[%s387 + $0x2a8] sm:$0xff]
        %v503 = vld [vmem:[%s387 + $0x2b0] sm:$0xff]
        %v504 = vld [vmem:[%s387 + $0x2b8] sm:$0xff]
        %v505 = vld [vmem:[%s387 + $0x2c0] sm:$0xff]
        %v506 = vld [vmem:[%s387 + $0x2c8] sm:$0xff]
        %v507 = vld [vmem:[%s387 + $0x2d0] sm:$0xff]
        %v508 = vld [vmem:[%s387 + $0x2d8] sm:$0xff]
        %v509 = vld [vmem:[%s387 + $0x2e0] sm:$0xff]
        %v510 = vld [vmem:[%s387 + $0x2e8] sm:$0xff]
        %v511 = vld [vmem:[%s387 + $0x2f0] sm:$0xff]
        %v512 = vld [vmem:[%s387 + $0x2f8] sm:$0xff]
        %v513 = vld [vmem:[%s387 + $0x300] sm:$0xff]
        %v514 = vld [vmem:[%s387 + $0x308] sm:$0xff]
        %v515 = vld [vmem:[%s387 + $0x310] sm:$0xff]
        %v516 = vld [vmem:[%s387 + $0x318] sm:$0xff]
        %v517 = vld [vmem:[%s387 + $0x320] sm:$0xff]
        %v518 = vld [vmem:[%s387 + $0x328] sm:$0xff]
        %v519 = vld [vmem:[%s387 + $0x330] sm:$0xff]
        %v520 = vld [vmem:[%s387 + $0x338] sm:$0xff]
        %v521 = vld [vmem:[%s387 + $0x340] sm:$0xff]
        %v522 = vld [vmem:[%s387 + $0x348] sm:$0xff]
        %v523 = vld [vmem:[%s387 + $0x350] sm:$0xff]
        %v524 = vld [vmem:[%s387 + $0x358] sm:$0xff]
        %v525 = vld [vmem:[%s387 + $0x360] sm:$0xff]
        %v526 = vld [vmem:[%s387 + $0x368] sm:$0xff]
        %v527 = vld [vmem:[%s387 + $0x370] sm:$0xff]
        %v528 = vld [vmem:[%s387 + $0x378] sm:$0xff]
        %v529 = vld [vmem:[%s2] sm:$0xff]
        %531 = vset.pattern.permute.xlu0 0
        %532 = vperm.xlu0 %531, %v529
        %v533 = vpop.permute.xlu0 %532
        %v536 = vunpack.c.l.b16 %v416
        %v537 = vunpack.c.h.b16 %v416
        %v538 = vpack.c.b16 %v536, %v536
        %v539 = vpack.c.b16 %v537, %v537
        %v653 = vunpack.c.l.b16 %v417
        %v654 = vunpack.c.h.b16 %v417
        %v655 = vunpack.c.l.b16 %v418
        %v656 = vunpack.c.h.b16 %v418
        %v657 = vunpack.c.l.b16 %v419
        %v658 = vunpack.c.h.b16 %v419
        %v659 = vunpack.c.l.b16 %v420
        %v660 = vunpack.c.h.b16 %v420
        %v661 = vunpack.c.l.b16 %v421
        %v662 = vunpack.c.h.b16 %v421
        %v663 = vunpack.c.l.b16 %v422
        %v664 = vunpack.c.h.b16 %v422
        %v665 = vunpack.c.l.b16 %v423
        %v666 = vunpack.c.h.b16 %v423
        %v667 = vunpack.c.l.b16 %v424
        %v668 = vunpack.c.h.b16 %v424
        %v669 = vunpack.c.l.b16 %v425
        %v670 = vunpack.c.h.b16 %v425
        %v671 = vunpack.c.l.b16 %v426
        %v672 = vunpack.c.h.b16 %v426
        %v673 = vunpack.c.l.b16 %v427
        %v674 = vunpack.c.h.b16 %v427
        %v675 = vunpack.c.l.b16 %v428
        %v676 = vunpack.c.h.b16 %v428
        %v677 = vunpack.c.l.b16 %v429
        %v678 = vunpack.c.h.b16 %v429
        %v679 = vunpack.c.l.b16 %v430
        %v680 = vunpack.c.h.b16 %v430
        %v681 = vunpack.c.l.b16 %v431
        %v682 = vunpack.c.h.b16 %v431
        %v683 = vunpack.c.l.b16 %v432
        %v684 = vunpack.c.h.b16 %v432
        %v685 = vunpack.c.l.b16 %v433
        %v686 = vunpack.c.h.b16 %v433
        %v687 = vunpack.c.l.b16 %v434
        %v688 = vunpack.c.h.b16 %v434
        %v689 = vunpack.c.l.b16 %v435
        %v690 = vunpack.c.h.b16 %v435
        %v691 = vunpack.c.l.b16 %v436
        %v692 = vunpack.c.h.b16 %v436
        %v693 = vunpack.c.l.b16 %v437
        %v694 = vunpack.c.h.b16 %v437
        %v695 = vunpack.c.l.b16 %v438
        %v696 = vunpack.c.h.b16 %v438
        %v697 = vunpack.c.l.b16 %v439
        %v698 = vunpack.c.h.b16 %v439
        %v699 = vunpack.c.l.b16 %v440
        %v700 = vunpack.c.h.b16 %v440
        %v701 = vunpack.c.l.b16 %v441
        %v702 = vunpack.c.h.b16 %v441
        %v703 = vunpack.c.l.b16 %v442
        %v704 = vunpack.c.h.b16 %v442
        %v705 = vunpack.c.l.b16 %v443
        %v706 = vunpack.c.h.b16 %v443
        %v707 = vunpack.c.l.b16 %v444
        %v708 = vunpack.c.h.b16 %v444
        %v709 = vunpack.c.l.b16 %v445
        %v710 = vunpack.c.h.b16 %v445
        %v711 = vunpack.c.l.b16 %v446
        %v712 = vunpack.c.h.b16 %v446
        %v713 = vunpack.c.l.b16 %v447
        %v714 = vunpack.c.h.b16 %v447
        %v715 = vunpack.c.l.b16 %v448
        %v716 = vunpack.c.h.b16 %v448
        %v717 = vunpack.c.l.b16 %v449
        %v718 = vunpack.c.h.b16 %v449
        %v719 = vunpack.c.l.b16 %v450
        %v720 = vunpack.c.h.b16 %v450
        %v721 = vunpack.c.l.b16 %v451
        %v722 = vunpack.c.h.b16 %v451
        %v723 = vunpack.c.l.b16 %v452
        %v724 = vunpack.c.h.b16 %v452
        %v725 = vunpack.c.l.b16 %v453
        %v726 = vunpack.c.h.b16 %v453
        %v727 = vunpack.c.l.b16 %v454
        %v728 = vunpack.c.h.b16 %v454
        %v729 = vunpack.c.l.b16 %v455
        %v730 = vunpack.c.h.b16 %v455
        %v731 = vunpack.c.l.b16 %v456
        %v732 = vunpack.c.h.b16 %v456
        %v733 = vunpack.c.l.b16 %v457
        %v734 = vunpack.c.h.b16 %v457
        %v735 = vunpack.c.l.b16 %v458
        %v736 = vunpack.c.h.b16 %v458
        %v737 = vunpack.c.l.b16 %v459
        %v738 = vunpack.c.h.b16 %v459
        %v739 = vunpack.c.l.b16 %v460
        %v740 = vunpack.c.h.b16 %v460
        %v741 = vunpack.c.l.b16 %v461
        %v742 = vunpack.c.h.b16 %v461
        %v743 = vunpack.c.l.b16 %v462
        %v744 = vunpack.c.h.b16 %v462
        %v745 = vunpack.c.l.b16 %v463
        %v746 = vunpack.c.h.b16 %v463
        %v747 = vunpack.c.l.b16 %v464
        %v748 = vunpack.c.h.b16 %v464
        %v749 = vunpack.c.l.b16 %v465
        %v750 = vunpack.c.h.b16 %v465
        %v751 = vunpack.c.l.b16 %v466
        %v752 = vunpack.c.h.b16 %v466
        %v753 = vunpack.c.l.b16 %v467
        %v754 = vunpack.c.h.b16 %v467
        %v755 = vunpack.c.l.b16 %v468
        %v756 = vunpack.c.h.b16 %v468
        %v757 = vunpack.c.l.b16 %v469
        %v758 = vunpack.c.h.b16 %v469
        %v759 = vunpack.c.l.b16 %v470
        %v760 = vunpack.c.h.b16 %v470
        %v761 = vunpack.c.l.b16 %v471
        %v762 = vunpack.c.h.b16 %v471
        %v763 = vunpack.c.l.b16 %v472
        %v764 = vunpack.c.h.b16 %v472
        %v765 = vunpack.c.l.b16 %v473
        %v766 = vunpack.c.h.b16 %v473
        %v767 = vunpack.c.l.b16 %v474
        %v768 = vunpack.c.h.b16 %v474
        %v769 = vunpack.c.l.b16 %v475
        %v770 = vunpack.c.h.b16 %v475
        %v771 = vunpack.c.l.b16 %v476
        %v772 = vunpack.c.h.b16 %v476
        %v773 = vunpack.c.l.b16 %v477
        %v774 = vunpack.c.h.b16 %v477
        %v775 = vunpack.c.l.b16 %v478
        %v776 = vunpack.c.h.b16 %v478
        %v777 = vunpack.c.l.b16 %v479
        %v778 = vunpack.c.h.b16 %v479
        %v779 = vunpack.c.l.b16 %v480
        %v780 = vunpack.c.h.b16 %v480
        %v781 = vunpack.c.l.b16 %v481
        %v782 = vunpack.c.h.b16 %v481
        %v783 = vunpack.c.l.b16 %v482
        %v784 = vunpack.c.h.b16 %v482
        %v785 = vunpack.c.l.b16 %v483
        %v786 = vunpack.c.h.b16 %v483
        %v787 = vunpack.c.l.b16 %v484
        %v788 = vunpack.c.h.b16 %v484
        %v789 = vunpack.c.l.b16 %v485
        %v790 = vunpack.c.h.b16 %v485
        %v791 = vunpack.c.l.b16 %v486
        %v792 = vunpack.c.h.b16 %v486
        %v793 = vunpack.c.l.b16 %v487
        %v794 = vunpack.c.h.b16 %v487
        %v795 = vunpack.c.l.b16 %v488
        %v796 = vunpack.c.h.b16 %v488
        %v797 = vunpack.c.l.b16 %v489
        %v798 = vunpack.c.h.b16 %v489
        %v799 = vunpack.c.l.b16 %v490
        %v800 = vunpack.c.h.b16 %v490
        %v801 = vunpack.c.l.b16 %v491
        %v802 = vunpack.c.h.b16 %v491
        %v803 = vunpack.c.l.b16 %v492
        %v804 = vunpack.c.h.b16 %v492
        %v805 = vunpack.c.l.b16 %v493
        %v806 = vunpack.c.h.b16 %v493
        %v807 = vunpack.c.l.b16 %v494
        %v808 = vunpack.c.h.b16 %v494
        %v809 = vunpack.c.l.b16 %v495
        %v810 = vunpack.c.h.b16 %v495
        %v811 = vunpack.c.l.b16 %v496
        %v812 = vunpack.c.h.b16 %v496
        %v813 = vunpack.c.l.b16 %v497
        %v814 = vunpack.c.h.b16 %v497
        %v815 = vunpack.c.l.b16 %v498
        %v816 = vunpack.c.h.b16 %v498
        %v817 = vunpack.c.l.b16 %v499
        %v818 = vunpack.c.h.b16 %v499
        %v819 = vunpack.c.l.b16 %v500
        %v820 = vunpack.c.h.b16 %v500
        %v821 = vunpack.c.l.b16 %v501
        %v822 = vunpack.c.h.b16 %v501
        %v823 = vunpack.c.l.b16 %v502
        %v824 = vunpack.c.h.b16 %v502
        %v825 = vunpack.c.l.b16 %v503
        %v826 = vunpack.c.h.b16 %v503
        %v827 = vunpack.c.l.b16 %v504
        %v828 = vunpack.c.h.b16 %v504
        %v829 = vunpack.c.l.b16 %v505
        %v830 = vunpack.c.h.b16 %v505
        %v831 = vunpack.c.l.b16 %v506
        %v832 = vunpack.c.h.b16 %v506
        %v833 = vunpack.c.l.b16 %v507
        %v834 = vunpack.c.h.b16 %v507
        %v835 = vunpack.c.l.b16 %v508
        %v836 = vunpack.c.h.b16 %v508
        %v837 = vunpack.c.l.b16 %v509
        %v838 = vunpack.c.h.b16 %v509
        %v839 = vunpack.c.l.b16 %v510
        %v840 = vunpack.c.h.b16 %v510
        %v841 = vunpack.c.l.b16 %v511
        %v842 = vunpack.c.h.b16 %v511
        %v843 = vunpack.c.l.b16 %v512
        %v844 = vunpack.c.h.b16 %v512
        %v845 = vunpack.c.l.b16 %v513
        %v846 = vunpack.c.h.b16 %v513
        %v847 = vunpack.c.l.b16 %v514
        %v848 = vunpack.c.h.b16 %v514
        %v849 = vunpack.c.l.b16 %v515
        %v850 = vunpack.c.h.b16 %v515
        %v851 = vunpack.c.l.b16 %v516
        %v852 = vunpack.c.h.b16 %v516
        %v853 = vunpack.c.l.b16 %v517
        %v854 = vunpack.c.h.b16 %v517
        %v855 = vunpack.c.l.b16 %v518
        %v856 = vunpack.c.h.b16 %v518
        %v857 = vunpack.c.l.b16 %v519
        %v858 = vunpack.c.h.b16 %v519
        %v859 = vunpack.c.l.b16 %v520
        %v860 = vunpack.c.h.b16 %v520
        %v861 = vunpack.c.l.b16 %v521
        %v862 = vunpack.c.h.b16 %v521
        %v863 = vunpack.c.l.b16 %v522
        %v864 = vunpack.c.h.b16 %v522
        %v865 = vunpack.c.l.b16 %v523
        %v866 = vunpack.c.h.b16 %v523
        %v867 = vunpack.c.l.b16 %v524
        %v868 = vunpack.c.h.b16 %v524
        %v869 = vunpack.c.l.b16 %v525
        %v870 = vunpack.c.h.b16 %v525
        %v871 = vunpack.c.l.b16 %v526
        %v872 = vunpack.c.h.b16 %v526
        %v873 = vunpack.c.l.b16 %v527
        %v874 = vunpack.c.h.b16 %v527
        %v875 = vunpack.c.l.b16 %v528
        %v876 = vunpack.c.h.b16 %v528
        %v877 = vpack.c.b16 %v661, %v653
        %v878 = vpack.c.b16 %v662, %v654
        %v879 = vpack.c.b16 %v663, %v655
        %v880 = vpack.c.b16 %v664, %v656
        %v881 = vpack.c.b16 %v665, %v657
        %v882 = vpack.c.b16 %v666, %v658
        %v883 = vpack.c.b16 %v667, %v659
        %v884 = vpack.c.b16 %v668, %v660
        %v885 = vpack.c.b16 %v677, %v669
        %v886 = vpack.c.b16 %v678, %v670
        %v887 = vpack.c.b16 %v679, %v671
        %v888 = vpack.c.b16 %v680, %v672
        %v889 = vpack.c.b16 %v681, %v673
        %v890 = vpack.c.b16 %v682, %v674
        %v891 = vpack.c.b16 %v683, %v675
        %v892 = vpack.c.b16 %v684, %v676
        %v893 = vpack.c.b16 %v693, %v685
        %v894 = vpack.c.b16 %v694, %v686
        %v895 = vpack.c.b16 %v695, %v687
        %v896 = vpack.c.b16 %v696, %v688
        %v897 = vpack.c.b16 %v697, %v689
        %v898 = vpack.c.b16 %v698, %v690
        %v899 = vpack.c.b16 %v699, %v691
        %v900 = vpack.c.b16 %v700, %v692
        %v901 = vpack.c.b16 %v709, %v701
        %v902 = vpack.c.b16 %v710, %v702
        %v903 = vpack.c.b16 %v711, %v703
        %v904 = vpack.c.b16 %v712, %v704
        %v905 = vpack.c.b16 %v713, %v705
        %v906 = vpack.c.b16 %v714, %v706
        %v907 = vpack.c.b16 %v715, %v707
        %v908 = vpack.c.b16 %v716, %v708
        %v909 = vpack.c.b16 %v725, %v717
        %v910 = vpack.c.b16 %v726, %v718
        %v911 = vpack.c.b16 %v727, %v719
        %v912 = vpack.c.b16 %v728, %v720
        %v913 = vpack.c.b16 %v729, %v721
        %v914 = vpack.c.b16 %v730, %v722
        %v915 = vpack.c.b16 %v731, %v723
        %v916 = vpack.c.b16 %v732, %v724
        %v917 = vpack.c.b16 %v741, %v733
        %v918 = vpack.c.b16 %v742, %v734
        %v919 = vpack.c.b16 %v743, %v735
        %v920 = vpack.c.b16 %v744, %v736
        %v921 = vpack.c.b16 %v745, %v737
        %v922 = vpack.c.b16 %v746, %v738
        %v923 = vpack.c.b16 %v747, %v739
        %v924 = vpack.c.b16 %v748, %v740
        %v925 = vpack.c.b16 %v757, %v749
        %v926 = vpack.c.b16 %v758, %v750
        %v927 = vpack.c.b16 %v759, %v751
        %v928 = vpack.c.b16 %v760, %v752
        %v929 = vpack.c.b16 %v761, %v753
        %v930 = vpack.c.b16 %v762, %v754
        %v931 = vpack.c.b16 %v763, %v755
        %v932 = vpack.c.b16 %v764, %v756
        %v933 = vpack.c.b16 %v773, %v765
        %v934 = vpack.c.b16 %v774, %v766
        %v935 = vpack.c.b16 %v775, %v767
        %v936 = vpack.c.b16 %v776, %v768
        %v937 = vpack.c.b16 %v777, %v769
        %v938 = vpack.c.b16 %v778, %v770
        %v939 = vpack.c.b16 %v779, %v771
        %v940 = vpack.c.b16 %v780, %v772
        %v941 = vpack.c.b16 %v789, %v781
        %v942 = vpack.c.b16 %v790, %v782
        %v943 = vpack.c.b16 %v791, %v783
        %v944 = vpack.c.b16 %v792, %v784
        %v945 = vpack.c.b16 %v793, %v785
        %v946 = vpack.c.b16 %v794, %v786
        %v947 = vpack.c.b16 %v795, %v787
        %v948 = vpack.c.b16 %v796, %v788
        %v949 = vpack.c.b16 %v805, %v797
        %v950 = vpack.c.b16 %v806, %v798
        %v951 = vpack.c.b16 %v807, %v799
        %v952 = vpack.c.b16 %v808, %v800
        %v953 = vpack.c.b16 %v809, %v801
        %v954 = vpack.c.b16 %v810, %v802
        %v955 = vpack.c.b16 %v811, %v803
        %v956 = vpack.c.b16 %v812, %v804
        %v957 = vpack.c.b16 %v821, %v813
        %v958 = vpack.c.b16 %v822, %v814
        %v959 = vpack.c.b16 %v823, %v815
        %v960 = vpack.c.b16 %v824, %v816
        %v961 = vpack.c.b16 %v825, %v817
        %v962 = vpack.c.b16 %v826, %v818
        %v963 = vpack.c.b16 %v827, %v819
        %v964 = vpack.c.b16 %v828, %v820
        %v965 = vpack.c.b16 %v837, %v829
        %v966 = vpack.c.b16 %v838, %v830
        %v967 = vpack.c.b16 %v839, %v831
        %v968 = vpack.c.b16 %v840, %v832
        %v969 = vpack.c.b16 %v841, %v833
        %v970 = vpack.c.b16 %v842, %v834
        %v971 = vpack.c.b16 %v843, %v835
        %v972 = vpack.c.b16 %v844, %v836
        %v973 = vpack.c.b16 %v853, %v845
        %v974 = vpack.c.b16 %v854, %v846
        %v975 = vpack.c.b16 %v855, %v847
        %v976 = vpack.c.b16 %v856, %v848
        %v977 = vpack.c.b16 %v857, %v849
        %v978 = vpack.c.b16 %v858, %v850
        %v979 = vpack.c.b16 %v859, %v851
        %v980 = vpack.c.b16 %v860, %v852
        %v981 = vpack.c.b16 %v869, %v861
        %v982 = vpack.c.b16 %v870, %v862
        %v983 = vpack.c.b16 %v871, %v863
        %v984 = vpack.c.b16 %v872, %v864
        %v985 = vpack.c.b16 %v873, %v865
        %v986 = vpack.c.b16 %v874, %v866
        %v987 = vpack.c.b16 %v875, %v867
        %v988 = vpack.c.b16 %v876, %v868
        %vm1101 = vcmask 785408
        %v1103 = vsel %vm1101, %v539, 0
        %1105 = vmatprep.subr.bf16.mxu0 %v878
        %1106 = vmatpush1.bf16.msra.mxu0 %v877
        %1107 = vmatprep.subr.bf16.mxu0 %v886
        %1108 = vmatpush1.bf16.msra.mxu0 %v885
        %1109 = vmatprep.subr.bf16.mxu0 %v894
        %1110 = vmatpush1.bf16.msra.mxu0 %v893
        %1111 = vmatprep.subr.bf16.mxu0 %v902
        %1112 = vmatpush1.bf16.msra.mxu0 %v901
        %1113 = vmatprep.subr.bf16.mxu0 %v910
        %1114 = vmatpush1.bf16.msra.mxu0 %v909
        %1115 = vmatprep.subr.bf16.mxu0 %v918
        %1116 = vmatpush1.bf16.msra.mxu0 %v917
        %1117 = vmatprep.subr.bf16.mxu0 %v926
        %1118 = vmatpush1.bf16.msra.mxu0 %v925
        %1119 = vmatprep.subr.bf16.mxu0 %v934
        %1120 = vmatpush1.bf16.msra.mxu0 %v933
        %1121 = vmatprep.subr.bf16.mxu0 %v942
        %1122 = vmatpush1.bf16.msra.mxu0 %v941
        %1123 = vmatprep.subr.bf16.mxu0 %v950
        %1124 = vmatpush1.bf16.msra.mxu0 %v949
        %1125 = vmatprep.subr.bf16.mxu0 %v958
        %1126 = vmatpush1.bf16.msra.mxu0 %v957
        %1127 = vmatprep.subr.bf16.mxu0 %v966
        %1128 = vmatpush1.bf16.msra.mxu0 %v965
        %1129 = vmatprep.subr.bf16.mxu0 %v974
        %1130 = vmatpush1.bf16.msra.mxu0 %v973
        %1131 = vmatprep.subr.bf16.mxu0 %v982
        %1132 = vmatpush1.bf16.msra.mxu0 %v981
        %1133 = vmatprep.subr.bf16.mxu0 0
        %1134 = vmatpush1.bf16.msra.mxu0 0
        %1135 = vmatprep.subr.bf16.mxu0 0
        %1136 = vmatpush1.bf16.msra.mxu0 0
        %1137 = vmatprep.mubr.bf16.mxu0 %v1103
        %1138 = vmatmul.mubr.bf16.gmra.mrb[0].mxu0 %v538
        %v1139 = vpop.f32.mrb[0].mxu0
        %v1140 = vadd.f32 %v533, %v1139
        %v1141 = vpop.f32.mrb[0].mxu0
        %v1142 = vadd.f32 %v533, %v1141
        %v1143 = vpop.f32.mrb[0].mxu0
        %v1144 = vpop.f32.mrb[0].mxu0
        %1145 = vdwg.mxu0
        %1146 = vmatprep.subr.bf16.mxu0 %v880
        %1147 = vmatpush1.bf16.msra.mxu0 %v879
        %1148 = vmatprep.subr.bf16.mxu0 %v888
        %1149 = vmatpush1.bf16.msra.mxu0 %v887
        %1150 = vmatprep.subr.bf16.mxu0 %v896
        %1151 = vmatpush1.bf16.msra.mxu0 %v895
        %1152 = vmatprep.subr.bf16.mxu0 %v904
        %1153 = vmatpush1.bf16.msra.mxu0 %v903
        %1154 = vmatprep.subr.bf16.mxu0 %v912
        %1155 = vmatpush1.bf16.msra.mxu0 %v911
        %1156 = vmatprep.subr.bf16.mxu0 %v920
        %1157 = vmatpush1.bf16.msra.mxu0 %v919
        %1158 = vmatprep.subr.bf16.mxu0 %v928
        %1159 = vmatpush1.bf16.msra.mxu0 %v927
        %1160 = vmatprep.subr.bf16.mxu0 %v936
        %1161 = vmatpush1.bf16.msra.mxu0 %v935
        %1162 = vmatprep.subr.bf16.mxu0 %v944
        %1163 = vmatpush1.bf16.msra.mxu0 %v943
        %1164 = vmatprep.subr.bf16.mxu0 %v952
        %1165 = vmatpush1.bf16.msra.mxu0 %v951
        %1166 = vmatprep.subr.bf16.mxu0 %v960
        %1167 = vmatpush1.bf16.msra.mxu0 %v959
        %1168 = vmatprep.subr.bf16.mxu0 %v968
        %1169 = vmatpush1.bf16.msra.mxu0 %v967
        %1170 = vmatprep.subr.bf16.mxu0 %v976
        %1171 = vmatpush1.bf16.msra.mxu0 %v975
        %1172 = vmatprep.subr.bf16.mxu0 %v984
        %1173 = vmatpush1.bf16.msra.mxu0 %v983
        %1174 = vmatprep.subr.bf16.mxu0 0
        %1175 = vmatpush1.bf16.msra.mxu0 0
        %1176 = vmatprep.subr.bf16.mxu0 0
        %1177 = vmatpush1.bf16.msra.mxu0 0
        %1178 = vmatprep.mubr.bf16.mxu0 %v1103
        %1179 = vmatmul.mubr.bf16.gmra.mrb[0].mxu0 %v538
        %v1180 = vpop.f32.mrb[0].mxu0
        %v1181 = vadd.f32 %v533, %v1180
        %v1182 = vpop.f32.mrb[0].mxu0
        %v1183 = vadd.f32 %v533, %v1182
        %v1184 = vpop.f32.mrb[0].mxu0
        %v1185 = vpop.f32.mrb[0].mxu0
        %1186 = vdwg.mxu0
        %1187 = vmatprep.subr.bf16.mxu0 %v882
        %1188 = vmatpush1.bf16.msra.mxu0 %v881
        %1189 = vmatprep.subr.bf16.mxu0 %v890
        %1190 = vmatpush1.bf16.msra.mxu0 %v889
        %1191 = vmatprep.subr.bf16.mxu0 %v898
        %1192 = vmatpush1.bf16.msra.mxu0 %v897
        %1193 = vmatprep.subr.bf16.mxu0 %v906
        %1194 = vmatpush1.bf16.msra.mxu0 %v905
        %1195 = vmatprep.subr.bf16.mxu0 %v914
        %1196 = vmatpush1.bf16.msra.mxu0 %v913
        %1197 = vmatprep.subr.bf16.mxu0 %v922
        %1198 = vmatpush1.bf16.msra.mxu0 %v921
        %1199 = vmatprep.subr.bf16.mxu0 %v930
        %1200 = vmatpush1.bf16.msra.mxu0 %v929
        %1201 = vmatprep.subr.bf16.mxu0 %v938
        %1202 = vmatpush1.bf16.msra.mxu0 %v937
        %1203 = vmatprep.subr.bf16.mxu0 %v946
        %1204 = vmatpush1.bf16.msra.mxu0 %v945
        %1205 = vmatprep.subr.bf16.mxu0 %v954
        %1206 = vmatpush1.bf16.msra.mxu0 %v953
        %1207 = vmatprep.subr.bf16.mxu0 %v962
        %1208 = vmatpush1.bf16.msra.mxu0 %v961
        %1209 = vmatprep.subr.bf16.mxu0 %v970
        %1210 = vmatpush1.bf16.msra.mxu0 %v969
        %1211 = vmatprep.subr.bf16.mxu0 %v978
        %1212 = vmatpush1.bf16.msra.mxu0 %v977
        %1213 = vmatprep.subr.bf16.mxu0 %v986
        %1214 = vmatpush1.bf16.msra.mxu0 %v985
        %1215 = vmatprep.subr.bf16.mxu0 0
        %1216 = vmatpush1.bf16.msra.mxu0 0
        %1217 = vmatprep.subr.bf16.mxu0 0
        %1218 = vmatpush1.bf16.msra.mxu0 0
        %1219 = vmatprep.mubr.bf16.mxu0 %v1103
        %1220 = vmatmul.mubr.bf16.gmra.mrb[0].mxu0 %v538
        %v1221 = vpop.f32.mrb[0].mxu0
        %v1222 = vadd.f32 %v533, %v1221
        %v1223 = vpop.f32.mrb[0].mxu0
        %v1224 = vadd.f32 %v533, %v1223
        %v1225 = vpop.f32.mrb[0].mxu0
        %v1226 = vpop.f32.mrb[0].mxu0
        %1227 = vdwg.mxu0
        %1228 = vmatprep.subr.bf16.mxu0 %v884
        %1229 = vmatpush1.bf16.msra.mxu0 %v883
        %1230 = vmatprep.subr.bf16.mxu0 %v892
        %1231 = vmatpush1.bf16.msra.mxu0 %v891
        %1232 = vmatprep.subr.bf16.mxu0 %v900
        %1233 = vmatpush1.bf16.msra.mxu0 %v899
        %1234 = vmatprep.subr.bf16.mxu0 %v908
        %1235 = vmatpush1.bf16.msra.mxu0 %v907
        %1236 = vmatprep.subr.bf16.mxu0 %v916
        %1237 = vmatpush1.bf16.msra.mxu0 %v915
        %1238 = vmatprep.subr.bf16.mxu0 %v924
        %1239 = vmatpush1.bf16.msra.mxu0 %v923
        %1240 = vmatprep.subr.bf16.mxu0 %v932
        %1241 = vmatpush1.bf16.msra.mxu0 %v931
        %1242 = vmatprep.subr.bf16.mxu0 %v940
        %1243 = vmatpush1.bf16.msra.mxu0 %v939
        %1244 = vmatprep.subr.bf16.mxu0 %v948
        %1245 = vmatpush1.bf16.msra.mxu0 %v947
        %1246 = vmatprep.subr.bf16.mxu0 %v956
        %1247 = vmatpush1.bf16.msra.mxu0 %v955
        %1248 = vmatprep.subr.bf16.mxu0 %v964
        %1249 = vmatpush1.bf16.msra.mxu0 %v963
        %1250 = vmatprep.subr.bf16.mxu0 %v972
        %1251 = vmatpush1.bf16.msra.mxu0 %v971
        %1252 = vmatprep.subr.bf16.mxu0 %v980
        %1253 = vmatpush1.bf16.msra.mxu0 %v979
        %1254 = vmatprep.subr.bf16.mxu0 %v988
        %1255 = vmatpush1.bf16.msra.mxu0 %v987
        %1256 = vmatprep.subr.bf16.mxu0 0
        %1257 = vmatpush1.bf16.msra.mxu0 0
        %1258 = vmatprep.subr.bf16.mxu0 0
        %1259 = vmatpush1.bf16.msra.mxu0 0
        %1260 = vmatprep.mubr.bf16.mxu0 %v1103
        %1261 = vmatmul.mubr.bf16.gmra.mrb[0].mxu0 %v538
        %v1262 = vpop.f32.mrb[0].mxu0
        %v1263 = vadd.f32 %v533, %v1262
        %v1264 = vpop.f32.mrb[0].mxu0
        %v1265 = vadd.f32 %v533, %v1264
        %v1266 = vpop.f32.mrb[0].mxu0
        %v1267 = vpop.f32.mrb[0].mxu0
        %1268 = vdwg.mxu0
        %vm1269 = vcmp.gt.f32.partialorder %v1140, 0.0
        %vm1270 = vcmp.gt.f32.partialorder %v1142, 0.0
        %vm1271 = vcmp.gt.f32.partialorder %v1181, 0.0
        %vm1272 = vcmp.gt.f32.partialorder %v1183, 0.0
        %vm1273 = vcmp.gt.f32.partialorder %v1222, 0.0
        %vm1274 = vcmp.gt.f32.partialorder %v1224, 0.0
        %vm1275 = vcmp.gt.f32.partialorder %v1263, 0.0
        %vm1276 = vcmp.gt.f32.partialorder %v1265, 0.0
        %v1277 = vmul.f32 %v1140, 0.01
        %v1278 = vmul.f32 %v1142, 0.01
        %v1279 = vmul.f32 %v1181, 0.01
        %v1280 = vmul.f32 %v1183, 0.01
        %v1281 = vmul.f32 %v1222, 0.01
        %v1282 = vmul.f32 %v1224, 0.01
        %v1283 = vmul.f32 %v1263, 0.01
        %v1284 = vmul.f32 %v1265, 0.01
        %v1285 = vsel %vm1269, %v1140, %v1277
        %v1286 = vsel %vm1270, %v1142, %v1278
        %v1287 = vsel %vm1271, %v1181, %v1279
        %v1288 = vsel %vm1272, %v1183, %v1280
        %v1289 = vsel %vm1273, %v1222, %v1281
        %v1290 = vsel %vm1274, %v1224, %v1282
        %v1291 = vsel %vm1275, %v1263, %v1283
        %v1292 = vsel %vm1276, %v1265, %v1284
        %1293 = vst [vmem:[%s413] sm:$0xff] %v1285
        %1294 = vst [vmem:[%s413 + $0x8] sm:$0xff] %v1286
        %1295 = vst [vmem:[%s413 + $0x10] sm:$0xff] %v1287
        %1296 = vst [vmem:[%s413 + $0x18] sm:$0xff] %v1288
        %1297 = vst [vmem:[%s413 + $0x20] sm:$0xff] %v1289
        %1298 = vst [vmem:[%s413 + $0x28] sm:$0xff] %v1290
        %1299 = vst [vmem:[%s413 + $0x30] sm:$0xff] %v1291
        %1300 = vst [vmem:[%s413 + $0x38] sm:$0xff] %v1292
        %s1301 = smul.u32 8, %s14
        %p1302 = scmp.lt.s32.totalorder %s1301, 159
        %s1303 = scalar_select %p1302, %s1301, 159
        %s1304 = smul.addr %s1303, 8
        %s1305 = scalar_lea.vmem %s3, %s1304
        // Predicated region
        $region56: #{_lambda_.19} parent=50 // pred_check
          %p1306 = pneg %p100
        $region57: #{_lambda_.19} parent=50 // pred_check_branch
          %1308 = sbr.rel (%p1306) target = $region59
        $region58: #{_lambda_.19} parent=50 // pred_region
          %s1309 = smul.u32 8, %s14
        $region59: #{_lambda_.19} parent=50 // pred_fallthru
          _
      $region51: #{_lambda_.19} parent=5 // pred_fallthru
        _
      %p1310 = scmp.le.s32.totalorder 2, %s9
      // Predicated region
      $region60: #{_lambda_.19} parent=5 // pred_check
        %p1311 = pneg %p1310
      $region61: #{_lambda_.19} parent=5 // pred_check_branch
        %1313 = sbr.rel (%p1311) target = $region63
      $region62: #{_lambda_.19} parent=5 // pred_region
        %s1314 = ssub.s32 %s9, 2
        // Predicated region
        $region64: #{_lambda_.19} parent=62 // pred_check
          %p1315 = pneg %p106
        $region65: #{_lambda_.19} parent=62 // pred_check_branch
          %1317 = sbr.rel (%p1315) target = $region67
        $region66: #{_lambda_.19} parent=62 // pred_region
          %s1318 = smul.u32 8, %s15
          %p1319 = scmp.lt.s32.totalorder %s1318, 159
          %s1320 = scalar_select %p1319, %s1318, 159
          %s1321 = smul.addr %s1320, 8
          %s1322 = scalar_lea.vmem %s3, %s1321
        $region67: #{_lambda_.19} parent=62 // pred_fallthru
          _
      $region63: #{_lambda_.19} parent=5 // pred_fallthru
        _
    $region6: #{_lambda_.19} parent=1 // loop_footer
      %s13 = sadd.s32 1, %s9
    $region7: #{_lambda_.19} parent=1 // loop_footer_branch
      %8 = sbr.rel target = $region3
    $region8: #{_lambda_.19} parent=1 // loop_exit
      _

// kernel: _lambda_.20
$region0: #{_lambda_.20}
  #allocation0 [shape = 'u32[]', space=smem, size = 0x4, offset = 0x4, fixed_abs, tag = 'smem constant byte address 0x4 - core index']
  #allocation1 [shape = 'u32[144,128]{1,0:T(1,128)}', space=vmem, size = 0x12000, scoped, tag = 'internal scratch']
  %s0 = inlined_call_operand.vmem [shape: bf16[8,336], index: 0, kind: input, shape index: {}]
  %s1 = inlined_call_operand.vmem [shape: bf16[336,20480], index: 1, kind: input, shape index: {}]
  %s2 = inlined_call_operand.vmem [shape: f32[8,1], index: 2, kind: input, shape index: {}]
  %s3 = inlined_call_operand.vmem [shape: f32[8,20480], index: 3, kind: output, shape index: {}]
  %s4 = sld [smem:[#allocation0]]
  $region68: #{_lambda_.20} parent=0
    _
  %s6 = ssub.s32 1, %s4
  %s7 = scalar_select 0, %s6, %s4
  $region1: #{_lambda_.20} parent=0
    #allocation2 [shape = 'u8[1376256]{0}', space=vmem, size = 0x150000, scoped, tag = 'input window, operand 1']
    loop: start=0, step=1, limit=22
    $region2: #{_lambda_.20} parent=1 // loop_pre_header
      _
    $region3: #{_lambda_.20} parent=1 // loop_header
      %s9 = sphi 0, %s13
      %p10 = scmp.ge.s32.totalorder %s9, 22
      %s17 = sphi 0, %s17
      %s19 = sphi 0, %s17
      %s20 = sphi 0, %s19
      %s34 = sphi 0, %s20
      %s40 = sphi 0, %s42
      %s43 = sphi 0, %s40
      %s44 = sphi 0, %s43
      %s60 = sphi 0, %s44
      %s64 = sphi 0, %s64
      %s66 = sphi 0, %s64
      %s67 = sphi 0, %s66
      %s81 = sphi 0, %s67
      %s87 = sphi 0, %s89
      %s90 = sphi 0, %s87
      %s91 = sphi 0, %s90
      %s107 = sphi 0, %s91
    $region4: #{_lambda_.20} parent=1 // loop_header_branch
      %12 = sbr.rel (%p10) target = $region8
    $region5: #{_lambda_.20} parent=1 // loop_body
      %s14 = ssub.s32 %s9, 1
      %s15 = ssub.s32 %s9, 2
      %s16 = sadd.s32 %s9, 1
      %s18 = sadd.s32 %s17, 1
      %p21 = scmp.eq.s32.totalorder %s9, 19
      %p22 = scmp.ne.s32.totalorder %s17, %s19
      %p23 = scmp.eq.s32.totalorder %s9, 0
      %p24 = por %p22, %p23
      %p25 = scmp.ne.s32.totalorder %s17, %s19
      %p26 = scmp.eq.s32.totalorder %s14, 19
      %p27 = por %p25, %p26
      %p28 = scmp.ne.s32.totalorder %s19, %s20
      %p29 = scmp.eq.s32.totalorder %s14, 0
      %p30 = por %p28, %p29
      %p31 = scmp.ne.s32.totalorder %s19, %s20
      %p32 = scmp.eq.s32.totalorder %s15, 19
      %p33 = por %p31, %p32
      %p35 = scmp.ne.s32.totalorder %s20, %s34
      %p36 = scmp.eq.s32.totalorder %s15, 0
      %p37 = por %p35, %p36
      %s38 = ssub.s32 %s9, %s16
      %p39 = scmp.eq.s32.totalorder %s38, 0
      %s41 = sadd.s32 %s40, 1
      %s42 = scalar_select %p39, %s40, %s41
      %p45 = pneg %p39
      %p46 = scmp.eq.s32.totalorder %s9, 19
      %p47 = por %p45, %p46
      %p48 = scmp.ne.s32.totalorder %s40, %s43
      %p49 = scmp.eq.s32.totalorder %s9, 0
      %p50 = por %p48, %p49
      %p51 = scmp.ne.s32.totalorder %s40, %s43
      %p52 = scmp.eq.s32.totalorder %s14, 19
      %p53 = por %p51, %p52
      %p54 = scmp.ne.s32.totalorder %s43, %s44
      %p55 = scmp.eq.s32.totalorder %s14, 0
      %p56 = por %p54, %p55
      %p57 = scmp.ne.s32.totalorder %s43, %s44
      %p58 = scmp.eq.s32.totalorder %s15, 19
      %p59 = por %p57, %p58
      %p61 = scmp.ne.s32.totalorder %s44, %s60
      %p62 = scmp.eq.s32.totalorder %s15, 0
      %p63 = por %p61, %p62
      %s65 = sadd.s32 %s64, 1
      %p68 = scmp.eq.s32.totalorder %s9, 19
      %p69 = scmp.ne.s32.totalorder %s64, %s66
      %p70 = scmp.eq.s32.totalorder %s9, 0
      %p71 = por %p69, %p70
      %p72 = scmp.ne.s32.totalorder %s64, %s66
      %p73 = scmp.eq.s32.totalorder %s14, 19
      %p74 = por %p72, %p73
      %p75 = scmp.ne.s32.totalorder %s66, %s67
      %p76 = scmp.eq.s32.totalorder %s14, 0
      %p77 = por %p75, %p76
      %p78 = scmp.ne.s32.totalorder %s66, %s67
      %p79 = scmp.eq.s32.totalorder %s15, 19
      %p80 = por %p78, %p79
      %p82 = scmp.ne.s32.totalorder %s67, %s81
      %p83 = scmp.eq.s32.totalorder %s15, 0
      %p84 = por %p82, %p83
      %s85 = ssub.s32 %s9, %s16
      %p86 = scmp.eq.s32.totalorder %s85, 0
      %s88 = sadd.s32 %s87, 1
      %s89 = scalar_select %p86, %s87, %s88
      %p92 = pneg %p86
      %p93 = scmp.eq.s32.totalorder %s9, 19
      %p94 = por %p92, %p93
      %p95 = scmp.ne.s32.totalorder %s87, %s90
      %p96 = scmp.eq.s32.totalorder %s9, 0
      %p97 = por %p95, %p96
      %p98 = scmp.ne.s32.totalorder %s87, %s90
      %p99 = scmp.eq.s32.totalorder %s14, 19
      %p100 = por %p98, %p99
      %p101 = scmp.ne.s32.totalorder %s90, %s91
      %p102 = scmp.eq.s32.totalorder %s14, 0
      %p103 = por %p101, %p102
      %p104 = scmp.ne.s32.totalorder %s90, %s91
      %p105 = scmp.eq.s32.totalorder %s15, 19
      %p106 = por %p104, %p105
      %p108 = scmp.ne.s32.totalorder %s91, %s107
      %p109 = scmp.eq.s32.totalorder %s15, 0
      %p110 = por %p108, %p109
      %p111 = scmp.le.s32.totalorder 1, %s9
      %p112 = scmp.lt.s32.totalorder %s9, 21
      %p113 = pnand %p111, %p112
      %p114 = pneg %p113
      // Predicated region
      $region9: #{_lambda_.20} parent=5 // pred_check
        _
      $region10: #{_lambda_.20} parent=5 // pred_check_branch
        %116 = sbr.rel (%p113) target = $region12
      $region11: #{_lambda_.20} parent=5 // pred_region
        %s117 = ssub.s32 %s9, 1
        // Predicated region
        $region13: #{_lambda_.20} parent=11 // pred_check
          %p118 = pneg %p30
        $region14: #{_lambda_.20} parent=11 // pred_check_branch
          %120 = sbr.rel (%p118) target = $region16
        $region15: #{_lambda_.20} parent=11 // pred_region
          _
        $region16: #{_lambda_.20} parent=11 // pred_fallthru
          _
        // Predicated region
        $region17: #{_lambda_.20} parent=11 // pred_check
          %p121 = pneg %p77
        $region18: #{_lambda_.20} parent=11 // pred_check_branch
          %123 = sbr.rel (%p121) target = $region20
        $region19: #{_lambda_.20} parent=11 // pred_region
          _
        $region20: #{_lambda_.20} parent=11 // pred_fallthru
          _
      $region12: #{_lambda_.20} parent=5 // pred_fallthru
        _
      %p124 = scmp.lt.s32.totalorder %s9, 20
      // Predicated region
      $region21: #{_lambda_.20} parent=5 // pred_check
        %p125 = pneg %p124
      $region22: #{_lambda_.20} parent=5 // pred_check_branch
        %127 = sbr.rel (%p125) target = $region24
      $region23: #{_lambda_.20} parent=5 // pred_region
        // Predicated region
        $region25: #{_lambda_.20} parent=23 // pred_check
          %p128 = pneg %p50
        $region26: #{_lambda_.20} parent=23 // pred_check_branch
          %130 = sbr.rel (%p128) target = $region28
        $region27: #{_lambda_.20} parent=23 // pred_region
          %s131 = sand.u32 %s40, 1
          %s132 = sand.u32 %s40, 1
          %s133 = smul.addr %s132, 1344
          %s134 = scalar_lea.vmem [#allocation2], %s133
          %s135 = smul.u32 8, %s9
          %s136 = smul.addr %s135, 4
          %s137 = scalar_lea.vmem %s1, %s136
          // Predicated region
          $region29: #{_lambda_.20} parent=27 // pred_check
            _
          $region30: #{_lambda_.20} parent=27 // pred_check_branch
            %139 = sbr.rel (0) target = $region32
          $region31: #{_lambda_.20} parent=27 // pred_region
            // Predicated region
            $region33: #{_lambda_.20} parent=31 // pred_check
              _
            $region34: #{_lambda_.20} parent=31 // pred_check_branch
              %141 = sbr.rel (0) target = $region36
            $region35: #{_lambda_.20} parent=31 // pred_region
              loop: start=0, step=1, limit=1
              $region37: #{_lambda_.20} parent=35 // loop_pre_header
                _
              $region38: #{_lambda_.20} parent=35 // loop_header
                %s143 = sphi 0, %s147
                %p144 = scmp.ge.s32.totalorder %s143, 1
                %s148 = sphi %s137, %s137
                %s149 = sphi %s134, %s134
              $region39: #{_lambda_.20} parent=35 // loop_header_branch
                %146 = sbr.rel (%p144) target = $region43
              $region40: #{_lambda_.20} parent=35 // loop_body
                %v150 = vld [vmem:[%s148] sm:$0xff]
                %151 = vst [vmem:[%s149] sm:$0xff] %v150
                %v152 = vld [vmem:[%s148 + $0x8] sm:$0xff]
                %153 = vst [vmem:[%s149 + $0x8] sm:$0xff] %v152
                %v154 = vld [vmem:[%s148 + $0x10] sm:$0xff]
                %155 = vst [vmem:[%s149 + $0x10] sm:$0xff] %v154
                %v156 = vld [vmem:[%s148 + $0x18] sm:$0xff]
                %157 = vst [vmem:[%s149 + $0x18] sm:$0xff] %v156
                %v158 = vld [vmem:[%s148 + $0x280] sm:$0xff]
                %159 = vst [vmem:[%s149 + $0x20] sm:$0xff] %v158
                %v160 = vld [vmem:[%s148 + $0x288] sm:$0xff]
                %161 = vst [vmem:[%s149 + $0x28] sm:$0xff] %v160
                %v162 = vld [vmem:[%s148 + $0x290] sm:$0xff]
                %163 = vst [vmem:[%s149 + $0x30] sm:$0xff] %v162
                %v164 = vld [vmem:[%s148 + $0x298] sm:$0xff]
                %165 = vst [vmem:[%s149 + $0x38] sm:$0xff] %v164
                %v166 = vld [vmem:[%s148 + $0x500] sm:$0xff]
                %167 = vst [vmem:[%s149 + $0x40] sm:$0xff] %v166
                %v168 = vld [vmem:[%s148 + $0x508] sm:$0xff]
                %169 = vst [vmem:[%s149 + $0x48] sm:$0xff] %v168
                %v170 = vld [vmem:[%s148 + $0x510] sm:$0xff]
                %171 = vst [vmem:[%s149 + $0x50] sm:$0xff] %v170
                %v172 = vld [vmem:[%s148 + $0x518] sm:$0xff]
                %173 = vst [vmem:[%s149 + $0x58] sm:$0xff] %v172
                %v174 = vld [vmem:[%s148 + $0x780] sm:$0xff]
                %175 = vst [vmem:[%s149 + $0x60] sm:$0xff] %v174
                %v176 = vld [vmem:[%s148 + $0x788] sm:$0xff]
                %177 = vst [vmem:[%s149 + $0x68] sm:$0xff] %v176
                %v178 = vld [vmem:[%s148 + $0x790] sm:$0xff]
                %179 = vst [vmem:[%s149 + $0x70] sm:$0xff] %v178
                %v180 = vld [vmem:[%s148 + $0x798] sm:$0xff]
                %181 = vst [vmem:[%s149 + $0x78] sm:$0xff] %v180
                %v182 = vld [vmem:[%s148 + $0xa00] sm:$0xff]
                %183 = vst [vmem:[%s149 + $0x80] sm:$0xff] %v182
                %v184 = vld [vmem:[%s148 + $0xa08] sm:$0xff]
                %185 = vst [vmem:[%s149 + $0x88] sm:$0xff] %v184
                %v186 = vld [vmem:[%s148 + $0xa10] sm:$0xff]
                %187 = vst [vmem:[%s149 + $0x90] sm:$0xff] %v186
                %v188 = vld [vmem:[%s148 + $0xa18] sm:$0xff]
                %189 = vst [vmem:[%s149 + $0x98] sm:$0xff] %v188
                %v190 = vld [vmem:[%s148 + $0xc80] sm:$0xff]
                %191 = vst [vmem:[%s149 + $0xa0] sm:$0xff] %v190
                %v192 = vld [vmem:[%s148 + $0xc88] sm:$0xff]
                %193 = vst [vmem:[%s149 + $0xa8] sm:$0xff] %v192
                %v194 = vld [vmem:[%s148 + $0xc90] sm:$0xff]
                %195 = vst [vmem:[%s149 + $0xb0] sm:$0xff] %v194
                %v196 = vld [vmem:[%s148 + $0xc98] sm:$0xff]
                %197 = vst [vmem:[%s149 + $0xb8] sm:$0xff] %v196
                %v198 = vld [vmem:[%s148 + $0xf00] sm:$0xff]
                %199 = vst [vmem:[%s149 + $0xc0] sm:$0xff] %v198
                %v200 = vld [vmem:[%s148 + $0xf08] sm:$0xff]
                %201 = vst [vmem:[%s149 + $0xc8] sm:$0xff] %v200
                %v202 = vld [vmem:[%s148 + $0xf10] sm:$0xff]
                %203 = vst [vmem:[%s149 + $0xd0] sm:$0xff] %v202
                %v204 = vld [vmem:[%s148 + $0xf18] sm:$0xff]
                %205 = vst [vmem:[%s149 + $0xd8] sm:$0xff] %v204
                %v206 = vld [vmem:[%s148 + $0x1180] sm:$0xff]
                %207 = vst [vmem:[%s149 + $0xe0] sm:$0xff] %v206
                %v208 = vld [vmem:[%s148 + $0x1188] sm:$0xff]
                %209 = vst [vmem:[%s149 + $0xe8] sm:$0xff] %v208
                %v210 = vld [vmem:[%s148 + $0x1190] sm:$0xff]
                %211 = vst [vmem:[%s149 + $0xf0] sm:$0xff] %v210
                %v212 = vld [vmem:[%s148 + $0x1198] sm:$0xff]
                %213 = vst [vmem:[%s149 + $0xf8] sm:$0xff] %v212
                %v214 = vld [vmem:[%s148 + $0x1400] sm:$0xff]
                %215 = vst [vmem:[%s149 + $0x100] sm:$0xff] %v214
                %v216 = vld [vmem:[%s148 + $0x1408] sm:$0xff]
                %217 = vst [vmem:[%s149 + $0x108] sm:$0xff] %v216
                %v218 = vld [vmem:[%s148 + $0x1410] sm:$0xff]
                %219 = vst [vmem:[%s149 + $0x110] sm:$0xff] %v218
                %v220 = vld [vmem:[%s148 + $0x1418] sm:$0xff]
                %221 = vst [vmem:[%s149 + $0x118] sm:$0xff] %v220
                %v222 = vld [vmem:[%s148 + $0x1680] sm:$0xff]
                %223 = vst [vmem:[%s149 + $0x120] sm:$0xff] %v222
                %v224 = vld [vmem:[%s148 + $0x1688] sm:$0xff]
                %225 = vst [vmem:[%s149 + $0x128] sm:$0xff] %v224
                %v226 = vld [vmem:[%s148 + $0x1690] sm:$0xff]
                %227 = vst [vmem:[%s149 + $0x130] sm:$0xff] %v226
                %v228 = vld [vmem:[%s148 + $0x1698] sm:$0xff]
                %229 = vst [vmem:[%s149 + $0x138] sm:$0xff] %v228
                %v230 = vld [vmem:[%s148 + $0x1900] sm:$0xff]
                %231 = vst [vmem:[%s149 + $0x140] sm:$0xff] %v230
                %v232 = vld [vmem:[%s148 + $0x1908] sm:$0xff]
                %233 = vst [vmem:[%s149 + $0x148] sm:$0xff] %v232
                %v234 = vld [vmem:[%s148 + $0x1910] sm:$0xff]
                %235 = vst [vmem:[%s149 + $0x150] sm:$0xff] %v234
                %v236 = vld [vmem:[%s148 + $0x1918] sm:$0xff]
                %237 = vst [vmem:[%s149 + $0x158] sm:$0xff] %v236
                %v238 = vld [vmem:[%s148 + $0x1b80] sm:$0xff]
                %239 = vst [vmem:[%s149 + $0x160] sm:$0xff] %v238
                %v240 = vld [vmem:[%s148 + $0x1b88] sm:$0xff]
                %241 = vst [vmem:[%s149 + $0x168] sm:$0xff] %v240
                %v242 = vld [vmem:[%s148 + $0x1b90] sm:$0xff]
                %243 = vst [vmem:[%s149 + $0x170] sm:$0xff] %v242
                %v244 = vld [vmem:[%s148 + $0x1b98] sm:$0xff]
                %245 = vst [vmem:[%s149 + $0x178] sm:$0xff] %v244
                %v246 = vld [vmem:[%s148 + $0x1e00] sm:$0xff]
                %247 = vst [vmem:[%s149 + $0x180] sm:$0xff] %v246
                %v248 = vld [vmem:[%s148 + $0x1e08] sm:$0xff]
                %249 = vst [vmem:[%s149 + $0x188] sm:$0xff] %v248
                %v250 = vld [vmem:[%s148 + $0x1e10] sm:$0xff]
                %251 = vst [vmem:[%s149 + $0x190] sm:$0xff] %v250
                %v252 = vld [vmem:[%s148 + $0x1e18] sm:$0xff]
                %253 = vst [vmem:[%s149 + $0x198] sm:$0xff] %v252
                %v254 = vld [vmem:[%s148 + $0x2080] sm:$0xff]
                %255 = vst [vmem:[%s149 + $0x1a0] sm:$0xff] %v254
                %v256 = vld [vmem:[%s148 + $0x2088] sm:$0xff]
                %257 = vst [vmem:[%s149 + $0x1a8] sm:$0xff] %v256
                %v258 = vld [vmem:[%s148 + $0x2090] sm:$0xff]
                %259 = vst [vmem:[%s149 + $0x1b0] sm:$0xff] %v258
                %v260 = vld [vmem:[%s148 + $0x2098] sm:$0xff]
                %261 = vst [vmem:[%s149 + $0x1b8] sm:$0xff] %v260
                %v262 = vld [vmem:[%s148 + $0x2300] sm:$0xff]
                %263 = vst [vmem:[%s149 + $0x1c0] sm:$0xff] %v262
                %v264 = vld [vmem:[%s148 + $0x2308] sm:$0xff]
                %265 = vst [vmem:[%s149 + $0x1c8] sm:$0xff] %v264
                %v266 = vld [vmem:[%s148 + $0x2310] sm:$0xff]
                %267 = vst [vmem:[%s149 + $0x1d0] sm:$0xff] %v266
                %v268 = vld [vmem:[%s148 + $0x2318] sm:$0xff]
                %269 = vst [vmem:[%s149 + $0x1d8] sm:$0xff] %v268
                %v270 = vld [vmem:[%s148 + $0x2580] sm:$0xff]
                %271 = vst [vmem:[%s149 + $0x1e0] sm:$0xff] %v270
                %v272 = vld [vmem:[%s148 + $0x2588] sm:$0xff]
                %273 = vst [vmem:[%s149 + $0x1e8] sm:$0xff] %v272
                %v274 = vld [vmem:[%s148 + $0x2590] sm:$0xff]
                %275 = vst [vmem:[%s149 + $0x1f0] sm:$0xff] %v274
                %v276 = vld [vmem:[%s148 + $0x2598] sm:$0xff]
                %277 = vst [vmem:[%s149 + $0x1f8] sm:$0xff] %v276
                %v278 = vld [vmem:[%s148 + $0x2800] sm:$0xff]
                %279 = vst [vmem:[%s149 + $0x200] sm:$0xff] %v278
                %v280 = vld [vmem:[%s148 + $0x2808] sm:$0xff]
                %281 = vst [vmem:[%s149 + $0x208] sm:$0xff] %v280
                %v282 = vld [vmem:[%s148 + $0x2810] sm:$0xff]
                %283 = vst [vmem:[%s149 + $0x210] sm:$0xff] %v282
                %v284 = vld [vmem:[%s148 + $0x2818] sm:$0xff]
                %285 = vst [vmem:[%s149 + $0x218] sm:$0xff] %v284
                %v286 = vld [vmem:[%s148 + $0x2a80] sm:$0xff]
                %287 = vst [vmem:[%s149 + $0x220] sm:$0xff] %v286
                %v288 = vld [vmem:[%s148 + $0x2a88] sm:$0xff]
                %289 = vst [vmem:[%s149 + $0x228] sm:$0xff] %v288
                %v290 = vld [vmem:[%s148 + $0x2a90] sm:$0xff]
                %291 = vst [vmem:[%s149 + $0x230] sm:$0xff] %v290
                %v292 = vld [vmem:[%s148 + $0x2a98] sm:$0xff]
                %293 = vst [vmem:[%s149 + $0x238] sm:$0xff] %v292
                %v294 = vld [vmem:[%s148 + $0x2d00] sm:$0xff]
                %295 = vst [vmem:[%s149 + $0x240] sm:$0xff] %v294
                %v296 = vld [vmem:[%s148 + $0x2d08] sm:$0xff]
                %297 = vst [vmem:[%s149 + $0x248] sm:$0xff] %v296
                %v298 = vld [vmem:[%s148 + $0x2d10] sm:$0xff]
                %299 = vst [vmem:[%s149 + $0x250] sm:$0xff] %v298
                %v300 = vld [vmem:[%s148 + $0x2d18] sm:$0xff]
                %301 = vst [vmem:[%s149 + $0x258] sm:$0xff] %v300
                %v302 = vld [vmem:[%s148 + $0x2f80] sm:$0xff]
                %303 = vst [vmem:[%s149 + $0x260] sm:$0xff] %v302
                %v304 = vld [vmem:[%s148 + $0x2f88] sm:$0xff]
                %305 = vst [vmem:[%s149 + $0x268] sm:$0xff] %v304
                %v306 = vld [vmem:[%s148 + $0x2f90] sm:$0xff]
                %307 = vst [vmem:[%s149 + $0x270] sm:$0xff] %v306
                %v308 = vld [vmem:[%s148 + $0x2f98] sm:$0xff]
                %309 = vst [vmem:[%s149 + $0x278] sm:$0xff] %v308
                %v310 = vld [vmem:[%s148 + $0x3200] sm:$0xff]
                %311 = vst [vmem:[%s149 + $0x280] sm:$0xff] %v310
                %v312 = vld [vmem:[%s148 + $0x3208] sm:$0xff]
                %313 = vst [vmem:[%s149 + $0x288] sm:$0xff] %v312
                %v314 = vld [vmem:[%s148 + $0x3210] sm:$0xff]
                %315 = vst [vmem:[%s149 + $0x290] sm:$0xff] %v314
                %v316 = vld [vmem:[%s148 + $0x3218] sm:$0xff]
                %317 = vst [vmem:[%s149 + $0x298] sm:$0xff] %v316
                %v318 = vld [vmem:[%s148 + $0x3480] sm:$0xff]
                %319 = vst [vmem:[%s149 + $0x2a0] sm:$0xff] %v318
                %v320 = vld [vmem:[%s148 + $0x3488] sm:$0xff]
                %321 = vst [vmem:[%s149 + $0x2a8] sm:$0xff] %v320
                %v322 = vld [vmem:[%s148 + $0x3490] sm:$0xff]
                %323 = vst [vmem:[%s149 + $0x2b0] sm:$0xff] %v322
                %v324 = vld [vmem:[%s148 + $0x3498] sm:$0xff]
                %325 = vst [vmem:[%s149 + $0x2b8] sm:$0xff] %v324
                %v326 = vld [vmem:[%s148 + $0x3700] sm:$0xff]
                %327 = vst [vmem:[%s149 + $0x2c0] sm:$0xff] %v326
                %v328 = vld [vmem:[%s148 + $0x3708] sm:$0xff]
                %329 = vst [vmem:[%s149 + $0x2c8] sm:$0xff] %v328
                %v330 = vld [vmem:[%s148 + $0x3710] sm:$0xff]
                %331 = vst [vmem:[%s149 + $0x2d0] sm:$0xff] %v330
                %v332 = vld [vmem:[%s148 + $0x3718] sm:$0xff]
                %333 = vst [vmem:[%s149 + $0x2d8] sm:$0xff] %v332
                %v334 = vld [vmem:[%s148 + $0x3980] sm:$0xff]
                %335 = vst [vmem:[%s149 + $0x2e0] sm:$0xff] %v334
                %v336 = vld [vmem:[%s148 + $0x3988] sm:$0xff]
                %337 = vst [vmem:[%s149 + $0x2e8] sm:$0xff] %v336
                %v338 = vld [vmem:[%s148 + $0x3990] sm:$0xff]
                %339 = vst [vmem:[%s149 + $0x2f0] sm:$0xff] %v338
                %v340 = vld [vmem:[%s148 + $0x3998] sm:$0xff]
                %341 = vst [vmem:[%s149 + $0x2f8] sm:$0xff] %v340
                %v342 = vld [vmem:[%s148 + $0x3c00] sm:$0xff]
                %343 = vst [vmem:[%s149 + $0x300] sm:$0xff] %v342
                %v344 = vld [vmem:[%s148 + $0x3c08] sm:$0xff]
                %345 = vst [vmem:[%s149 + $0x308] sm:$0xff] %v344
                %v346 = vld [vmem:[%s148 + $0x3c10] sm:$0xff]
                %347 = vst [vmem:[%s149 + $0x310] sm:$0xff] %v346
                %v348 = vld [vmem:[%s148 + $0x3c18] sm:$0xff]
                %349 = vst [vmem:[%s149 + $0x318] sm:$0xff] %v348
                %v350 = vld [vmem:[%s148 + $0x3e80] sm:$0xff]
                %351 = vst [vmem:[%s149 + $0x320] sm:$0xff] %v350
                %v352 = vld [vmem:[%s148 + $0x3e88] sm:$0xff]
                %353 = vst [vmem:[%s149 + $0x328] sm:$0xff] %v352
                %v354 = vld [vmem:[%s148 + $0x3e90] sm:$0xff]
                %355 = vst [vmem:[%s149 + $0x330] sm:$0xff] %v354
                %v356 = vld [vmem:[%s148 + $0x3e98] sm:$0xff]
                %357 = vst [vmem:[%s149 + $0x338] sm:$0xff] %v356
                %v358 = vld [vmem:[%s148 + $0x4100] sm:$0xff]
                %359 = vst [vmem:[%s149 + $0x340] sm:$0xff] %v358
                %v360 = vld [vmem:[%s148 + $0x4108] sm:$0xff]
                %361 = vst [vmem:[%s149 + $0x348] sm:$0xff] %v360
                %v362 = vld [vmem:[%s148 + $0x4110] sm:$0xff]
                %363 = vst [vmem:[%s149 + $0x350] sm:$0xff] %v362
                %v364 = vld [vmem:[%s148 + $0x4118] sm:$0xff]
                %365 = vst [vmem:[%s149 + $0x358] sm:$0xff] %v364
                %v366 = vld [vmem:[%s148 + $0x4380] sm:$0xff]
                %367 = vst [vmem:[%s149 + $0x360] sm:$0xff] %v366
                %v368 = vld [vmem:[%s148 + $0x4388] sm:$0xff]
                %369 = vst [vmem:[%s149 + $0x368] sm:$0xff] %v368
                %v370 = vld [vmem:[%s148 + $0x4390] sm:$0xff]
                %371 = vst [vmem:[%s149 + $0x370] sm:$0xff] %v370
                %v372 = vld [vmem:[%s148 + $0x4398] sm:$0xff]
                %373 = vst [vmem:[%s149 + $0x378] sm:$0xff] %v372
                %v374 = vld [vmem:[%s148 + $0x4600] sm:$0xff]
                %375 = vst [vmem:[%s149 + $0x380] sm:$0xff] %v374
                %v376 = vld [vmem:[%s148 + $0x4608] sm:$0xff]
                %377 = vst [vmem:[%s149 + $0x388] sm:$0xff] %v376
                %v378 = vld [vmem:[%s148 + $0x4610] sm:$0xff]
                %379 = vst [vmem:[%s149 + $0x390] sm:$0xff] %v378
                %v380 = vld [vmem:[%s148 + $0x4618] sm:$0xff]
                %381 = vst [vmem:[%s149 + $0x398] sm:$0xff] %v380
                %v382 = vld [vmem:[%s148 + $0x4880] sm:$0xff]
                %383 = vst [vmem:[%s149 + $0x3a0] sm:$0xff] %v382
                %v384 = vld [vmem:[%s148 + $0x4888] sm:$0xff]
                %385 = vst [vmem:[%s149 + $0x3a8] sm:$0xff] %v384
                %v386 = vld [vmem:[%s148 + $0x4890] sm:$0xff]
                %387 = vst [vmem:[%s149 + $0x3b0] sm:$0xff] %v386
                %v388 = vld [vmem:[%s148 + $0x4898] sm:$0xff]
                %389 = vst [vmem:[%s149 + $0x3b8] sm:$0xff] %v388
                %v390 = vld [vmem:[%s148 + $0x4b00] sm:$0xff]
                %391 = vst [vmem:[%s149 + $0x3c0] sm:$0xff] %v390
                %v392 = vld [vmem:[%s148 + $0x4b08] sm:$0xff]
                %393 = vst [vmem:[%s149 + $0x3c8] sm:$0xff] %v392
                %v394 = vld [vmem:[%s148 + $0x4b10] sm:$0xff]
                %395 = vst [vmem:[%s149 + $0x3d0] sm:$0xff] %v394
                %v396 = vld [vmem:[%s148 + $0x4b18] sm:$0xff]
                %397 = vst [vmem:[%s149 + $0x3d8] sm:$0xff] %v396
                %v398 = vld [vmem:[%s148 + $0x4d80] sm:$0xff]
                %399 = vst [vmem:[%s149 + $0x3e0] sm:$0xff] %v398
                %v400 = vld [vmem:[%s148 + $0x4d88] sm:$0xff]
                %401 = vst [vmem:[%s149 + $0x3e8] sm:$0xff] %v400
                %v402 = vld [vmem:[%s148 + $0x4d90] sm:$0xff]
                %403 = vst [vmem:[%s149 + $0x3f0] sm:$0xff] %v402
                %v404 = vld [vmem:[%s148 + $0x4d98] sm:$0xff]
                %405 = vst [vmem:[%s149 + $0x3f8] sm:$0xff] %v404
                %v406 = vld [vmem:[%s148 + $0x5000] sm:$0xff]
                %407 = vst [vmem:[%s149 + $0x400] sm:$0xff] %v406
                %v408 = vld [vmem:[%s148 + $0x5008] sm:$0xff]
                %409 = vst [vmem:[%s149 + $0x408] sm:$0xff] %v408
                %v410 = vld [vmem:[%s148 + $0x5010] sm:$0xff]
                %411 = vst [vmem:[%s149 + $0x410] sm:$0xff] %v410
                %v412 = vld [vmem:[%s148 + $0x5018] sm:$0xff]
                %413 = vst [vmem:[%s149 + $0x418] sm:$0xff] %v412
                %v414 = vld [vmem:[%s148 + $0x5280] sm:$0xff]
                %415 = vst [vmem:[%s149 + $0x420] sm:$0xff] %v414
                %v416 = vld [vmem:[%s148 + $0x5288] sm:$0xff]
                %417 = vst [vmem:[%s149 + $0x428] sm:$0xff] %v416
                %v418 = vld [vmem:[%s148 + $0x5290] sm:$0xff]
                %419 = vst [vmem:[%s149 + $0x430] sm:$0xff] %v418
                %v420 = vld [vmem:[%s148 + $0x5298] sm:$0xff]
                %421 = vst [vmem:[%s149 + $0x438] sm:$0xff] %v420
                %v422 = vld [vmem:[%s148 + $0x5500] sm:$0xff]
                %423 = vst [vmem:[%s149 + $0x440] sm:$0xff] %v422
                %v424 = vld [vmem:[%s148 + $0x5508] sm:$0xff]
                %425 = vst [vmem:[%s149 + $0x448] sm:$0xff] %v424
                %v426 = vld [vmem:[%s148 + $0x5510] sm:$0xff]
                %427 = vst [vmem:[%s149 + $0x450] sm:$0xff] %v426
                %v428 = vld [vmem:[%s148 + $0x5518] sm:$0xff]
                %429 = vst [vmem:[%s149 + $0x458] sm:$0xff] %v428
                %v430 = vld [vmem:[%s148 + $0x5780] sm:$0xff]
                %431 = vst [vmem:[%s149 + $0x460] sm:$0xff] %v430
                %v432 = vld [vmem:[%s148 + $0x5788] sm:$0xff]
                %433 = vst [vmem:[%s149 + $0x468] sm:$0xff] %v432
                %v434 = vld [vmem:[%s148 + $0x5790] sm:$0xff]
                %435 = vst [vmem:[%s149 + $0x470] sm:$0xff] %v434
                %v436 = vld [vmem:[%s148 + $0x5798] sm:$0xff]
                %437 = vst [vmem:[%s149 + $0x478] sm:$0xff] %v436
                %v438 = vld [vmem:[%s148 + $0x5a00] sm:$0xff]
                %439 = vst [vmem:[%s149 + $0x480] sm:$0xff] %v438
                %v440 = vld [vmem:[%s148 + $0x5a08] sm:$0xff]
                %441 = vst [vmem:[%s149 + $0x488] sm:$0xff] %v440
                %v442 = vld [vmem:[%s148 + $0x5a10] sm:$0xff]
                %443 = vst [vmem:[%s149 + $0x490] sm:$0xff] %v442
                %v444 = vld [vmem:[%s148 + $0x5a18] sm:$0xff]
                %445 = vst [vmem:[%s149 + $0x498] sm:$0xff] %v444
                %v446 = vld [vmem:[%s148 + $0x5c80] sm:$0xff]
                %447 = vst [vmem:[%s149 + $0x4a0] sm:$0xff] %v446
                %v448 = vld [vmem:[%s148 + $0x5c88] sm:$0xff]
                %449 = vst [vmem:[%s149 + $0x4a8] sm:$0xff] %v448
                %v450 = vld [vmem:[%s148 + $0x5c90] sm:$0xff]
                %451 = vst [vmem:[%s149 + $0x4b0] sm:$0xff] %v450
                %v452 = vld [vmem:[%s148 + $0x5c98] sm:$0xff]
                %453 = vst [vmem:[%s149 + $0x4b8] sm:$0xff] %v452
                %v454 = vld [vmem:[%s148 + $0x5f00] sm:$0xff]
                %455 = vst [vmem:[%s149 + $0x4c0] sm:$0xff] %v454
                %v456 = vld [vmem:[%s148 + $0x5f08] sm:$0xff]
                %457 = vst [vmem:[%s149 + $0x4c8] sm:$0xff] %v456
                %v458 = vld [vmem:[%s148 + $0x5f10] sm:$0xff]
                %459 = vst [vmem:[%s149 + $0x4d0] sm:$0xff] %v458
                %v460 = vld [vmem:[%s148 + $0x5f18] sm:$0xff]
                %461 = vst [vmem:[%s149 + $0x4d8] sm:$0xff] %v460
                %v462 = vld [vmem:[%s148 + $0x6180] sm:$0xff]
                %463 = vst [vmem:[%s149 + $0x4e0] sm:$0xff] %v462
                %v464 = vld [vmem:[%s148 + $0x6188] sm:$0xff]
                %465 = vst [vmem:[%s149 + $0x4e8] sm:$0xff] %v464
                %v466 = vld [vmem:[%s148 + $0x6190] sm:$0xff]
                %467 = vst [vmem:[%s149 + $0x4f0] sm:$0xff] %v466
                %v468 = vld [vmem:[%s148 + $0x6198] sm:$0xff]
                %469 = vst [vmem:[%s149 + $0x4f8] sm:$0xff] %v468
                %v470 = vld [vmem:[%s148 + $0x6400] sm:$0xff]
                %471 = vst [vmem:[%s149 + $0x500] sm:$0xff] %v470
                %v472 = vld [vmem:[%s148 + $0x6408] sm:$0xff]
                %473 = vst [vmem:[%s149 + $0x508] sm:$0xff] %v472
                %v474 = vld [vmem:[%s148 + $0x6410] sm:$0xff]
                %475 = vst [vmem:[%s149 + $0x510] sm:$0xff] %v474
                %v476 = vld [vmem:[%s148 + $0x6418] sm:$0xff]
                %477 = vst [vmem:[%s149 + $0x518] sm:$0xff] %v476
                %v478 = vld [vmem:[%s148 + $0x6680] sm:$0xff]
                %479 = vst [vmem:[%s149 + $0x520] sm:$0xff] %v478
                %v480 = vld [vmem:[%s148 + $0x6688] sm:$0xff]
                %481 = vst [vmem:[%s149 + $0x528] sm:$0xff] %v480
                %v482 = vld [vmem:[%s148 + $0x6690] sm:$0xff]
                %483 = vst [vmem:[%s149 + $0x530] sm:$0xff] %v482
                %v484 = vld [vmem:[%s148 + $0x6698] sm:$0xff]
                %485 = vst [vmem:[%s149 + $0x538] sm:$0xff] %v484
              $region41: #{_lambda_.20} parent=35 // loop_footer
                %s147 = sadd.s32 1, %s143
              $region42: #{_lambda_.20} parent=35 // loop_footer_branch
                %142 = sbr.rel target = $region38
              $region43: #{_lambda_.20} parent=35 // loop_exit
                _
            $region36: #{_lambda_.20} parent=31 // pred_fallthru
              _
            // Predicated region
            $region44: #{_lambda_.20} parent=31 // pred_check
              _
            $region45: #{_lambda_.20} parent=31 // pred_check_branch
              %487 = sbr.rel target = $region47
            $region46: #{_lambda_.20} parent=31 // pred_region
              _
            $region47: #{_lambda_.20} parent=31 // pred_fallthru
              _
          $region32: #{_lambda_.20} parent=27 // pred_fallthru
            _
          %488 = vnop
        $region28: #{_lambda_.20} parent=23 // pred_fallthru
          _
      $region24: #{_lambda_.20} parent=5 // pred_fallthru
        _
      %p489 = scmp.le.s32.totalorder 1, %s9
      %p490 = scmp.lt.s32.totalorder %s9, 21
      %p491 = pnand %p489, %p490
      %p492 = pneg %p491
      // Predicated region
      $region48: #{_lambda_.20} parent=5 // pred_check
        _
      $region49: #{_lambda_.20} parent=5 // pred_check_branch
        %494 = sbr.rel (%p491) target = $region51
      $region50: #{_lambda_.20} parent=5 // pred_region
        %s495 = ssub.s32 %s9, 1
        %s496 = sand.u32 %s43, 1
        %s497 = sand.u32 %s43, 1
        %s498 = smul.addr %s497, 1344
        %s499 = scalar_lea.vmem [#allocation2], %s498
        // Predicated region
        $region52: #{_lambda_.20} parent=50 // pred_check
          %p500 = pneg %p56
        $region53: #{_lambda_.20} parent=50 // pred_check_branch
          %502 = sbr.rel (%p500) target = $region55
        $region54: #{_lambda_.20} parent=50 // pred_region
          _
        $region55: #{_lambda_.20} parent=50 // pred_fallthru
          _
        %p503 = pneg %p30
        %p504 = pneg %p27
        %s505 = sand.u32 %s43, 1
        %s506 = sand.u32 %s43, 1
        %s507 = smul.addr %s506, 1344
        %s508 = scalar_lea.vmem [#allocation2], %s507
        %p509 = pneg %p56
        %p510 = pneg %p53
        %p511 = pneg %p77
        %p512 = pneg %p74
        %p513 = pneg %p103
        %p514 = pneg %p100
        %s515 = smul.u32 8, %s14
        %p516 = scmp.lt.s32.totalorder %s515, 159
        %s517 = scalar_select %p516, %s515, 159
        %s518 = smul.addr %s517, 8
        %s519 = scalar_lea.vmem %s3, %s518
        %s520 = smul.u32 8, %s14
        %s521 = smul.u32 8, %s14
        %p522 = scmp.lt.s32.totalorder %s521, 159
        %s523 = scalar_select %p522, %s521, 159
        %s524 = smul.addr %s523, 8
        %s525 = scalar_lea.vmem %s3, %s524
        %s526 = smul.u32 8, %s14
        %v528 = vld [vmem:[%s0] sm:$0xff]
        %v529 = vld [vmem:[%s0 + $0x8] sm:$0xf]
        %v530 = vld [vmem:[%s499] sm:$0xff]
        %v531 = vld [vmem:[%s499 + $0x8] sm:$0xff]
        %v532 = vld [vmem:[%s499 + $0x10] sm:$0xff]
        %v533 = vld [vmem:[%s499 + $0x18] sm:$0xff]
        %v534 = vld [vmem:[%s499 + $0x20] sm:$0xff]
        %v535 = vld [vmem:[%s499 + $0x28] sm:$0xff]
        %v536 = vld [vmem:[%s499 + $0x30] sm:$0xff]
        %v537 = vld [vmem:[%s499 + $0x38] sm:$0xff]
        %v538 = vld [vmem:[%s499 + $0x40] sm:$0xff]
        %v539 = vld [vmem:[%s499 + $0x48] sm:$0xff]
        %v540 = vld [vmem:[%s499 + $0x50] sm:$0xff]
        %v541 = vld [vmem:[%s499 + $0x58] sm:$0xff]
        %v542 = vld [vmem:[%s499 + $0x60] sm:$0xff]
        %v543 = vld [vmem:[%s499 + $0x68] sm:$0xff]
        %v544 = vld [vmem:[%s499 + $0x70] sm:$0xff]
        %v545 = vld [vmem:[%s499 + $0x78] sm:$0xff]
        %v546 = vld [vmem:[%s499 + $0x80] sm:$0xff]
        %v547 = vld [vmem:[%s499 + $0x88] sm:$0xff]
        %v548 = vld [vmem:[%s499 + $0x90] sm:$0xff]
        %v549 = vld [vmem:[%s499 + $0x98] sm:$0xff]
        %v550 = vld [vmem:[%s499 + $0xa0] sm:$0xff]
        %v551 = vld [vmem:[%s499 + $0xa8] sm:$0xff]
        %v552 = vld [vmem:[%s499 + $0xb0] sm:$0xff]
        %v553 = vld [vmem:[%s499 + $0xb8] sm:$0xff]
        %v554 = vld [vmem:[%s499 + $0xc0] sm:$0xff]
        %v555 = vld [vmem:[%s499 + $0xc8] sm:$0xff]
        %v556 = vld [vmem:[%s499 + $0xd0] sm:$0xff]
        %v557 = vld [vmem:[%s499 + $0xd8] sm:$0xff]
        %v558 = vld [vmem:[%s499 + $0xe0] sm:$0xff]
        %v559 = vld [vmem:[%s499 + $0xe8] sm:$0xff]
        %v560 = vld [vmem:[%s499 + $0xf0] sm:$0xff]
        %v561 = vld [vmem:[%s499 + $0xf8] sm:$0xff]
        %v562 = vld [vmem:[%s499 + $0x100] sm:$0xff]
        %v563 = vld [vmem:[%s499 + $0x108] sm:$0xff]
        %v564 = vld [vmem:[%s499 + $0x110] sm:$0xff]
        %v565 = vld [vmem:[%s499 + $0x118] sm:$0xff]
        %v566 = vld [vmem:[%s499 + $0x120] sm:$0xff]
        %v567 = vld [vmem:[%s499 + $0x128] sm:$0xff]
        %v568 = vld [vmem:[%s499 + $0x130] sm:$0xff]
        %v569 = vld [vmem:[%s499 + $0x138] sm:$0xff]
        %v570 = vld [vmem:[%s499 + $0x140] sm:$0xff]
        %v571 = vld [vmem:[%s499 + $0x148] sm:$0xff]
        %v572 = vld [vmem:[%s499 + $0x150] sm:$0xff]
        %v573 = vld [vmem:[%s499 + $0x158] sm:$0xff]
        %v574 = vld [vmem:[%s499 + $0x160] sm:$0xff]
        %v575 = vld [vmem:[%s499 + $0x168] sm:$0xff]
        %v576 = vld [vmem:[%s499 + $0x170] sm:$0xff]
        %v577 = vld [vmem:[%s499 + $0x178] sm:$0xff]
        %v578 = vld [vmem:[%s499 + $0x180] sm:$0xff]
        %v579 = vld [vmem:[%s499 + $0x188] sm:$0xff]
        %v580 = vld [vmem:[%s499 + $0x190] sm:$0xff]
        %v581 = vld [vmem:[%s499 + $0x198] sm:$0xff]
        %v582 = vld [vmem:[%s499 + $0x1a0] sm:$0xff]
        %v583 = vld [vmem:[%s499 + $0x1a8] sm:$0xff]
        %v584 = vld [vmem:[%s499 + $0x1b0] sm:$0xff]
        %v585 = vld [vmem:[%s499 + $0x1b8] sm:$0xff]
        %v586 = vld [vmem:[%s499 + $0x1c0] sm:$0xff]
        %v587 = vld [vmem:[%s499 + $0x1c8] sm:$0xff]
        %v588 = vld [vmem:[%s499 + $0x1d0] sm:$0xff]
        %v589 = vld [vmem:[%s499 + $0x1d8] sm:$0xff]
        %v590 = vld [vmem:[%s499 + $0x1e0] sm:$0xff]
        %v591 = vld [vmem:[%s499 + $0x1e8] sm:$0xff]
        %v592 = vld [vmem:[%s499 + $0x1f0] sm:$0xff]
        %v593 = vld [vmem:[%s499 + $0x1f8] sm:$0xff]
        %v594 = vld [vmem:[%s499 + $0x200] sm:$0xff]
        %v595 = vld [vmem:[%s499 + $0x208] sm:$0xff]
        %v596 = vld [vmem:[%s499 + $0x210] sm:$0xff]
        %v597 = vld [vmem:[%s499 + $0x218] sm:$0xff]
        %v598 = vld [vmem:[%s499 + $0x220] sm:$0xff]
        %v599 = vld [vmem:[%s499 + $0x228] sm:$0xff]
        %v600 = vld [vmem:[%s499 + $0x230] sm:$0xff]
        %v601 = vld [vmem:[%s499 + $0x238] sm:$0xff]
        %v602 = vld [vmem:[%s499 + $0x240] sm:$0xff]
        %v603 = vld [vmem:[%s499 + $0x248] sm:$0xff]
        %v604 = vld [vmem:[%s499 + $0x250] sm:$0xff]
        %v605 = vld [vmem:[%s499 + $0x258] sm:$0xff]
        %v606 = vld [vmem:[%s499 + $0x260] sm:$0xff]
        %v607 = vld [vmem:[%s499 + $0x268] sm:$0xff]
        %v608 = vld [vmem:[%s499 + $0x270] sm:$0xff]
        %v609 = vld [vmem:[%s499 + $0x278] sm:$0xff]
        %v610 = vld [vmem:[%s499 + $0x280] sm:$0xff]
        %v611 = vld [vmem:[%s499 + $0x288] sm:$0xff]
        %v612 = vld [vmem:[%s499 + $0x290] sm:$0xff]
        %v613 = vld [vmem:[%s499 + $0x298] sm:$0xff]
        %v614 = vld [vmem:[%s499 + $0x2a0] sm:$0xff]
        %v615 = vld [vmem:[%s499 + $0x2a8] sm:$0xff]
        %v616 = vld [vmem:[%s499 + $0x2b0] sm:$0xff]
        %v617 = vld [vmem:[%s499 + $0x2b8] sm:$0xff]
        %v618 = vld [vmem:[%s499 + $0x2c0] sm:$0xff]
        %v619 = vld [vmem:[%s499 + $0x2c8] sm:$0xff]
        %v620 = vld [vmem:[%s499 + $0x2d0] sm:$0xff]
        %v621 = vld [vmem:[%s499 + $0x2d8] sm:$0xff]
        %v622 = vld [vmem:[%s499 + $0x2e0] sm:$0xff]
        %v623 = vld [vmem:[%s499 + $0x2e8] sm:$0xff]
        %v624 = vld [vmem:[%s499 + $0x2f0] sm:$0xff]
        %v625 = vld [vmem:[%s499 + $0x2f8] sm:$0xff]
        %v626 = vld [vmem:[%s499 + $0x300] sm:$0xff]
        %v627 = vld [vmem:[%s499 + $0x308] sm:$0xff]
        %v628 = vld [vmem:[%s499 + $0x310] sm:$0xff]
        %v629 = vld [vmem:[%s499 + $0x318] sm:$0xff]
        %v630 = vld [vmem:[%s499 + $0x320] sm:$0xff]
        %v631 = vld [vmem:[%s499 + $0x328] sm:$0xff]
        %v632 = vld [vmem:[%s499 + $0x330] sm:$0xff]
        %v633 = vld [vmem:[%s499 + $0x338] sm:$0xff]
        %v634 = vld [vmem:[%s499 + $0x340] sm:$0xff]
        %v635 = vld [vmem:[%s499 + $0x348] sm:$0xff]
        %v636 = vld [vmem:[%s499 + $0x350] sm:$0xff]
        %v637 = vld [vmem:[%s499 + $0x358] sm:$0xff]
        %v638 = vld [vmem:[%s499 + $0x360] sm:$0xff]
        %v639 = vld [vmem:[%s499 + $0x368] sm:$0xff]
        %v640 = vld [vmem:[%s499 + $0x370] sm:$0xff]
        %v641 = vld [vmem:[%s499 + $0x378] sm:$0xff]
        %v642 = vld [vmem:[%s499 + $0x380] sm:$0xff]
        %v643 = vld [vmem:[%s499 + $0x388] sm:$0xff]
        %v644 = vld [vmem:[%s499 + $0x390] sm:$0xff]
        %v645 = vld [vmem:[%s499 + $0x398] sm:$0xff]
        %v646 = vld [vmem:[%s499 + $0x3a0] sm:$0xff]
        %v647 = vld [vmem:[%s499 + $0x3a8] sm:$0xff]
        %v648 = vld [vmem:[%s499 + $0x3b0] sm:$0xff]
        %v649 = vld [vmem:[%s499 + $0x3b8] sm:$0xff]
        %v650 = vld [vmem:[%s499 + $0x3c0] sm:$0xff]
        %v651 = vld [vmem:[%s499 + $0x3c8] sm:$0xff]
        %v652 = vld [vmem:[%s499 + $0x3d0] sm:$0xff]
        %v653 = vld [vmem:[%s499 + $0x3d8] sm:$0xff]
        %v654 = vld [vmem:[%s499 + $0x3e0] sm:$0xff]
        %v655 = vld [vmem:[%s499 + $0x3e8] sm:$0xff]
        %v656 = vld [vmem:[%s499 + $0x3f0] sm:$0xff]
        %v657 = vld [vmem:[%s499 + $0x3f8] sm:$0xff]
        %v658 = vld [vmem:[%s499 + $0x400] sm:$0xff]
        %v659 = vld [vmem:[%s499 + $0x408] sm:$0xff]
        %v660 = vld [vmem:[%s499 + $0x410] sm:$0xff]
        %v661 = vld [vmem:[%s499 + $0x418] sm:$0xff]
        %v662 = vld [vmem:[%s499 + $0x420] sm:$0xff]
        %v663 = vld [vmem:[%s499 + $0x428] sm:$0xff]
        %v664 = vld [vmem:[%s499 + $0x430] sm:$0xff]
        %v665 = vld [vmem:[%s499 + $0x438] sm:$0xff]
        %v666 = vld [vmem:[%s499 + $0x440] sm:$0xff]
        %v667 = vld [vmem:[%s499 + $0x448] sm:$0xff]
        %v668 = vld [vmem:[%s499 + $0x450] sm:$0xff]
        %v669 = vld [vmem:[%s499 + $0x458] sm:$0xff]
        %v670 = vld [vmem:[%s499 + $0x460] sm:$0xff]
        %v671 = vld [vmem:[%s499 + $0x468] sm:$0xff]
        %v672 = vld [vmem:[%s499 + $0x470] sm:$0xff]
        %v673 = vld [vmem:[%s499 + $0x478] sm:$0xff]
        %v674 = vld [vmem:[%s499 + $0x480] sm:$0xff]
        %v675 = vld [vmem:[%s499 + $0x488] sm:$0xff]
        %v676 = vld [vmem:[%s499 + $0x490] sm:$0xff]
        %v677 = vld [vmem:[%s499 + $0x498] sm:$0xff]
        %v678 = vld [vmem:[%s499 + $0x4a0] sm:$0xff]
        %v679 = vld [vmem:[%s499 + $0x4a8] sm:$0xff]
        %v680 = vld [vmem:[%s499 + $0x4b0] sm:$0xff]
        %v681 = vld [vmem:[%s499 + $0x4b8] sm:$0xff]
        %v682 = vld [vmem:[%s499 + $0x4c0] sm:$0xff]
        %v683 = vld [vmem:[%s499 + $0x4c8] sm:$0xff]
        %v684 = vld [vmem:[%s499 + $0x4d0] sm:$0xff]
        %v685 = vld [vmem:[%s499 + $0x4d8] sm:$0xff]
        %v686 = vld [vmem:[%s499 + $0x4e0] sm:$0xff]
        %v687 = vld [vmem:[%s499 + $0x4e8] sm:$0xff]
        %v688 = vld [vmem:[%s499 + $0x4f0] sm:$0xff]
        %v689 = vld [vmem:[%s499 + $0x4f8] sm:$0xff]
        %v690 = vld [vmem:[%s499 + $0x500] sm:$0xff]
        %v691 = vld [vmem:[%s499 + $0x508] sm:$0xff]
        %v692 = vld [vmem:[%s499 + $0x510] sm:$0xff]
        %v693 = vld [vmem:[%s499 + $0x518] sm:$0xff]
        %v694 = vld [vmem:[%s499 + $0x520] sm:$0xff]
        %v695 = vld [vmem:[%s499 + $0x528] sm:$0xff]
        %v696 = vld [vmem:[%s499 + $0x530] sm:$0xff]
        %v697 = vld [vmem:[%s499 + $0x538] sm:$0xff]
        %v698 = vld [vmem:[%s2] sm:$0xff]
        %700 = vset.pattern.permute.xlu0 0
        %701 = vperm.xlu0 %700, %v698
        %v702 = vpop.permute.xlu0 %701
        %v706 = vunpack.c.l.b16 %v528
        %v707 = vunpack.c.h.b16 %v528
        %v708 = vunpack.c.l.b16 %v529
        %v709 = vpack.c.b16 %v706, %v706
        %v710 = vpack.c.b16 %v707, %v707
        %v711 = vpack.c.b16 %v708, %v708
        %v882 = vunpack.c.l.b16 %v530
        %v883 = vunpack.c.h.b16 %v530
        %v884 = vunpack.c.l.b16 %v531
        %v885 = vunpack.c.h.b16 %v531
        %v886 = vunpack.c.l.b16 %v532
        %v887 = vunpack.c.h.b16 %v532
        %v888 = vunpack.c.l.b16 %v533
        %v889 = vunpack.c.h.b16 %v533
        %v890 = vunpack.c.l.b16 %v534
        %v891 = vunpack.c.h.b16 %v534
        %v892 = vunpack.c.l.b16 %v535
        %v893 = vunpack.c.h.b16 %v535
        %v894 = vunpack.c.l.b16 %v536
        %v895 = vunpack.c.h.b16 %v536
        %v896 = vunpack.c.l.b16 %v537
        %v897 = vunpack.c.h.b16 %v537
        %v898 = vunpack.c.l.b16 %v538
        %v899 = vunpack.c.h.b16 %v538
        %v900 = vunpack.c.l.b16 %v539
        %v901 = vunpack.c.h.b16 %v539
        %v902 = vunpack.c.l.b16 %v540
        %v903 = vunpack.c.h.b16 %v540
        %v904 = vunpack.c.l.b16 %v541
        %v905 = vunpack.c.h.b16 %v541
        %v906 = vunpack.c.l.b16 %v542
        %v907 = vunpack.c.h.b16 %v542
        %v908 = vunpack.c.l.b16 %v543
        %v909 = vunpack.c.h.b16 %v543
        %v910 = vunpack.c.l.b16 %v544
        %v911 = vunpack.c.h.b16 %v544
        %v912 = vunpack.c.l.b16 %v545
        %v913 = vunpack.c.h.b16 %v545
        %v914 = vunpack.c.l.b16 %v546
        %v915 = vunpack.c.h.b16 %v546
        %v916 = vunpack.c.l.b16 %v547
        %v917 = vunpack.c.h.b16 %v547
        %v918 = vunpack.c.l.b16 %v548
        %v919 = vunpack.c.h.b16 %v548
        %v920 = vunpack.c.l.b16 %v549
        %v921 = vunpack.c.h.b16 %v549
        %v922 = vunpack.c.l.b16 %v550
        %v923 = vunpack.c.h.b16 %v550
        %v924 = vunpack.c.l.b16 %v551
        %v925 = vunpack.c.h.b16 %v551
        %v926 = vunpack.c.l.b16 %v552
        %v927 = vunpack.c.h.b16 %v552
        %v928 = vunpack.c.l.b16 %v553
        %v929 = vunpack.c.h.b16 %v553
        %v930 = vunpack.c.l.b16 %v554
        %v931 = vunpack.c.h.b16 %v554
        %v932 = vunpack.c.l.b16 %v555
        %v933 = vunpack.c.h.b16 %v555
        %v934 = vunpack.c.l.b16 %v556
        %v935 = vunpack.c.h.b16 %v556
        %v936 = vunpack.c.l.b16 %v557
        %v937 = vunpack.c.h.b16 %v557
        %v938 = vunpack.c.l.b16 %v558
        %v939 = vunpack.c.h.b16 %v558
        %v940 = vunpack.c.l.b16 %v559
        %v941 = vunpack.c.h.b16 %v559
        %v942 = vunpack.c.l.b16 %v560
        %v943 = vunpack.c.h.b16 %v560
        %v944 = vunpack.c.l.b16 %v561
        %v945 = vunpack.c.h.b16 %v561
        %v946 = vunpack.c.l.b16 %v562
        %v947 = vunpack.c.h.b16 %v562
        %v948 = vunpack.c.l.b16 %v563
        %v949 = vunpack.c.h.b16 %v563
        %v950 = vunpack.c.l.b16 %v564
        %v951 = vunpack.c.h.b16 %v564
        %v952 = vunpack.c.l.b16 %v565
        %v953 = vunpack.c.h.b16 %v565
        %v954 = vunpack.c.l.b16 %v566
        %v955 = vunpack.c.h.b16 %v566
        %v956 = vunpack.c.l.b16 %v567
        %v957 = vunpack.c.h.b16 %v567
        %v958 = vunpack.c.l.b16 %v568
        %v959 = vunpack.c.h.b16 %v568
        %v960 = vunpack.c.l.b16 %v569
        %v961 = vunpack.c.h.b16 %v569
        %v962 = vunpack.c.l.b16 %v570
        %v963 = vunpack.c.h.b16 %v570
        %v964 = vunpack.c.l.b16 %v571
        %v965 = vunpack.c.h.b16 %v571
        %v966 = vunpack.c.l.b16 %v572
        %v967 = vunpack.c.h.b16 %v572
        %v968 = vunpack.c.l.b16 %v573
        %v969 = vunpack.c.h.b16 %v573
        %v970 = vunpack.c.l.b16 %v574
        %v971 = vunpack.c.h.b16 %v574
        %v972 = vunpack.c.l.b16 %v575
        %v973 = vunpack.c.h.b16 %v575
        %v974 = vunpack.c.l.b16 %v576
        %v975 = vunpack.c.h.b16 %v576
        %v976 = vunpack.c.l.b16 %v577
        %v977 = vunpack.c.h.b16 %v577
        %v978 = vunpack.c.l.b16 %v578
        %v979 = vunpack.c.h.b16 %v578
        %v980 = vunpack.c.l.b16 %v579
        %v981 = vunpack.c.h.b16 %v579
        %v982 = vunpack.c.l.b16 %v580
        %v983 = vunpack.c.h.b16 %v580
        %v984 = vunpack.c.l.b16 %v581
        %v985 = vunpack.c.h.b16 %v581
        %v986 = vunpack.c.l.b16 %v582
        %v987 = vunpack.c.h.b16 %v582
        %v988 = vunpack.c.l.b16 %v583
        %v989 = vunpack.c.h.b16 %v583
        %v990 = vunpack.c.l.b16 %v584
        %v991 = vunpack.c.h.b16 %v584
        %v992 = vunpack.c.l.b16 %v585
        %v993 = vunpack.c.h.b16 %v585
        %v994 = vunpack.c.l.b16 %v586
        %v995 = vunpack.c.h.b16 %v586
        %v996 = vunpack.c.l.b16 %v587
        %v997 = vunpack.c.h.b16 %v587
        %v998 = vunpack.c.l.b16 %v588
        %v999 = vunpack.c.h.b16 %v588
        %v1000 = vunpack.c.l.b16 %v589
        %v1001 = vunpack.c.h.b16 %v589
        %v1002 = vunpack.c.l.b16 %v590
        %v1003 = vunpack.c.h.b16 %v590
        %v1004 = vunpack.c.l.b16 %v591
        %v1005 = vunpack.c.h.b16 %v591
        %v1006 = vunpack.c.l.b16 %v592
        %v1007 = vunpack.c.h.b16 %v592
        %v1008 = vunpack.c.l.b16 %v593
        %v1009 = vunpack.c.h.b16 %v593
        %v1010 = vunpack.c.l.b16 %v594
        %v1011 = vunpack.c.h.b16 %v594
        %v1012 = vunpack.c.l.b16 %v595
        %v1013 = vunpack.c.h.b16 %v595
        %v1014 = vunpack.c.l.b16 %v596
        %v1015 = vunpack.c.h.b16 %v596
        %v1016 = vunpack.c.l.b16 %v597
        %v1017 = vunpack.c.h.b16 %v597
        %v1018 = vunpack.c.l.b16 %v598
        %v1019 = vunpack.c.h.b16 %v598
        %v1020 = vunpack.c.l.b16 %v599
        %v1021 = vunpack.c.h.b16 %v599
        %v1022 = vunpack.c.l.b16 %v600
        %v1023 = vunpack.c.h.b16 %v600
        %v1024 = vunpack.c.l.b16 %v601
        %v1025 = vunpack.c.h.b16 %v601
        %v1026 = vunpack.c.l.b16 %v602
        %v1027 = vunpack.c.h.b16 %v602
        %v1028 = vunpack.c.l.b16 %v603
        %v1029 = vunpack.c.h.b16 %v603
        %v1030 = vunpack.c.l.b16 %v604
        %v1031 = vunpack.c.h.b16 %v604
        %v1032 = vunpack.c.l.b16 %v605
        %v1033 = vunpack.c.h.b16 %v605
        %v1034 = vunpack.c.l.b16 %v606
        %v1035 = vunpack.c.h.b16 %v606
        %v1036 = vunpack.c.l.b16 %v607
        %v1037 = vunpack.c.h.b16 %v607
        %v1038 = vunpack.c.l.b16 %v608
        %v1039 = vunpack.c.h.b16 %v608
        %v1040 = vunpack.c.l.b16 %v609
        %v1041 = vunpack.c.h.b16 %v609
        %v1042 = vunpack.c.l.b16 %v610
        %v1043 = vunpack.c.h.b16 %v610
        %v1044 = vunpack.c.l.b16 %v611
        %v1045 = vunpack.c.h.b16 %v611
        %v1046 = vunpack.c.l.b16 %v612
        %v1047 = vunpack.c.h.b16 %v612
        %v1048 = vunpack.c.l.b16 %v613
        %v1049 = vunpack.c.h.b16 %v613
        %v1050 = vunpack.c.l.b16 %v614
        %v1051 = vunpack.c.h.b16 %v614
        %v1052 = vunpack.c.l.b16 %v615
        %v1053 = vunpack.c.h.b16 %v615
        %v1054 = vunpack.c.l.b16 %v616
        %v1055 = vunpack.c.h.b16 %v616
        %v1056 = vunpack.c.l.b16 %v617
        %v1057 = vunpack.c.h.b16 %v617
        %v1058 = vunpack.c.l.b16 %v618
        %v1059 = vunpack.c.h.b16 %v618
        %v1060 = vunpack.c.l.b16 %v619
        %v1061 = vunpack.c.h.b16 %v619
        %v1062 = vunpack.c.l.b16 %v620
        %v1063 = vunpack.c.h.b16 %v620
        %v1064 = vunpack.c.l.b16 %v621
        %v1065 = vunpack.c.h.b16 %v621
        %v1066 = vunpack.c.l.b16 %v622
        %v1067 = vunpack.c.h.b16 %v622
        %v1068 = vunpack.c.l.b16 %v623
        %v1069 = vunpack.c.h.b16 %v623
        %v1070 = vunpack.c.l.b16 %v624
        %v1071 = vunpack.c.h.b16 %v624
        %v1072 = vunpack.c.l.b16 %v625
        %v1073 = vunpack.c.h.b16 %v625
        %v1074 = vunpack.c.l.b16 %v626
        %v1075 = vunpack.c.h.b16 %v626
        %v1076 = vunpack.c.l.b16 %v627
        %v1077 = vunpack.c.h.b16 %v627
        %v1078 = vunpack.c.l.b16 %v628
        %v1079 = vunpack.c.h.b16 %v628
        %v1080 = vunpack.c.l.b16 %v629
        %v1081 = vunpack.c.h.b16 %v629
        %v1082 = vunpack.c.l.b16 %v630
        %v1083 = vunpack.c.h.b16 %v630
        %v1084 = vunpack.c.l.b16 %v631
        %v1085 = vunpack.c.h.b16 %v631
        %v1086 = vunpack.c.l.b16 %v632
        %v1087 = vunpack.c.h.b16 %v632
        %v1088 = vunpack.c.l.b16 %v633
        %v1089 = vunpack.c.h.b16 %v633
        %v1090 = vunpack.c.l.b16 %v634
        %v1091 = vunpack.c.h.b16 %v634
        %v1092 = vunpack.c.l.b16 %v635
        %v1093 = vunpack.c.h.b16 %v635
        %v1094 = vunpack.c.l.b16 %v636
        %v1095 = vunpack.c.h.b16 %v636
        %v1096 = vunpack.c.l.b16 %v637
        %v1097 = vunpack.c.h.b16 %v637
        %v1098 = vunpack.c.l.b16 %v638
        %v1099 = vunpack.c.h.b16 %v638
        %v1100 = vunpack.c.l.b16 %v639
        %v1101 = vunpack.c.h.b16 %v639
        %v1102 = vunpack.c.l.b16 %v640
        %v1103 = vunpack.c.h.b16 %v640
        %v1104 = vunpack.c.l.b16 %v641
        %v1105 = vunpack.c.h.b16 %v641
        %v1106 = vunpack.c.l.b16 %v642
        %v1107 = vunpack.c.h.b16 %v642
        %v1108 = vunpack.c.l.b16 %v643
        %v1109 = vunpack.c.h.b16 %v643
        %v1110 = vunpack.c.l.b16 %v644
        %v1111 = vunpack.c.h.b16 %v644
        %v1112 = vunpack.c.l.b16 %v645
        %v1113 = vunpack.c.h.b16 %v645
        %v1114 = vunpack.c.l.b16 %v646
        %v1115 = vunpack.c.h.b16 %v646
        %v1116 = vunpack.c.l.b16 %v647
        %v1117 = vunpack.c.h.b16 %v647
        %v1118 = vunpack.c.l.b16 %v648
        %v1119 = vunpack.c.h.b16 %v648
        %v1120 = vunpack.c.l.b16 %v649
        %v1121 = vunpack.c.h.b16 %v649
        %v1122 = vunpack.c.l.b16 %v650
        %v1123 = vunpack.c.h.b16 %v650
        %v1124 = vunpack.c.l.b16 %v651
        %v1125 = vunpack.c.h.b16 %v651
        %v1126 = vunpack.c.l.b16 %v652
        %v1127 = vunpack.c.h.b16 %v652
        %v1128 = vunpack.c.l.b16 %v653
        %v1129 = vunpack.c.h.b16 %v653
        %v1130 = vunpack.c.l.b16 %v654
        %v1131 = vunpack.c.h.b16 %v654
        %v1132 = vunpack.c.l.b16 %v655
        %v1133 = vunpack.c.h.b16 %v655
        %v1134 = vunpack.c.l.b16 %v656
        %v1135 = vunpack.c.h.b16 %v656
        %v1136 = vunpack.c.l.b16 %v657
        %v1137 = vunpack.c.h.b16 %v657
        %v1138 = vunpack.c.l.b16 %v658
        %v1139 = vunpack.c.h.b16 %v658
        %v1140 = vunpack.c.l.b16 %v659
        %v1141 = vunpack.c.h.b16 %v659
        %v1142 = vunpack.c.l.b16 %v660
        %v1143 = vunpack.c.h.b16 %v660
        %v1144 = vunpack.c.l.b16 %v661
        %v1145 = vunpack.c.h.b16 %v661
        %v1146 = vunpack.c.l.b16 %v662
        %v1147 = vunpack.c.h.b16 %v662
        %v1148 = vunpack.c.l.b16 %v663
        %v1149 = vunpack.c.h.b16 %v663
        %v1150 = vunpack.c.l.b16 %v664
        %v1151 = vunpack.c.h.b16 %v664
        %v1152 = vunpack.c.l.b16 %v665
        %v1153 = vunpack.c.h.b16 %v665
        %v1154 = vunpack.c.l.b16 %v666
        %v1155 = vunpack.c.h.b16 %v666
        %v1156 = vunpack.c.l.b16 %v667
        %v1157 = vunpack.c.h.b16 %v667
        %v1158 = vunpack.c.l.b16 %v668
        %v1159 = vunpack.c.h.b16 %v668
        %v1160 = vunpack.c.l.b16 %v669
        %v1161 = vunpack.c.h.b16 %v669
        %v1162 = vunpack.c.l.b16 %v670
        %v1163 = vunpack.c.h.b16 %v670
        %v1164 = vunpack.c.l.b16 %v671
        %v1165 = vunpack.c.h.b16 %v671
        %v1166 = vunpack.c.l.b16 %v672
        %v1167 = vunpack.c.h.b16 %v672
        %v1168 = vunpack.c.l.b16 %v673
        %v1169 = vunpack.c.h.b16 %v673
        %v1170 = vunpack.c.l.b16 %v674
        %v1171 = vunpack.c.h.b16 %v674
        %v1172 = vunpack.c.l.b16 %v675
        %v1173 = vunpack.c.h.b16 %v675
        %v1174 = vunpack.c.l.b16 %v676
        %v1175 = vunpack.c.h.b16 %v676
        %v1176 = vunpack.c.l.b16 %v677
        %v1177 = vunpack.c.h.b16 %v677
        %v1178 = vunpack.c.l.b16 %v678
        %v1179 = vunpack.c.h.b16 %v678
        %v1180 = vunpack.c.l.b16 %v679
        %v1181 = vunpack.c.h.b16 %v679
        %v1182 = vunpack.c.l.b16 %v680
        %v1183 = vunpack.c.h.b16 %v680
        %v1184 = vunpack.c.l.b16 %v681
        %v1185 = vunpack.c.h.b16 %v681
        %v1186 = vunpack.c.l.b16 %v682
        %v1187 = vunpack.c.h.b16 %v682
        %v1188 = vunpack.c.l.b16 %v683
        %v1189 = vunpack.c.h.b16 %v683
        %v1190 = vunpack.c.l.b16 %v684
        %v1191 = vunpack.c.h.b16 %v684
        %v1192 = vunpack.c.l.b16 %v685
        %v1193 = vunpack.c.h.b16 %v685
        %v1194 = vunpack.c.l.b16 %v686
        %v1195 = vunpack.c.h.b16 %v686
        %v1196 = vunpack.c.l.b16 %v687
        %v1197 = vunpack.c.h.b16 %v687
        %v1198 = vunpack.c.l.b16 %v688
        %v1199 = vunpack.c.h.b16 %v688
        %v1200 = vunpack.c.l.b16 %v689
        %v1201 = vunpack.c.h.b16 %v689
        %v1202 = vunpack.c.l.b16 %v690
        %v1203 = vunpack.c.h.b16 %v690
        %v1204 = vunpack.c.l.b16 %v691
        %v1205 = vunpack.c.h.b16 %v691
        %v1206 = vunpack.c.l.b16 %v692
        %v1207 = vunpack.c.h.b16 %v692
        %v1208 = vunpack.c.l.b16 %v693
        %v1209 = vunpack.c.h.b16 %v693
        %v1210 = vunpack.c.l.b16 %v694
        %v1211 = vunpack.c.h.b16 %v694
        %v1212 = vunpack.c.l.b16 %v695
        %v1213 = vunpack.c.h.b16 %v695
        %v1214 = vunpack.c.l.b16 %v696
        %v1215 = vunpack.c.h.b16 %v696
        %v1216 = vunpack.c.l.b16 %v697
        %v1217 = vunpack.c.h.b16 %v697
        %v1218 = vpack.c.b16 %v890, %v882
        %v1219 = vpack.c.b16 %v891, %v883
        %v1220 = vpack.c.b16 %v892, %v884
        %v1221 = vpack.c.b16 %v893, %v885
        %v1222 = vpack.c.b16 %v894, %v886
        %v1223 = vpack.c.b16 %v895, %v887
        %v1224 = vpack.c.b16 %v896, %v888
        %v1225 = vpack.c.b16 %v897, %v889
        %v1226 = vpack.c.b16 %v906, %v898
        %v1227 = vpack.c.b16 %v907, %v899
        %v1228 = vpack.c.b16 %v908, %v900
        %v1229 = vpack.c.b16 %v909, %v901
        %v1230 = vpack.c.b16 %v910, %v902
        %v1231 = vpack.c.b16 %v911, %v903
        %v1232 = vpack.c.b16 %v912, %v904
        %v1233 = vpack.c.b16 %v913, %v905
        %v1234 = vpack.c.b16 %v922, %v914
        %v1235 = vpack.c.b16 %v923, %v915
        %v1236 = vpack.c.b16 %v924, %v916
        %v1237 = vpack.c.b16 %v925, %v917
        %v1238 = vpack.c.b16 %v926, %v918
        %v1239 = vpack.c.b16 %v927, %v919
        %v1240 = vpack.c.b16 %v928, %v920
        %v1241 = vpack.c.b16 %v929, %v921
        %v1242 = vpack.c.b16 %v938, %v930
        %v1243 = vpack.c.b16 %v939, %v931
        %v1244 = vpack.c.b16 %v940, %v932
        %v1245 = vpack.c.b16 %v941, %v933
        %v1246 = vpack.c.b16 %v942, %v934
        %v1247 = vpack.c.b16 %v943, %v935
        %v1248 = vpack.c.b16 %v944, %v936
        %v1249 = vpack.c.b16 %v945, %v937
        %v1250 = vpack.c.b16 %v954, %v946
        %v1251 = vpack.c.b16 %v955, %v947
        %v1252 = vpack.c.b16 %v956, %v948
        %v1253 = vpack.c.b16 %v957, %v949
        %v1254 = vpack.c.b16 %v958, %v950
        %v1255 = vpack.c.b16 %v959, %v951
        %v1256 = vpack.c.b16 %v960, %v952
        %v1257 = vpack.c.b16 %v961, %v953
        %v1258 = vpack.c.b16 %v970, %v962
        %v1259 = vpack.c.b16 %v971, %v963
        %v1260 = vpack.c.b16 %v972, %v964
        %v1261 = vpack.c.b16 %v973, %v965
        %v1262 = vpack.c.b16 %v974, %v966
        %v1263 = vpack.c.b16 %v975, %v967
        %v1264 = vpack.c.b16 %v976, %v968
        %v1265 = vpack.c.b16 %v977, %v969
        %v1266 = vpack.c.b16 %v986, %v978
        %v1267 = vpack.c.b16 %v987, %v979
        %v1268 = vpack.c.b16 %v988, %v980
        %v1269 = vpack.c.b16 %v989, %v981
        %v1270 = vpack.c.b16 %v990, %v982
        %v1271 = vpack.c.b16 %v991, %v983
        %v1272 = vpack.c.b16 %v992, %v984
        %v1273 = vpack.c.b16 %v993, %v985
        %v1274 = vpack.c.b16 %v1002, %v994
        %v1275 = vpack.c.b16 %v1003, %v995
        %v1276 = vpack.c.b16 %v1004, %v996
        %v1277 = vpack.c.b16 %v1005, %v997
        %v1278 = vpack.c.b16 %v1006, %v998
        %v1279 = vpack.c.b16 %v1007, %v999
        %v1280 = vpack.c.b16 %v1008, %v1000
        %v1281 = vpack.c.b16 %v1009, %v1001
        %v1282 = vpack.c.b16 %v1018, %v1010
        %v1283 = vpack.c.b16 %v1019, %v1011
        %v1284 = vpack.c.b16 %v1020, %v1012
        %v1285 = vpack.c.b16 %v1021, %v1013
        %v1286 = vpack.c.b16 %v1022, %v1014
        %v1287 = vpack.c.b16 %v1023, %v1015
        %v1288 = vpack.c.b16 %v1024, %v1016
        %v1289 = vpack.c.b16 %v1025, %v1017
        %v1290 = vpack.c.b16 %v1034, %v1026
        %v1291 = vpack.c.b16 %v1035, %v1027
        %v1292 = vpack.c.b16 %v1036, %v1028
        %v1293 = vpack.c.b16 %v1037, %v1029
        %v1294 = vpack.c.b16 %v1038, %v1030
        %v1295 = vpack.c.b16 %v1039, %v1031
        %v1296 = vpack.c.b16 %v1040, %v1032
        %v1297 = vpack.c.b16 %v1041, %v1033
        %v1298 = vpack.c.b16 %v1050, %v1042
        %v1299 = vpack.c.b16 %v1051, %v1043
        %v1300 = vpack.c.b16 %v1052, %v1044
        %v1301 = vpack.c.b16 %v1053, %v1045
        %v1302 = vpack.c.b16 %v1054, %v1046
        %v1303 = vpack.c.b16 %v1055, %v1047
        %v1304 = vpack.c.b16 %v1056, %v1048
        %v1305 = vpack.c.b16 %v1057, %v1049
        %v1306 = vpack.c.b16 %v1066, %v1058
        %v1307 = vpack.c.b16 %v1067, %v1059
        %v1308 = vpack.c.b16 %v1068, %v1060
        %v1309 = vpack.c.b16 %v1069, %v1061
        %v1310 = vpack.c.b16 %v1070, %v1062
        %v1311 = vpack.c.b16 %v1071, %v1063
        %v1312 = vpack.c.b16 %v1072, %v1064
        %v1313 = vpack.c.b16 %v1073, %v1065
        %v1314 = vpack.c.b16 %v1082, %v1074
        %v1315 = vpack.c.b16 %v1083, %v1075
        %v1316 = vpack.c.b16 %v1084, %v1076
        %v1317 = vpack.c.b16 %v1085, %v1077
        %v1318 = vpack.c.b16 %v1086, %v1078
        %v1319 = vpack.c.b16 %v1087, %v1079
        %v1320 = vpack.c.b16 %v1088, %v1080
        %v1321 = vpack.c.b16 %v1089, %v1081
        %v1322 = vpack.c.b16 %v1098, %v1090
        %v1323 = vpack.c.b16 %v1099, %v1091
        %v1324 = vpack.c.b16 %v1100, %v1092
        %v1325 = vpack.c.b16 %v1101, %v1093
        %v1326 = vpack.c.b16 %v1102, %v1094
        %v1327 = vpack.c.b16 %v1103, %v1095
        %v1328 = vpack.c.b16 %v1104, %v1096
        %v1329 = vpack.c.b16 %v1105, %v1097
        %v1330 = vpack.c.b16 %v1114, %v1106
        %v1331 = vpack.c.b16 %v1115, %v1107
        %v1332 = vpack.c.b16 %v1116, %v1108
        %v1333 = vpack.c.b16 %v1117, %v1109
        %v1334 = vpack.c.b16 %v1118, %v1110
        %v1335 = vpack.c.b16 %v1119, %v1111
        %v1336 = vpack.c.b16 %v1120, %v1112
        %v1337 = vpack.c.b16 %v1121, %v1113
        %v1338 = vpack.c.b16 %v1130, %v1122
        %v1339 = vpack.c.b16 %v1131, %v1123
        %v1340 = vpack.c.b16 %v1132, %v1124
        %v1341 = vpack.c.b16 %v1133, %v1125
        %v1342 = vpack.c.b16 %v1134, %v1126
        %v1343 = vpack.c.b16 %v1135, %v1127
        %v1344 = vpack.c.b16 %v1136, %v1128
        %v1345 = vpack.c.b16 %v1137, %v1129
        %v1346 = vpack.c.b16 %v1146, %v1138
        %v1347 = vpack.c.b16 %v1147, %v1139
        %v1348 = vpack.c.b16 %v1148, %v1140
        %v1349 = vpack.c.b16 %v1149, %v1141
        %v1350 = vpack.c.b16 %v1150, %v1142
        %v1351 = vpack.c.b16 %v1151, %v1143
        %v1352 = vpack.c.b16 %v1152, %v1144
        %v1353 = vpack.c.b16 %v1153, %v1145
        %v1354 = vpack.c.b16 %v1162, %v1154
        %v1355 = vpack.c.b16 %v1163, %v1155
        %v1356 = vpack.c.b16 %v1164, %v1156
        %v1357 = vpack.c.b16 %v1165, %v1157
        %v1358 = vpack.c.b16 %v1166, %v1158
        %v1359 = vpack.c.b16 %v1167, %v1159
        %v1360 = vpack.c.b16 %v1168, %v1160
        %v1361 = vpack.c.b16 %v1169, %v1161
        %v1362 = vpack.c.b16 %v1178, %v1170
        %v1363 = vpack.c.b16 %v1179, %v1171
        %v1364 = vpack.c.b16 %v1180, %v1172
        %v1365 = vpack.c.b16 %v1181, %v1173
        %v1366 = vpack.c.b16 %v1182, %v1174
        %v1367 = vpack.c.b16 %v1183, %v1175
        %v1368 = vpack.c.b16 %v1184, %v1176
        %v1369 = vpack.c.b16 %v1185, %v1177
        %v1370 = vpack.c.b16 %v1194, %v1186
        %v1371 = vpack.c.b16 %v1195, %v1187
        %v1372 = vpack.c.b16 %v1196, %v1188
        %v1373 = vpack.c.b16 %v1197, %v1189
        %v1374 = vpack.c.b16 %v1198, %v1190
        %v1375 = vpack.c.b16 %v1199, %v1191
        %v1376 = vpack.c.b16 %v1200, %v1192
        %v1377 = vpack.c.b16 %v1201, %v1193
        %v1378 = vpack.c.b16 %v1210, %v1202
        %v1379 = vpack.c.b16 %v1211, %v1203
        %v1380 = vpack.c.b16 %v1212, %v1204
        %v1381 = vpack.c.b16 %v1213, %v1205
        %v1382 = vpack.c.b16 %v1214, %v1206
        %v1383 = vpack.c.b16 %v1215, %v1207
        %v1384 = vpack.c.b16 %v1216, %v1208
        %v1385 = vpack.c.b16 %v1217, %v1209
        %vm1554 = vcmask 654336
        %v1556 = vsel %vm1554, %v711, 0
        %1558 = vmatprep.subr.bf16.mxu0 %v1219
        %1559 = vmatpush1.bf16.msra.mxu0 %v1218
        %1560 = vmatprep.subr.bf16.mxu0 %v1227
        %1561 = vmatpush1.bf16.msra.mxu0 %v1226
        %1562 = vmatprep.subr.bf16.mxu0 %v1235
        %1563 = vmatpush1.bf16.msra.mxu0 %v1234
        %1564 = vmatprep.subr.bf16.mxu0 %v1243
        %1565 = vmatpush1.bf16.msra.mxu0 %v1242
        %1566 = vmatprep.subr.bf16.mxu0 %v1251
        %1567 = vmatpush1.bf16.msra.mxu0 %v1250
        %1568 = vmatprep.subr.bf16.mxu0 %v1259
        %1569 = vmatpush1.bf16.msra.mxu0 %v1258
        %1570 = vmatprep.subr.bf16.mxu0 %v1267
        %1571 = vmatpush1.bf16.msra.mxu0 %v1266
        %1572 = vmatprep.subr.bf16.mxu0 %v1275
        %1573 = vmatpush1.bf16.msra.mxu0 %v1274
        %1574 = vmatprep.subr.bf16.mxu0 %v1283
        %1575 = vmatpush1.bf16.msra.mxu0 %v1282
        %1576 = vmatprep.subr.bf16.mxu0 %v1291
        %1577 = vmatpush1.bf16.msra.mxu0 %v1290
        %1578 = vmatprep.subr.bf16.mxu0 %v1299
        %1579 = vmatpush1.bf16.msra.mxu0 %v1298
        %1580 = vmatprep.subr.bf16.mxu0 %v1307
        %1581 = vmatpush1.bf16.msra.mxu0 %v1306
        %1582 = vmatprep.subr.bf16.mxu0 %v1315
        %1583 = vmatpush1.bf16.msra.mxu0 %v1314
        %1584 = vmatprep.subr.bf16.mxu0 %v1323
        %1585 = vmatpush1.bf16.msra.mxu0 %v1322
        %1586 = vmatprep.subr.bf16.mxu0 %v1331
        %1587 = vmatpush1.bf16.msra.mxu0 %v1330
        %1588 = vmatprep.subr.bf16.mxu0 %v1339
        %1589 = vmatpush1.bf16.msra.mxu0 %v1338
        %1590 = vmatprep.mubr.bf16.mxu0 %v710
        %1591 = vmatmul.mubr.bf16.gmra.mrb[0].mxu0 %v709
        %v1592 = vpop.f32.mrb[0].mxu0
        %v1593 = vadd.f32 %v702, %v1592
        %v1594 = vpop.f32.mrb[0].mxu0
        %v1595 = vadd.f32 %v702, %v1594
        %v1596 = vpop.f32.mrb[0].mxu0
        %v1597 = vpop.f32.mrb[0].mxu0
        %1598 = vdwg.mxu0
        %1599 = vmatprep.subr.bf16.mxu0 %v1347
        %1600 = vmatpush1.bf16.msra.mxu0 %v1346
        %1601 = vmatprep.subr.bf16.mxu0 %v1355
        %1602 = vmatpush1.bf16.msra.mxu0 %v1354
        %1603 = vmatprep.subr.bf16.mxu0 %v1363
        %1604 = vmatpush1.bf16.msra.mxu0 %v1362
        %1605 = vmatprep.subr.bf16.mxu0 %v1371
        %1606 = vmatpush1.bf16.msra.mxu0 %v1370
        %1607 = vmatprep.subr.bf16.mxu0 %v1379
        %1608 = vmatpush1.bf16.msra.mxu0 %v1378
        %1609 = vmatprep.subr.bf16.mxu0 0
        %1610 = vmatpush1.bf16.msra.mxu0 0
        %1611 = vmatprep.subr.bf16.mxu0 0
        %1612 = vmatpush1.bf16.msra.mxu0 0
        %1613 = vmatprep.subr.bf16.mxu0 0
        %1614 = vmatpush1.bf16.msra.mxu0 0
        %1615 = vmatprep.subr.bf16.mxu0 0
        %1616 = vmatpush1.bf16.msra.mxu0 0
        %1617 = vmatprep.subr.bf16.mxu0 0
        %1618 = vmatpush1.bf16.msra.mxu0 0
        %1619 = vmatprep.subr.bf16.mxu0 0
        %1620 = vmatpush1.bf16.msra.mxu0 0
        %1621 = vmatprep.subr.bf16.mxu0 0
        %1622 = vmatpush1.bf16.msra.mxu0 0
        %1623 = vmatprep.subr.bf16.mxu0 0
        %1624 = vmatpush1.bf16.msra.mxu0 0
        %1625 = vmatprep.subr.bf16.mxu0 0
        %1626 = vmatpush1.bf16.msra.mxu0 0
        %1627 = vmatprep.subr.bf16.mxu0 0
        %1628 = vmatpush1.bf16.msra.mxu0 0
        %1629 = vmatprep.subr.bf16.mxu0 0
        %1630 = vmatpush1.bf16.msra.mxu0 0
        %1631 = vmatprep.mubr.bf16.mxu0 0
        %1632 = vmatmul.mubr.bf16.gmra.mrb[0].mxu0 %v1556
        %v1633 = vpop.f32.mrb[0].mxu0
        %v1634 = vadd.f32 %v1593, %v1633
        %v1635 = vpop.f32.mrb[0].mxu0
        %v1636 = vadd.f32 %v1595, %v1635
        %v1637 = vpop.f32.mrb[0].mxu0
        %v1638 = vpop.f32.mrb[0].mxu0
        %1639 = vdwg.mxu0
        %1640 = vmatprep.subr.bf16.mxu0 %v1221
        %1641 = vmatpush1.bf16.msra.mxu0 %v1220
        %1642 = vmatprep.subr.bf16.mxu0 %v1229
        %1643 = vmatpush1.bf16.msra.mxu0 %v1228
        %1644 = vmatprep.subr.bf16.mxu0 %v1237
        %1645 = vmatpush1.bf16.msra.mxu0 %v1236
        %1646 = vmatprep.subr.bf16.mxu0 %v1245
        %1647 = vmatpush1.bf16.msra.mxu0 %v1244
        %1648 = vmatprep.subr.bf16.mxu0 %v1253
        %1649 = vmatpush1.bf16.msra.mxu0 %v1252
        %1650 = vmatprep.subr.bf16.mxu0 %v1261
        %1651 = vmatpush1.bf16.msra.mxu0 %v1260
        %1652 = vmatprep.subr.bf16.mxu0 %v1269
        %1653 = vmatpush1.bf16.msra.mxu0 %v1268
        %1654 = vmatprep.subr.bf16.mxu0 %v1277
        %1655 = vmatpush1.bf16.msra.mxu0 %v1276
        %1656 = vmatprep.subr.bf16.mxu0 %v1285
        %1657 = vmatpush1.bf16.msra.mxu0 %v1284
        %1658 = vmatprep.subr.bf16.mxu0 %v1293
        %1659 = vmatpush1.bf16.msra.mxu0 %v1292
        %1660 = vmatprep.subr.bf16.mxu0 %v1301
        %1661 = vmatpush1.bf16.msra.mxu0 %v1300
        %1662 = vmatprep.subr.bf16.mxu0 %v1309
        %1663 = vmatpush1.bf16.msra.mxu0 %v1308
        %1664 = vmatprep.subr.bf16.mxu0 %v1317
        %1665 = vmatpush1.bf16.msra.mxu0 %v1316
        %1666 = vmatprep.subr.bf16.mxu0 %v1325
        %1667 = vmatpush1.bf16.msra.mxu0 %v1324
        %1668 = vmatprep.subr.bf16.mxu0 %v1333
        %1669 = vmatpush1.bf16.msra.mxu0 %v1332
        %1670 = vmatprep.subr.bf16.mxu0 %v1341
        %1671 = vmatpush1.bf16.msra.mxu0 %v1340
        %1672 = vmatprep.mubr.bf16.mxu0 %v710
        %1673 = vmatmul.mubr.bf16.gmra.mrb[0].mxu0 %v709
        %v1674 = vpop.f32.mrb[0].mxu0
        %v1675 = vadd.f32 %v702, %v1674
        %v1676 = vpop.f32.mrb[0].mxu0
        %v1677 = vadd.f32 %v702, %v1676
        %v1678 = vpop.f32.mrb[0].mxu0
        %v1679 = vpop.f32.mrb[0].mxu0
        %1680 = vdwg.mxu0
        %1681 = vmatprep.subr.bf16.mxu0 %v1349
        %1682 = vmatpush1.bf16.msra.mxu0 %v1348
        %1683 = vmatprep.subr.bf16.mxu0 %v1357
        %1684 = vmatpush1.bf16.msra.mxu0 %v1356
        %1685 = vmatprep.subr.bf16.mxu0 %v1365
        %1686 = vmatpush1.bf16.msra.mxu0 %v1364
        %1687 = vmatprep.subr.bf16.mxu0 %v1373
        %1688 = vmatpush1.bf16.msra.mxu0 %v1372
        %1689 = vmatprep.subr.bf16.mxu0 %v1381
        %1690 = vmatpush1.bf16.msra.mxu0 %v1380
        %1691 = vmatprep.subr.bf16.mxu0 0
        %1692 = vmatpush1.bf16.msra.mxu0 0
        %1693 = vmatprep.subr.bf16.mxu0 0
        %1694 = vmatpush1.bf16.msra.mxu0 0
        %1695 = vmatprep.subr.bf16.mxu0 0
        %1696 = vmatpush1.bf16.msra.mxu0 0
        %1697 = vmatprep.subr.bf16.mxu0 0
        %1698 = vmatpush1.bf16.msra.mxu0 0
        %1699 = vmatprep.subr.bf16.mxu0 0
        %1700 = vmatpush1.bf16.msra.mxu0 0
        %1701 = vmatprep.subr.bf16.mxu0 0
        %1702 = vmatpush1.bf16.msra.mxu0 0
        %1703 = vmatprep.subr.bf16.mxu0 0
        %1704 = vmatpush1.bf16.msra.mxu0 0
        %1705 = vmatprep.subr.bf16.mxu0 0
        %1706 = vmatpush1.bf16.msra.mxu0 0
        %1707 = vmatprep.subr.bf16.mxu0 0
        %1708 = vmatpush1.bf16.msra.mxu0 0
        %1709 = vmatprep.subr.bf16.mxu0 0
        %1710 = vmatpush1.bf16.msra.mxu0 0
        %1711 = vmatprep.subr.bf16.mxu0 0
        %1712 = vmatpush1.bf16.msra.mxu0 0
        %1713 = vmatprep.mubr.bf16.mxu0 0
        %1714 = vmatmul.mubr.bf16.gmra.mrb[0].mxu0 %v1556
        %v1715 = vpop.f32.mrb[0].mxu0
        %v1716 = vadd.f32 %v1675, %v1715
        %v1717 = vpop.f32.mrb[0].mxu0
        %v1718 = vadd.f32 %v1677, %v1717
        %v1719 = vpop.f32.mrb[0].mxu0
        %v1720 = vpop.f32.mrb[0].mxu0
        %1721 = vdwg.mxu0
        %1722 = vmatprep.subr.bf16.mxu0 %v1223
        %1723 = vmatpush1.bf16.msra.mxu0 %v1222
        %1724 = vmatprep.subr.bf16.mxu0 %v1231
        %1725 = vmatpush1.bf16.msra.mxu0 %v1230
        %1726 = vmatprep.subr.bf16.mxu0 %v1239
        %1727 = vmatpush1.bf16.msra.mxu0 %v1238
        %1728 = vmatprep.subr.bf16.mxu0 %v1247
        %1729 = vmatpush1.bf16.msra.mxu0 %v1246
        %1730 = vmatprep.subr.bf16.mxu0 %v1255
        %1731 = vmatpush1.bf16.msra.mxu0 %v1254
        %1732 = vmatprep.subr.bf16.mxu0 %v1263
        %1733 = vmatpush1.bf16.msra.mxu0 %v1262
        %1734 = vmatprep.subr.bf16.mxu0 %v1271
        %1735 = vmatpush1.bf16.msra.mxu0 %v1270
        %1736 = vmatprep.subr.bf16.mxu0 %v1279
        %1737 = vmatpush1.bf16.msra.mxu0 %v1278
        %1738 = vmatprep.subr.bf16.mxu0 %v1287
        %1739 = vmatpush1.bf16.msra.mxu0 %v1286
        %1740 = vmatprep.subr.bf16.mxu0 %v1295
        %1741 = vmatpush1.bf16.msra.mxu0 %v1294
        %1742 = vmatprep.subr.bf16.mxu0 %v1303
        %1743 = vmatpush1.bf16.msra.mxu0 %v1302
        %1744 = vmatprep.subr.bf16.mxu0 %v1311
        %1745 = vmatpush1.bf16.msra.mxu0 %v1310
        %1746 = vmatprep.subr.bf16.mxu0 %v1319
        %1747 = vmatpush1.bf16.msra.mxu0 %v1318
        %1748 = vmatprep.subr.bf16.mxu0 %v1327
        %1749 = vmatpush1.bf16.msra.mxu0 %v1326
        %1750 = vmatprep.subr.bf16.mxu0 %v1335
        %1751 = vmatpush1.bf16.msra.mxu0 %v1334
        %1752 = vmatprep.subr.bf16.mxu0 %v1343
        %1753 = vmatpush1.bf16.msra.mxu0 %v1342
        %1754 = vmatprep.mubr.bf16.mxu0 %v710
        %1755 = vmatmul.mubr.bf16.gmra.mrb[0].mxu0 %v709
        %v1756 = vpop.f32.mrb[0].mxu0
        %v1757 = vadd.f32 %v702, %v1756
        %v1758 = vpop.f32.mrb[0].mxu0
        %v1759 = vadd.f32 %v702, %v1758
        %v1760 = vpop.f32.mrb[0].mxu0
        %v1761 = vpop.f32.mrb[0].mxu0
        %1762 = vdwg.mxu0
        %1763 = vmatprep.subr.bf16.mxu0 %v1351
        %1764 = vmatpush1.bf16.msra.mxu0 %v1350
        %1765 = vmatprep.subr.bf16.mxu0 %v1359
        %1766 = vmatpush1.bf16.msra.mxu0 %v1358
        %1767 = vmatprep.subr.bf16.mxu0 %v1367
        %1768 = vmatpush1.bf16.msra.mxu0 %v1366
        %1769 = vmatprep.subr.bf16.mxu0 %v1375
        %1770 = vmatpush1.bf16.msra.mxu0 %v1374
        %1771 = vmatprep.subr.bf16.mxu0 %v1383
        %1772 = vmatpush1.bf16.msra.mxu0 %v1382
        %1773 = vmatprep.subr.bf16.mxu0 0
        %1774 = vmatpush1.bf16.msra.mxu0 0
        %1775 = vmatprep.subr.bf16.mxu0 0
        %1776 = vmatpush1.bf16.msra.mxu0 0
        %1777 = vmatprep.subr.bf16.mxu0 0
        %1778 = vmatpush1.bf16.msra.mxu0 0
        %1779 = vmatprep.subr.bf16.mxu0 0
        %1780 = vmatpush1.bf16.msra.mxu0 0
        %1781 = vmatprep.subr.bf16.mxu0 0
        %1782 = vmatpush1.bf16.msra.mxu0 0
        %1783 = vmatprep.subr.bf16.mxu0 0
        %1784 = vmatpush1.bf16.msra.mxu0 0
        %1785 = vmatprep.subr.bf16.mxu0 0
        %1786 = vmatpush1.bf16.msra.mxu0 0
        %1787 = vmatprep.subr.bf16.mxu0 0
        %1788 = vmatpush1.bf16.msra.mxu0 0
        %1789 = vmatprep.subr.bf16.mxu0 0
        %1790 = vmatpush1.bf16.msra.mxu0 0
        %1791 = vmatprep.subr.bf16.mxu0 0
        %1792 = vmatpush1.bf16.msra.mxu0 0
        %1793 = vmatprep.subr.bf16.mxu0 0
        %1794 = vmatpush1.bf16.msra.mxu0 0
        %1795 = vmatprep.mubr.bf16.mxu0 0
        %1796 = vmatmul.mubr.bf16.gmra.mrb[0].mxu0 %v1556
        %v1797 = vpop.f32.mrb[0].mxu0
        %v1798 = vadd.f32 %v1757, %v1797
        %v1799 = vpop.f32.mrb[0].mxu0
        %v1800 = vadd.f32 %v1759, %v1799
        %v1801 = vpop.f32.mrb[0].mxu0
        %v1802 = vpop.f32.mrb[0].mxu0
        %1803 = vdwg.mxu0
        %1804 = vmatprep.subr.bf16.mxu0 %v1225
        %1805 = vmatpush1.bf16.msra.mxu0 %v1224
        %1806 = vmatprep.subr.bf16.mxu0 %v1233
        %1807 = vmatpush1.bf16.msra.mxu0 %v1232
        %1808 = vmatprep.subr.bf16.mxu0 %v1241
        %1809 = vmatpush1.bf16.msra.mxu0 %v1240
        %1810 = vmatprep.subr.bf16.mxu0 %v1249
        %1811 = vmatpush1.bf16.msra.mxu0 %v1248
        %1812 = vmatprep.subr.bf16.mxu0 %v1257
        %1813 = vmatpush1.bf16.msra.mxu0 %v1256
        %1814 = vmatprep.subr.bf16.mxu0 %v1265
        %1815 = vmatpush1.bf16.msra.mxu0 %v1264
        %1816 = vmatprep.subr.bf16.mxu0 %v1273
        %1817 = vmatpush1.bf16.msra.mxu0 %v1272
        %1818 = vmatprep.subr.bf16.mxu0 %v1281
        %1819 = vmatpush1.bf16.msra.mxu0 %v1280
        %1820 = vmatprep.subr.bf16.mxu0 %v1289
        %1821 = vmatpush1.bf16.msra.mxu0 %v1288
        %1822 = vmatprep.subr.bf16.mxu0 %v1297
        %1823 = vmatpush1.bf16.msra.mxu0 %v1296
        %1824 = vmatprep.subr.bf16.mxu0 %v1305
        %1825 = vmatpush1.bf16.msra.mxu0 %v1304
        %1826 = vmatprep.subr.bf16.mxu0 %v1313
        %1827 = vmatpush1.bf16.msra.mxu0 %v1312
        %1828 = vmatprep.subr.bf16.mxu0 %v1321
        %1829 = vmatpush1.bf16.msra.mxu0 %v1320
        %1830 = vmatprep.subr.bf16.mxu0 %v1329
        %1831 = vmatpush1.bf16.msra.mxu0 %v1328
        %1832 = vmatprep.subr.bf16.mxu0 %v1337
        %1833 = vmatpush1.bf16.msra.mxu0 %v1336
        %1834 = vmatprep.subr.bf16.mxu0 %v1345
        %1835 = vmatpush1.bf16.msra.mxu0 %v1344
        %1836 = vmatprep.mubr.bf16.mxu0 %v710
        %1837 = vmatmul.mubr.bf16.gmra.mrb[0].mxu0 %v709
        %v1838 = vpop.f32.mrb[0].mxu0
        %v1839 = vadd.f32 %v702, %v1838
        %v1840 = vpop.f32.mrb[0].mxu0
        %v1841 = vadd.f32 %v702, %v1840
        %v1842 = vpop.f32.mrb[0].mxu0
        %v1843 = vpop.f32.mrb[0].mxu0
        %1844 = vdwg.mxu0
        %1845 = vmatprep.subr.bf16.mxu0 %v1353
        %1846 = vmatpush1.bf16.msra.mxu0 %v1352
        %1847 = vmatprep.subr.bf16.mxu0 %v1361
        %1848 = vmatpush1.bf16.msra.mxu0 %v1360
        %1849 = vmatprep.subr.bf16.mxu0 %v1369
        %1850 = vmatpush1.bf16.msra.mxu0 %v1368
        %1851 = vmatprep.subr.bf16.mxu0 %v1377
        %1852 = vmatpush1.bf16.msra.mxu0 %v1376
        %1853 = vmatprep.subr.bf16.mxu0 %v1385
        %1854 = vmatpush1.bf16.msra.mxu0 %v1384
        %1855 = vmatprep.subr.bf16.mxu0 0
        %1856 = vmatpush1.bf16.msra.mxu0 0
        %1857 = vmatprep.subr.bf16.mxu0 0
        %1858 = vmatpush1.bf16.msra.mxu0 0
        %1859 = vmatprep.subr.bf16.mxu0 0
        %1860 = vmatpush1.bf16.msra.mxu0 0
        %1861 = vmatprep.subr.bf16.mxu0 0
        %1862 = vmatpush1.bf16.msra.mxu0 0
        %1863 = vmatprep.subr.bf16.mxu0 0
        %1864 = vmatpush1.bf16.msra.mxu0 0
        %1865 = vmatprep.subr.bf16.mxu0 0
        %1866 = vmatpush1.bf16.msra.mxu0 0
        %1867 = vmatprep.subr.bf16.mxu0 0
        %1868 = vmatpush1.bf16.msra.mxu0 0
        %1869 = vmatprep.subr.bf16.mxu0 0
        %1870 = vmatpush1.bf16.msra.mxu0 0
        %1871 = vmatprep.subr.bf16.mxu0 0
        %1872 = vmatpush1.bf16.msra.mxu0 0
        %1873 = vmatprep.subr.bf16.mxu0 0
        %1874 = vmatpush1.bf16.msra.mxu0 0
        %1875 = vmatprep.subr.bf16.mxu0 0
        %1876 = vmatpush1.bf16.msra.mxu0 0
        %1877 = vmatprep.mubr.bf16.mxu0 0
        %1878 = vmatmul.mubr.bf16.gmra.mrb[0].mxu0 %v1556
        %v1879 = vpop.f32.mrb[0].mxu0
        %v1880 = vadd.f32 %v1839, %v1879
        %v1881 = vpop.f32.mrb[0].mxu0
        %v1882 = vadd.f32 %v1841, %v1881
        %v1883 = vpop.f32.mrb[0].mxu0
        %v1884 = vpop.f32.mrb[0].mxu0
        %1885 = vdwg.mxu0
        %vm1886 = vcmp.gt.f32.partialorder %v1634, 0.0
        %vm1887 = vcmp.gt.f32.partialorder %v1636, 0.0
        %vm1888 = vcmp.gt.f32.partialorder %v1716, 0.0
        %vm1889 = vcmp.gt.f32.partialorder %v1718, 0.0
        %vm1890 = vcmp.gt.f32.partialorder %v1798, 0.0
        %vm1891 = vcmp.gt.f32.partialorder %v1800, 0.0
        %vm1892 = vcmp.gt.f32.partialorder %v1880, 0.0
        %vm1893 = vcmp.gt.f32.partialorder %v1882, 0.0
        %v1894 = vmul.f32 %v1634, 0.01
        %v1895 = vmul.f32 %v1636, 0.01
        %v1896 = vmul.f32 %v1716, 0.01
        %v1897 = vmul.f32 %v1718, 0.01
        %v1898 = vmul.f32 %v1798, 0.01
        %v1899 = vmul.f32 %v1800, 0.01
        %v1900 = vmul.f32 %v1880, 0.01
        %v1901 = vmul.f32 %v1882, 0.01
        %v1902 = vsel %vm1886, %v1634, %v1894
        %v1903 = vsel %vm1887, %v1636, %v1895
        %v1904 = vsel %vm1888, %v1716, %v1896
        %v1905 = vsel %vm1889, %v1718, %v1897
        %v1906 = vsel %vm1890, %v1798, %v1898
        %v1907 = vsel %vm1891, %v1800, %v1899
        %v1908 = vsel %vm1892, %v1880, %v1900
        %v1909 = vsel %vm1893, %v1882, %v1901
        %1910 = vst [vmem:[%s525] sm:$0xff] %v1902
        %1911 = vst [vmem:[%s525 + $0x8] sm:$0xff] %v1903
        %1912 = vst [vmem:[%s525 + $0x10] sm:$0xff] %v1904
        %1913 = vst [vmem:[%s525 + $0x18] sm:$0xff] %v1905
        %1914 = vst [vmem:[%s525 + $0x20] sm:$0xff] %v1906
        %1915 = vst [vmem:[%s525 + $0x28] sm:$0xff] %v1907
        %1916 = vst [vmem:[%s525 + $0x30] sm:$0xff] %v1908
        %1917 = vst [vmem:[%s525 + $0x38] sm:$0xff] %v1909
        %s1918 = smul.u32 8, %s14
        %p1919 = scmp.lt.s32.totalorder %s1918, 159
        %s1920 = scalar_select %p1919, %s1918, 159
        %s1921 = smul.addr %s1920, 8
        %s1922 = scalar_lea.vmem %s3, %s1921
        // Predicated region
        $region56: #{_lambda_.20} parent=50 // pred_check
          %p1923 = pneg %p100
        $region57: #{_lambda_.20} parent=50 // pred_check_branch
          %1925 = sbr.rel (%p1923) target = $region59
        $region58: #{_lambda_.20} parent=50 // pred_region
          %s1926 = smul.u32 8, %s14
        $region59: #{_lambda_.20} parent=50 // pred_fallthru
          _
      $region51: #{_lambda_.20} parent=5 // pred_fallthru
        _
      %p1927 = scmp.le.s32.totalorder 2, %s9
      // Predicated region
      $region60: #{_lambda_.20} parent=5 // pred_check
        %p1928 = pneg %p1927
      $region61: #{_lambda_.20} parent=5 // pred_check_branch
        %1930 = sbr.rel (%p1928) target = $region63
      $region62: #{_lambda_.20} parent=5 // pred_region
        %s1931 = ssub.s32 %s9, 2
        // Predicated region
        $region64: #{_lambda_.20} parent=62 // pred_check
          %p1932 = pneg %p106
        $region65: #{_lambda_.20} parent=62 // pred_check_branch
          %1934 = sbr.rel (%p1932) target = $region67
        $region66: #{_lambda_.20} parent=62 // pred_region
          %s1935 = smul.u32 8, %s15
          %p1936 = scmp.lt.s32.totalorder %s1935, 159
          %s1937 = scalar_select %p1936, %s1935, 159
          %s1938 = smul.addr %s1937, 8
          %s1939 = scalar_lea.vmem %s3, %s1938
        $region67: #{_lambda_.20} parent=62 // pred_fallthru
          _
      $region63: #{_lambda_.20} parent=5 // pred_fallthru
        _
    $region6: #{_lambda_.20} parent=1 // loop_footer
      %s13 = sadd.s32 1, %s9
    $region7: #{_lambda_.20} parent=1 // loop_footer_branch
      %8 = sbr.rel target = $region3
    $region8: #{_lambda_.20} parent=1 // loop_exit
      _

// kernel: _lambda_.21
$region0: #{_lambda_.21}
  #allocation0 [shape = 'u32[]', space=smem, size = 0x4, offset = 0x4, fixed_abs, tag = 'smem constant byte address 0x4 - core index']
  #allocation1 [shape = 'u32[144,128]{1,0:T(1,128)}', space=vmem, size = 0x12000, scoped, tag = 'internal scratch']
  %s0 = inlined_call_operand.vmem [shape: bf16[8,112], index: 0, kind: input, shape index: {}]
  %s1 = inlined_call_operand.vmem [shape: bf16[112,20480], index: 1, kind: input, shape index: {}]
  %s2 = inlined_call_operand.vmem [shape: f32[8,1], index: 2, kind: input, shape index: {}]
  %s3 = inlined_call_operand.vmem [shape: f32[8,20480], index: 3, kind: output, shape index: {}]
  %s4 = sld [smem:[#allocation0]]
  $region68: #{_lambda_.21} parent=0
    _
  %s6 = ssub.s32 1, %s4
  %s7 = scalar_select 0, %s6, %s4
  $region1: #{_lambda_.21} parent=0
    #allocation2 [shape = 'u8[458752]{0}', space=vmem, size = 0x70000, scoped, tag = 'input window, operand 1']
    loop: start=0, step=1, limit=22
    $region2: #{_lambda_.21} parent=1 // loop_pre_header
      _
    $region3: #{_lambda_.21} parent=1 // loop_header
      %s9 = sphi 0, %s13
      %p10 = scmp.ge.s32.totalorder %s9, 22
      %s17 = sphi 0, %s17
      %s19 = sphi 0, %s17
      %s20 = sphi 0, %s19
      %s34 = sphi 0, %s20
      %s40 = sphi 0, %s42
      %s43 = sphi 0, %s40
      %s44 = sphi 0, %s43
      %s60 = sphi 0, %s44
      %s64 = sphi 0, %s64
      %s66 = sphi 0, %s64
      %s67 = sphi 0, %s66
      %s81 = sphi 0, %s67
      %s87 = sphi 0, %s89
      %s90 = sphi 0, %s87
      %s91 = sphi 0, %s90
      %s107 = sphi 0, %s91
    $region4: #{_lambda_.21} parent=1 // loop_header_branch
      %12 = sbr.rel (%p10) target = $region8
    $region5: #{_lambda_.21} parent=1 // loop_body
      %s14 = ssub.s32 %s9, 1
      %s15 = ssub.s32 %s9, 2
      %s16 = sadd.s32 %s9, 1
      %s18 = sadd.s32 %s17, 1
      %p21 = scmp.eq.s32.totalorder %s9, 19
      %p22 = scmp.ne.s32.totalorder %s17, %s19
      %p23 = scmp.eq.s32.totalorder %s9, 0
      %p24 = por %p22, %p23
      %p25 = scmp.ne.s32.totalorder %s17, %s19
      %p26 = scmp.eq.s32.totalorder %s14, 19
      %p27 = por %p25, %p26
      %p28 = scmp.ne.s32.totalorder %s19, %s20
      %p29 = scmp.eq.s32.totalorder %s14, 0
      %p30 = por %p28, %p29
      %p31 = scmp.ne.s32.totalorder %s19, %s20
      %p32 = scmp.eq.s32.totalorder %s15, 19
      %p33 = por %p31, %p32
      %p35 = scmp.ne.s32.totalorder %s20, %s34
      %p36 = scmp.eq.s32.totalorder %s15, 0
      %p37 = por %p35, %p36
      %s38 = ssub.s32 %s9, %s16
      %p39 = scmp.eq.s32.totalorder %s38, 0
      %s41 = sadd.s32 %s40, 1
      %s42 = scalar_select %p39, %s40, %s41
      %p45 = pneg %p39
      %p46 = scmp.eq.s32.totalorder %s9, 19
      %p47 = por %p45, %p46
      %p48 = scmp.ne.s32.totalorder %s40, %s43
      %p49 = scmp.eq.s32.totalorder %s9, 0
      %p50 = por %p48, %p49
      %p51 = scmp.ne.s32.totalorder %s40, %s43
      %p52 = scmp.eq.s32.totalorder %s14, 19
      %p53 = por %p51, %p52
      %p54 = scmp.ne.s32.totalorder %s43, %s44
      %p55 = scmp.eq.s32.totalorder %s14, 0
      %p56 = por %p54, %p55
      %p57 = scmp.ne.s32.totalorder %s43, %s44
      %p58 = scmp.eq.s32.totalorder %s15, 19
      %p59 = por %p57, %p58
      %p61 = scmp.ne.s32.totalorder %s44, %s60
      %p62 = scmp.eq.s32.totalorder %s15, 0
      %p63 = por %p61, %p62
      %s65 = sadd.s32 %s64, 1
      %p68 = scmp.eq.s32.totalorder %s9, 19
      %p69 = scmp.ne.s32.totalorder %s64, %s66
      %p70 = scmp.eq.s32.totalorder %s9, 0
      %p71 = por %p69, %p70
      %p72 = scmp.ne.s32.totalorder %s64, %s66
      %p73 = scmp.eq.s32.totalorder %s14, 19
      %p74 = por %p72, %p73
      %p75 = scmp.ne.s32.totalorder %s66, %s67
      %p76 = scmp.eq.s32.totalorder %s14, 0
      %p77 = por %p75, %p76
      %p78 = scmp.ne.s32.totalorder %s66, %s67
      %p79 = scmp.eq.s32.totalorder %s15, 19
      %p80 = por %p78, %p79
      %p82 = scmp.ne.s32.totalorder %s67, %s81
      %p83 = scmp.eq.s32.totalorder %s15, 0
      %p84 = por %p82, %p83
      %s85 = ssub.s32 %s9, %s16
      %p86 = scmp.eq.s32.totalorder %s85, 0
      %s88 = sadd.s32 %s87, 1
      %s89 = scalar_select %p86, %s87, %s88
      %p92 = pneg %p86
      %p93 = scmp.eq.s32.totalorder %s9, 19
      %p94 = por %p92, %p93
      %p95 = scmp.ne.s32.totalorder %s87, %s90
      %p96 = scmp.eq.s32.totalorder %s9, 0
      %p97 = por %p95, %p96
      %p98 = scmp.ne.s32.totalorder %s87, %s90
      %p99 = scmp.eq.s32.totalorder %s14, 19
      %p100 = por %p98, %p99
      %p101 = scmp.ne.s32.totalorder %s90, %s91
      %p102 = scmp.eq.s32.totalorder %s14, 0
      %p103 = por %p101, %p102
      %p104 = scmp.ne.s32.totalorder %s90, %s91
      %p105 = scmp.eq.s32.totalorder %s15, 19
      %p106 = por %p104, %p105
      %p108 = scmp.ne.s32.totalorder %s91, %s107
      %p109 = scmp.eq.s32.totalorder %s15, 0
      %p110 = por %p108, %p109
      %p111 = scmp.le.s32.totalorder 1, %s9
      %p112 = scmp.lt.s32.totalorder %s9, 21
      %p113 = pnand %p111, %p112
      %p114 = pneg %p113
      // Predicated region
      $region9: #{_lambda_.21} parent=5 // pred_check
        _
      $region10: #{_lambda_.21} parent=5 // pred_check_branch
        %116 = sbr.rel (%p113) target = $region12
      $region11: #{_lambda_.21} parent=5 // pred_region
        %s117 = ssub.s32 %s9, 1
        // Predicated region
        $region13: #{_lambda_.21} parent=11 // pred_check
          %p118 = pneg %p30
        $region14: #{_lambda_.21} parent=11 // pred_check_branch
          %120 = sbr.rel (%p118) target = $region16
        $region15: #{_lambda_.21} parent=11 // pred_region
          _
        $region16: #{_lambda_.21} parent=11 // pred_fallthru
          _
        // Predicated region
        $region17: #{_lambda_.21} parent=11 // pred_check
          %p121 = pneg %p77
        $region18: #{_lambda_.21} parent=11 // pred_check_branch
          %123 = sbr.rel (%p121) target = $region20
        $region19: #{_lambda_.21} parent=11 // pred_region
          _
        $region20: #{_lambda_.21} parent=11 // pred_fallthru
          _
      $region12: #{_lambda_.21} parent=5 // pred_fallthru
        _
      %p124 = scmp.lt.s32.totalorder %s9, 20
      // Predicated region
      $region21: #{_lambda_.21} parent=5 // pred_check
        %p125 = pneg %p124
      $region22: #{_lambda_.21} parent=5 // pred_check_branch
        %127 = sbr.rel (%p125) target = $region24
      $region23: #{_lambda_.21} parent=5 // pred_region
        // Predicated region
        $region25: #{_lambda_.21} parent=23 // pred_check
          %p128 = pneg %p50
        $region26: #{_lambda_.21} parent=23 // pred_check_branch
          %130 = sbr.rel (%p128) target = $region28
        $region27: #{_lambda_.21} parent=23 // pred_region
          %s131 = sand.u32 %s40, 1
          %s132 = sand.u32 %s40, 1
          %s133 = smul.addr %s132, 448
          %s134 = scalar_lea.vmem [#allocation2], %s133
          %s135 = smul.u32 8, %s9
          %s136 = smul.addr %s135, 4
          %s137 = scalar_lea.vmem %s1, %s136
          // Predicated region
          $region29: #{_lambda_.21} parent=27 // pred_check
            _
          $region30: #{_lambda_.21} parent=27 // pred_check_branch
            %139 = sbr.rel (0) target = $region32
          $region31: #{_lambda_.21} parent=27 // pred_region
            // Predicated region
            $region33: #{_lambda_.21} parent=31 // pred_check
              _
            $region34: #{_lambda_.21} parent=31 // pred_check_branch
              %141 = sbr.rel (0) target = $region36
            $region35: #{_lambda_.21} parent=31 // pred_region
              loop: start=0, step=1, limit=1
              $region37: #{_lambda_.21} parent=35 // loop_pre_header
                _
              $region38: #{_lambda_.21} parent=35 // loop_header
                %s143 = sphi 0, %s147
                %p144 = scmp.ge.s32.totalorder %s143, 1
                %s148 = sphi %s137, %s137
                %s149 = sphi %s134, %s134
              $region39: #{_lambda_.21} parent=35 // loop_header_branch
                %146 = sbr.rel (%p144) target = $region43
              $region40: #{_lambda_.21} parent=35 // loop_body
                %v150 = vld [vmem:[%s148] sm:$0xff]
                %151 = vst [vmem:[%s149] sm:$0xff] %v150
                %v152 = vld [vmem:[%s148 + $0x8] sm:$0xff]
                %153 = vst [vmem:[%s149 + $0x8] sm:$0xff] %v152
                %v154 = vld [vmem:[%s148 + $0x10] sm:$0xff]
                %155 = vst [vmem:[%s149 + $0x10] sm:$0xff] %v154
                %v156 = vld [vmem:[%s148 + $0x18] sm:$0xff]
                %157 = vst [vmem:[%s149 + $0x18] sm:$0xff] %v156
                %v158 = vld [vmem:[%s148 + $0x280] sm:$0xff]
                %159 = vst [vmem:[%s149 + $0x20] sm:$0xff] %v158
                %v160 = vld [vmem:[%s148 + $0x288] sm:$0xff]
                %161 = vst [vmem:[%s149 + $0x28] sm:$0xff] %v160
                %v162 = vld [vmem:[%s148 + $0x290] sm:$0xff]
                %163 = vst [vmem:[%s149 + $0x30] sm:$0xff] %v162
                %v164 = vld [vmem:[%s148 + $0x298] sm:$0xff]
                %165 = vst [vmem:[%s149 + $0x38] sm:$0xff] %v164
                %v166 = vld [vmem:[%s148 + $0x500] sm:$0xff]
                %167 = vst [vmem:[%s149 + $0x40] sm:$0xff] %v166
                %v168 = vld [vmem:[%s148 + $0x508] sm:$0xff]
                %169 = vst [vmem:[%s149 + $0x48] sm:$0xff] %v168
                %v170 = vld [vmem:[%s148 + $0x510] sm:$0xff]
                %171 = vst [vmem:[%s149 + $0x50] sm:$0xff] %v170
                %v172 = vld [vmem:[%s148 + $0x518] sm:$0xff]
                %173 = vst [vmem:[%s149 + $0x58] sm:$0xff] %v172
                %v174 = vld [vmem:[%s148 + $0x780] sm:$0xff]
                %175 = vst [vmem:[%s149 + $0x60] sm:$0xff] %v174
                %v176 = vld [vmem:[%s148 + $0x788] sm:$0xff]
                %177 = vst [vmem:[%s149 + $0x68] sm:$0xff] %v176
                %v178 = vld [vmem:[%s148 + $0x790] sm:$0xff]
                %179 = vst [vmem:[%s149 + $0x70] sm:$0xff] %v178
                %v180 = vld [vmem:[%s148 + $0x798] sm:$0xff]
                %181 = vst [vmem:[%s149 + $0x78] sm:$0xff] %v180
                %v182 = vld [vmem:[%s148 + $0xa00] sm:$0xff]
                %183 = vst [vmem:[%s149 + $0x80] sm:$0xff] %v182
                %v184 = vld [vmem:[%s148 + $0xa08] sm:$0xff]
                %185 = vst [vmem:[%s149 + $0x88] sm:$0xff] %v184
                %v186 = vld [vmem:[%s148 + $0xa10] sm:$0xff]
                %187 = vst [vmem:[%s149 + $0x90] sm:$0xff] %v186
                %v188 = vld [vmem:[%s148 + $0xa18] sm:$0xff]
                %189 = vst [vmem:[%s149 + $0x98] sm:$0xff] %v188
                %v190 = vld [vmem:[%s148 + $0xc80] sm:$0xff]
                %191 = vst [vmem:[%s149 + $0xa0] sm:$0xff] %v190
                %v192 = vld [vmem:[%s148 + $0xc88] sm:$0xff]
                %193 = vst [vmem:[%s149 + $0xa8] sm:$0xff] %v192
                %v194 = vld [vmem:[%s148 + $0xc90] sm:$0xff]
                %195 = vst [vmem:[%s149 + $0xb0] sm:$0xff] %v194
                %v196 = vld [vmem:[%s148 + $0xc98] sm:$0xff]
                %197 = vst [vmem:[%s149 + $0xb8] sm:$0xff] %v196
                %v198 = vld [vmem:[%s148 + $0xf00] sm:$0xff]
                %199 = vst [vmem:[%s149 + $0xc0] sm:$0xff] %v198
                %v200 = vld [vmem:[%s148 + $0xf08] sm:$0xff]
                %201 = vst [vmem:[%s149 + $0xc8] sm:$0xff] %v200
                %v202 = vld [vmem:[%s148 + $0xf10] sm:$0xff]
                %203 = vst [vmem:[%s149 + $0xd0] sm:$0xff] %v202
                %v204 = vld [vmem:[%s148 + $0xf18] sm:$0xff]
                %205 = vst [vmem:[%s149 + $0xd8] sm:$0xff] %v204
                %v206 = vld [vmem:[%s148 + $0x1180] sm:$0xff]
                %207 = vst [vmem:[%s149 + $0xe0] sm:$0xff] %v206
                %v208 = vld [vmem:[%s148 + $0x1188] sm:$0xff]
                %209 = vst [vmem:[%s149 + $0xe8] sm:$0xff] %v208
                %v210 = vld [vmem:[%s148 + $0x1190] sm:$0xff]
                %211 = vst [vmem:[%s149 + $0xf0] sm:$0xff] %v210
                %v212 = vld [vmem:[%s148 + $0x1198] sm:$0xff]
                %213 = vst [vmem:[%s149 + $0xf8] sm:$0xff] %v212
                %v214 = vld [vmem:[%s148 + $0x1400] sm:$0xff]
                %215 = vst [vmem:[%s149 + $0x100] sm:$0xff] %v214
                %v216 = vld [vmem:[%s148 + $0x1408] sm:$0xff]
                %217 = vst [vmem:[%s149 + $0x108] sm:$0xff] %v216
                %v218 = vld [vmem:[%s148 + $0x1410] sm:$0xff]
                %219 = vst [vmem:[%s149 + $0x110] sm:$0xff] %v218
                %v220 = vld [vmem:[%s148 + $0x1418] sm:$0xff]
                %221 = vst [vmem:[%s149 + $0x118] sm:$0xff] %v220
                %v222 = vld [vmem:[%s148 + $0x1680] sm:$0xff]
                %223 = vst [vmem:[%s149 + $0x120] sm:$0xff] %v222
                %v224 = vld [vmem:[%s148 + $0x1688] sm:$0xff]
                %225 = vst [vmem:[%s149 + $0x128] sm:$0xff] %v224
                %v226 = vld [vmem:[%s148 + $0x1690] sm:$0xff]
                %227 = vst [vmem:[%s149 + $0x130] sm:$0xff] %v226
                %v228 = vld [vmem:[%s148 + $0x1698] sm:$0xff]
                %229 = vst [vmem:[%s149 + $0x138] sm:$0xff] %v228
                %v230 = vld [vmem:[%s148 + $0x1900] sm:$0xff]
                %231 = vst [vmem:[%s149 + $0x140] sm:$0xff] %v230
                %v232 = vld [vmem:[%s148 + $0x1908] sm:$0xff]
                %233 = vst [vmem:[%s149 + $0x148] sm:$0xff] %v232
                %v234 = vld [vmem:[%s148 + $0x1910] sm:$0xff]
                %235 = vst [vmem:[%s149 + $0x150] sm:$0xff] %v234
                %v236 = vld [vmem:[%s148 + $0x1918] sm:$0xff]
                %237 = vst [vmem:[%s149 + $0x158] sm:$0xff] %v236
                %v238 = vld [vmem:[%s148 + $0x1b80] sm:$0xff]
                %239 = vst [vmem:[%s149 + $0x160] sm:$0xff] %v238
                %v240 = vld [vmem:[%s148 + $0x1b88] sm:$0xff]
                %241 = vst [vmem:[%s149 + $0x168] sm:$0xff] %v240
                %v242 = vld [vmem:[%s148 + $0x1b90] sm:$0xff]
                %243 = vst [vmem:[%s149 + $0x170] sm:$0xff] %v242
                %v244 = vld [vmem:[%s148 + $0x1b98] sm:$0xff]
                %245 = vst [vmem:[%s149 + $0x178] sm:$0xff] %v244
                %v246 = vld [vmem:[%s148 + $0x1e00] sm:$0xff]
                %247 = vst [vmem:[%s149 + $0x180] sm:$0xff] %v246
                %v248 = vld [vmem:[%s148 + $0x1e08] sm:$0xff]
                %249 = vst [vmem:[%s149 + $0x188] sm:$0xff] %v248
                %v250 = vld [vmem:[%s148 + $0x1e10] sm:$0xff]
                %251 = vst [vmem:[%s149 + $0x190] sm:$0xff] %v250
                %v252 = vld [vmem:[%s148 + $0x1e18] sm:$0xff]
                %253 = vst [vmem:[%s149 + $0x198] sm:$0xff] %v252
                %v254 = vld [vmem:[%s148 + $0x2080] sm:$0xff]
                %255 = vst [vmem:[%s149 + $0x1a0] sm:$0xff] %v254
                %v256 = vld [vmem:[%s148 + $0x2088] sm:$0xff]
                %257 = vst [vmem:[%s149 + $0x1a8] sm:$0xff] %v256
                %v258 = vld [vmem:[%s148 + $0x2090] sm:$0xff]
                %259 = vst [vmem:[%s149 + $0x1b0] sm:$0xff] %v258
                %v260 = vld [vmem:[%s148 + $0x2098] sm:$0xff]
                %261 = vst [vmem:[%s149 + $0x1b8] sm:$0xff] %v260
              $region41: #{_lambda_.21} parent=35 // loop_footer
                %s147 = sadd.s32 1, %s143
              $region42: #{_lambda_.21} parent=35 // loop_footer_branch
                %142 = sbr.rel target = $region38
              $region43: #{_lambda_.21} parent=35 // loop_exit
                _
            $region36: #{_lambda_.21} parent=31 // pred_fallthru
              _
            // Predicated region
            $region44: #{_lambda_.21} parent=31 // pred_check
              _
            $region45: #{_lambda_.21} parent=31 // pred_check_branch
              %263 = sbr.rel target = $region47
            $region46: #{_lambda_.21} parent=31 // pred_region
              _
            $region47: #{_lambda_.21} parent=31 // pred_fallthru
              _
          $region32: #{_lambda_.21} parent=27 // pred_fallthru
            _
          %264 = vnop
        $region28: #{_lambda_.21} parent=23 // pred_fallthru
          _
      $region24: #{_lambda_.21} parent=5 // pred_fallthru
        _
      %p265 = scmp.le.s32.totalorder 1, %s9
      %p266 = scmp.lt.s32.totalorder %s9, 21
      %p267 = pnand %p265, %p266
      %p268 = pneg %p267
      // Predicated region
      $region48: #{_lambda_.21} parent=5 // pred_check
        _
      $region49: #{_lambda_.21} parent=5 // pred_check_branch
        %270 = sbr.rel (%p267) target = $region51
      $region50: #{_lambda_.21} parent=5 // pred_region
        %s271 = ssub.s32 %s9, 1
        %s272 = sand.u32 %s43, 1
        %s273 = sand.u32 %s43, 1
        %s274 = smul.addr %s273, 448
        %s275 = scalar_lea.vmem [#allocation2], %s274
        // Predicated region
        $region52: #{_lambda_.21} parent=50 // pred_check
          %p276 = pneg %p56
        $region53: #{_lambda_.21} parent=50 // pred_check_branch
          %278 = sbr.rel (%p276) target = $region55
        $region54: #{_lambda_.21} parent=50 // pred_region
          _
        $region55: #{_lambda_.21} parent=50 // pred_fallthru
          _
        %p279 = pneg %p30
        %p280 = pneg %p27
        %s281 = sand.u32 %s43, 1
        %s282 = sand.u32 %s43, 1
        %s283 = smul.addr %s282, 448
        %s284 = scalar_lea.vmem [#allocation2], %s283
        %p285 = pneg %p56
        %p286 = pneg %p53
        %p287 = pneg %p77
        %p288 = pneg %p74
        %p289 = pneg %p103
        %p290 = pneg %p100
        %s291 = smul.u32 8, %s14
        %p292 = scmp.lt.s32.totalorder %s291, 159
        %s293 = scalar_select %p292, %s291, 159
        %s294 = smul.addr %s293, 8
        %s295 = scalar_lea.vmem %s3, %s294
        %s296 = smul.u32 8, %s14
        %s297 = smul.u32 8, %s14
        %p298 = scmp.lt.s32.totalorder %s297, 159
        %s299 = scalar_select %p298, %s297, 159
        %s300 = smul.addr %s299, 8
        %s301 = scalar_lea.vmem %s3, %s300
        %s302 = smul.u32 8, %s14
        %v304 = vld [vmem:[%s0] sm:$0xf]
        %v305 = vld [vmem:[%s275] sm:$0xff]
        %v306 = vld [vmem:[%s275 + $0x8] sm:$0xff]
        %v307 = vld [vmem:[%s275 + $0x10] sm:$0xff]
        %v308 = vld [vmem:[%s275 + $0x18] sm:$0xff]
        %v309 = vld [vmem:[%s275 + $0x20] sm:$0xff]
        %v310 = vld [vmem:[%s275 + $0x28] sm:$0xff]
        %v311 = vld [vmem:[%s275 + $0x30] sm:$0xff]
        %v312 = vld [vmem:[%s275 + $0x38] sm:$0xff]
        %v313 = vld [vmem:[%s275 + $0x40] sm:$0xff]
        %v314 = vld [vmem:[%s275 + $0x48] sm:$0xff]
        %v315 = vld [vmem:[%s275 + $0x50] sm:$0xff]
        %v316 = vld [vmem:[%s275 + $0x58] sm:$0xff]
        %v317 = vld [vmem:[%s275 + $0x60] sm:$0xff]
        %v318 = vld [vmem:[%s275 + $0x68] sm:$0xff]
        %v319 = vld [vmem:[%s275 + $0x70] sm:$0xff]
        %v320 = vld [vmem:[%s275 + $0x78] sm:$0xff]
        %v321 = vld [vmem:[%s275 + $0x80] sm:$0xff]
        %v322 = vld [vmem:[%s275 + $0x88] sm:$0xff]
        %v323 = vld [vmem:[%s275 + $0x90] sm:$0xff]
        %v324 = vld [vmem:[%s275 + $0x98] sm:$0xff]
        %v325 = vld [vmem:[%s275 + $0xa0] sm:$0xff]
        %v326 = vld [vmem:[%s275 + $0xa8] sm:$0xff]
        %v327 = vld [vmem:[%s275 + $0xb0] sm:$0xff]
        %v328 = vld [vmem:[%s275 + $0xb8] sm:$0xff]
        %v329 = vld [vmem:[%s275 + $0xc0] sm:$0xff]
        %v330 = vld [vmem:[%s275 + $0xc8] sm:$0xff]
        %v331 = vld [vmem:[%s275 + $0xd0] sm:$0xff]
        %v332 = vld [vmem:[%s275 + $0xd8] sm:$0xff]
        %v333 = vld [vmem:[%s275 + $0xe0] sm:$0xff]
        %v334 = vld [vmem:[%s275 + $0xe8] sm:$0xff]
        %v335 = vld [vmem:[%s275 + $0xf0] sm:$0xff]
        %v336 = vld [vmem:[%s275 + $0xf8] sm:$0xff]
        %v337 = vld [vmem:[%s275 + $0x100] sm:$0xff]
        %v338 = vld [vmem:[%s275 + $0x108] sm:$0xff]
        %v339 = vld [vmem:[%s275 + $0x110] sm:$0xff]
        %v340 = vld [vmem:[%s275 + $0x118] sm:$0xff]
        %v341 = vld [vmem:[%s275 + $0x120] sm:$0xff]
        %v342 = vld [vmem:[%s275 + $0x128] sm:$0xff]
        %v343 = vld [vmem:[%s275 + $0x130] sm:$0xff]
        %v344 = vld [vmem:[%s275 + $0x138] sm:$0xff]
        %v345 = vld [vmem:[%s275 + $0x140] sm:$0xff]
        %v346 = vld [vmem:[%s275 + $0x148] sm:$0xff]
        %v347 = vld [vmem:[%s275 + $0x150] sm:$0xff]
        %v348 = vld [vmem:[%s275 + $0x158] sm:$0xff]
        %v349 = vld [vmem:[%s275 + $0x160] sm:$0xff]
        %v350 = vld [vmem:[%s275 + $0x168] sm:$0xff]
        %v351 = vld [vmem:[%s275 + $0x170] sm:$0xff]
        %v352 = vld [vmem:[%s275 + $0x178] sm:$0xff]
        %v353 = vld [vmem:[%s275 + $0x180] sm:$0xff]
        %v354 = vld [vmem:[%s275 + $0x188] sm:$0xff]
        %v355 = vld [vmem:[%s275 + $0x190] sm:$0xff]
        %v356 = vld [vmem:[%s275 + $0x198] sm:$0xff]
        %v357 = vld [vmem:[%s275 + $0x1a0] sm:$0xff]
        %v358 = vld [vmem:[%s275 + $0x1a8] sm:$0xff]
        %v359 = vld [vmem:[%s275 + $0x1b0] sm:$0xff]
        %v360 = vld [vmem:[%s275 + $0x1b8] sm:$0xff]
        %v361 = vld [vmem:[%s2] sm:$0xff]
        %363 = vset.pattern.permute.xlu0 0
        %364 = vperm.xlu0 %363, %v361
        %v365 = vpop.permute.xlu0 %364
        %v423 = vunpack.c.l.b16 %v305
        %v424 = vunpack.c.h.b16 %v305
        %v425 = vunpack.c.l.b16 %v306
        %v426 = vunpack.c.h.b16 %v306
        %v427 = vunpack.c.l.b16 %v307
        %v428 = vunpack.c.h.b16 %v307
        %v429 = vunpack.c.l.b16 %v308
        %v430 = vunpack.c.h.b16 %v308
        %v431 = vunpack.c.l.b16 %v309
        %v432 = vunpack.c.h.b16 %v309
        %v433 = vunpack.c.l.b16 %v310
        %v434 = vunpack.c.h.b16 %v310
        %v435 = vunpack.c.l.b16 %v311
        %v436 = vunpack.c.h.b16 %v311
        %v437 = vunpack.c.l.b16 %v312
        %v438 = vunpack.c.h.b16 %v312
        %v439 = vunpack.c.l.b16 %v313
        %v440 = vunpack.c.h.b16 %v313
        %v441 = vunpack.c.l.b16 %v314
        %v442 = vunpack.c.h.b16 %v314
        %v443 = vunpack.c.l.b16 %v315
        %v444 = vunpack.c.h.b16 %v315
        %v445 = vunpack.c.l.b16 %v316
        %v446 = vunpack.c.h.b16 %v316
        %v447 = vunpack.c.l.b16 %v317
        %v448 = vunpack.c.h.b16 %v317
        %v449 = vunpack.c.l.b16 %v318
        %v450 = vunpack.c.h.b16 %v318
        %v451 = vunpack.c.l.b16 %v319
        %v452 = vunpack.c.h.b16 %v319
        %v453 = vunpack.c.l.b16 %v320
        %v454 = vunpack.c.h.b16 %v320
        %v455 = vunpack.c.l.b16 %v321
        %v456 = vunpack.c.h.b16 %v321
        %v457 = vunpack.c.l.b16 %v322
        %v458 = vunpack.c.h.b16 %v322
        %v459 = vunpack.c.l.b16 %v323
        %v460 = vunpack.c.h.b16 %v323
        %v461 = vunpack.c.l.b16 %v324
        %v462 = vunpack.c.h.b16 %v324
        %v463 = vunpack.c.l.b16 %v325
        %v464 = vunpack.c.h.b16 %v325
        %v465 = vunpack.c.l.b16 %v326
        %v466 = vunpack.c.h.b16 %v326
        %v467 = vunpack.c.l.b16 %v327
        %v468 = vunpack.c.h.b16 %v327
        %v469 = vunpack.c.l.b16 %v328
        %v470 = vunpack.c.h.b16 %v328
        %v471 = vunpack.c.l.b16 %v329
        %v472 = vunpack.c.h.b16 %v329
        %v473 = vunpack.c.l.b16 %v330
        %v474 = vunpack.c.h.b16 %v330
        %v475 = vunpack.c.l.b16 %v331
        %v476 = vunpack.c.h.b16 %v331
        %v477 = vunpack.c.l.b16 %v332
        %v478 = vunpack.c.h.b16 %v332
        %v479 = vunpack.c.l.b16 %v333
        %v480 = vunpack.c.h.b16 %v333
        %v481 = vunpack.c.l.b16 %v334
        %v482 = vunpack.c.h.b16 %v334
        %v483 = vunpack.c.l.b16 %v335
        %v484 = vunpack.c.h.b16 %v335
        %v485 = vunpack.c.l.b16 %v336
        %v486 = vunpack.c.h.b16 %v336
        %v487 = vunpack.c.l.b16 %v337
        %v488 = vunpack.c.h.b16 %v337
        %v489 = vunpack.c.l.b16 %v338
        %v490 = vunpack.c.h.b16 %v338
        %v491 = vunpack.c.l.b16 %v339
        %v492 = vunpack.c.h.b16 %v339
        %v493 = vunpack.c.l.b16 %v340
        %v494 = vunpack.c.h.b16 %v340
        %v495 = vunpack.c.l.b16 %v341
        %v496 = vunpack.c.h.b16 %v341
        %v497 = vunpack.c.l.b16 %v342
        %v498 = vunpack.c.h.b16 %v342
        %v499 = vunpack.c.l.b16 %v343
        %v500 = vunpack.c.h.b16 %v343
        %v501 = vunpack.c.l.b16 %v344
        %v502 = vunpack.c.h.b16 %v344
        %v503 = vunpack.c.l.b16 %v345
        %v504 = vunpack.c.h.b16 %v345
        %v505 = vunpack.c.l.b16 %v346
        %v506 = vunpack.c.h.b16 %v346
        %v507 = vunpack.c.l.b16 %v347
        %v508 = vunpack.c.h.b16 %v347
        %v509 = vunpack.c.l.b16 %v348
        %v510 = vunpack.c.h.b16 %v348
        %v511 = vunpack.c.l.b16 %v349
        %v512 = vunpack.c.h.b16 %v349
        %v513 = vunpack.c.l.b16 %v350
        %v514 = vunpack.c.h.b16 %v350
        %v515 = vunpack.c.l.b16 %v351
        %v516 = vunpack.c.h.b16 %v351
        %v517 = vunpack.c.l.b16 %v352
        %v518 = vunpack.c.h.b16 %v352
        %v519 = vunpack.c.l.b16 %v353
        %v520 = vunpack.c.h.b16 %v353
        %v521 = vunpack.c.l.b16 %v354
        %v522 = vunpack.c.h.b16 %v354
        %v523 = vunpack.c.l.b16 %v355
        %v524 = vunpack.c.h.b16 %v355
        %v525 = vunpack.c.l.b16 %v356
        %v526 = vunpack.c.h.b16 %v356
        %v527 = vunpack.c.l.b16 %v357
        %v528 = vunpack.c.h.b16 %v357
        %v529 = vunpack.c.l.b16 %v358
        %v530 = vunpack.c.h.b16 %v358
        %v531 = vunpack.c.l.b16 %v359
        %v532 = vunpack.c.h.b16 %v359
        %v533 = vunpack.c.l.b16 %v360
        %v534 = vunpack.c.h.b16 %v360
        %v535 = vpack.c.b16 %v431, %v423
        %v536 = vpack.c.b16 %v432, %v424
        %v537 = vpack.c.b16 %v433, %v425
        %v538 = vpack.c.b16 %v434, %v426
        %v539 = vpack.c.b16 %v435, %v427
        %v540 = vpack.c.b16 %v436, %v428
        %v541 = vpack.c.b16 %v437, %v429
        %v542 = vpack.c.b16 %v438, %v430
        %v543 = vpack.c.b16 %v447, %v439
        %v544 = vpack.c.b16 %v448, %v440
        %v545 = vpack.c.b16 %v449, %v441
        %v546 = vpack.c.b16 %v450, %v442
        %v547 = vpack.c.b16 %v451, %v443
        %v548 = vpack.c.b16 %v452, %v444
        %v549 = vpack.c.b16 %v453, %v445
        %v550 = vpack.c.b16 %v454, %v446
        %v551 = vpack.c.b16 %v463, %v455
        %v552 = vpack.c.b16 %v464, %v456
        %v553 = vpack.c.b16 %v465, %v457
        %v554 = vpack.c.b16 %v466, %v458
        %v555 = vpack.c.b16 %v467, %v459
        %v556 = vpack.c.b16 %v468, %v460
        %v557 = vpack.c.b16 %v469, %v461
        %v558 = vpack.c.b16 %v470, %v462
        %v559 = vpack.c.b16 %v479, %v471
        %v560 = vpack.c.b16 %v480, %v472
        %v561 = vpack.c.b16 %v481, %v473
        %v562 = vpack.c.b16 %v482, %v474
        %v563 = vpack.c.b16 %v483, %v475
        %v564 = vpack.c.b16 %v484, %v476
        %v565 = vpack.c.b16 %v485, %v477
        %v566 = vpack.c.b16 %v486, %v478
        %v567 = vpack.c.b16 %v495, %v487
        %v568 = vpack.c.b16 %v496, %v488
        %v569 = vpack.c.b16 %v497, %v489
        %v570 = vpack.c.b16 %v498, %v490
        %v571 = vpack.c.b16 %v499, %v491
        %v572 = vpack.c.b16 %v500, %v492
        %v573 = vpack.c.b16 %v501, %v493
        %v574 = vpack.c.b16 %v502, %v494
        %v575 = vpack.c.b16 %v511, %v503
        %v576 = vpack.c.b16 %v512, %v504
        %v577 = vpack.c.b16 %v513, %v505
        %v578 = vpack.c.b16 %v514, %v506
        %v579 = vpack.c.b16 %v515, %v507
        %v580 = vpack.c.b16 %v516, %v508
        %v581 = vpack.c.b16 %v517, %v509
        %v582 = vpack.c.b16 %v518, %v510
        %v583 = vpack.c.b16 %v527, %v519
        %v584 = vpack.c.b16 %v528, %v520
        %v585 = vpack.c.b16 %v529, %v521
        %v586 = vpack.c.b16 %v530, %v522
        %v587 = vpack.c.b16 %v531, %v523
        %v588 = vpack.c.b16 %v532, %v524
        %v589 = vpack.c.b16 %v533, %v525
        %v590 = vpack.c.b16 %v534, %v526
        %vm647 = vcmask 916480
        %v649 = vsel %vm647, %v304, 0
        %651 = vmatprep.subr.bf16.mxu0 %v536
        %652 = vmatpush1.bf16.msra.mxu0 %v535
        %653 = vmatprep.subr.bf16.mxu0 %v544
        %654 = vmatpush1.bf16.msra.mxu0 %v543
        %655 = vmatprep.subr.bf16.mxu0 %v552
        %656 = vmatpush1.bf16.msra.mxu0 %v551
        %657 = vmatprep.subr.bf16.mxu0 %v560
        %658 = vmatpush1.bf16.msra.mxu0 %v559
        %659 = vmatprep.subr.bf16.mxu0 %v568
        %660 = vmatpush1.bf16.msra.mxu0 %v567
        %661 = vmatprep.subr.bf16.mxu0 %v576
        %662 = vmatpush1.bf16.msra.mxu0 %v575
        %663 = vmatprep.subr.bf16.mxu0 %v584
        %664 = vmatpush1.bf16.msra.mxu0 %v583
        %665 = vmatprep.subr.bf16.mxu0 0
        %666 = vmatpush1.bf16.msra.mxu0 0
        %667 = vmatprep.subr.bf16.mxu0 0
        %668 = vmatpush1.bf16.msra.mxu0 0
        %669 = vmatprep.subr.bf16.mxu0 0
        %670 = vmatpush1.bf16.msra.mxu0 0
        %671 = vmatprep.subr.bf16.mxu0 0
        %672 = vmatpush1.bf16.msra.mxu0 0
        %673 = vmatprep.subr.bf16.mxu0 0
        %674 = vmatpush1.bf16.msra.mxu0 0
        %675 = vmatprep.subr.bf16.mxu0 0
        %676 = vmatpush1.bf16.msra.mxu0 0
        %677 = vmatprep.subr.bf16.mxu0 0
        %678 = vmatpush1.bf16.msra.mxu0 0
        %679 = vmatprep.subr.bf16.mxu0 0
        %680 = vmatpush1.bf16.msra.mxu0 0
        %681 = vmatprep.subr.bf16.mxu0 0
        %682 = vmatpush1.bf16.msra.mxu0 0
        %683 = vmatprep.mubr.bf16.mxu0 0
        %684 = vmatmul.mubr.bf16.gmra.mrb[0].mxu0 %v649
        %v685 = vpop.f32.mrb[0].mxu0
        %v686 = vadd.f32 %v365, %v685
        %v687 = vpop.f32.mrb[0].mxu0
        %v688 = vadd.f32 %v365, %v687
        %v689 = vpop.f32.mrb[0].mxu0
        %v690 = vpop.f32.mrb[0].mxu0
        %691 = vdwg.mxu0
        %692 = vmatprep.subr.bf16.mxu0 %v538
        %693 = vmatpush1.bf16.msra.mxu0 %v537
        %694 = vmatprep.subr.bf16.mxu0 %v546
        %695 = vmatpush1.bf16.msra.mxu0 %v545
        %696 = vmatprep.subr.bf16.mxu0 %v554
        %697 = vmatpush1.bf16.msra.mxu0 %v553
        %698 = vmatprep.subr.bf16.mxu0 %v562
        %699 = vmatpush1.bf16.msra.mxu0 %v561
        %700 = vmatprep.subr.bf16.mxu0 %v570
        %701 = vmatpush1.bf16.msra.mxu0 %v569
        %702 = vmatprep.subr.bf16.mxu0 %v578
        %703 = vmatpush1.bf16.msra.mxu0 %v577
        %704 = vmatprep.subr.bf16.mxu0 %v586
        %705 = vmatpush1.bf16.msra.mxu0 %v585
        %706 = vmatprep.subr.bf16.mxu0 0
        %707 = vmatpush1.bf16.msra.mxu0 0
        %708 = vmatprep.subr.bf16.mxu0 0
        %709 = vmatpush1.bf16.msra.mxu0 0
        %710 = vmatprep.subr.bf16.mxu0 0
        %711 = vmatpush1.bf16.msra.mxu0 0
        %712 = vmatprep.subr.bf16.mxu0 0
        %713 = vmatpush1.bf16.msra.mxu0 0
        %714 = vmatprep.subr.bf16.mxu0 0
        %715 = vmatpush1.bf16.msra.mxu0 0
        %716 = vmatprep.subr.bf16.mxu0 0
        %717 = vmatpush1.bf16.msra.mxu0 0
        %718 = vmatprep.subr.bf16.mxu0 0
        %719 = vmatpush1.bf16.msra.mxu0 0
        %720 = vmatprep.subr.bf16.mxu0 0
        %721 = vmatpush1.bf16.msra.mxu0 0
        %722 = vmatprep.subr.bf16.mxu0 0
        %723 = vmatpush1.bf16.msra.mxu0 0
        %724 = vmatprep.mubr.bf16.mxu0 0
        %725 = vmatmul.mubr.bf16.gmra.mrb[0].mxu0 %v649
        %v726 = vpop.f32.mrb[0].mxu0
        %v727 = vadd.f32 %v365, %v726
        %v728 = vpop.f32.mrb[0].mxu0
        %v729 = vadd.f32 %v365, %v728
        %v730 = vpop.f32.mrb[0].mxu0
        %v731 = vpop.f32.mrb[0].mxu0
        %732 = vdwg.mxu0
        %733 = vmatprep.subr.bf16.mxu0 %v540
        %734 = vmatpush1.bf16.msra.mxu0 %v539
        %735 = vmatprep.subr.bf16.mxu0 %v548
        %736 = vmatpush1.bf16.msra.mxu0 %v547
        %737 = vmatprep.subr.bf16.mxu0 %v556
        %738 = vmatpush1.bf16.msra.mxu0 %v555
        %739 = vmatprep.subr.bf16.mxu0 %v564
        %740 = vmatpush1.bf16.msra.mxu0 %v563
        %741 = vmatprep.subr.bf16.mxu0 %v572
        %742 = vmatpush1.bf16.msra.mxu0 %v571
        %743 = vmatprep.subr.bf16.mxu0 %v580
        %744 = vmatpush1.bf16.msra.mxu0 %v579
        %745 = vmatprep.subr.bf16.mxu0 %v588
        %746 = vmatpush1.bf16.msra.mxu0 %v587
        %747 = vmatprep.subr.bf16.mxu0 0
        %748 = vmatpush1.bf16.msra.mxu0 0
        %749 = vmatprep.subr.bf16.mxu0 0
        %750 = vmatpush1.bf16.msra.mxu0 0
        %751 = vmatprep.subr.bf16.mxu0 0
        %752 = vmatpush1.bf16.msra.mxu0 0
        %753 = vmatprep.subr.bf16.mxu0 0
        %754 = vmatpush1.bf16.msra.mxu0 0
        %755 = vmatprep.subr.bf16.mxu0 0
        %756 = vmatpush1.bf16.msra.mxu0 0
        %757 = vmatprep.subr.bf16.mxu0 0
        %758 = vmatpush1.bf16.msra.mxu0 0
        %759 = vmatprep.subr.bf16.mxu0 0
        %760 = vmatpush1.bf16.msra.mxu0 0
        %761 = vmatprep.subr.bf16.mxu0 0
        %762 = vmatpush1.bf16.msra.mxu0 0
        %763 = vmatprep.subr.bf16.mxu0 0
        %764 = vmatpush1.bf16.msra.mxu0 0
        %765 = vmatprep.mubr.bf16.mxu0 0
        %766 = vmatmul.mubr.bf16.gmra.mrb[0].mxu0 %v649
        %v767 = vpop.f32.mrb[0].mxu0
        %v768 = vadd.f32 %v365, %v767
        %v769 = vpop.f32.mrb[0].mxu0
        %v770 = vadd.f32 %v365, %v769
        %v771 = vpop.f32.mrb[0].mxu0
        %v772 = vpop.f32.mrb[0].mxu0
        %773 = vdwg.mxu0
        %774 = vmatprep.subr.bf16.mxu0 %v542
        %775 = vmatpush1.bf16.msra.mxu0 %v541
        %776 = vmatprep.subr.bf16.mxu0 %v550
        %777 = vmatpush1.bf16.msra.mxu0 %v549
        %778 = vmatprep.subr.bf16.mxu0 %v558
        %779 = vmatpush1.bf16.msra.mxu0 %v557
        %780 = vmatprep.subr.bf16.mxu0 %v566
        %781 = vmatpush1.bf16.msra.mxu0 %v565
        %782 = vmatprep.subr.bf16.mxu0 %v574
        %783 = vmatpush1.bf16.msra.mxu0 %v573
        %784 = vmatprep.subr.bf16.mxu0 %v582
        %785 = vmatpush1.bf16.msra.mxu0 %v581
        %786 = vmatprep.subr.bf16.mxu0 %v590
        %787 = vmatpush1.bf16.msra.mxu0 %v589
        %788 = vmatprep.subr.bf16.mxu0 0
        %789 = vmatpush1.bf16.msra.mxu0 0
        %790 = vmatprep.subr.bf16.mxu0 0
        %791 = vmatpush1.bf16.msra.mxu0 0
        %792 = vmatprep.subr.bf16.mxu0 0
        %793 = vmatpush1.bf16.msra.mxu0 0
        %794 = vmatprep.subr.bf16.mxu0 0
        %795 = vmatpush1.bf16.msra.mxu0 0
        %796 = vmatprep.subr.bf16.mxu0 0
        %797 = vmatpush1.bf16.msra.mxu0 0
        %798 = vmatprep.subr.bf16.mxu0 0
        %799 = vmatpush1.bf16.msra.mxu0 0
        %800 = vmatprep.subr.bf16.mxu0 0
        %801 = vmatpush1.bf16.msra.mxu0 0
        %802 = vmatprep.subr.bf16.mxu0 0
        %803 = vmatpush1.bf16.msra.mxu0 0
        %804 = vmatprep.subr.bf16.mxu0 0
        %805 = vmatpush1.bf16.msra.mxu0 0
        %806 = vmatprep.mubr.bf16.mxu0 0
        %807 = vmatmul.mubr.bf16.gmra.mrb[0].mxu0 %v649
        %v808 = vpop.f32.mrb[0].mxu0
        %v809 = vadd.f32 %v365, %v808
        %v810 = vpop.f32.mrb[0].mxu0
        %v811 = vadd.f32 %v365, %v810
        %v812 = vpop.f32.mrb[0].mxu0
        %v813 = vpop.f32.mrb[0].mxu0
        %814 = vdwg.mxu0
        %815 = vst [vmem:[%s301] sm:$0xff] %v686
        %816 = vst [vmem:[%s301 + $0x8] sm:$0xff] %v688
        %817 = vst [vmem:[%s301 + $0x10] sm:$0xff] %v727
        %818 = vst [vmem:[%s301 + $0x18] sm:$0xff] %v729
        %819 = vst [vmem:[%s301 + $0x20] sm:$0xff] %v768
        %820 = vst [vmem:[%s301 + $0x28] sm:$0xff] %v770
        %821 = vst [vmem:[%s301 + $0x30] sm:$0xff] %v809
        %822 = vst [vmem:[%s301 + $0x38] sm:$0xff] %v811
        %s823 = smul.u32 8, %s14
        %p824 = scmp.lt.s32.totalorder %s823, 159
        %s825 = scalar_select %p824, %s823, 159
        %s826 = smul.addr %s825, 8
        %s827 = scalar_lea.vmem %s3, %s826
        // Predicated region
        $region56: #{_lambda_.21} parent=50 // pred_check
          %p828 = pneg %p100
        $region57: #{_lambda_.21} parent=50 // pred_check_branch
          %830 = sbr.rel (%p828) target = $region59
        $region58: #{_lambda_.21} parent=50 // pred_region
          %s831 = smul.u32 8, %s14
        $region59: #{_lambda_.21} parent=50 // pred_fallthru
          _
      $region51: #{_lambda_.21} parent=5 // pred_fallthru
        _
      %p832 = scmp.le.s32.totalorder 2, %s9
      // Predicated region
      $region60: #{_lambda_.21} parent=5 // pred_check
        %p833 = pneg %p832
      $region61: #{_lambda_.21} parent=5 // pred_check_branch
        %835 = sbr.rel (%p833) target = $region63
      $region62: #{_lambda_.21} parent=5 // pred_region
        %s836 = ssub.s32 %s9, 2
        // Predicated region
        $region64: #{_lambda_.21} parent=62 // pred_check
          %p837 = pneg %p106
        $region65: #{_lambda_.21} parent=62 // pred_check_branch
          %839 = sbr.rel (%p837) target = $region67
        $region66: #{_lambda_.21} parent=62 // pred_region
          %s840 = smul.u32 8, %s15
          %p841 = scmp.lt.s32.totalorder %s840, 159
          %s842 = scalar_select %p841, %s840, 159
          %s843 = smul.addr %s842, 8
          %s844 = scalar_lea.vmem %s3, %s843
        $region67: #{_lambda_.21} parent=62 // pred_fallthru
          _
      $region63: #{_lambda_.21} parent=5 // pred_fallthru
        _
    $region6: #{_lambda_.21} parent=1 // loop_footer
      %s13 = sadd.s32 1, %s9
    $region7: #{_lambda_.21} parent=1 // loop_footer_branch
      %8 = sbr.rel target = $region3
    $region8: #{_lambda_.21} parent=1 // loop_exit
      _

</llo_original>
